<compile_context>
chip_gen: v5e
topology: v5e:2x2
jax: 0.10.0
libtpu: 0.0.40
codegen_flags: <defaults>
</compile_context>

<pallas_src>
import functools

import jax
import jax.numpy as jnp
from jax.experimental import pallas as pl
from jax.experimental.pallas import tpu as pltpu


# ---------------------------------------------------------------------------
# helpers
# ---------------------------------------------------------------------------
def _const_spec(shape):
    """BlockSpec covering the whole array (same block at every grid step)."""
    nd = len(shape)
    return pl.BlockSpec(shape, lambda b, _nd=nd: (0,) * _nd)


def _dense(key, fan_in, fan_out):
    """Deterministic Conv1d(k=1)-style init: uniform(-1/sqrt(fan_in), +)."""
    scale = 1.0 / (fan_in ** 0.5)
    kw, kb = jax.random.split(key)
    w = jax.random.uniform(kw, (fan_in, fan_out), jnp.float32, -scale, scale)
    b = jax.random.uniform(kb, (1, fan_out), jnp.float32, -scale, scale)
    return w, b


def _multi_tensorcore_chip():
    """True on chips whose TensorCores are fed by a 'parallel' grid axis (v7x-like)."""
    try:
        kind = jax.devices()[0].device_kind.lower()
    except Exception:
        return False
    return ("v7" in kind) or ("tpu7" in kind) or ("7x" in kind) or ("v4" in kind) or ("v5p" in kind)


_PN_KEYS = ("w1", "b1", "w2", "b2", "w3", "b3", "w4a", "w4b", "b4", "w5", "b5")
_DEC_KEYS = ("dec_w", "dec_b", "w6h", "b6h", "w7h", "b7h", "w8h", "b8h")


# ---------------------------------------------------------------------------
# fused Network kernel (nb batch elements per grid step)
# ---------------------------------------------------------------------------
def _network_kernel(scat_ref, pts_ref, geo_ref,
                    w1, b1, w2, b2, w3, b3, w4a, w4b, b4, w5, b5,
                    dec_w, dec_b, w6h, b6h, w7h, b7h, w8h, b8h,
                    out_ref):
    f32, bf16 = jnp.float32, jnp.bfloat16
    nb, nv, _ = pts_ref.shape
    hw = geo_ref.shape[1]
    cp = w5.shape[1]                                   # pose feature channels

    def lin(h_bf, w_ref, b_ref):
        return jnp.dot(h_bf, w_ref[...], preferred_element_type=f32) + b_ref[...]

    # ---- PointNet: shared per-point MLP on (nb*Nv) merged rows -------------
    pts = pts_ref[...].reshape(nb * nv, -1).astype(bf16)
    h1 = jax.nn.relu(lin(pts, w1, b1)).astype(bf16)              # (R, 64)
    h2 = jax.nn.relu(lin(h1, w2, b2)).astype(bf16)               # (R, 128)
    h3 = jax.nn.relu(lin(h2, w3, b3))                            # (R, 256) f32
    h3r = h3.reshape(nb, nv, -1)
    h1h = jnp.dot(h1, w4a[...],
                  preferred_element_type=f32).reshape(nb, nv, -1)

    # per-batch: global max-pool feature, PointNet head, scatter-as-matmul
    # (static unroll; nb is 1 on multi-TC chips, B on single-TC chips)
    scat = scat_ref[...]                                         # (HW, Nv) bf16
    pms = []
    for b in range(nb):
        g = jnp.max(h3r[b], axis=0, keepdims=True)               # (1, 256)
        # padded points repeat a real point, so the max is unchanged
        g4 = lin(g.astype(bf16), w4b, b4)                        # (1, 128)
        h4 = jax.nn.relu(h1h[b] + g4).astype(bf16)               # (Nv, 128)
        pose = lin(h4, w5, b5).astype(bf16)                      # (Nv, Cp)
        # one-hot scatter: padded / out-of-range columns are all-zero ->
        # dropped; pixels not in valid_idx stay 0 (matches reference
        # new_zeros scatter into the pose feature map).
        pms.append(jnp.dot(scat, pose, preferred_element_type=f32))   # (HW, Cp)
    xp = (pms[0] if nb == 1 else jnp.concatenate(pms, axis=0)).astype(bf16)
    xg = geo_ref[...].reshape(nb * hw, -1)                       # (nb*HW, Cg) bf16

    # ---- ShapeDecoder trunk (batches merged along rows) ---------------------
    # concat([pose_map, geometry_map]) realized by splitting the cin-input
    # layers into pose/geometry partial matmuls (no lane concat in kernel).
    # TODO(synk): BatchNorm1d layers of the original ShapeDecoder omitted
    # (class body not in the snippet); plain ReLU MLP used instead.
    def dlin(h_bf, i):
        return jnp.dot(h_bf, dec_w[i], preferred_element_type=f32) + dec_b[i:i + 1, :]

    dw1 = dec_w[0]
    f1 = jax.nn.relu(jnp.dot(xp, dw1[:cp], preferred_element_type=f32)
                     + jnp.dot(xg, dw1[cp:], preferred_element_type=f32)
                     + dec_b[0:1, :]).astype(bf16)
    f2 = jax.nn.relu(dlin(f1, 1)).astype(bf16)
    f3 = jax.nn.relu(dlin(f2, 2)).astype(bf16)
    dw4 = dec_w[3]
    f4 = jax.nn.relu(jnp.dot(xp, dw4[:cp], preferred_element_type=f32)
                     + jnp.dot(xg, dw4[cp:], preferred_element_type=f32)
                     + jnp.dot(f3, dec_w[4], preferred_element_type=f32)
                     + dec_b[3:4, :]).astype(bf16)
    f5 = jax.nn.relu(dlin(f4, 5)).astype(bf16)

    # ---- dual heads packed along N (lanes [0:hs]=residuals, [hs:2hs]=normals)
    h6 = jax.nn.relu(jnp.dot(f5, w6h[...], preferred_element_type=f32)
                     + b6h[...]).astype(bf16)                    # (R, 2hs)
    h7 = jax.nn.relu(jnp.dot(h6, w7h[...], preferred_element_type=f32)
                     + b7h[...]).astype(bf16)                    # (R, 2hs)
    out = jnp.dot(h7, w8h[...], preferred_element_type=f32) + b8h[...]
    # lane-dense packed output: cols 0:3 = residuals, cols 3:6 = normals, rest 0
    out_ref[...] = out.reshape(nb, hw, -1).astype(out_ref.dtype)


# ---------------------------------------------------------------------------
# parameter init (deterministic; packs decoder trunk + dual heads)
# ---------------------------------------------------------------------------
def init_params(key, input_channel=3, pose_feature_channel=64,
                geometry_feature_channel=64, hidden_size=128):
    keys = jax.random.split(key, 16)
    bf16 = jnp.bfloat16
    params = {}
    cin = pose_feature_channel + geometry_feature_channel

    # PointNet: per-point MLP 3->64->128->256, global max, head (64+256)->128->Cp
    c1, c2, cg, c4 = 64, 128, 256, 128
    w1, b1 = _dense(keys[0], input_channel, c1)
    in_pad = max(8, input_channel)                       # pad xyz lanes to 8
    w1 = jnp.concatenate([w1, jnp.zeros((in_pad - input_channel, c1))], axis=0)
    w2, b2 = _dense(keys[1], c1, c2)
    w3, b3 = _dense(keys[2], c2, cg)
    w4, b4 = _dense(keys[3], c1 + cg, c4)
    w5, b5 = _dense(keys[4], c4, pose_feature_channel)
    params["pointnet"] = dict(
        w1=w1.astype(bf16), b1=b1, w2=w2.astype(bf16), b2=b2,
        w3=w3.astype(bf16), b3=b3, w4a=w4[:c1].astype(bf16),
        w4b=w4[c1:].astype(bf16), b4=b4, w5=w5.astype(bf16), b5=b5)

    # ShapeDecoder: in = pose + geometry feature channels
    hs = hidden_size
    assert cin == hs, "packed decoder trunk assumes cin == hidden_size"
    d_w1, d_b1 = _dense(keys[5], cin, hs)
    d_w2, d_b2 = _dense(keys[6], hs, hs)
    d_w3, d_b3 = _dense(keys[7], hs, hs)
    d_w4, d_b4 = _dense(keys[8], cin + hs, hs)
    d_w5, d_b5 = _dense(keys[9], hs, hs)
    d_w6, d_b6 = _dense(keys[10], hs, hs)
    d_w7, d_b7 = _dense(keys[11], hs, hs)
    d_w8, d_b8 = _dense(keys[12], hs, 3)
    d_w6n, d_b6n = _dense(keys[13], hs, hs)
    d_w7n, d_b7n = _dense(keys[14], hs, hs)
    d_w8n, d_b8n = _dense(keys[15], hs, 3)

    # trunk stack: 0 w1, 1 w2, 2 w3, 3 w4(x-part), 4 w4(f3-part), 5 w5
    zb = jnp.zeros((1, hs))
    params["dec_w"] = jnp.stack(
        [d_w1, d_w2, d_w3, d_w4[:cin], d_w4[cin:], d_w5]).astype(bf16)
    params["dec_b"] = jnp.concatenate(
        [d_b1, d_b2, d_b3, d_b4, zb, d_b5], axis=0).astype(jnp.float32)

    # dual heads packed along N (=2*hs): layer6 hstack, layer7 block-diag,
    # layer8 vstack into a lane-dense (2hs, out_w) with cols 0:3 / 3:6 used
    out_w = hs
    params["w6h"] = jnp.concatenate([d_w6, d_w6n], axis=1).astype(bf16)
    params["b6h"] = jnp.concatenate([d_b6, d_b6n], axis=1).astype(jnp.float32)
    w7h = jnp.zeros((2 * hs, 2 * hs)).at[:hs, :hs].set(d_w7).at[hs:, hs:].set(d_w7n)
    params["w7h"] = w7h.astype(bf16)
    params["b7h"] = jnp.concatenate([d_b7, d_b7n], axis=1).astype(jnp.float32)
    w8h = jnp.zeros((2 * hs, out_w)).at[:hs, 0:3].set(d_w8).at[hs:, 3:6].set(d_w8n)
    params["w8h"] = w8h.astype(bf16)
    params["b8h"] = (jnp.zeros((1, out_w)).at[:, 0:3].set(d_b8)
                     .at[:, 3:6].set(d_b8n)).astype(jnp.float32)
    return params


# ---------------------------------------------------------------------------
# Network.forward
# ---------------------------------------------------------------------------
def network_forward(params, posmap, geometry_feature_map, uv_location,
                    pq_coords, valid_idx):
    B = posmap.shape[0]
    Bg, Cg, H, W = geometry_feature_map.shape
    HW = H * W

    in_pad = params["pointnet"]["w1"].shape[0]           # xyz padded to 8 lanes
    out_w = params["w8h"].shape[1]

    # posmap.reshape(B, -1, 3)[:, valid_idx, :]; pad Nv to a multiple of 16 by
    # repeating a real point (max-pool unchanged; its scatter column is zero).
    pts = posmap.reshape(B, -1, 3)[:, valid_idx, :]                 # (B, Nv0, 3)
    n_valid = pts.shape[1]
    nv = ((n_valid + 15) // 16) * 16
    pad = nv - n_valid
    if pad:
        pts = jnp.concatenate(
            [pts, jnp.broadcast_to(pts[:, -1:, :], (B, pad, 3))], axis=1)
    pts = jnp.concatenate(
        [pts, jnp.zeros((B, nv, in_pad - 3), pts.dtype)],
        axis=-1).astype(jnp.float32)                                # (B, Nv, 8)

    # batch-invariant one-hot scatter matrix, hoisted out of the kernel
    vid = valid_idx.astype(jnp.int32)
    if pad:
        vid = jnp.concatenate([vid, jnp.full((pad,), HW, jnp.int32)])
    scat = (jnp.arange(HW, dtype=jnp.int32)[:, None] == vid[None, :]
            ).astype(jnp.bfloat16)                                  # (HW, Nv)

    feature_resolution = H
    uv_resolution = int(uv_location.shape[1] ** 0.5)
    if feature_resolution != uv_resolution:
        # TODO(synk): bilinear F.grid_sample(uv_to_grid(...)) resampling branch
        # not implemented; test config keeps uv_resolution == feature_resolution.
        raise NotImplementedError("grid_sample resampling path not implemented")

    # channels-last bf16 geometry features (no zero padding -> 4x less DMA)
    geo = geometry_feature_map.reshape(Bg, Cg, HW).transpose(0, 2, 1)
    geo = geo.astype(jnp.bfloat16)                                  # (B, HW, Cg)

    # grid strategy: one batch per "parallel" step on multi-TC chips (v7x);
    # collapse the batch into a single step on single-TC chips (v5e/v6e) so
    # RHS weight pushes are amortized over B*rows and per-step overhead drops.
    # TODO(synk): for B == 1 on v7x an HW-split parallel axis would be needed
    # to occupy both TensorCores; not implemented at these small shapes.
    nb = 1 if (_multi_tensorcore_chip() and B > 1) else B
    grid = (B // nb,)

    pn = [params["pointnet"][k] for k in _PN_KEYS]
    dec = [params[k] for k in _DEC_KEYS]

    in_specs = ([_const_spec(scat.shape),
                 pl.BlockSpec((nb, nv, in_pad), lambda b: (b, 0, 0)),
                 pl.BlockSpec((nb, HW, Cg), lambda b: (b, 0, 0))]
                + [_const_spec(w.shape) for w in pn]
                + [_const_spec(w.shape) for w in dec])

    packed = pl.pallas_call(
        _network_kernel,
        out_shape=jax.ShapeDtypeStruct((B, HW, out_w), jnp.bfloat16),
        grid=grid,
        in_specs=in_specs,
        out_specs=pl.BlockSpec((nb, HW, out_w), lambda b: (b, 0, 0)),
        compiler_params=pltpu.CompilerParams(
            dimension_semantics=("parallel",)),
    )(scat, pts, geo, *pn, *dec)

    # (uv_location / pq_coords permutes in the reference forward are dead code:
    #  only pixel_feature feeds the decoder.)
    N_samples = 1
    residuals = packed[:, :, 0:3].astype(jnp.float32)
    normals = packed[:, :, 3:6].astype(jnp.float32)
    residuals = residuals.transpose(0, 2, 1).reshape(B, 3, H, W, N_samples)
    normals = normals.transpose(0, 2, 1).reshape(B, 3, H, W, N_samples)
    return residuals, normals


# ---------------------------------------------------------------------------
# main
# ---------------------------------------------------------------------------
if __name__ == "__main__":
    key = jax.random.PRNGKey(0)
    kp, k1, k2, k3, k4, k5 = jax.random.split(key, 6)

    B, H, W = 2, 16, 16
    input_channel = 3
    pose_feature_channel = 64
    geometry_feature_channel = 64
    hidden_size = 128
    n_valid = 200

    params = init_params(kp, input_channel, pose_feature_channel,
                         geometry_feature_channel, hidden_size)

    posmap = jax.random.normal(k1, (B, H, W, input_channel), jnp.float32)
    geometry_feature_map = jax.random.normal(
        k2, (B, geometry_feature_channel, H, W), jnp.float32)
    uv_location = jax.random.uniform(k3, (B, H * W, 2), dtype=jnp.float32)
    pq_coords = jax.random.uniform(k4, (B, H * W, 1, 2), dtype=jnp.float32)
    valid_idx = jnp.sort(jax.random.permutation(k5, H * W)[:n_valid])

    fwd = jax.jit(functools.partial(network_forward, params))
    residuals, normals = fwd(posmap, geometry_feature_map, uv_location,
                             pq_coords, valid_idx)
    jax.block_until_ready((residuals, normals))

    assert residuals.shape == (B, 3, H, W, 1), residuals.shape
    assert normals.shape == (B, 3, H, W, 1), normals.shape
    assert bool(jnp.all(jnp.isfinite(residuals))) and bool(jnp.all(jnp.isfinite(normals)))
    print("KERNEL_OK")
</pallas_src>

<mosaic_0001>
module attributes {stable_mosaic.version = 11 : i64} {
  func.func @_network_kernel(%arg0: i32, %arg1: memref<256x208xbf16, #tpu.memory_space<vmem>>, %arg2: memref<2x208x8xf32, #tpu.memory_space<vmem>>, %arg3: memref<2x256x64xbf16, #tpu.memory_space<vmem>>, %arg4: memref<8x64xbf16, #tpu.memory_space<vmem>>, %arg5: memref<1x64xf32, #tpu.memory_space<vmem>>, %arg6: memref<64x128xbf16, #tpu.memory_space<vmem>>, %arg7: memref<1x128xf32, #tpu.memory_space<vmem>>, %arg8: memref<128x256xbf16, #tpu.memory_space<vmem>>, %arg9: memref<1x256xf32, #tpu.memory_space<vmem>>, %arg10: memref<64x128xbf16, #tpu.memory_space<vmem>>, %arg11: memref<256x128xbf16, #tpu.memory_space<vmem>>, %arg12: memref<1x128xf32, #tpu.memory_space<vmem>>, %arg13: memref<128x64xbf16, #tpu.memory_space<vmem>>, %arg14: memref<1x64xf32, #tpu.memory_space<vmem>>, %arg15: memref<6x128x128xbf16, #tpu.memory_space<vmem>>, %arg16: memref<6x128xf32, #tpu.memory_space<vmem>>, %arg17: memref<128x256xbf16, #tpu.memory_space<vmem>>, %arg18: memref<1x256xf32, #tpu.memory_space<vmem>>, %arg19: memref<256x256xbf16, #tpu.memory_space<vmem>>, %arg20: memref<1x256xf32, #tpu.memory_space<vmem>>, %arg21: memref<256x128xbf16, #tpu.memory_space<vmem>>, %arg22: memref<1x128xf32, #tpu.memory_space<vmem>>, %arg23: memref<2x256x128xbf16, #tpu.memory_space<vmem>>) attributes {dimension_semantics = [#tpu.dimension_semantics<parallel>], iteration_bounds = array<i64: 1>, scalar_prefetch = 0 : i64, scratch_operands = 0 : i64, tpu.core_type = #tpu.core_type<tc>, window_params = [{pipeline_mode = #tpu.pipeline_mode<synchronous>, transform_indices = @transform_0, window_bounds = array<i64: 256, 208>}, {transform_indices = @transform_1, window_bounds = array<i64: 2, 208, 8>}, {transform_indices = @transform_2, window_bounds = array<i64: 2, 256, 64>}, {pipeline_mode = #tpu.pipeline_mode<synchronous>, transform_indices = @transform_3, window_bounds = array<i64: 8, 64>}, {pipeline_mode = #tpu.pipeline_mode<synchronous>, transform_indices = @transform_4, window_bounds = array<i64: 1, 64>}, {pipeline_mode = #tpu.pipeline_mode<synchronous>, transform_indices = @transform_5, window_bounds = array<i64: 64, 128>}, {pipeline_mode = #tpu.pipeline_mode<synchronous>, transform_indices = @transform_6, window_bounds = array<i64: 1, 128>}, {pipeline_mode = #tpu.pipeline_mode<synchronous>, transform_indices = @transform_7, window_bounds = array<i64: 128, 256>}, {pipeline_mode = #tpu.pipeline_mode<synchronous>, transform_indices = @transform_8, window_bounds = array<i64: 1, 256>}, {pipeline_mode = #tpu.pipeline_mode<synchronous>, transform_indices = @transform_9, window_bounds = array<i64: 64, 128>}, {pipeline_mode = #tpu.pipeline_mode<synchronous>, transform_indices = @transform_10, window_bounds = array<i64: 256, 128>}, {pipeline_mode = #tpu.pipeline_mode<synchronous>, transform_indices = @transform_11, window_bounds = array<i64: 1, 128>}, {pipeline_mode = #tpu.pipeline_mode<synchronous>, transform_indices = @transform_12, window_bounds = array<i64: 128, 64>}, {pipeline_mode = #tpu.pipeline_mode<synchronous>, transform_indices = @transform_13, window_bounds = array<i64: 1, 64>}, {pipeline_mode = #tpu.pipeline_mode<synchronous>, transform_indices = @transform_14, window_bounds = array<i64: 6, 128, 128>}, {pipeline_mode = #tpu.pipeline_mode<synchronous>, transform_indices = @transform_15, window_bounds = array<i64: 6, 128>}, {pipeline_mode = #tpu.pipeline_mode<synchronous>, transform_indices = @transform_16, window_bounds = array<i64: 128, 256>}, {pipeline_mode = #tpu.pipeline_mode<synchronous>, transform_indices = @transform_17, window_bounds = array<i64: 1, 256>}, {pipeline_mode = #tpu.pipeline_mode<synchronous>, transform_indices = @transform_18, window_bounds = array<i64: 256, 256>}, {pipeline_mode = #tpu.pipeline_mode<synchronous>, transform_indices = @transform_19, window_bounds = array<i64: 1, 256>}, {pipeline_mode = #tpu.pipeline_mode<synchronous>, transform_indices = @transform_20, window_bounds = array<i64: 256, 128>}, {pipeline_mode = #tpu.pipeline_mode<synchronous>, transform_indices = @transform_21, window_bounds = array<i64: 1, 128>}, {transform_indices = @transform_22, window_bounds = array<i64: 2, 256, 128>}]} {
    %c0 = arith.constant 0 : index
    %c0_0 = arith.constant 0 : index
    %c0_1 = arith.constant 0 : index
    %0 = vector.load %arg2[%c0, %c0_0, %c0_1] : memref<2x208x8xf32, #tpu.memory_space<vmem>>, vector<2x208x8xf32>
    %1 = vector.shape_cast %0 : vector<2x208x8xf32> to vector<416x8xf32>
    %2 = arith.truncf %1 : vector<416x8xf32> to vector<416x8xbf16>
    %c0_2 = arith.constant 0 : index
    %c0_3 = arith.constant 0 : index
    %3 = vector.load %arg4[%c0_2, %c0_3] : memref<8x64xbf16, #tpu.memory_space<vmem>>, vector<8x64xbf16>
    %cst = arith.constant dense<0.000000e+00> : vector<416x64xf32>
    %4 = tpu.matmul %2, %3, %cst {dimension_numbers = #tpu.dot_dimension_numbers<[1], [0], [0], [1], [0, 0, 1, 1], [], []>} : vector<416x8xbf16>, vector<8x64xbf16>, vector<416x64xf32> -> vector<416x64xf32>
    %c0_4 = arith.constant 0 : index
    %c0_5 = arith.constant 0 : index
    %5 = vector.load %arg5[%c0_4, %c0_5] : memref<1x64xf32, #tpu.memory_space<vmem>>, vector<1x64xf32>
    %6 = vector.broadcast %5 : vector<1x64xf32> to vector<416x64xf32>
    %7 = arith.addf %4, %6 : vector<416x64xf32>
    %cst_6 = arith.constant 0.000000e+00 : f32
    %8 = vector.broadcast %cst_6 : f32 to vector<416x64xf32>
    %9 = arith.maximumf %7, %8 : vector<416x64xf32>
    %10 = arith.truncf %9 : vector<416x64xf32> to vector<416x64xbf16>
    %c0_7 = arith.constant 0 : index
    %c0_8 = arith.constant 0 : index
    %11 = vector.load %arg6[%c0_7, %c0_8] : memref<64x128xbf16, #tpu.memory_space<vmem>>, vector<64x128xbf16>
    %cst_9 = arith.constant dense<0.000000e+00> : vector<416x128xf32>
    %12 = tpu.matmul %10, %11, %cst_9 {dimension_numbers = #tpu.dot_dimension_numbers<[1], [0], [0], [1], [0, 0, 1, 1], [], []>} : vector<416x64xbf16>, vector<64x128xbf16>, vector<416x128xf32> -> vector<416x128xf32>
    %c0_10 = arith.constant 0 : index
    %c0_11 = arith.constant 0 : index
    %13 = vector.load %arg7[%c0_10, %c0_11] : memref<1x128xf32, #tpu.memory_space<vmem>>, vector<1x128xf32>
    %14 = vector.broadcast %13 : vector<1x128xf32> to vector<416x128xf32>
    %15 = arith.addf %12, %14 : vector<416x128xf32>
    %cst_12 = arith.constant 0.000000e+00 : f32
    %16 = vector.broadcast %cst_12 : f32 to vector<416x128xf32>
    %17 = arith.maximumf %15, %16 : vector<416x128xf32>
    %18 = arith.truncf %17 : vector<416x128xf32> to vector<416x128xbf16>
    %c0_13 = arith.constant 0 : index
    %c0_14 = arith.constant 0 : index
    %19 = vector.load %arg8[%c0_13, %c0_14] : memref<128x256xbf16, #tpu.memory_space<vmem>>, vector<128x256xbf16>
    %cst_15 = arith.constant dense<0.000000e+00> : vector<416x256xf32>
    %20 = tpu.matmul %18, %19, %cst_15 {dimension_numbers = #tpu.dot_dimension_numbers<[1], [0], [0], [1], [0, 0, 1, 1], [], []>} : vector<416x128xbf16>, vector<128x256xbf16>, vector<416x256xf32> -> vector<416x256xf32>
    %c0_16 = arith.constant 0 : index
    %c0_17 = arith.constant 0 : index
    %21 = vector.load %arg9[%c0_16, %c0_17] : memref<1x256xf32, #tpu.memory_space<vmem>>, vector<1x256xf32>
    %22 = vector.broadcast %21 : vector<1x256xf32> to vector<416x256xf32>
    %23 = arith.addf %20, %22 : vector<416x256xf32>
    %cst_18 = arith.constant 0.000000e+00 : f32
    %24 = vector.broadcast %cst_18 : f32 to vector<416x256xf32>
    %25 = arith.maximumf %23, %24 : vector<416x256xf32>
    %26 = vector.shape_cast %25 : vector<416x256xf32> to vector<2x208x256xf32>
    %c0_19 = arith.constant 0 : index
    %c0_20 = arith.constant 0 : index
    %27 = vector.load %arg10[%c0_19, %c0_20] : memref<64x128xbf16, #tpu.memory_space<vmem>>, vector<64x128xbf16>
    %cst_21 = arith.constant dense<0.000000e+00> : vector<416x128xf32>
    %28 = tpu.matmul %10, %27, %cst_21 {dimension_numbers = #tpu.dot_dimension_numbers<[1], [0], [0], [1], [0, 0, 1, 1], [], []>} : vector<416x64xbf16>, vector<64x128xbf16>, vector<416x128xf32> -> vector<416x128xf32>
    %29 = vector.shape_cast %28 : vector<416x128xf32> to vector<2x208x128xf32>
    %c0_22 = arith.constant 0 : index
    %c0_23 = arith.constant 0 : index
    %30 = vector.load %arg1[%c0_22, %c0_23] : memref<256x208xbf16, #tpu.memory_space<vmem>>, vector<256x208xbf16>
    %31 = vector.extract_strided_slice %26 {offsets = [0, 0, 0], sizes = [1, 208, 256], strides = [1, 1, 1]} : vector<2x208x256xf32> to vector<1x208x256xf32>
    %32 = vector.shape_cast %31 : vector<1x208x256xf32> to vector<208x256xf32>
    %cst_24 = arith.constant dense<0xFF800000> : vector<256xf32>
    %33 = vector.multi_reduction <maximumf>, %32, %cst_24 [0] : vector<208x256xf32> to vector<256xf32>
    %34 = vector.shape_cast %33 : vector<256xf32> to vector<1x256xf32>
    %35 = arith.truncf %34 : vector<1x256xf32> to vector<1x256xbf16>
    %c0_25 = arith.constant 0 : index
    %c0_26 = arith.constant 0 : index
    %36 = vector.load %arg11[%c0_25, %c0_26] : memref<256x128xbf16, #tpu.memory_space<vmem>>, vector<256x128xbf16>
    %cst_27 = arith.constant dense<0.000000e+00> : vector<1x128xf32>
    %37 = tpu.matmul %35, %36, %cst_27 {dimension_numbers = #tpu.dot_dimension_numbers<[1], [0], [0], [1], [0, 0, 1, 1], [], []>} : vector<1x256xbf16>, vector<256x128xbf16>, vector<1x128xf32> -> vector<1x128xf32>
    %c0_28 = arith.constant 0 : index
    %c0_29 = arith.constant 0 : index
    %38 = vector.load %arg12[%c0_28, %c0_29] : memref<1x128xf32, #tpu.memory_space<vmem>>, vector<1x128xf32>
    %39 = arith.addf %37, %38 : vector<1x128xf32>
    %40 = vector.extract_strided_slice %29 {offsets = [0, 0, 0], sizes = [1, 208, 128], strides = [1, 1, 1]} : vector<2x208x128xf32> to vector<1x208x128xf32>
    %41 = vector.shape_cast %40 : vector<1x208x128xf32> to vector<208x128xf32>
    %42 = vector.broadcast %39 : vector<1x128xf32> to vector<208x128xf32>
    %43 = arith.addf %41, %42 : vector<208x128xf32>
    %cst_30 = arith.constant 0.000000e+00 : f32
    %44 = vector.broadcast %cst_30 : f32 to vector<208x128xf32>
    %45 = arith.maximumf %43, %44 : vector<208x128xf32>
    %46 = arith.truncf %45 : vector<208x128xf32> to vector<208x128xbf16>
    %c0_31 = arith.constant 0 : index
    %c0_32 = arith.constant 0 : index
    %47 = vector.load %arg13[%c0_31, %c0_32] : memref<128x64xbf16, #tpu.memory_space<vmem>>, vector<128x64xbf16>
    %cst_33 = arith.constant dense<0.000000e+00> : vector<208x64xf32>
    %48 = tpu.matmul %46, %47, %cst_33 {dimension_numbers = #tpu.dot_dimension_numbers<[1], [0], [0], [1], [0, 0, 1, 1], [], []>} : vector<208x128xbf16>, vector<128x64xbf16>, vector<208x64xf32> -> vector<208x64xf32>
    %c0_34 = arith.constant 0 : index
    %c0_35 = arith.constant 0 : index
    %49 = vector.load %arg14[%c0_34, %c0_35] : memref<1x64xf32, #tpu.memory_space<vmem>>, vector<1x64xf32>
    %50 = vector.broadcast %49 : vector<1x64xf32> to vector<208x64xf32>
    %51 = arith.addf %48, %50 : vector<208x64xf32>
    %52 = arith.truncf %51 : vector<208x64xf32> to vector<208x64xbf16>
    %cst_36 = arith.constant dense<0.000000e+00> : vector<256x64xf32>
    %53 = tpu.matmul %30, %52, %cst_36 {dimension_numbers = #tpu.dot_dimension_numbers<[1], [0], [0], [1], [0, 0, 1, 1], [], []>} : vector<256x208xbf16>, vector<208x64xbf16>, vector<256x64xf32> -> vector<256x64xf32>
    %54 = vector.extract_strided_slice %26 {offsets = [1, 0, 0], sizes = [1, 208, 256], strides = [1, 1, 1]} : vector<2x208x256xf32> to vector<1x208x256xf32>
    %55 = vector.shape_cast %54 : vector<1x208x256xf32> to vector<208x256xf32>
    %cst_37 = arith.constant dense<0xFF800000> : vector<256xf32>
    %56 = vector.multi_reduction <maximumf>, %55, %cst_37 [0] : vector<208x256xf32> to vector<256xf32>
    %57 = vector.shape_cast %56 : vector<256xf32> to vector<1x256xf32>
    %58 = arith.truncf %57 : vector<1x256xf32> to vector<1x256xbf16>
    %c0_38 = arith.constant 0 : index
    %c0_39 = arith.constant 0 : index
    %59 = vector.load %arg11[%c0_38, %c0_39] : memref<256x128xbf16, #tpu.memory_space<vmem>>, vector<256x128xbf16>
    %cst_40 = arith.constant dense<0.000000e+00> : vector<1x128xf32>
    %60 = tpu.matmul %58, %59, %cst_40 {dimension_numbers = #tpu.dot_dimension_numbers<[1], [0], [0], [1], [0, 0, 1, 1], [], []>} : vector<1x256xbf16>, vector<256x128xbf16>, vector<1x128xf32> -> vector<1x128xf32>
    %c0_41 = arith.constant 0 : index
    %c0_42 = arith.constant 0 : index
    %61 = vector.load %arg12[%c0_41, %c0_42] : memref<1x128xf32, #tpu.memory_space<vmem>>, vector<1x128xf32>
    %62 = arith.addf %60, %61 : vector<1x128xf32>
    %63 = vector.extract_strided_slice %29 {offsets = [1, 0, 0], sizes = [1, 208, 128], strides = [1, 1, 1]} : vector<2x208x128xf32> to vector<1x208x128xf32>
    %64 = vector.shape_cast %63 : vector<1x208x128xf32> to vector<208x128xf32>
    %65 = vector.broadcast %62 : vector<1x128xf32> to vector<208x128xf32>
    %66 = arith.addf %64, %65 : vector<208x128xf32>
    %cst_43 = arith.constant 0.000000e+00 : f32
    %67 = vector.broadcast %cst_43 : f32 to vector<208x128xf32>
    %68 = arith.maximumf %66, %67 : vector<208x128xf32>
    %69 = arith.truncf %68 : vector<208x128xf32> to vector<208x128xbf16>
    %c0_44 = arith.constant 0 : index
    %c0_45 = arith.constant 0 : index
    %70 = vector.load %arg13[%c0_44, %c0_45] : memref<128x64xbf16, #tpu.memory_space<vmem>>, vector<128x64xbf16>
    %cst_46 = arith.constant dense<0.000000e+00> : vector<208x64xf32>
    %71 = tpu.matmul %69, %70, %cst_46 {dimension_numbers = #tpu.dot_dimension_numbers<[1], [0], [0], [1], [0, 0, 1, 1], [], []>} : vector<208x128xbf16>, vector<128x64xbf16>, vector<208x64xf32> -> vector<208x64xf32>
    %c0_47 = arith.constant 0 : index
    %c0_48 = arith.constant 0 : index
    %72 = vector.load %arg14[%c0_47, %c0_48] : memref<1x64xf32, #tpu.memory_space<vmem>>, vector<1x64xf32>
    %73 = vector.broadcast %72 : vector<1x64xf32> to vector<208x64xf32>
    %74 = arith.addf %71, %73 : vector<208x64xf32>
    %75 = arith.truncf %74 : vector<208x64xf32> to vector<208x64xbf16>
    %cst_49 = arith.constant dense<0.000000e+00> : vector<256x64xf32>
    %76 = tpu.matmul %30, %75, %cst_49 {dimension_numbers = #tpu.dot_dimension_numbers<[1], [0], [0], [1], [0, 0, 1, 1], [], []>} : vector<256x208xbf16>, vector<208x64xbf16>, vector<256x64xf32> -> vector<256x64xf32>
    %77 = tpu.concatenate %53, %76 in 0 : vector<256x64xf32>, vector<256x64xf32> -> vector<512x64xf32>
    %78 = arith.truncf %77 : vector<512x64xf32> to vector<512x64xbf16>
    %c0_50 = arith.constant 0 : index
    %c0_51 = arith.constant 0 : index
    %c0_52 = arith.constant 0 : index
    %79 = vector.load %arg3[%c0_50, %c0_51, %c0_52] : memref<2x256x64xbf16, #tpu.memory_space<vmem>>, vector<2x256x64xbf16>
    %80 = vector.shape_cast %79 : vector<2x256x64xbf16> to vector<512x64xbf16>
    %c0_53 = arith.constant 0 : index
    %c0_54 = arith.constant 0 : index
    %c0_55 = arith.constant 0 : index
    %81 = vector.load %arg15[%c0_53, %c0_54, %c0_55] : memref<6x128x128xbf16, #tpu.memory_space<vmem>>, vector<1x128x128xbf16>
    %82 = vector.shape_cast %81 : vector<1x128x128xbf16> to vector<128x128xbf16>
    %83 = vector.extract_strided_slice %82 {offsets = [0, 0], sizes = [64, 128], strides = [1, 1]} : vector<128x128xbf16> to vector<64x128xbf16>
    %cst_56 = arith.constant dense<0.000000e+00> : vector<512x128xf32>
    %84 = tpu.matmul %78, %83, %cst_56 {dimension_numbers = #tpu.dot_dimension_numbers<[1], [0], [0], [1], [0, 0, 1, 1], [], []>} : vector<512x64xbf16>, vector<64x128xbf16>, vector<512x128xf32> -> vector<512x128xf32>
    %85 = vector.extract_strided_slice %82 {offsets = [64, 0], sizes = [64, 128], strides = [1, 1]} : vector<128x128xbf16> to vector<64x128xbf16>
    %cst_57 = arith.constant dense<0.000000e+00> : vector<512x128xf32>
    %86 = tpu.matmul %80, %85, %cst_57 {dimension_numbers = #tpu.dot_dimension_numbers<[1], [0], [0], [1], [0, 0, 1, 1], [], []>} : vector<512x64xbf16>, vector<64x128xbf16>, vector<512x128xf32> -> vector<512x128xf32>
    %87 = arith.addf %84, %86 : vector<512x128xf32>
    %c0_58 = arith.constant 0 : index
    %c0_59 = arith.constant 0 : index
    %88 = vector.load %arg16[%c0_58, %c0_59] : memref<6x128xf32, #tpu.memory_space<vmem>>, vector<1x128xf32>
    %89 = vector.broadcast %88 : vector<1x128xf32> to vector<512x128xf32>
    %90 = arith.addf %87, %89 : vector<512x128xf32>
    %cst_60 = arith.constant 0.000000e+00 : f32
    %91 = vector.broadcast %cst_60 : f32 to vector<512x128xf32>
    %92 = arith.maximumf %90, %91 : vector<512x128xf32>
    %93 = arith.truncf %92 : vector<512x128xf32> to vector<512x128xbf16>
    %c1 = arith.constant 1 : index
    %c0_61 = arith.constant 0 : index
    %c0_62 = arith.constant 0 : index
    %94 = vector.load %arg15[%c1, %c0_61, %c0_62] : memref<6x128x128xbf16, #tpu.memory_space<vmem>>, vector<1x128x128xbf16>
    %95 = vector.shape_cast %94 : vector<1x128x128xbf16> to vector<128x128xbf16>
    %cst_63 = arith.constant dense<0.000000e+00> : vector<512x128xf32>
    %96 = tpu.matmul %93, %95, %cst_63 {dimension_numbers = #tpu.dot_dimension_numbers<[1], [0], [0], [1], [0, 0, 1, 1], [], []>} : vector<512x128xbf16>, vector<128x128xbf16>, vector<512x128xf32> -> vector<512x128xf32>
    %c1_64 = arith.constant 1 : index
    %c0_65 = arith.constant 0 : index
    %97 = vector.load %arg16[%c1_64, %c0_65] : memref<6x128xf32, #tpu.memory_space<vmem>>, vector<1x128xf32>
    %98 = vector.broadcast %97 : vector<1x128xf32> to vector<512x128xf32>
    %99 = arith.addf %96, %98 : vector<512x128xf32>
    %cst_66 = arith.constant 0.000000e+00 : f32
    %100 = vector.broadcast %cst_66 : f32 to vector<512x128xf32>
    %101 = arith.maximumf %99, %100 : vector<512x128xf32>
    %102 = arith.truncf %101 : vector<512x128xf32> to vector<512x128xbf16>
    %c2 = arith.constant 2 : index
    %c0_67 = arith.constant 0 : index
    %c0_68 = arith.constant 0 : index
    %103 = vector.load %arg15[%c2, %c0_67, %c0_68] : memref<6x128x128xbf16, #tpu.memory_space<vmem>>, vector<1x128x128xbf16>
    %104 = vector.shape_cast %103 : vector<1x128x128xbf16> to vector<128x128xbf16>
    %cst_69 = arith.constant dense<0.000000e+00> : vector<512x128xf32>
    %105 = tpu.matmul %102, %104, %cst_69 {dimension_numbers = #tpu.dot_dimension_numbers<[1], [0], [0], [1], [0, 0, 1, 1], [], []>} : vector<512x128xbf16>, vector<128x128xbf16>, vector<512x128xf32> -> vector<512x128xf32>
    %c2_70 = arith.constant 2 : index
    %c0_71 = arith.constant 0 : index
    %106 = vector.load %arg16[%c2_70, %c0_71] : memref<6x128xf32, #tpu.memory_space<vmem>>, vector<1x128xf32>
    %107 = vector.broadcast %106 : vector<1x128xf32> to vector<512x128xf32>
    %108 = arith.addf %105, %107 : vector<512x128xf32>
    %cst_72 = arith.constant 0.000000e+00 : f32
    %109 = vector.broadcast %cst_72 : f32 to vector<512x128xf32>
    %110 = arith.maximumf %108, %109 : vector<512x128xf32>
    %111 = arith.truncf %110 : vector<512x128xf32> to vector<512x128xbf16>
    %c3 = arith.constant 3 : index
    %c0_73 = arith.constant 0 : index
    %c0_74 = arith.constant 0 : index
    %112 = vector.load %arg15[%c3, %c0_73, %c0_74] : memref<6x128x128xbf16, #tpu.memory_space<vmem>>, vector<1x128x128xbf16>
    %113 = vector.shape_cast %112 : vector<1x128x128xbf16> to vector<128x128xbf16>
    %114 = vector.extract_strided_slice %113 {offsets = [0, 0], sizes = [64, 128], strides = [1, 1]} : vector<128x128xbf16> to vector<64x128xbf16>
    %cst_75 = arith.constant dense<0.000000e+00> : vector<512x128xf32>
    %115 = tpu.matmul %78, %114, %cst_75 {dimension_numbers = #tpu.dot_dimension_numbers<[1], [0], [0], [1], [0, 0, 1, 1], [], []>} : vector<512x64xbf16>, vector<64x128xbf16>, vector<512x128xf32> -> vector<512x128xf32>
    %116 = vector.extract_strided_slice %113 {offsets = [64, 0], sizes = [64, 128], strides = [1, 1]} : vector<128x128xbf16> to vector<64x128xbf16>
    %cst_76 = arith.constant dense<0.000000e+00> : vector<512x128xf32>
    %117 = tpu.matmul %80, %116, %cst_76 {dimension_numbers = #tpu.dot_dimension_numbers<[1], [0], [0], [1], [0, 0, 1, 1], [], []>} : vector<512x64xbf16>, vector<64x128xbf16>, vector<512x128xf32> -> vector<512x128xf32>
    %118 = arith.addf %115, %117 : vector<512x128xf32>
    %c4 = arith.constant 4 : index
    %c0_77 = arith.constant 0 : index
    %c0_78 = arith.constant 0 : index
    %119 = vector.load %arg15[%c4, %c0_77, %c0_78] : memref<6x128x128xbf16, #tpu.memory_space<vmem>>, vector<1x128x128xbf16>
    %120 = vector.shape_cast %119 : vector<1x128x128xbf16> to vector<128x128xbf16>
    %cst_79 = arith.constant dense<0.000000e+00> : vector<512x128xf32>
    %121 = tpu.matmul %111, %120, %cst_79 {dimension_numbers = #tpu.dot_dimension_numbers<[1], [0], [0], [1], [0, 0, 1, 1], [], []>} : vector<512x128xbf16>, vector<128x128xbf16>, vector<512x128xf32> -> vector<512x128xf32>
    %122 = arith.addf %118, %121 : vector<512x128xf32>
    %c3_80 = arith.constant 3 : index
    %c0_81 = arith.constant 0 : index
    %123 = vector.load %arg16[%c3_80, %c0_81] : memref<6x128xf32, #tpu.memory_space<vmem>>, vector<1x128xf32>
    %124 = vector.broadcast %123 : vector<1x128xf32> to vector<512x128xf32>
    %125 = arith.addf %122, %124 : vector<512x128xf32>
    %cst_82 = arith.constant 0.000000e+00 : f32
    %126 = vector.broadcast %cst_82 : f32 to vector<512x128xf32>
    %127 = arith.maximumf %125, %126 : vector<512x128xf32>
    %128 = arith.truncf %127 : vector<512x128xf32> to vector<512x128xbf16>
    %c5 = arith.constant 5 : index
    %c0_83 = arith.constant 0 : index
    %c0_84 = arith.constant 0 : index
    %129 = vector.load %arg15[%c5, %c0_83, %c0_84] : memref<6x128x128xbf16, #tpu.memory_space<vmem>>, vector<1x128x128xbf16>
    %130 = vector.shape_cast %129 : vector<1x128x128xbf16> to vector<128x128xbf16>
    %cst_85 = arith.constant dense<0.000000e+00> : vector<512x128xf32>
    %131 = tpu.matmul %128, %130, %cst_85 {dimension_numbers = #tpu.dot_dimension_numbers<[1], [0], [0], [1], [0, 0, 1, 1], [], []>} : vector<512x128xbf16>, vector<128x128xbf16>, vector<512x128xf32> -> vector<512x128xf32>
    %c5_86 = arith.constant 5 : index
    %c0_87 = arith.constant 0 : index
    %132 = vector.load %arg16[%c5_86, %c0_87] : memref<6x128xf32, #tpu.memory_space<vmem>>, vector<1x128xf32>
    %133 = vector.broadcast %132 : vector<1x128xf32> to vector<512x128xf32>
    %134 = arith.addf %131, %133 : vector<512x128xf32>
    %cst_88 = arith.constant 0.000000e+00 : f32
    %135 = vector.broadcast %cst_88 : f32 to vector<512x128xf32>
    %136 = arith.maximumf %134, %135 : vector<512x128xf32>
    %137 = arith.truncf %136 : vector<512x128xf32> to vector<512x128xbf16>
    %c0_89 = arith.constant 0 : index
    %c0_90 = arith.constant 0 : index
    %138 = vector.load %arg17[%c0_89, %c0_90] : memref<128x256xbf16, #tpu.memory_space<vmem>>, vector<128x256xbf16>
    %cst_91 = arith.constant dense<0.000000e+00> : vector<512x256xf32>
    %139 = tpu.matmul %137, %138, %cst_91 {dimension_numbers = #tpu.dot_dimension_numbers<[1], [0], [0], [1], [0, 0, 1, 1], [], []>} : vector<512x128xbf16>, vector<128x256xbf16>, vector<512x256xf32> -> vector<512x256xf32>
    %c0_92 = arith.constant 0 : index
    %c0_93 = arith.constant 0 : index
    %140 = vector.load %arg18[%c0_92, %c0_93] : memref<1x256xf32, #tpu.memory_space<vmem>>, vector<1x256xf32>
    %141 = vector.broadcast %140 : vector<1x256xf32> to vector<512x256xf32>
    %142 = arith.addf %139, %141 : vector<512x256xf32>
    %cst_94 = arith.constant 0.000000e+00 : f32
    %143 = vector.broadcast %cst_94 : f32 to vector<512x256xf32>
    %144 = arith.maximumf %142, %143 : vector<512x256xf32>
    %145 = arith.truncf %144 : vector<512x256xf32> to vector<512x256xbf16>
    %c0_95 = arith.constant 0 : index
    %c0_96 = arith.constant 0 : index
    %146 = vector.load %arg19[%c0_95, %c0_96] : memref<256x256xbf16, #tpu.memory_space<vmem>>, vector<256x256xbf16>
    %cst_97 = arith.constant dense<0.000000e+00> : vector<512x256xf32>
    %147 = tpu.matmul %145, %146, %cst_97 {dimension_numbers = #tpu.dot_dimension_numbers<[1], [0], [0], [1], [0, 0, 1, 1], [], []>} : vector<512x256xbf16>, vector<256x256xbf16>, vector<512x256xf32> -> vector<512x256xf32>
    %c0_98 = arith.constant 0 : index
    %c0_99 = arith.constant 0 : index
    %148 = vector.load %arg20[%c0_98, %c0_99] : memref<1x256xf32, #tpu.memory_space<vmem>>, vector<1x256xf32>
    %149 = vector.broadcast %148 : vector<1x256xf32> to vector<512x256xf32>
    %150 = arith.addf %147, %149 : vector<512x256xf32>
    %cst_100 = arith.constant 0.000000e+00 : f32
    %151 = vector.broadcast %cst_100 : f32 to vector<512x256xf32>
    %152 = arith.maximumf %150, %151 : vector<512x256xf32>
    %153 = arith.truncf %152 : vector<512x256xf32> to vector<512x256xbf16>
    %c0_101 = arith.constant 0 : index
    %c0_102 = arith.constant 0 : index
    %154 = vector.load %arg21[%c0_101, %c0_102] : memref<256x128xbf16, #tpu.memory_space<vmem>>, vector<256x128xbf16>
    %cst_103 = arith.constant dense<0.000000e+00> : vector<512x128xf32>
    %155 = tpu.matmul %153, %154, %cst_103 {dimension_numbers = #tpu.dot_dimension_numbers<[1], [0], [0], [1], [0, 0, 1, 1], [], []>} : vector<512x256xbf16>, vector<256x128xbf16>, vector<512x128xf32> -> vector<512x128xf32>
    %c0_104 = arith.constant 0 : index
    %c0_105 = arith.constant 0 : index
    %156 = vector.load %arg22[%c0_104, %c0_105] : memref<1x128xf32, #tpu.memory_space<vmem>>, vector<1x128xf32>
    %157 = vector.broadcast %156 : vector<1x128xf32> to vector<512x128xf32>
    %158 = arith.addf %155, %157 : vector<512x128xf32>
    %159 = vector.shape_cast %158 : vector<512x128xf32> to vector<2x256x128xf32>
    %160 = arith.truncf %159 : vector<2x256x128xf32> to vector<2x256x128xbf16>
    %c0_106 = arith.constant 0 : index
    %c0_107 = arith.constant 0 : index
    %c0_108 = arith.constant 0 : index
    %161 = vector.load %arg23[%c0_106, %c0_107, %c0_108] : memref<2x256x128xbf16, #tpu.memory_space<vmem>>, vector<2x256x128xbf16>
    tpu.vector_store %arg23[%c0_106, %c0_107, %c0_108], %160 {strides = array<i32>} : memref<2x256x128xbf16, #tpu.memory_space<vmem>>, vector<2x256x128xbf16>,
    return
  }
  func.func @transform_0(%arg0: i32) -> (i32, i32) {
    %c0_i32 = arith.constant 0 : i32
    %c0_i32_0 = arith.constant 0 : i32
    %c0_i32_1 = arith.constant 0 : i32
    return %c0_i32, %c0_i32_0 : i32, i32
  }
  func.func @transform_1(%arg0: i32) -> (i32, i32, i32) {
    %c0_i32 = arith.constant 0 : i32
    %c0_i32_0 = arith.constant 0 : i32
    %c0_i32_1 = arith.constant 0 : i32
    return %arg0, %c0_i32, %c0_i32_0 : i32, i32, i32
  }
  func.func @transform_2(%arg0: i32) -> (i32, i32, i32) {
    %c0_i32 = arith.constant 0 : i32
    %c0_i32_0 = arith.constant 0 : i32
    %c0_i32_1 = arith.constant 0 : i32
    return %arg0, %c0_i32, %c0_i32_0 : i32, i32, i32
  }
  func.func @transform_3(%arg0: i32) -> (i32, i32) {
    %c0_i32 = arith.constant 0 : i32
    %c0_i32_0 = arith.constant 0 : i32
    %c0_i32_1 = arith.constant 0 : i32
    return %c0_i32, %c0_i32_0 : i32, i32
  }
  func.func @transform_4(%arg0: i32) -> (i32, i32) {
    %c0_i32 = arith.constant 0 : i32
    %c0_i32_0 = arith.constant 0 : i32
    %c0_i32_1 = arith.constant 0 : i32
    return %c0_i32, %c0_i32_0 : i32, i32
  }
  func.func @transform_5(%arg0: i32) -> (i32, i32) {
    %c0_i32 = arith.constant 0 : i32
    %c0_i32_0 = arith.constant 0 : i32
    %c0_i32_1 = arith.constant 0 : i32
    return %c0_i32, %c0_i32_0 : i32, i32
  }
  func.func @transform_6(%arg0: i32) -> (i32, i32) {
    %c0_i32 = arith.constant 0 : i32
    %c0_i32_0 = arith.constant 0 : i32
    %c0_i32_1 = arith.constant 0 : i32
    return %c0_i32, %c0_i32_0 : i32, i32
  }
  func.func @transform_7(%arg0: i32) -> (i32, i32) {
    %c0_i32 = arith.constant 0 : i32
    %c0_i32_0 = arith.constant 0 : i32
    %c0_i32_1 = arith.constant 0 : i32
    return %c0_i32, %c0_i32_0 : i32, i32
  }
  func.func @transform_8(%arg0: i32) -> (i32, i32) {
    %c0_i32 = arith.constant 0 : i32
    %c0_i32_0 = arith.constant 0 : i32
    %c0_i32_1 = arith.constant 0 : i32
    return %c0_i32, %c0_i32_0 : i32, i32
  }
  func.func @transform_9(%arg0: i32) -> (i32, i32) {
    %c0_i32 = arith.constant 0 : i32
    %c0_i32_0 = arith.constant 0 : i32
    %c0_i32_1 = arith.constant 0 : i32
    return %c0_i32, %c0_i32_0 : i32, i32
  }
  func.func @transform_10(%arg0: i32) -> (i32, i32) {
    %c0_i32 = arith.constant 0 : i32
    %c0_i32_0 = arith.constant 0 : i32
    %c0_i32_1 = arith.constant 0 : i32
    return %c0_i32, %c0_i32_0 : i32, i32
  }
  func.func @transform_11(%arg0: i32) -> (i32, i32) {
    %c0_i32 = arith.constant 0 : i32
    %c0_i32_0 = arith.constant 0 : i32
    %c0_i32_1 = arith.constant 0 : i32
    return %c0_i32, %c0_i32_0 : i32, i32
  }
  func.func @transform_12(%arg0: i32) -> (i32, i32) {
    %c0_i32 = arith.constant 0 : i32
    %c0_i32_0 = arith.constant 0 : i32
    %c0_i32_1 = arith.constant 0 : i32
    return %c0_i32, %c0_i32_0 : i32, i32
  }
  func.func @transform_13(%arg0: i32) -> (i32, i32) {
    %c0_i32 = arith.constant 0 : i32
    %c0_i32_0 = arith.constant 0 : i32
    %c0_i32_1 = arith.constant 0 : i32
    return %c0_i32, %c0_i32_0 : i32, i32
  }
  func.func @transform_14(%arg0: i32) -> (i32, i32, i32) {
    %c0_i32 = arith.constant 0 : i32
    %c0_i32_0 = arith.constant 0 : i32
    %c0_i32_1 = arith.constant 0 : i32
    %c0_i32_2 = arith.constant 0 : i32
    return %c0_i32, %c0_i32_0, %c0_i32_1 : i32, i32, i32
  }
  func.func @transform_15(%arg0: i32) -> (i32, i32) {
    %c0_i32 = arith.constant 0 : i32
    %c0_i32_0 = arith.constant 0 : i32
    %c0_i32_1 = arith.constant 0 : i32
    return %c0_i32, %c0_i32_0 : i32, i32
  }
  func.func @transform_16(%arg0: i32) -> (i32, i32) {
    %c0_i32 = arith.constant 0 : i32
    %c0_i32_0 = arith.constant 0 : i32
    %c0_i32_1 = arith.constant 0 : i32
    return %c0_i32, %c0_i32_0 : i32, i32
  }
  func.func @transform_17(%arg0: i32) -> (i32, i32) {
    %c0_i32 = arith.constant 0 : i32
    %c0_i32_0 = arith.constant 0 : i32
    %c0_i32_1 = arith.constant 0 : i32
    return %c0_i32, %c0_i32_0 : i32, i32
  }
  func.func @transform_18(%arg0: i32) -> (i32, i32) {
    %c0_i32 = arith.constant 0 : i32
    %c0_i32_0 = arith.constant 0 : i32
    %c0_i32_1 = arith.constant 0 : i32
    return %c0_i32, %c0_i32_0 : i32, i32
  }
  func.func @transform_19(%arg0: i32) -> (i32, i32) {
    %c0_i32 = arith.constant 0 : i32
    %c0_i32_0 = arith.constant 0 : i32
    %c0_i32_1 = arith.constant 0 : i32
    return %c0_i32, %c0_i32_0 : i32, i32
  }
  func.func @transform_20(%arg0: i32) -> (i32, i32) {
    %c0_i32 = arith.constant 0 : i32
    %c0_i32_0 = arith.constant 0 : i32
    %c0_i32_1 = arith.constant 0 : i32
    return %c0_i32, %c0_i32_0 : i32, i32
  }
  func.func @transform_21(%arg0: i32) -> (i32, i32) {
    %c0_i32 = arith.constant 0 : i32
    %c0_i32_0 = arith.constant 0 : i32
    %c0_i32_1 = arith.constant 0 : i32
    return %c0_i32, %c0_i32_0 : i32, i32
  }
  func.func @transform_22(%arg0: i32) -> (i32, i32, i32) {
    %c0_i32 = arith.constant 0 : i32
    %c0_i32_0 = arith.constant 0 : i32
    %c0_i32_1 = arith.constant 0 : i32
    return %arg0, %c0_i32, %c0_i32_0 : i32, i32, i32
  }
}

</mosaic_0001>

<llo_original>
// kernel: network_forward.1
$region0: #{network_forward.1}
  #allocation0 [shape = 'u32[]', space=smem, size = 0x4, offset = 0x4, fixed_abs, tag = 'smem constant byte address 0x4 - core index']
  #allocation1 [shape = 'u32[72,128]{1,0:T(1,128)}', space=vmem, size = 0x9000, scoped, tag = 'internal scratch']
  %s0 = inlined_call_operand.vmem [shape: bf16[256,208], index: 0, kind: input, shape index: {}]
  %s1 = inlined_call_operand.vmem [shape: f32[2,208,8], index: 1, kind: input, shape index: {}]
  %s2 = inlined_call_operand.vmem [shape: bf16[2,256,64], index: 2, kind: input, shape index: {}]
  %s3 = inlined_call_operand.vmem [shape: bf16[8,64], index: 3, kind: input, shape index: {}]
  %s4 = inlined_call_operand.vmem [shape: f32[1,64], index: 4, kind: input, shape index: {}]
  %s5 = inlined_call_operand.vmem [shape: bf16[64,128], index: 5, kind: input, shape index: {}]
  %s6 = inlined_call_operand.vmem [shape: f32[1,128], index: 6, kind: input, shape index: {}]
  %s7 = inlined_call_operand.vmem [shape: bf16[128,256], index: 7, kind: input, shape index: {}]
  %s8 = inlined_call_operand.vmem [shape: f32[1,256], index: 8, kind: input, shape index: {}]
  %s9 = inlined_call_operand.vmem [shape: bf16[64,128], index: 9, kind: input, shape index: {}]
  %s10 = inlined_call_operand.vmem [shape: bf16[256,128], index: 10, kind: input, shape index: {}]
  %s11 = inlined_call_operand.vmem [shape: f32[1,128], index: 11, kind: input, shape index: {}]
  %s12 = inlined_call_operand.vmem [shape: bf16[128,64], index: 12, kind: input, shape index: {}]
  %s13 = inlined_call_operand.vmem [shape: f32[1,64], index: 13, kind: input, shape index: {}]
  %s14 = inlined_call_operand.vmem [shape: bf16[6,128,128], index: 14, kind: input, shape index: {}]
  %s15 = inlined_call_operand.vmem [shape: f32[6,128], index: 15, kind: input, shape index: {}]
  %s16 = inlined_call_operand.vmem [shape: bf16[128,256], index: 16, kind: input, shape index: {}]
  %s17 = inlined_call_operand.vmem [shape: f32[1,256], index: 17, kind: input, shape index: {}]
  %s18 = inlined_call_operand.vmem [shape: bf16[256,256], index: 18, kind: input, shape index: {}]
  %s19 = inlined_call_operand.vmem [shape: f32[1,256], index: 19, kind: input, shape index: {}]
  %s20 = inlined_call_operand.vmem [shape: bf16[256,128], index: 20, kind: input, shape index: {}]
  %s21 = inlined_call_operand.vmem [shape: f32[1,128], index: 21, kind: input, shape index: {}]
  %s22 = inlined_call_operand.vmem [shape: bf16[2,256,128], index: 22, kind: output, shape index: {}]
  %s23 = sld [smem:[#allocation0]]
  $region98: #{network_forward.1} parent=0
    _
  %s25 = ssub.s32 1, %s23
  %s26 = scalar_select 0, %s25, %s23
  // Predicated region
  $region2: #{network_forward.1} parent=0 // pred_check
    _
  $region3: #{network_forward.1} parent=0 // pred_check_branch
    %28 = sbr.rel (0) target = $region5
  $region4: #{network_forward.1} parent=0 // pred_region
    _
  $region5: #{network_forward.1} parent=0 // pred_fallthru
    _
  // Predicated region
  $region6: #{network_forward.1} parent=0 // pred_check
    _
  $region7: #{network_forward.1} parent=0 // pred_check_branch
    %30 = sbr.rel (0) target = $region9
  $region8: #{network_forward.1} parent=0 // pred_region
    _
  $region9: #{network_forward.1} parent=0 // pred_fallthru
    _
  // Predicated region
  $region10: #{network_forward.1} parent=0 // pred_check
    _
  $region11: #{network_forward.1} parent=0 // pred_check_branch
    %32 = sbr.rel (0) target = $region13
  $region12: #{network_forward.1} parent=0 // pred_region
    _
  $region13: #{network_forward.1} parent=0 // pred_fallthru
    _
  // Predicated region
  $region14: #{network_forward.1} parent=0 // pred_check
    _
  $region15: #{network_forward.1} parent=0 // pred_check_branch
    %34 = sbr.rel (0) target = $region17
  $region16: #{network_forward.1} parent=0 // pred_region
    _
  $region17: #{network_forward.1} parent=0 // pred_fallthru
    _
  // Predicated region
  $region18: #{network_forward.1} parent=0 // pred_check
    _
  $region19: #{network_forward.1} parent=0 // pred_check_branch
    %36 = sbr.rel (0) target = $region21
  $region20: #{network_forward.1} parent=0 // pred_region
    _
  $region21: #{network_forward.1} parent=0 // pred_fallthru
    _
  // Predicated region
  $region22: #{network_forward.1} parent=0 // pred_check
    _
  $region23: #{network_forward.1} parent=0 // pred_check_branch
    %38 = sbr.rel (0) target = $region25
  $region24: #{network_forward.1} parent=0 // pred_region
    _
  $region25: #{network_forward.1} parent=0 // pred_fallthru
    _
  // Predicated region
  $region26: #{network_forward.1} parent=0 // pred_check
    _
  $region27: #{network_forward.1} parent=0 // pred_check_branch
    %40 = sbr.rel (0) target = $region29
  $region28: #{network_forward.1} parent=0 // pred_region
    _
  $region29: #{network_forward.1} parent=0 // pred_fallthru
    _
  // Predicated region
  $region30: #{network_forward.1} parent=0 // pred_check
    _
  $region31: #{network_forward.1} parent=0 // pred_check_branch
    %42 = sbr.rel (0) target = $region33
  $region32: #{network_forward.1} parent=0 // pred_region
    _
  $region33: #{network_forward.1} parent=0 // pred_fallthru
    _
  // Predicated region
  $region34: #{network_forward.1} parent=0 // pred_check
    _
  $region35: #{network_forward.1} parent=0 // pred_check_branch
    %44 = sbr.rel (0) target = $region37
  $region36: #{network_forward.1} parent=0 // pred_region
    _
  $region37: #{network_forward.1} parent=0 // pred_fallthru
    _
  // Predicated region
  $region38: #{network_forward.1} parent=0 // pred_check
    _
  $region39: #{network_forward.1} parent=0 // pred_check_branch
    %46 = sbr.rel (0) target = $region41
  $region40: #{network_forward.1} parent=0 // pred_region
    _
  $region41: #{network_forward.1} parent=0 // pred_fallthru
    _
  // Predicated region
  $region42: #{network_forward.1} parent=0 // pred_check
    _
  $region43: #{network_forward.1} parent=0 // pred_check_branch
    %48 = sbr.rel (0) target = $region45
  $region44: #{network_forward.1} parent=0 // pred_region
    _
  $region45: #{network_forward.1} parent=0 // pred_fallthru
    _
  // Predicated region
  $region46: #{network_forward.1} parent=0 // pred_check
    _
  $region47: #{network_forward.1} parent=0 // pred_check_branch
    %50 = sbr.rel (0) target = $region49
  $region48: #{network_forward.1} parent=0 // pred_region
    _
  $region49: #{network_forward.1} parent=0 // pred_fallthru
    _
  // Predicated region
  $region50: #{network_forward.1} parent=0 // pred_check
    _
  $region51: #{network_forward.1} parent=0 // pred_check_branch
    %52 = sbr.rel (0) target = $region53
  $region52: #{network_forward.1} parent=0 // pred_region
    _
  $region53: #{network_forward.1} parent=0 // pred_fallthru
    _
  // Predicated region
  $region54: #{network_forward.1} parent=0 // pred_check
    _
  $region55: #{network_forward.1} parent=0 // pred_check_branch
    %54 = sbr.rel (0) target = $region57
  $region56: #{network_forward.1} parent=0 // pred_region
    _
  $region57: #{network_forward.1} parent=0 // pred_fallthru
    _
  // Predicated region
  $region58: #{network_forward.1} parent=0 // pred_check
    _
  $region59: #{network_forward.1} parent=0 // pred_check_branch
    %56 = sbr.rel (0) target = $region61
  $region60: #{network_forward.1} parent=0 // pred_region
    _
  $region61: #{network_forward.1} parent=0 // pred_fallthru
    _
  // Predicated region
  $region62: #{network_forward.1} parent=0 // pred_check
    _
  $region63: #{network_forward.1} parent=0 // pred_check_branch
    %58 = sbr.rel (0) target = $region65
  $region64: #{network_forward.1} parent=0 // pred_region
    _
  $region65: #{network_forward.1} parent=0 // pred_fallthru
    _
  // Predicated region
  $region66: #{network_forward.1} parent=0 // pred_check
    _
  $region67: #{network_forward.1} parent=0 // pred_check_branch
    %60 = sbr.rel (0) target = $region69
  $region68: #{network_forward.1} parent=0 // pred_region
    _
  $region69: #{network_forward.1} parent=0 // pred_fallthru
    _
  // Predicated region
  $region70: #{network_forward.1} parent=0 // pred_check
    _
  $region71: #{network_forward.1} parent=0 // pred_check_branch
    %62 = sbr.rel (0) target = $region73
  $region72: #{network_forward.1} parent=0 // pred_region
    _
  $region73: #{network_forward.1} parent=0 // pred_fallthru
    _
  // Predicated region
  $region74: #{network_forward.1} parent=0 // pred_check
    _
  $region75: #{network_forward.1} parent=0 // pred_check_branch
    %64 = sbr.rel (0) target = $region77
  $region76: #{network_forward.1} parent=0 // pred_region
    _
  $region77: #{network_forward.1} parent=0 // pred_fallthru
    _
  // Predicated region
  $region78: #{network_forward.1} parent=0 // pred_check
    _
  $region79: #{network_forward.1} parent=0 // pred_check_branch
    %66 = sbr.rel (0) target = $region81
  $region80: #{network_forward.1} parent=0 // pred_region
    _
  $region81: #{network_forward.1} parent=0 // pred_fallthru
    _
  // Predicated region
  $region82: #{network_forward.1} parent=0 // pred_check
    _
  $region83: #{network_forward.1} parent=0 // pred_check_branch
    %68 = sbr.rel (0) target = $region85
  $region84: #{network_forward.1} parent=0 // pred_region
    _
  $region85: #{network_forward.1} parent=0 // pred_fallthru
    _
  // Predicated region
  $region86: #{network_forward.1} parent=0 // pred_check
    _
  $region87: #{network_forward.1} parent=0 // pred_check_branch
    %70 = sbr.rel (0) target = $region89
  $region88: #{network_forward.1} parent=0 // pred_region
    _
  $region89: #{network_forward.1} parent=0 // pred_fallthru
    _
  %v72 = vld [vmem:[%s1] sm:$0xff]
  %v73 = vld [vmem:[%s1 + $0x8] sm:$0xff]
  %v74 = vld [vmem:[%s1 + $0x10] sm:$0xff]
  %v75 = vld [vmem:[%s1 + $0x18] sm:$0xff]
  %v76 = vld [vmem:[%s1 + $0x20] sm:$0xff]
  %v77 = vld [vmem:[%s1 + $0x28] sm:$0xff]
  %v78 = vld [vmem:[%s1 + $0x30] sm:$0xff]
  %v79 = vld [vmem:[%s1 + $0x38] sm:$0xff]
  %v80 = vld [vmem:[%s1 + $0x40] sm:$0xff]
  %v81 = vld [vmem:[%s1 + $0x48] sm:$0xff]
  %v82 = vld [vmem:[%s1 + $0x50] sm:$0xff]
  %v83 = vld [vmem:[%s1 + $0x58] sm:$0xff]
  %v84 = vld [vmem:[%s1 + $0x60] sm:$0xff]
  %v85 = vld [vmem:[%s1 + $0x68] sm:$0xff]
  %v86 = vld [vmem:[%s1 + $0x70] sm:$0xff]
  %v87 = vld [vmem:[%s1 + $0x78] sm:$0xff]
  %v88 = vld [vmem:[%s1 + $0x80] sm:$0xff]
  %v89 = vld [vmem:[%s1 + $0x88] sm:$0xff]
  %v90 = vld [vmem:[%s1 + $0x90] sm:$0xff]
  %v91 = vld [vmem:[%s1 + $0x98] sm:$0xff]
  %v92 = vld [vmem:[%s1 + $0xa0] sm:$0xff]
  %v93 = vld [vmem:[%s1 + $0xa8] sm:$0xff]
  %v94 = vld [vmem:[%s1 + $0xb0] sm:$0xff]
  %v95 = vld [vmem:[%s1 + $0xb8] sm:$0xff]
  %v96 = vld [vmem:[%s1 + $0xc0] sm:$0xff]
  %v97 = vld [vmem:[%s1 + $0xc8] sm:$0xff]
  %v98 = vld [vmem:[%s1 + $0xd0] sm:$0xff]
  %v99 = vld [vmem:[%s1 + $0xd8] sm:$0xff]
  %v100 = vld [vmem:[%s1 + $0xe0] sm:$0xff]
  %v101 = vld [vmem:[%s1 + $0xe8] sm:$0xff]
  %v102 = vld [vmem:[%s1 + $0xf0] sm:$0xff]
  %v103 = vld [vmem:[%s1 + $0xf8] sm:$0xff]
  %v104 = vld [vmem:[%s1 + $0x100] sm:$0xff]
  %v105 = vld [vmem:[%s1 + $0x108] sm:$0xff]
  %v106 = vld [vmem:[%s1 + $0x110] sm:$0xff]
  %v107 = vld [vmem:[%s1 + $0x118] sm:$0xff]
  %v108 = vld [vmem:[%s1 + $0x120] sm:$0xff]
  %v109 = vld [vmem:[%s1 + $0x128] sm:$0xff]
  %v110 = vld [vmem:[%s1 + $0x130] sm:$0xff]
  %v111 = vld [vmem:[%s1 + $0x138] sm:$0xff]
  %v112 = vld [vmem:[%s1 + $0x140] sm:$0xff]
  %v113 = vld [vmem:[%s1 + $0x148] sm:$0xff]
  %v114 = vld [vmem:[%s1 + $0x150] sm:$0xff]
  %v115 = vld [vmem:[%s1 + $0x158] sm:$0xff]
  %v116 = vld [vmem:[%s1 + $0x160] sm:$0xff]
  %v117 = vld [vmem:[%s1 + $0x168] sm:$0xff]
  %v118 = vld [vmem:[%s1 + $0x170] sm:$0xff]
  %v119 = vld [vmem:[%s1 + $0x178] sm:$0xff]
  %v120 = vld [vmem:[%s1 + $0x180] sm:$0xff]
  %v121 = vld [vmem:[%s1 + $0x188] sm:$0xff]
  %v122 = vld [vmem:[%s1 + $0x190] sm:$0xff]
  %v123 = vld [vmem:[%s1 + $0x198] sm:$0xff]
  %v124 = vpack.c.bf16 %v73, %v72
  %v125 = vpack.c.bf16 %v75, %v74
  %v126 = vpack.c.bf16 %v77, %v76
  %v127 = vpack.c.bf16 %v79, %v78
  %v128 = vpack.c.bf16 %v81, %v80
  %v129 = vpack.c.bf16 %v83, %v82
  %v130 = vpack.c.bf16 %v85, %v84
  %v131 = vpack.c.bf16 %v87, %v86
  %v132 = vpack.c.bf16 %v89, %v88
  %v133 = vpack.c.bf16 %v91, %v90
  %v134 = vpack.c.bf16 %v93, %v92
  %v135 = vpack.c.bf16 %v95, %v94
  %v136 = vpack.c.bf16 %v97, %v96
  %v137 = vpack.c.bf16 %v99, %v98
  %v138 = vpack.c.bf16 %v101, %v100
  %v139 = vpack.c.bf16 %v103, %v102
  %v140 = vpack.c.bf16 %v105, %v104
  %v141 = vpack.c.bf16 %v107, %v106
  %v142 = vpack.c.bf16 %v109, %v108
  %v143 = vpack.c.bf16 %v111, %v110
  %v144 = vpack.c.bf16 %v113, %v112
  %v145 = vpack.c.bf16 %v115, %v114
  %v146 = vpack.c.bf16 %v117, %v116
  %v147 = vpack.c.bf16 %v119, %v118
  %v148 = vpack.c.bf16 %v121, %v120
  %v149 = vpack.c.bf16 %v123, %v122
  %v150 = vld [vmem:[%s3] sm:$0xf]
  %v151 = vld [vmem:[%s4] sm:$0x1]
  %v153 = vperm.slane %v151, 0
  %vm155 = vcmask 64512
  %v157 = vsel %vm155, %v124, 0
  %v160 = vsel %vm155, %v125, 0
  %v163 = vsel %vm155, %v126, 0
  %v166 = vsel %vm155, %v127, 0
  %v169 = vsel %vm155, %v128, 0
  %v172 = vsel %vm155, %v129, 0
  %v175 = vsel %vm155, %v130, 0
  %v178 = vsel %vm155, %v131, 0
  %v181 = vsel %vm155, %v132, 0
  %v184 = vsel %vm155, %v133, 0
  %v187 = vsel %vm155, %v134, 0
  %v190 = vsel %vm155, %v135, 0
  %v193 = vsel %vm155, %v136, 0
  %v196 = vsel %vm155, %v137, 0
  %v199 = vsel %vm155, %v138, 0
  %v202 = vsel %vm155, %v139, 0
  %v205 = vsel %vm155, %v140, 0
  %v208 = vsel %vm155, %v141, 0
  %v211 = vsel %vm155, %v142, 0
  %v214 = vsel %vm155, %v143, 0
  %v217 = vsel %vm155, %v144, 0
  %v220 = vsel %vm155, %v145, 0
  %v223 = vsel %vm155, %v146, 0
  %v226 = vsel %vm155, %v147, 0
  %v229 = vsel %vm155, %v148, 0
  %v232 = vsel %vm155, %v149, 0
  %vm234 = vcmask 1043456
  %v236 = vsel %vm234, %v150, 0
  %238 = vmatpush.bf16.msra.mxu0 0
  %239 = vmatpush.bf16.msra.mxu0 0
  %240 = vmatpush.bf16.msra.mxu0 0
  %241 = vmatpush.bf16.msra.mxu0 0
  %242 = vmatpush.bf16.msra.mxu0 0
  %243 = vmatpush.bf16.msra.mxu0 0
  %244 = vmatpush.bf16.msra.mxu0 0
  %245 = vmatpush.bf16.msra.mxu0 %v236
  %246 = vmatmul.bf16.gmra.mxu0 %v157
  %v247 = vpop.f32.mrf.mxu0
  %v248 = vadd.f32 %v153, %v247
  %v249 = vpop.f32.mrf.mxu0
  %v250 = vadd.f32 %v153, %v249
  %251 = vmatmul.bf16.gmra.mxu0 %v160
  %v252 = vpop.f32.mrf.mxu0
  %v253 = vadd.f32 %v153, %v252
  %v254 = vpop.f32.mrf.mxu0
  %v255 = vadd.f32 %v153, %v254
  %256 = vmatmul.bf16.gmra.mxu0 %v163
  %v257 = vpop.f32.mrf.mxu0
  %v258 = vadd.f32 %v153, %v257
  %v259 = vpop.f32.mrf.mxu0
  %v260 = vadd.f32 %v153, %v259
  %261 = vmatmul.bf16.gmra.mxu0 %v166
  %v262 = vpop.f32.mrf.mxu0
  %v263 = vadd.f32 %v153, %v262
  %v264 = vpop.f32.mrf.mxu0
  %v265 = vadd.f32 %v153, %v264
  %266 = vmatmul.bf16.gmra.mxu0 %v169
  %v267 = vpop.f32.mrf.mxu0
  %v268 = vadd.f32 %v153, %v267
  %v269 = vpop.f32.mrf.mxu0
  %v270 = vadd.f32 %v153, %v269
  %271 = vmatmul.bf16.gmra.mxu0 %v172
  %v272 = vpop.f32.mrf.mxu0
  %v273 = vadd.f32 %v153, %v272
  %v274 = vpop.f32.mrf.mxu0
  %v275 = vadd.f32 %v153, %v274
  %276 = vmatmul.bf16.gmra.mxu0 %v175
  %v277 = vpop.f32.mrf.mxu0
  %v278 = vadd.f32 %v153, %v277
  %v279 = vpop.f32.mrf.mxu0
  %v280 = vadd.f32 %v153, %v279
  %281 = vmatmul.bf16.gmra.mxu0 %v178
  %v282 = vpop.f32.mrf.mxu0
  %v283 = vadd.f32 %v153, %v282
  %v284 = vpop.f32.mrf.mxu0
  %v285 = vadd.f32 %v153, %v284
  %286 = vmatmul.bf16.gmra.mxu0 %v181
  %v287 = vpop.f32.mrf.mxu0
  %v288 = vadd.f32 %v153, %v287
  %v289 = vpop.f32.mrf.mxu0
  %v290 = vadd.f32 %v153, %v289
  %291 = vmatmul.bf16.gmra.mxu0 %v184
  %v292 = vpop.f32.mrf.mxu0
  %v293 = vadd.f32 %v153, %v292
  %v294 = vpop.f32.mrf.mxu0
  %v295 = vadd.f32 %v153, %v294
  %296 = vmatmul.bf16.gmra.mxu0 %v187
  %v297 = vpop.f32.mrf.mxu0
  %v298 = vadd.f32 %v153, %v297
  %v299 = vpop.f32.mrf.mxu0
  %v300 = vadd.f32 %v153, %v299
  %301 = vmatmul.bf16.gmra.mxu0 %v190
  %v302 = vpop.f32.mrf.mxu0
  %v303 = vadd.f32 %v153, %v302
  %v304 = vpop.f32.mrf.mxu0
  %v305 = vadd.f32 %v153, %v304
  %306 = vmatmul.bf16.gmra.mxu0 %v193
  %v307 = vpop.f32.mrf.mxu0
  %v308 = vadd.f32 %v153, %v307
  %v309 = vpop.f32.mrf.mxu0
  %v310 = vadd.f32 %v153, %v309
  %311 = vmatmul.bf16.gmra.mxu0 %v196
  %v312 = vpop.f32.mrf.mxu0
  %v313 = vadd.f32 %v153, %v312
  %v314 = vpop.f32.mrf.mxu0
  %v315 = vadd.f32 %v153, %v314
  %316 = vmatmul.bf16.gmra.mxu0 %v199
  %v317 = vpop.f32.mrf.mxu0
  %v318 = vadd.f32 %v153, %v317
  %v319 = vpop.f32.mrf.mxu0
  %v320 = vadd.f32 %v153, %v319
  %321 = vmatmul.bf16.gmra.mxu0 %v202
  %v322 = vpop.f32.mrf.mxu0
  %v323 = vadd.f32 %v153, %v322
  %v324 = vpop.f32.mrf.mxu0
  %v325 = vadd.f32 %v153, %v324
  %326 = vmatmul.bf16.gmra.mxu0 %v205
  %v327 = vpop.f32.mrf.mxu0
  %v328 = vadd.f32 %v153, %v327
  %v329 = vpop.f32.mrf.mxu0
  %v330 = vadd.f32 %v153, %v329
  %331 = vmatmul.bf16.gmra.mxu0 %v208
  %v332 = vpop.f32.mrf.mxu0
  %v333 = vadd.f32 %v153, %v332
  %v334 = vpop.f32.mrf.mxu0
  %v335 = vadd.f32 %v153, %v334
  %336 = vmatmul.bf16.gmra.mxu0 %v211
  %v337 = vpop.f32.mrf.mxu0
  %v338 = vadd.f32 %v153, %v337
  %v339 = vpop.f32.mrf.mxu0
  %v340 = vadd.f32 %v153, %v339
  %341 = vmatmul.bf16.gmra.mxu0 %v214
  %v342 = vpop.f32.mrf.mxu0
  %v343 = vadd.f32 %v153, %v342
  %v344 = vpop.f32.mrf.mxu0
  %v345 = vadd.f32 %v153, %v344
  %346 = vmatmul.bf16.gmra.mxu0 %v217
  %v347 = vpop.f32.mrf.mxu0
  %v348 = vadd.f32 %v153, %v347
  %v349 = vpop.f32.mrf.mxu0
  %v350 = vadd.f32 %v153, %v349
  %351 = vmatmul.bf16.gmra.mxu0 %v220
  %v352 = vpop.f32.mrf.mxu0
  %v353 = vadd.f32 %v153, %v352
  %v354 = vpop.f32.mrf.mxu0
  %v355 = vadd.f32 %v153, %v354
  %356 = vmatmul.bf16.gmra.mxu0 %v223
  %v357 = vpop.f32.mrf.mxu0
  %v358 = vadd.f32 %v153, %v357
  %v359 = vpop.f32.mrf.mxu0
  %v360 = vadd.f32 %v153, %v359
  %361 = vmatmul.bf16.gmra.mxu0 %v226
  %v362 = vpop.f32.mrf.mxu0
  %v363 = vadd.f32 %v153, %v362
  %v364 = vpop.f32.mrf.mxu0
  %v365 = vadd.f32 %v153, %v364
  %366 = vmatmul.bf16.gmra.mxu0 %v229
  %v367 = vpop.f32.mrf.mxu0
  %v368 = vadd.f32 %v153, %v367
  %v369 = vpop.f32.mrf.mxu0
  %v370 = vadd.f32 %v153, %v369
  %371 = vmatmul.bf16.gmra.mxu0 %v232
  %v372 = vpop.f32.mrf.mxu0
  %v373 = vadd.f32 %v153, %v372
  %v374 = vpop.f32.mrf.mxu0
  %v375 = vadd.f32 %v153, %v374
  %376 = vdwg.mxu0
  %v377 = vmax.f32 %v248, 0.0
  %v378 = vmax.f32 %v250, 0.0
  %v379 = vmax.f32 %v253, 0.0
  %v380 = vmax.f32 %v255, 0.0
  %v381 = vmax.f32 %v258, 0.0
  %v382 = vmax.f32 %v260, 0.0
  %v383 = vmax.f32 %v263, 0.0
  %v384 = vmax.f32 %v265, 0.0
  %v385 = vmax.f32 %v268, 0.0
  %v386 = vmax.f32 %v270, 0.0
  %v387 = vmax.f32 %v273, 0.0
  %v388 = vmax.f32 %v275, 0.0
  %v389 = vmax.f32 %v278, 0.0
  %v390 = vmax.f32 %v280, 0.0
  %v391 = vmax.f32 %v283, 0.0
  %v392 = vmax.f32 %v285, 0.0
  %v393 = vmax.f32 %v288, 0.0
  %v394 = vmax.f32 %v290, 0.0
  %v395 = vmax.f32 %v293, 0.0
  %v396 = vmax.f32 %v295, 0.0
  %v397 = vmax.f32 %v298, 0.0
  %v398 = vmax.f32 %v300, 0.0
  %v399 = vmax.f32 %v303, 0.0
  %v400 = vmax.f32 %v305, 0.0
  %v401 = vmax.f32 %v308, 0.0
  %v402 = vmax.f32 %v310, 0.0
  %v403 = vmax.f32 %v313, 0.0
  %v404 = vmax.f32 %v315, 0.0
  %v405 = vmax.f32 %v318, 0.0
  %v406 = vmax.f32 %v320, 0.0
  %v407 = vmax.f32 %v323, 0.0
  %v408 = vmax.f32 %v325, 0.0
  %v409 = vmax.f32 %v328, 0.0
  %v410 = vmax.f32 %v330, 0.0
  %v411 = vmax.f32 %v333, 0.0
  %v412 = vmax.f32 %v335, 0.0
  %v413 = vmax.f32 %v338, 0.0
  %v414 = vmax.f32 %v340, 0.0
  %v415 = vmax.f32 %v343, 0.0
  %v416 = vmax.f32 %v345, 0.0
  %v417 = vmax.f32 %v348, 0.0
  %v418 = vmax.f32 %v350, 0.0
  %v419 = vmax.f32 %v353, 0.0
  %v420 = vmax.f32 %v355, 0.0
  %v421 = vmax.f32 %v358, 0.0
  %v422 = vmax.f32 %v360, 0.0
  %v423 = vmax.f32 %v363, 0.0
  %v424 = vmax.f32 %v365, 0.0
  %v425 = vmax.f32 %v368, 0.0
  %v426 = vmax.f32 %v370, 0.0
  %v427 = vmax.f32 %v373, 0.0
  %v428 = vmax.f32 %v375, 0.0
  %v429 = vpack.c.bf16 %v378, %v377
  %v430 = vpack.c.bf16 %v380, %v379
  %v431 = vpack.c.bf16 %v382, %v381
  %v432 = vpack.c.bf16 %v384, %v383
  %v433 = vpack.c.bf16 %v386, %v385
  %v434 = vpack.c.bf16 %v388, %v387
  %v435 = vpack.c.bf16 %v390, %v389
  %v436 = vpack.c.bf16 %v392, %v391
  %v437 = vpack.c.bf16 %v394, %v393
  %v438 = vpack.c.bf16 %v396, %v395
  %v439 = vpack.c.bf16 %v398, %v397
  %v440 = vpack.c.bf16 %v400, %v399
  %v441 = vpack.c.bf16 %v402, %v401
  %v442 = vpack.c.bf16 %v404, %v403
  %v443 = vpack.c.bf16 %v406, %v405
  %v444 = vpack.c.bf16 %v408, %v407
  %v445 = vpack.c.bf16 %v410, %v409
  %v446 = vpack.c.bf16 %v412, %v411
  %v447 = vpack.c.bf16 %v414, %v413
  %v448 = vpack.c.bf16 %v416, %v415
  %v449 = vpack.c.bf16 %v418, %v417
  %v450 = vpack.c.bf16 %v420, %v419
  %v451 = vpack.c.bf16 %v422, %v421
  %v452 = vpack.c.bf16 %v424, %v423
  %v453 = vpack.c.bf16 %v426, %v425
  %v454 = vpack.c.bf16 %v428, %v427
  %v455 = vld [vmem:[%s5] sm:$0xf]
  %v456 = vld [vmem:[%s5 + $0x4] sm:$0xf]
  %v457 = vld [vmem:[%s5 + $0x8] sm:$0xf]
  %v458 = vld [vmem:[%s5 + $0xc] sm:$0xf]
  %v459 = vld [vmem:[%s5 + $0x10] sm:$0xf]
  %v460 = vld [vmem:[%s5 + $0x14] sm:$0xf]
  %v461 = vld [vmem:[%s5 + $0x18] sm:$0xf]
  %v462 = vld [vmem:[%s5 + $0x1c] sm:$0xf]
  %v463 = vld [vmem:[%s6] sm:$0x1]
  %v465 = vperm.slane %v463, 0
  %v475 = vunpack.c.l.b16 %v455
  %v476 = vunpack.c.l.b16 %v456
  %v477 = vunpack.c.l.b16 %v457
  %v478 = vunpack.c.l.b16 %v458
  %v479 = vunpack.c.l.b16 %v459
  %v480 = vunpack.c.l.b16 %v460
  %v481 = vunpack.c.l.b16 %v461
  %v482 = vunpack.c.l.b16 %v462
  %v483 = vpack.c.b16 %v476, %v475
  %v484 = vpack.c.b16 %v478, %v477
  %v485 = vpack.c.b16 %v480, %v479
  %v486 = vpack.c.b16 %v482, %v481
  %vm491 = vcmask 523264
  %v493 = vsel %vm491, %v429, 0
  %v496 = vsel %vm491, %v430, 0
  %v499 = vsel %vm491, %v431, 0
  %v502 = vsel %vm491, %v432, 0
  %v505 = vsel %vm491, %v433, 0
  %v508 = vsel %vm491, %v434, 0
  %v511 = vsel %vm491, %v435, 0
  %v514 = vsel %vm491, %v436, 0
  %v517 = vsel %vm491, %v437, 0
  %v520 = vsel %vm491, %v438, 0
  %v523 = vsel %vm491, %v439, 0
  %v526 = vsel %vm491, %v440, 0
  %v529 = vsel %vm491, %v441, 0
  %v532 = vsel %vm491, %v442, 0
  %v535 = vsel %vm491, %v443, 0
  %v538 = vsel %vm491, %v444, 0
  %v541 = vsel %vm491, %v445, 0
  %v544 = vsel %vm491, %v446, 0
  %v547 = vsel %vm491, %v447, 0
  %v550 = vsel %vm491, %v448, 0
  %v553 = vsel %vm491, %v449, 0
  %v556 = vsel %vm491, %v450, 0
  %v559 = vsel %vm491, %v451, 0
  %v562 = vsel %vm491, %v452, 0
  %v565 = vsel %vm491, %v453, 0
  %v568 = vsel %vm491, %v454, 0
  %570 = vmatpush.bf16.msra.mxu0 0
  %571 = vmatpush.bf16.msra.mxu0 0
  %572 = vmatpush.bf16.msra.mxu0 0
  %573 = vmatpush.bf16.msra.mxu0 0
  %574 = vmatpush.bf16.msra.mxu0 %v486
  %575 = vmatpush.bf16.msra.mxu0 %v485
  %576 = vmatpush.bf16.msra.mxu0 %v484
  %577 = vmatpush.bf16.msra.mxu0 %v483
  %578 = vmatmul.bf16.gmra.mxu0 %v493
  %v579 = vpop.f32.mrf.mxu0
  %v580 = vadd.f32 %v465, %v579
  %v581 = vpop.f32.mrf.mxu0
  %v582 = vadd.f32 %v465, %v581
  %583 = vmatmul.bf16.gmra.mxu0 %v496
  %v584 = vpop.f32.mrf.mxu0
  %v585 = vadd.f32 %v465, %v584
  %v586 = vpop.f32.mrf.mxu0
  %v587 = vadd.f32 %v465, %v586
  %588 = vmatmul.bf16.gmra.mxu0 %v499
  %v589 = vpop.f32.mrf.mxu0
  %v590 = vadd.f32 %v465, %v589
  %v591 = vpop.f32.mrf.mxu0
  %v592 = vadd.f32 %v465, %v591
  %593 = vmatmul.bf16.gmra.mxu0 %v502
  %v594 = vpop.f32.mrf.mxu0
  %v595 = vadd.f32 %v465, %v594
  %v596 = vpop.f32.mrf.mxu0
  %v597 = vadd.f32 %v465, %v596
  %598 = vmatmul.bf16.gmra.mxu0 %v505
  %v599 = vpop.f32.mrf.mxu0
  %v600 = vadd.f32 %v465, %v599
  %v601 = vpop.f32.mrf.mxu0
  %v602 = vadd.f32 %v465, %v601
  %603 = vmatmul.bf16.gmra.mxu0 %v508
  %v604 = vpop.f32.mrf.mxu0
  %v605 = vadd.f32 %v465, %v604
  %v606 = vpop.f32.mrf.mxu0
  %v607 = vadd.f32 %v465, %v606
  %608 = vmatmul.bf16.gmra.mxu0 %v511
  %v609 = vpop.f32.mrf.mxu0
  %v610 = vadd.f32 %v465, %v609
  %v611 = vpop.f32.mrf.mxu0
  %v612 = vadd.f32 %v465, %v611
  %613 = vmatmul.bf16.gmra.mxu0 %v514
  %v614 = vpop.f32.mrf.mxu0
  %v615 = vadd.f32 %v465, %v614
  %v616 = vpop.f32.mrf.mxu0
  %v617 = vadd.f32 %v465, %v616
  %618 = vmatmul.bf16.gmra.mxu0 %v517
  %v619 = vpop.f32.mrf.mxu0
  %v620 = vadd.f32 %v465, %v619
  %v621 = vpop.f32.mrf.mxu0
  %v622 = vadd.f32 %v465, %v621
  %623 = vmatmul.bf16.gmra.mxu0 %v520
  %v624 = vpop.f32.mrf.mxu0
  %v625 = vadd.f32 %v465, %v624
  %v626 = vpop.f32.mrf.mxu0
  %v627 = vadd.f32 %v465, %v626
  %628 = vmatmul.bf16.gmra.mxu0 %v523
  %v629 = vpop.f32.mrf.mxu0
  %v630 = vadd.f32 %v465, %v629
  %v631 = vpop.f32.mrf.mxu0
  %v632 = vadd.f32 %v465, %v631
  %633 = vmatmul.bf16.gmra.mxu0 %v526
  %v634 = vpop.f32.mrf.mxu0
  %v635 = vadd.f32 %v465, %v634
  %v636 = vpop.f32.mrf.mxu0
  %v637 = vadd.f32 %v465, %v636
  %638 = vmatmul.bf16.gmra.mxu0 %v529
  %v639 = vpop.f32.mrf.mxu0
  %v640 = vadd.f32 %v465, %v639
  %v641 = vpop.f32.mrf.mxu0
  %v642 = vadd.f32 %v465, %v641
  %643 = vmatmul.bf16.gmra.mxu0 %v532
  %v644 = vpop.f32.mrf.mxu0
  %v645 = vadd.f32 %v465, %v644
  %v646 = vpop.f32.mrf.mxu0
  %v647 = vadd.f32 %v465, %v646
  %648 = vmatmul.bf16.gmra.mxu0 %v535
  %v649 = vpop.f32.mrf.mxu0
  %v650 = vadd.f32 %v465, %v649
  %v651 = vpop.f32.mrf.mxu0
  %v652 = vadd.f32 %v465, %v651
  %653 = vmatmul.bf16.gmra.mxu0 %v538
  %v654 = vpop.f32.mrf.mxu0
  %v655 = vadd.f32 %v465, %v654
  %v656 = vpop.f32.mrf.mxu0
  %v657 = vadd.f32 %v465, %v656
  %658 = vmatmul.bf16.gmra.mxu0 %v541
  %v659 = vpop.f32.mrf.mxu0
  %v660 = vadd.f32 %v465, %v659
  %v661 = vpop.f32.mrf.mxu0
  %v662 = vadd.f32 %v465, %v661
  %663 = vmatmul.bf16.gmra.mxu0 %v544
  %v664 = vpop.f32.mrf.mxu0
  %v665 = vadd.f32 %v465, %v664
  %v666 = vpop.f32.mrf.mxu0
  %v667 = vadd.f32 %v465, %v666
  %668 = vmatmul.bf16.gmra.mxu0 %v547
  %v669 = vpop.f32.mrf.mxu0
  %v670 = vadd.f32 %v465, %v669
  %v671 = vpop.f32.mrf.mxu0
  %v672 = vadd.f32 %v465, %v671
  %673 = vmatmul.bf16.gmra.mxu0 %v550
  %v674 = vpop.f32.mrf.mxu0
  %v675 = vadd.f32 %v465, %v674
  %v676 = vpop.f32.mrf.mxu0
  %v677 = vadd.f32 %v465, %v676
  %678 = vmatmul.bf16.gmra.mxu0 %v553
  %v679 = vpop.f32.mrf.mxu0
  %v680 = vadd.f32 %v465, %v679
  %v681 = vpop.f32.mrf.mxu0
  %v682 = vadd.f32 %v465, %v681
  %683 = vmatmul.bf16.gmra.mxu0 %v556
  %v684 = vpop.f32.mrf.mxu0
  %v685 = vadd.f32 %v465, %v684
  %v686 = vpop.f32.mrf.mxu0
  %v687 = vadd.f32 %v465, %v686
  %688 = vmatmul.bf16.gmra.mxu0 %v559
  %v689 = vpop.f32.mrf.mxu0
  %v690 = vadd.f32 %v465, %v689
  %v691 = vpop.f32.mrf.mxu0
  %v692 = vadd.f32 %v465, %v691
  %693 = vmatmul.bf16.gmra.mxu0 %v562
  %v694 = vpop.f32.mrf.mxu0
  %v695 = vadd.f32 %v465, %v694
  %v696 = vpop.f32.mrf.mxu0
  %v697 = vadd.f32 %v465, %v696
  %698 = vmatmul.bf16.gmra.mxu0 %v565
  %v699 = vpop.f32.mrf.mxu0
  %v700 = vadd.f32 %v465, %v699
  %v701 = vpop.f32.mrf.mxu0
  %v702 = vadd.f32 %v465, %v701
  %703 = vmatmul.bf16.gmra.mxu0 %v568
  %v704 = vpop.f32.mrf.mxu0
  %v705 = vadd.f32 %v465, %v704
  %v706 = vpop.f32.mrf.mxu0
  %v707 = vadd.f32 %v465, %v706
  %708 = vdwg.mxu0
  %v709 = vmax.f32 %v580, 0.0
  %v710 = vmax.f32 %v582, 0.0
  %v711 = vmax.f32 %v585, 0.0
  %v712 = vmax.f32 %v587, 0.0
  %v713 = vmax.f32 %v590, 0.0
  %v714 = vmax.f32 %v592, 0.0
  %v715 = vmax.f32 %v595, 0.0
  %v716 = vmax.f32 %v597, 0.0
  %v717 = vmax.f32 %v600, 0.0
  %v718 = vmax.f32 %v602, 0.0
  %v719 = vmax.f32 %v605, 0.0
  %v720 = vmax.f32 %v607, 0.0
  %v721 = vmax.f32 %v610, 0.0
  %v722 = vmax.f32 %v612, 0.0
  %v723 = vmax.f32 %v615, 0.0
  %v724 = vmax.f32 %v617, 0.0
  %v725 = vmax.f32 %v620, 0.0
  %v726 = vmax.f32 %v622, 0.0
  %v727 = vmax.f32 %v625, 0.0
  %v728 = vmax.f32 %v627, 0.0
  %v729 = vmax.f32 %v630, 0.0
  %v730 = vmax.f32 %v632, 0.0
  %v731 = vmax.f32 %v635, 0.0
  %v732 = vmax.f32 %v637, 0.0
  %v733 = vmax.f32 %v640, 0.0
  %v734 = vmax.f32 %v642, 0.0
  %v735 = vmax.f32 %v645, 0.0
  %v736 = vmax.f32 %v647, 0.0
  %v737 = vmax.f32 %v650, 0.0
  %v738 = vmax.f32 %v652, 0.0
  %v739 = vmax.f32 %v655, 0.0
  %v740 = vmax.f32 %v657, 0.0
  %v741 = vmax.f32 %v660, 0.0
  %v742 = vmax.f32 %v662, 0.0
  %v743 = vmax.f32 %v665, 0.0
  %v744 = vmax.f32 %v667, 0.0
  %v745 = vmax.f32 %v670, 0.0
  %v746 = vmax.f32 %v672, 0.0
  %v747 = vmax.f32 %v675, 0.0
  %v748 = vmax.f32 %v677, 0.0
  %v749 = vmax.f32 %v680, 0.0
  %v750 = vmax.f32 %v682, 0.0
  %v751 = vmax.f32 %v685, 0.0
  %v752 = vmax.f32 %v687, 0.0
  %v753 = vmax.f32 %v690, 0.0
  %v754 = vmax.f32 %v692, 0.0
  %v755 = vmax.f32 %v695, 0.0
  %v756 = vmax.f32 %v697, 0.0
  %v757 = vmax.f32 %v700, 0.0
  %v758 = vmax.f32 %v702, 0.0
  %v759 = vmax.f32 %v705, 0.0
  %v760 = vmax.f32 %v707, 0.0
  %v761 = vpack.c.bf16 %v710, %v709
  %v762 = vpack.c.bf16 %v712, %v711
  %v763 = vpack.c.bf16 %v714, %v713
  %v764 = vpack.c.bf16 %v716, %v715
  %v765 = vpack.c.bf16 %v718, %v717
  %v766 = vpack.c.bf16 %v720, %v719
  %v767 = vpack.c.bf16 %v722, %v721
  %v768 = vpack.c.bf16 %v724, %v723
  %v769 = vpack.c.bf16 %v726, %v725
  %v770 = vpack.c.bf16 %v728, %v727
  %v771 = vpack.c.bf16 %v730, %v729
  %v772 = vpack.c.bf16 %v732, %v731
  %v773 = vpack.c.bf16 %v734, %v733
  %v774 = vpack.c.bf16 %v736, %v735
  %v775 = vpack.c.bf16 %v738, %v737
  %v776 = vpack.c.bf16 %v740, %v739
  %v777 = vpack.c.bf16 %v742, %v741
  %v778 = vpack.c.bf16 %v744, %v743
  %v779 = vpack.c.bf16 %v746, %v745
  %v780 = vpack.c.bf16 %v748, %v747
  %v781 = vpack.c.bf16 %v750, %v749
  %v782 = vpack.c.bf16 %v752, %v751
  %v783 = vpack.c.bf16 %v754, %v753
  %v784 = vpack.c.bf16 %v756, %v755
  %v785 = vpack.c.bf16 %v758, %v757
  %v786 = vpack.c.bf16 %v760, %v759
  %v787 = vld [vmem:[%s7] sm:$0xff]
  %v788 = vld [vmem:[%s7 + $0x8] sm:$0xff]
  %v789 = vld [vmem:[%s7 + $0x10] sm:$0xff]
  %v790 = vld [vmem:[%s7 + $0x18] sm:$0xff]
  %v791 = vld [vmem:[%s7 + $0x20] sm:$0xff]
  %v792 = vld [vmem:[%s7 + $0x28] sm:$0xff]
  %v793 = vld [vmem:[%s7 + $0x30] sm:$0xff]
  %v794 = vld [vmem:[%s7 + $0x38] sm:$0xff]
  %v795 = vld [vmem:[%s7 + $0x40] sm:$0xff]
  %v796 = vld [vmem:[%s7 + $0x48] sm:$0xff]
  %v797 = vld [vmem:[%s7 + $0x50] sm:$0xff]
  %v798 = vld [vmem:[%s7 + $0x58] sm:$0xff]
  %v799 = vld [vmem:[%s7 + $0x60] sm:$0xff]
  %v800 = vld [vmem:[%s7 + $0x68] sm:$0xff]
  %v801 = vld [vmem:[%s7 + $0x70] sm:$0xff]
  %v802 = vld [vmem:[%s7 + $0x78] sm:$0xff]
  %v803 = vld [vmem:[%s8] sm:$0x3]
  %v805 = vperm.slane %v803, 0
  %v806 = vperm.slane %v803, 1
  %v825 = vunpack.c.l.b16 %v787
  %v826 = vunpack.c.h.b16 %v787
  %v827 = vunpack.c.l.b16 %v788
  %v828 = vunpack.c.h.b16 %v788
  %v829 = vunpack.c.l.b16 %v789
  %v830 = vunpack.c.h.b16 %v789
  %v831 = vunpack.c.l.b16 %v790
  %v832 = vunpack.c.h.b16 %v790
  %v833 = vunpack.c.l.b16 %v791
  %v834 = vunpack.c.h.b16 %v791
  %v835 = vunpack.c.l.b16 %v792
  %v836 = vunpack.c.h.b16 %v792
  %v837 = vunpack.c.l.b16 %v793
  %v838 = vunpack.c.h.b16 %v793
  %v839 = vunpack.c.l.b16 %v794
  %v840 = vunpack.c.h.b16 %v794
  %v841 = vunpack.c.l.b16 %v795
  %v842 = vunpack.c.h.b16 %v795
  %v843 = vunpack.c.l.b16 %v796
  %v844 = vunpack.c.h.b16 %v796
  %v845 = vunpack.c.l.b16 %v797
  %v846 = vunpack.c.h.b16 %v797
  %v847 = vunpack.c.l.b16 %v798
  %v848 = vunpack.c.h.b16 %v798
  %v849 = vunpack.c.l.b16 %v799
  %v850 = vunpack.c.h.b16 %v799
  %v851 = vunpack.c.l.b16 %v800
  %v852 = vunpack.c.h.b16 %v800
  %v853 = vunpack.c.l.b16 %v801
  %v854 = vunpack.c.h.b16 %v801
  %v855 = vunpack.c.l.b16 %v802
  %v856 = vunpack.c.h.b16 %v802
  %v857 = vpack.c.b16 %v827, %v825
  %v858 = vpack.c.b16 %v828, %v826
  %v859 = vpack.c.b16 %v831, %v829
  %v860 = vpack.c.b16 %v832, %v830
  %v861 = vpack.c.b16 %v835, %v833
  %v862 = vpack.c.b16 %v836, %v834
  %v863 = vpack.c.b16 %v839, %v837
  %v864 = vpack.c.b16 %v840, %v838
  %v865 = vpack.c.b16 %v843, %v841
  %v866 = vpack.c.b16 %v844, %v842
  %v867 = vpack.c.b16 %v847, %v845
  %v868 = vpack.c.b16 %v848, %v846
  %v869 = vpack.c.b16 %v851, %v849
  %v870 = vpack.c.b16 %v852, %v850
  %v871 = vpack.c.b16 %v855, %v853
  %v872 = vpack.c.b16 %v856, %v854
  %889 = vmatpush.bf16.msra.mxu0 %v871
  %890 = vmatpush.bf16.msra.mxu0 %v869
  %891 = vmatpush.bf16.msra.mxu0 %v867
  %892 = vmatpush.bf16.msra.mxu0 %v865
  %893 = vmatpush.bf16.msra.mxu0 %v863
  %894 = vmatpush.bf16.msra.mxu0 %v861
  %895 = vmatpush.bf16.msra.mxu0 %v859
  %896 = vmatpush.bf16.msra.mxu0 %v857
  %897 = vmatmul.bf16.gmra.mxu0 %v761
  %v898 = vpop.f32.mrf.mxu0
  %v899 = vadd.f32 %v805, %v898
  %v900 = vpop.f32.mrf.mxu0
  %v901 = vadd.f32 %v805, %v900
  %902 = vmatmul.bf16.gmra.mxu0 %v762
  %v903 = vpop.f32.mrf.mxu0
  %v904 = vadd.f32 %v805, %v903
  %v905 = vpop.f32.mrf.mxu0
  %v906 = vadd.f32 %v805, %v905
  %907 = vmatmul.bf16.gmra.mxu0 %v763
  %v908 = vpop.f32.mrf.mxu0
  %v909 = vadd.f32 %v805, %v908
  %v910 = vpop.f32.mrf.mxu0
  %v911 = vadd.f32 %v805, %v910
  %912 = vmatmul.bf16.gmra.mxu0 %v764
  %v913 = vpop.f32.mrf.mxu0
  %v914 = vadd.f32 %v805, %v913
  %v915 = vpop.f32.mrf.mxu0
  %v916 = vadd.f32 %v805, %v915
  %917 = vmatmul.bf16.gmra.mxu0 %v765
  %v918 = vpop.f32.mrf.mxu0
  %v919 = vadd.f32 %v805, %v918
  %v920 = vpop.f32.mrf.mxu0
  %v921 = vadd.f32 %v805, %v920
  %922 = vmatmul.bf16.gmra.mxu0 %v766
  %v923 = vpop.f32.mrf.mxu0
  %v924 = vadd.f32 %v805, %v923
  %v925 = vpop.f32.mrf.mxu0
  %v926 = vadd.f32 %v805, %v925
  %927 = vmatmul.bf16.gmra.mxu0 %v767
  %v928 = vpop.f32.mrf.mxu0
  %v929 = vadd.f32 %v805, %v928
  %v930 = vpop.f32.mrf.mxu0
  %v931 = vadd.f32 %v805, %v930
  %932 = vmatmul.bf16.gmra.mxu0 %v768
  %v933 = vpop.f32.mrf.mxu0
  %v934 = vadd.f32 %v805, %v933
  %v935 = vpop.f32.mrf.mxu0
  %v936 = vadd.f32 %v805, %v935
  %937 = vmatmul.bf16.gmra.mxu0 %v769
  %v938 = vpop.f32.mrf.mxu0
  %v939 = vadd.f32 %v805, %v938
  %v940 = vpop.f32.mrf.mxu0
  %v941 = vadd.f32 %v805, %v940
  %942 = vmatmul.bf16.gmra.mxu0 %v770
  %v943 = vpop.f32.mrf.mxu0
  %v944 = vadd.f32 %v805, %v943
  %v945 = vpop.f32.mrf.mxu0
  %v946 = vadd.f32 %v805, %v945
  %947 = vmatmul.bf16.gmra.mxu0 %v771
  %v948 = vpop.f32.mrf.mxu0
  %v949 = vadd.f32 %v805, %v948
  %v950 = vpop.f32.mrf.mxu0
  %v951 = vadd.f32 %v805, %v950
  %952 = vmatmul.bf16.gmra.mxu0 %v772
  %v953 = vpop.f32.mrf.mxu0
  %v954 = vadd.f32 %v805, %v953
  %v955 = vpop.f32.mrf.mxu0
  %v956 = vadd.f32 %v805, %v955
  %957 = vmatmul.bf16.gmra.mxu0 %v773
  %v958 = vpop.f32.mrf.mxu0
  %v959 = vadd.f32 %v805, %v958
  %v960 = vpop.f32.mrf.mxu0
  %v961 = vadd.f32 %v805, %v960
  %962 = vmatmul.bf16.gmra.mxu0 %v774
  %v963 = vpop.f32.mrf.mxu0
  %v964 = vadd.f32 %v805, %v963
  %v965 = vpop.f32.mrf.mxu0
  %v966 = vadd.f32 %v805, %v965
  %967 = vmatmul.bf16.gmra.mxu0 %v775
  %v968 = vpop.f32.mrf.mxu0
  %v969 = vadd.f32 %v805, %v968
  %v970 = vpop.f32.mrf.mxu0
  %v971 = vadd.f32 %v805, %v970
  %972 = vmatmul.bf16.gmra.mxu0 %v776
  %v973 = vpop.f32.mrf.mxu0
  %v974 = vadd.f32 %v805, %v973
  %v975 = vpop.f32.mrf.mxu0
  %v976 = vadd.f32 %v805, %v975
  %977 = vmatmul.bf16.gmra.mxu0 %v777
  %v978 = vpop.f32.mrf.mxu0
  %v979 = vadd.f32 %v805, %v978
  %v980 = vpop.f32.mrf.mxu0
  %v981 = vadd.f32 %v805, %v980
  %982 = vmatmul.bf16.gmra.mxu0 %v778
  %v983 = vpop.f32.mrf.mxu0
  %v984 = vadd.f32 %v805, %v983
  %v985 = vpop.f32.mrf.mxu0
  %v986 = vadd.f32 %v805, %v985
  %987 = vmatmul.bf16.gmra.mxu0 %v779
  %v988 = vpop.f32.mrf.mxu0
  %v989 = vadd.f32 %v805, %v988
  %v990 = vpop.f32.mrf.mxu0
  %v991 = vadd.f32 %v805, %v990
  %992 = vmatmul.bf16.gmra.mxu0 %v780
  %v993 = vpop.f32.mrf.mxu0
  %v994 = vadd.f32 %v805, %v993
  %v995 = vpop.f32.mrf.mxu0
  %v996 = vadd.f32 %v805, %v995
  %997 = vmatmul.bf16.gmra.mxu0 %v781
  %v998 = vpop.f32.mrf.mxu0
  %v999 = vadd.f32 %v805, %v998
  %v1000 = vpop.f32.mrf.mxu0
  %v1001 = vadd.f32 %v805, %v1000
  %1002 = vmatmul.bf16.gmra.mxu0 %v782
  %v1003 = vpop.f32.mrf.mxu0
  %v1004 = vadd.f32 %v805, %v1003
  %v1005 = vpop.f32.mrf.mxu0
  %v1006 = vadd.f32 %v805, %v1005
  %1007 = vmatmul.bf16.gmra.mxu0 %v783
  %v1008 = vpop.f32.mrf.mxu0
  %v1009 = vadd.f32 %v805, %v1008
  %v1010 = vpop.f32.mrf.mxu0
  %v1011 = vadd.f32 %v805, %v1010
  %1012 = vmatmul.bf16.gmra.mxu0 %v784
  %v1013 = vpop.f32.mrf.mxu0
  %v1014 = vadd.f32 %v805, %v1013
  %v1015 = vpop.f32.mrf.mxu0
  %v1016 = vadd.f32 %v805, %v1015
  %1017 = vmatmul.bf16.gmra.mxu0 %v785
  %v1018 = vpop.f32.mrf.mxu0
  %v1019 = vadd.f32 %v805, %v1018
  %v1020 = vpop.f32.mrf.mxu0
  %v1021 = vadd.f32 %v805, %v1020
  %1022 = vmatmul.bf16.gmra.mxu0 %v786
  %v1023 = vpop.f32.mrf.mxu0
  %v1024 = vadd.f32 %v805, %v1023
  %v1025 = vpop.f32.mrf.mxu0
  %v1026 = vadd.f32 %v805, %v1025
  %1027 = vdwg.mxu0
  %1028 = vmatpush.bf16.msra.mxu0 %v872
  %1029 = vmatpush.bf16.msra.mxu0 %v870
  %1030 = vmatpush.bf16.msra.mxu0 %v868
  %1031 = vmatpush.bf16.msra.mxu0 %v866
  %1032 = vmatpush.bf16.msra.mxu0 %v864
  %1033 = vmatpush.bf16.msra.mxu0 %v862
  %1034 = vmatpush.bf16.msra.mxu0 %v860
  %1035 = vmatpush.bf16.msra.mxu0 %v858
  %1036 = vmatmul.bf16.gmra.mxu0 %v761
  %v1037 = vpop.f32.mrf.mxu0
  %v1038 = vadd.f32 %v806, %v1037
  %v1039 = vpop.f32.mrf.mxu0
  %v1040 = vadd.f32 %v806, %v1039
  %1041 = vmatmul.bf16.gmra.mxu0 %v762
  %v1042 = vpop.f32.mrf.mxu0
  %v1043 = vadd.f32 %v806, %v1042
  %v1044 = vpop.f32.mrf.mxu0
  %v1045 = vadd.f32 %v806, %v1044
  %1046 = vmatmul.bf16.gmra.mxu0 %v763
  %v1047 = vpop.f32.mrf.mxu0
  %v1048 = vadd.f32 %v806, %v1047
  %v1049 = vpop.f32.mrf.mxu0
  %v1050 = vadd.f32 %v806, %v1049
  %1051 = vmatmul.bf16.gmra.mxu0 %v764
  %v1052 = vpop.f32.mrf.mxu0
  %v1053 = vadd.f32 %v806, %v1052
  %v1054 = vpop.f32.mrf.mxu0
  %v1055 = vadd.f32 %v806, %v1054
  %1056 = vmatmul.bf16.gmra.mxu0 %v765
  %v1057 = vpop.f32.mrf.mxu0
  %v1058 = vadd.f32 %v806, %v1057
  %v1059 = vpop.f32.mrf.mxu0
  %v1060 = vadd.f32 %v806, %v1059
  %1061 = vmatmul.bf16.gmra.mxu0 %v766
  %v1062 = vpop.f32.mrf.mxu0
  %v1063 = vadd.f32 %v806, %v1062
  %v1064 = vpop.f32.mrf.mxu0
  %v1065 = vadd.f32 %v806, %v1064
  %1066 = vmatmul.bf16.gmra.mxu0 %v767
  %v1067 = vpop.f32.mrf.mxu0
  %v1068 = vadd.f32 %v806, %v1067
  %v1069 = vpop.f32.mrf.mxu0
  %v1070 = vadd.f32 %v806, %v1069
  %1071 = vmatmul.bf16.gmra.mxu0 %v768
  %v1072 = vpop.f32.mrf.mxu0
  %v1073 = vadd.f32 %v806, %v1072
  %v1074 = vpop.f32.mrf.mxu0
  %v1075 = vadd.f32 %v806, %v1074
  %1076 = vmatmul.bf16.gmra.mxu0 %v769
  %v1077 = vpop.f32.mrf.mxu0
  %v1078 = vadd.f32 %v806, %v1077
  %v1079 = vpop.f32.mrf.mxu0
  %v1080 = vadd.f32 %v806, %v1079
  %1081 = vmatmul.bf16.gmra.mxu0 %v770
  %v1082 = vpop.f32.mrf.mxu0
  %v1083 = vadd.f32 %v806, %v1082
  %v1084 = vpop.f32.mrf.mxu0
  %v1085 = vadd.f32 %v806, %v1084
  %1086 = vmatmul.bf16.gmra.mxu0 %v771
  %v1087 = vpop.f32.mrf.mxu0
  %v1088 = vadd.f32 %v806, %v1087
  %v1089 = vpop.f32.mrf.mxu0
  %v1090 = vadd.f32 %v806, %v1089
  %1091 = vmatmul.bf16.gmra.mxu0 %v772
  %v1092 = vpop.f32.mrf.mxu0
  %v1093 = vadd.f32 %v806, %v1092
  %v1094 = vpop.f32.mrf.mxu0
  %v1095 = vadd.f32 %v806, %v1094
  %1096 = vmatmul.bf16.gmra.mxu0 %v773
  %v1097 = vpop.f32.mrf.mxu0
  %v1098 = vadd.f32 %v806, %v1097
  %v1099 = vpop.f32.mrf.mxu0
  %v1100 = vadd.f32 %v806, %v1099
  %1101 = vmatmul.bf16.gmra.mxu0 %v774
  %v1102 = vpop.f32.mrf.mxu0
  %v1103 = vadd.f32 %v806, %v1102
  %v1104 = vpop.f32.mrf.mxu0
  %v1105 = vadd.f32 %v806, %v1104
  %1106 = vmatmul.bf16.gmra.mxu0 %v775
  %v1107 = vpop.f32.mrf.mxu0
  %v1108 = vadd.f32 %v806, %v1107
  %v1109 = vpop.f32.mrf.mxu0
  %v1110 = vadd.f32 %v806, %v1109
  %1111 = vmatmul.bf16.gmra.mxu0 %v776
  %v1112 = vpop.f32.mrf.mxu0
  %v1113 = vadd.f32 %v806, %v1112
  %v1114 = vpop.f32.mrf.mxu0
  %v1115 = vadd.f32 %v806, %v1114
  %1116 = vmatmul.bf16.gmra.mxu0 %v777
  %v1117 = vpop.f32.mrf.mxu0
  %v1118 = vadd.f32 %v806, %v1117
  %v1119 = vpop.f32.mrf.mxu0
  %v1120 = vadd.f32 %v806, %v1119
  %1121 = vmatmul.bf16.gmra.mxu0 %v778
  %v1122 = vpop.f32.mrf.mxu0
  %v1123 = vadd.f32 %v806, %v1122
  %v1124 = vpop.f32.mrf.mxu0
  %v1125 = vadd.f32 %v806, %v1124
  %1126 = vmatmul.bf16.gmra.mxu0 %v779
  %v1127 = vpop.f32.mrf.mxu0
  %v1128 = vadd.f32 %v806, %v1127
  %v1129 = vpop.f32.mrf.mxu0
  %v1130 = vadd.f32 %v806, %v1129
  %1131 = vmatmul.bf16.gmra.mxu0 %v780
  %v1132 = vpop.f32.mrf.mxu0
  %v1133 = vadd.f32 %v806, %v1132
  %v1134 = vpop.f32.mrf.mxu0
  %v1135 = vadd.f32 %v806, %v1134
  %1136 = vmatmul.bf16.gmra.mxu0 %v781
  %v1137 = vpop.f32.mrf.mxu0
  %v1138 = vadd.f32 %v806, %v1137
  %v1139 = vpop.f32.mrf.mxu0
  %v1140 = vadd.f32 %v806, %v1139
  %1141 = vmatmul.bf16.gmra.mxu0 %v782
  %v1142 = vpop.f32.mrf.mxu0
  %v1143 = vadd.f32 %v806, %v1142
  %v1144 = vpop.f32.mrf.mxu0
  %v1145 = vadd.f32 %v806, %v1144
  %1146 = vmatmul.bf16.gmra.mxu0 %v783
  %v1147 = vpop.f32.mrf.mxu0
  %v1148 = vadd.f32 %v806, %v1147
  %v1149 = vpop.f32.mrf.mxu0
  %v1150 = vadd.f32 %v806, %v1149
  %1151 = vmatmul.bf16.gmra.mxu0 %v784
  %v1152 = vpop.f32.mrf.mxu0
  %v1153 = vadd.f32 %v806, %v1152
  %v1154 = vpop.f32.mrf.mxu0
  %v1155 = vadd.f32 %v806, %v1154
  %1156 = vmatmul.bf16.gmra.mxu0 %v785
  %v1157 = vpop.f32.mrf.mxu0
  %v1158 = vadd.f32 %v806, %v1157
  %v1159 = vpop.f32.mrf.mxu0
  %v1160 = vadd.f32 %v806, %v1159
  %1161 = vmatmul.bf16.gmra.mxu0 %v786
  %v1162 = vpop.f32.mrf.mxu0
  %v1163 = vadd.f32 %v806, %v1162
  %v1164 = vpop.f32.mrf.mxu0
  %v1165 = vadd.f32 %v806, %v1164
  %1166 = vdwg.mxu0
  %v1167 = vmax.f32 %v899, 0.0
  %v1168 = vmax.f32 %v1038, 0.0
  %v1169 = vmax.f32 %v901, 0.0
  %v1170 = vmax.f32 %v1040, 0.0
  %v1171 = vmax.f32 %v904, 0.0
  %v1172 = vmax.f32 %v1043, 0.0
  %v1173 = vmax.f32 %v906, 0.0
  %v1174 = vmax.f32 %v1045, 0.0
  %v1175 = vmax.f32 %v909, 0.0
  %v1176 = vmax.f32 %v1048, 0.0
  %v1177 = vmax.f32 %v911, 0.0
  %v1178 = vmax.f32 %v1050, 0.0
  %v1179 = vmax.f32 %v914, 0.0
  %v1180 = vmax.f32 %v1053, 0.0
  %v1181 = vmax.f32 %v916, 0.0
  %v1182 = vmax.f32 %v1055, 0.0
  %v1183 = vmax.f32 %v919, 0.0
  %v1184 = vmax.f32 %v1058, 0.0
  %v1185 = vmax.f32 %v921, 0.0
  %v1186 = vmax.f32 %v1060, 0.0
  %v1187 = vmax.f32 %v924, 0.0
  %v1188 = vmax.f32 %v1063, 0.0
  %v1189 = vmax.f32 %v926, 0.0
  %v1190 = vmax.f32 %v1065, 0.0
  %v1191 = vmax.f32 %v929, 0.0
  %v1192 = vmax.f32 %v1068, 0.0
  %v1193 = vmax.f32 %v931, 0.0
  %v1194 = vmax.f32 %v1070, 0.0
  %v1195 = vmax.f32 %v934, 0.0
  %v1196 = vmax.f32 %v1073, 0.0
  %v1197 = vmax.f32 %v936, 0.0
  %v1198 = vmax.f32 %v1075, 0.0
  %v1199 = vmax.f32 %v939, 0.0
  %v1200 = vmax.f32 %v1078, 0.0
  %v1201 = vmax.f32 %v941, 0.0
  %v1202 = vmax.f32 %v1080, 0.0
  %v1203 = vmax.f32 %v944, 0.0
  %v1204 = vmax.f32 %v1083, 0.0
  %v1205 = vmax.f32 %v946, 0.0
  %v1206 = vmax.f32 %v1085, 0.0
  %v1207 = vmax.f32 %v949, 0.0
  %v1208 = vmax.f32 %v1088, 0.0
  %v1209 = vmax.f32 %v951, 0.0
  %v1210 = vmax.f32 %v1090, 0.0
  %v1211 = vmax.f32 %v954, 0.0
  %v1212 = vmax.f32 %v1093, 0.0
  %v1213 = vmax.f32 %v956, 0.0
  %v1214 = vmax.f32 %v1095, 0.0
  %v1215 = vmax.f32 %v959, 0.0
  %v1216 = vmax.f32 %v1098, 0.0
  %v1217 = vmax.f32 %v961, 0.0
  %v1218 = vmax.f32 %v1100, 0.0
  %v1219 = vmax.f32 %v964, 0.0
  %v1220 = vmax.f32 %v1103, 0.0
  %v1221 = vmax.f32 %v966, 0.0
  %v1222 = vmax.f32 %v1105, 0.0
  %v1223 = vmax.f32 %v969, 0.0
  %v1224 = vmax.f32 %v1108, 0.0
  %v1225 = vmax.f32 %v971, 0.0
  %v1226 = vmax.f32 %v1110, 0.0
  %v1227 = vmax.f32 %v974, 0.0
  %v1228 = vmax.f32 %v1113, 0.0
  %v1229 = vmax.f32 %v976, 0.0
  %v1230 = vmax.f32 %v1115, 0.0
  %v1231 = vmax.f32 %v979, 0.0
  %v1232 = vmax.f32 %v1118, 0.0
  %v1233 = vmax.f32 %v981, 0.0
  %v1234 = vmax.f32 %v1120, 0.0
  %v1235 = vmax.f32 %v984, 0.0
  %v1236 = vmax.f32 %v1123, 0.0
  %v1237 = vmax.f32 %v986, 0.0
  %v1238 = vmax.f32 %v1125, 0.0
  %v1239 = vmax.f32 %v989, 0.0
  %v1240 = vmax.f32 %v1128, 0.0
  %v1241 = vmax.f32 %v991, 0.0
  %v1242 = vmax.f32 %v1130, 0.0
  %v1243 = vmax.f32 %v994, 0.0
  %v1244 = vmax.f32 %v1133, 0.0
  %v1245 = vmax.f32 %v996, 0.0
  %v1246 = vmax.f32 %v1135, 0.0
  %v1247 = vmax.f32 %v999, 0.0
  %v1248 = vmax.f32 %v1138, 0.0
  %v1249 = vmax.f32 %v1001, 0.0
  %v1250 = vmax.f32 %v1140, 0.0
  %v1251 = vmax.f32 %v1004, 0.0
  %v1252 = vmax.f32 %v1143, 0.0
  %v1253 = vmax.f32 %v1006, 0.0
  %v1254 = vmax.f32 %v1145, 0.0
  %v1255 = vmax.f32 %v1009, 0.0
  %v1256 = vmax.f32 %v1148, 0.0
  %v1257 = vmax.f32 %v1011, 0.0
  %v1258 = vmax.f32 %v1150, 0.0
  %v1259 = vmax.f32 %v1014, 0.0
  %v1260 = vmax.f32 %v1153, 0.0
  %v1261 = vmax.f32 %v1016, 0.0
  %v1262 = vmax.f32 %v1155, 0.0
  %v1263 = vmax.f32 %v1019, 0.0
  %v1264 = vmax.f32 %v1158, 0.0
  %v1265 = vmax.f32 %v1021, 0.0
  %v1266 = vmax.f32 %v1160, 0.0
  %v1267 = vmax.f32 %v1024, 0.0
  %v1268 = vmax.f32 %v1163, 0.0
  %v1269 = vmax.f32 %v1026, 0.0
  %v1270 = vmax.f32 %v1165, 0.0
  %v1271 = vld [vmem:[%s9] sm:$0xf]
  %v1272 = vld [vmem:[%s9 + $0x4] sm:$0xf]
  %v1273 = vld [vmem:[%s9 + $0x8] sm:$0xf]
  %v1274 = vld [vmem:[%s9 + $0xc] sm:$0xf]
  %v1275 = vld [vmem:[%s9 + $0x10] sm:$0xf]
  %v1276 = vld [vmem:[%s9 + $0x14] sm:$0xf]
  %v1277 = vld [vmem:[%s9 + $0x18] sm:$0xf]
  %v1278 = vld [vmem:[%s9 + $0x1c] sm:$0xf]
  %v1287 = vunpack.c.l.b16 %v1271
  %v1288 = vunpack.c.l.b16 %v1272
  %v1289 = vunpack.c.l.b16 %v1273
  %v1290 = vunpack.c.l.b16 %v1274
  %v1291 = vunpack.c.l.b16 %v1275
  %v1292 = vunpack.c.l.b16 %v1276
  %v1293 = vunpack.c.l.b16 %v1277
  %v1294 = vunpack.c.l.b16 %v1278
  %v1295 = vpack.c.b16 %v1288, %v1287
  %v1296 = vpack.c.b16 %v1290, %v1289
  %v1297 = vpack.c.b16 %v1292, %v1291
  %v1298 = vpack.c.b16 %v1294, %v1293
  %1303 = vmatpush.bf16.msra.mxu0 0
  %1304 = vmatpush.bf16.msra.mxu0 0
  %1305 = vmatpush.bf16.msra.mxu0 0
  %1306 = vmatpush.bf16.msra.mxu0 0
  %1307 = vmatpush.bf16.msra.mxu0 %v1298
  %1308 = vmatpush.bf16.msra.mxu0 %v1297
  %1309 = vmatpush.bf16.msra.mxu0 %v1296
  %1310 = vmatpush.bf16.msra.mxu0 %v1295
  %1311 = vmatmul.bf16.gmra.mxu0 %v493
  %v1312 = vpop.f32.mrf.mxu0
  %v1313 = vadd.f32 0.0, %v1312
  %v1314 = vpop.f32.mrf.mxu0
  %v1315 = vadd.f32 0.0, %v1314
  %1316 = vmatmul.bf16.gmra.mxu0 %v496
  %v1317 = vpop.f32.mrf.mxu0
  %v1318 = vadd.f32 0.0, %v1317
  %v1319 = vpop.f32.mrf.mxu0
  %v1320 = vadd.f32 0.0, %v1319
  %1321 = vmatmul.bf16.gmra.mxu0 %v499
  %v1322 = vpop.f32.mrf.mxu0
  %v1323 = vadd.f32 0.0, %v1322
  %v1324 = vpop.f32.mrf.mxu0
  %v1325 = vadd.f32 0.0, %v1324
  %1326 = vmatmul.bf16.gmra.mxu0 %v502
  %v1327 = vpop.f32.mrf.mxu0
  %v1328 = vadd.f32 0.0, %v1327
  %v1329 = vpop.f32.mrf.mxu0
  %v1330 = vadd.f32 0.0, %v1329
  %1331 = vmatmul.bf16.gmra.mxu0 %v505
  %v1332 = vpop.f32.mrf.mxu0
  %v1333 = vadd.f32 0.0, %v1332
  %v1334 = vpop.f32.mrf.mxu0
  %v1335 = vadd.f32 0.0, %v1334
  %1336 = vmatmul.bf16.gmra.mxu0 %v508
  %v1337 = vpop.f32.mrf.mxu0
  %v1338 = vadd.f32 0.0, %v1337
  %v1339 = vpop.f32.mrf.mxu0
  %v1340 = vadd.f32 0.0, %v1339
  %1341 = vmatmul.bf16.gmra.mxu0 %v511
  %v1342 = vpop.f32.mrf.mxu0
  %v1343 = vadd.f32 0.0, %v1342
  %v1344 = vpop.f32.mrf.mxu0
  %v1345 = vadd.f32 0.0, %v1344
  %1346 = vmatmul.bf16.gmra.mxu0 %v514
  %v1347 = vpop.f32.mrf.mxu0
  %v1348 = vadd.f32 0.0, %v1347
  %v1349 = vpop.f32.mrf.mxu0
  %v1350 = vadd.f32 0.0, %v1349
  %1351 = vmatmul.bf16.gmra.mxu0 %v517
  %v1352 = vpop.f32.mrf.mxu0
  %v1353 = vadd.f32 0.0, %v1352
  %v1354 = vpop.f32.mrf.mxu0
  %v1355 = vadd.f32 0.0, %v1354
  %1356 = vmatmul.bf16.gmra.mxu0 %v520
  %v1357 = vpop.f32.mrf.mxu0
  %v1358 = vadd.f32 0.0, %v1357
  %v1359 = vpop.f32.mrf.mxu0
  %v1360 = vadd.f32 0.0, %v1359
  %1361 = vmatmul.bf16.gmra.mxu0 %v523
  %v1362 = vpop.f32.mrf.mxu0
  %v1363 = vadd.f32 0.0, %v1362
  %v1364 = vpop.f32.mrf.mxu0
  %v1365 = vadd.f32 0.0, %v1364
  %1366 = vmatmul.bf16.gmra.mxu0 %v526
  %v1367 = vpop.f32.mrf.mxu0
  %v1368 = vadd.f32 0.0, %v1367
  %v1369 = vpop.f32.mrf.mxu0
  %v1370 = vadd.f32 0.0, %v1369
  %1371 = vmatmul.bf16.gmra.mxu0 %v529
  %v1372 = vpop.f32.mrf.mxu0
  %v1373 = vadd.f32 0.0, %v1372
  %v1374 = vpop.f32.mrf.mxu0
  %v1375 = vadd.f32 0.0, %v1374
  %1376 = vmatmul.bf16.gmra.mxu0 %v532
  %v1377 = vpop.f32.mrf.mxu0
  %v1378 = vadd.f32 0.0, %v1377
  %v1379 = vpop.f32.mrf.mxu0
  %v1380 = vadd.f32 0.0, %v1379
  %1381 = vmatmul.bf16.gmra.mxu0 %v535
  %v1382 = vpop.f32.mrf.mxu0
  %v1383 = vadd.f32 0.0, %v1382
  %v1384 = vpop.f32.mrf.mxu0
  %v1385 = vadd.f32 0.0, %v1384
  %1386 = vmatmul.bf16.gmra.mxu0 %v538
  %v1387 = vpop.f32.mrf.mxu0
  %v1388 = vadd.f32 0.0, %v1387
  %v1389 = vpop.f32.mrf.mxu0
  %v1390 = vadd.f32 0.0, %v1389
  %1391 = vmatmul.bf16.gmra.mxu0 %v541
  %v1392 = vpop.f32.mrf.mxu0
  %v1393 = vadd.f32 0.0, %v1392
  %v1394 = vpop.f32.mrf.mxu0
  %v1395 = vadd.f32 0.0, %v1394
  %1396 = vmatmul.bf16.gmra.mxu0 %v544
  %v1397 = vpop.f32.mrf.mxu0
  %v1398 = vadd.f32 0.0, %v1397
  %v1399 = vpop.f32.mrf.mxu0
  %v1400 = vadd.f32 0.0, %v1399
  %1401 = vmatmul.bf16.gmra.mxu0 %v547
  %v1402 = vpop.f32.mrf.mxu0
  %v1403 = vadd.f32 0.0, %v1402
  %v1404 = vpop.f32.mrf.mxu0
  %v1405 = vadd.f32 0.0, %v1404
  %1406 = vmatmul.bf16.gmra.mxu0 %v550
  %v1407 = vpop.f32.mrf.mxu0
  %v1408 = vadd.f32 0.0, %v1407
  %v1409 = vpop.f32.mrf.mxu0
  %v1410 = vadd.f32 0.0, %v1409
  %1411 = vmatmul.bf16.gmra.mxu0 %v553
  %v1412 = vpop.f32.mrf.mxu0
  %v1413 = vadd.f32 0.0, %v1412
  %v1414 = vpop.f32.mrf.mxu0
  %v1415 = vadd.f32 0.0, %v1414
  %1416 = vmatmul.bf16.gmra.mxu0 %v556
  %v1417 = vpop.f32.mrf.mxu0
  %v1418 = vadd.f32 0.0, %v1417
  %v1419 = vpop.f32.mrf.mxu0
  %v1420 = vadd.f32 0.0, %v1419
  %1421 = vmatmul.bf16.gmra.mxu0 %v559
  %v1422 = vpop.f32.mrf.mxu0
  %v1423 = vadd.f32 0.0, %v1422
  %v1424 = vpop.f32.mrf.mxu0
  %v1425 = vadd.f32 0.0, %v1424
  %1426 = vmatmul.bf16.gmra.mxu0 %v562
  %v1427 = vpop.f32.mrf.mxu0
  %v1428 = vadd.f32 0.0, %v1427
  %v1429 = vpop.f32.mrf.mxu0
  %v1430 = vadd.f32 0.0, %v1429
  %1431 = vmatmul.bf16.gmra.mxu0 %v565
  %v1432 = vpop.f32.mrf.mxu0
  %v1433 = vadd.f32 0.0, %v1432
  %v1434 = vpop.f32.mrf.mxu0
  %v1435 = vadd.f32 0.0, %v1434
  %1436 = vmatmul.bf16.gmra.mxu0 %v568
  %v1437 = vpop.f32.mrf.mxu0
  %v1438 = vadd.f32 0.0, %v1437
  %v1439 = vpop.f32.mrf.mxu0
  %v1440 = vadd.f32 0.0, %v1439
  %1441 = vdwg.mxu0
  %v1442 = vld [vmem:[%s0] sm:$0xff]
  %v1443 = vld [vmem:[%s0 + $0x8] sm:$0xff]
  %v1444 = vld [vmem:[%s0 + $0x10] sm:$0xff]
  %v1445 = vld [vmem:[%s0 + $0x18] sm:$0xff]
  %v1446 = vld [vmem:[%s0 + $0x20] sm:$0xff]
  %v1447 = vld [vmem:[%s0 + $0x28] sm:$0xff]
  %v1448 = vld [vmem:[%s0 + $0x30] sm:$0xff]
  %v1449 = vld [vmem:[%s0 + $0x38] sm:$0xff]
  %v1450 = vld [vmem:[%s0 + $0x40] sm:$0xff]
  %v1451 = vld [vmem:[%s0 + $0x48] sm:$0xff]
  %v1452 = vld [vmem:[%s0 + $0x50] sm:$0xff]
  %v1453 = vld [vmem:[%s0 + $0x58] sm:$0xff]
  %v1454 = vld [vmem:[%s0 + $0x60] sm:$0xff]
  %v1455 = vld [vmem:[%s0 + $0x68] sm:$0xff]
  %v1456 = vld [vmem:[%s0 + $0x70] sm:$0xff]
  %v1457 = vld [vmem:[%s0 + $0x78] sm:$0xff]
  %v1458 = vld [vmem:[%s0 + $0x80] sm:$0xff]
  %v1459 = vld [vmem:[%s0 + $0x88] sm:$0xff]
  %v1460 = vld [vmem:[%s0 + $0x90] sm:$0xff]
  %v1461 = vld [vmem:[%s0 + $0x98] sm:$0xff]
  %v1462 = vld [vmem:[%s0 + $0xa0] sm:$0xff]
  %v1463 = vld [vmem:[%s0 + $0xa8] sm:$0xff]
  %v1464 = vld [vmem:[%s0 + $0xb0] sm:$0xff]
  %v1465 = vld [vmem:[%s0 + $0xb8] sm:$0xff]
  %v1466 = vld [vmem:[%s0 + $0xc0] sm:$0xff]
  %v1467 = vld [vmem:[%s0 + $0xc8] sm:$0xff]
  %v1468 = vld [vmem:[%s0 + $0xd0] sm:$0xff]
  %v1469 = vld [vmem:[%s0 + $0xd8] sm:$0xff]
  %v1470 = vld [vmem:[%s0 + $0xe0] sm:$0xff]
  %v1471 = vld [vmem:[%s0 + $0xe8] sm:$0xff]
  %v1472 = vld [vmem:[%s0 + $0xf0] sm:$0xff]
  %v1473 = vld [vmem:[%s0 + $0xf8] sm:$0xff]
  %v1474 = vmax.f32 %v1167, %v1171
  %v1475 = vmax.f32 %v1169, %v1173
  %v1476 = vmax.f32 %v1474, %v1175
  %v1477 = vmax.f32 %v1475, %v1177
  %v1478 = vmax.f32 %v1476, %v1179
  %v1479 = vmax.f32 %v1477, %v1181
  %v1480 = vmax.f32 %v1478, %v1183
  %v1481 = vmax.f32 %v1479, %v1185
  %v1482 = vmax.f32 %v1480, %v1187
  %v1483 = vmax.f32 %v1481, %v1189
  %v1484 = vmax.f32 %v1482, %v1191
  %v1485 = vmax.f32 %v1483, %v1193
  %v1486 = vmax.f32 %v1484, %v1195
  %v1487 = vmax.f32 %v1485, %v1197
  %v1488 = vmax.f32 %v1486, %v1199
  %v1489 = vmax.f32 %v1487, %v1201
  %v1490 = vmax.f32 %v1488, %v1203
  %v1491 = vmax.f32 %v1489, %v1205
  %v1492 = vmax.f32 %v1490, %v1207
  %v1493 = vmax.f32 %v1491, %v1209
  %v1494 = vmax.f32 %v1492, %v1211
  %v1495 = vmax.f32 %v1493, %v1213
  %v1496 = vmax.f32 %v1494, %v1215
  %v1497 = vmax.f32 %v1495, %v1217
  %v1498 = vmax.f32 %v1496, %v1497
  %v1499 = vrot.slane %v1498, 4
  %v1500 = vmax.f32 %v1498, %v1499
  %v1501 = vrot.slane %v1500, 2
  %v1502 = vmax.f32 %v1500, %v1501
  %v1503 = vrot.slane %v1502, 1
  %v1504 = vmax.f32 %v1502, %v1503
  %v1505 = vmax.f32 %v1168, %v1172
  %v1506 = vmax.f32 %v1170, %v1174
  %v1507 = vmax.f32 %v1505, %v1176
  %v1508 = vmax.f32 %v1506, %v1178
  %v1509 = vmax.f32 %v1507, %v1180
  %v1510 = vmax.f32 %v1508, %v1182
  %v1511 = vmax.f32 %v1509, %v1184
  %v1512 = vmax.f32 %v1510, %v1186
  %v1513 = vmax.f32 %v1511, %v1188
  %v1514 = vmax.f32 %v1512, %v1190
  %v1515 = vmax.f32 %v1513, %v1192
  %v1516 = vmax.f32 %v1514, %v1194
  %v1517 = vmax.f32 %v1515, %v1196
  %v1518 = vmax.f32 %v1516, %v1198
  %v1519 = vmax.f32 %v1517, %v1200
  %v1520 = vmax.f32 %v1518, %v1202
  %v1521 = vmax.f32 %v1519, %v1204
  %v1522 = vmax.f32 %v1520, %v1206
  %v1523 = vmax.f32 %v1521, %v1208
  %v1524 = vmax.f32 %v1522, %v1210
  %v1525 = vmax.f32 %v1523, %v1212
  %v1526 = vmax.f32 %v1524, %v1214
  %v1527 = vmax.f32 %v1525, %v1216
  %v1528 = vmax.f32 %v1526, %v1218
  %v1529 = vmax.f32 %v1527, %v1528
  %v1530 = vrot.slane %v1529, 4
  %v1531 = vmax.f32 %v1529, %v1530
  %v1532 = vrot.slane %v1531, 2
  %v1533 = vmax.f32 %v1531, %v1532
  %v1534 = vrot.slane %v1533, 1
  %v1535 = vmax.f32 %v1533, %v1534
  %v1536 = vpack.c.bf16 %v1504, %v1504
  %v1537 = vpack.c.bf16 %v1535, %v1535
  %v1538 = vld [vmem:[%s10] sm:$0xf]
  %v1539 = vld [vmem:[%s10 + $0x4] sm:$0xf]
  %v1540 = vld [vmem:[%s10 + $0x8] sm:$0xf]
  %v1541 = vld [vmem:[%s10 + $0xc] sm:$0xf]
  %v1542 = vld [vmem:[%s10 + $0x10] sm:$0xf]
  %v1543 = vld [vmem:[%s10 + $0x14] sm:$0xf]
  %v1544 = vld [vmem:[%s10 + $0x18] sm:$0xf]
  %v1545 = vld [vmem:[%s10 + $0x1c] sm:$0xf]
  %v1546 = vld [vmem:[%s10 + $0x20] sm:$0xf]
  %v1547 = vld [vmem:[%s10 + $0x24] sm:$0xf]
  %v1548 = vld [vmem:[%s10 + $0x28] sm:$0xf]
  %v1549 = vld [vmem:[%s10 + $0x2c] sm:$0xf]
  %v1550 = vld [vmem:[%s10 + $0x30] sm:$0xf]
  %v1551 = vld [vmem:[%s10 + $0x34] sm:$0xf]
  %v1552 = vld [vmem:[%s10 + $0x38] sm:$0xf]
  %v1553 = vld [vmem:[%s10 + $0x3c] sm:$0xf]
  %v1554 = vld [vmem:[%s10 + $0x40] sm:$0xf]
  %v1555 = vld [vmem:[%s10 + $0x44] sm:$0xf]
  %v1556 = vld [vmem:[%s10 + $0x48] sm:$0xf]
  %v1557 = vld [vmem:[%s10 + $0x4c] sm:$0xf]
  %v1558 = vld [vmem:[%s10 + $0x50] sm:$0xf]
  %v1559 = vld [vmem:[%s10 + $0x54] sm:$0xf]
  %v1560 = vld [vmem:[%s10 + $0x58] sm:$0xf]
  %v1561 = vld [vmem:[%s10 + $0x5c] sm:$0xf]
  %v1562 = vld [vmem:[%s10 + $0x60] sm:$0xf]
  %v1563 = vld [vmem:[%s10 + $0x64] sm:$0xf]
  %v1564 = vld [vmem:[%s10 + $0x68] sm:$0xf]
  %v1565 = vld [vmem:[%s10 + $0x6c] sm:$0xf]
  %v1566 = vld [vmem:[%s10 + $0x70] sm:$0xf]
  %v1567 = vld [vmem:[%s10 + $0x74] sm:$0xf]
  %v1568 = vld [vmem:[%s10 + $0x78] sm:$0xf]
  %v1569 = vld [vmem:[%s10 + $0x7c] sm:$0xf]
  %v1570 = vld [vmem:[%s11] sm:$0x1]
  %v1603 = vunpack.c.l.b16 %v1538
  %v1604 = vunpack.c.l.b16 %v1539
  %v1605 = vunpack.c.l.b16 %v1540
  %v1606 = vunpack.c.l.b16 %v1541
  %v1607 = vunpack.c.l.b16 %v1542
  %v1608 = vunpack.c.l.b16 %v1543
  %v1609 = vunpack.c.l.b16 %v1544
  %v1610 = vunpack.c.l.b16 %v1545
  %v1611 = vunpack.c.l.b16 %v1546
  %v1612 = vunpack.c.l.b16 %v1547
  %v1613 = vunpack.c.l.b16 %v1548
  %v1614 = vunpack.c.l.b16 %v1549
  %v1615 = vunpack.c.l.b16 %v1550
  %v1616 = vunpack.c.l.b16 %v1551
  %v1617 = vunpack.c.l.b16 %v1552
  %v1618 = vunpack.c.l.b16 %v1553
  %v1619 = vunpack.c.l.b16 %v1554
  %v1620 = vunpack.c.l.b16 %v1555
  %v1621 = vunpack.c.l.b16 %v1556
  %v1622 = vunpack.c.l.b16 %v1557
  %v1623 = vunpack.c.l.b16 %v1558
  %v1624 = vunpack.c.l.b16 %v1559
  %v1625 = vunpack.c.l.b16 %v1560
  %v1626 = vunpack.c.l.b16 %v1561
  %v1627 = vunpack.c.l.b16 %v1562
  %v1628 = vunpack.c.l.b16 %v1563
  %v1629 = vunpack.c.l.b16 %v1564
  %v1630 = vunpack.c.l.b16 %v1565
  %v1631 = vunpack.c.l.b16 %v1566
  %v1632 = vunpack.c.l.b16 %v1567
  %v1633 = vunpack.c.l.b16 %v1568
  %v1634 = vunpack.c.l.b16 %v1569
  %v1635 = vpack.c.b16 %v1604, %v1603
  %v1636 = vpack.c.b16 %v1606, %v1605
  %v1637 = vpack.c.b16 %v1608, %v1607
  %v1638 = vpack.c.b16 %v1610, %v1609
  %v1639 = vpack.c.b16 %v1612, %v1611
  %v1640 = vpack.c.b16 %v1614, %v1613
  %v1641 = vpack.c.b16 %v1616, %v1615
  %v1642 = vpack.c.b16 %v1618, %v1617
  %v1643 = vpack.c.b16 %v1620, %v1619
  %v1644 = vpack.c.b16 %v1622, %v1621
  %v1645 = vpack.c.b16 %v1624, %v1623
  %v1646 = vpack.c.b16 %v1626, %v1625
  %v1647 = vpack.c.b16 %v1628, %v1627
  %v1648 = vpack.c.b16 %v1630, %v1629
  %v1649 = vpack.c.b16 %v1632, %v1631
  %v1650 = vpack.c.b16 %v1634, %v1633
  %1667 = vmatpush.bf16.msra.mxu0 %v1642
  %1668 = vmatpush.bf16.msra.mxu0 %v1641
  %1669 = vmatpush.bf16.msra.mxu0 %v1640
  %1670 = vmatpush.bf16.msra.mxu0 %v1639
  %1671 = vmatpush.bf16.msra.mxu0 %v1638
  %1672 = vmatpush.bf16.msra.mxu0 %v1637
  %1673 = vmatpush.bf16.msra.mxu0 %v1636
  %1674 = vmatpush.bf16.msra.mxu0 %v1635
  %1675 = vmatmul.bf16.gmra.mxu0 %v1536
  %v1676 = vpop.f32.mrf.mxu0
  %v1677 = vadd.f32 %v1570, %v1676
  %v1678 = vpop.f32.mrf.mxu0
  %1679 = vdwg.mxu0
  %1680 = vmatpush.bf16.msra.mxu0 %v1650
  %1681 = vmatpush.bf16.msra.mxu0 %v1649
  %1682 = vmatpush.bf16.msra.mxu0 %v1648
  %1683 = vmatpush.bf16.msra.mxu0 %v1647
  %1684 = vmatpush.bf16.msra.mxu0 %v1646
  %1685 = vmatpush.bf16.msra.mxu0 %v1645
  %1686 = vmatpush.bf16.msra.mxu0 %v1644
  %1687 = vmatpush.bf16.msra.mxu0 %v1643
  %1688 = vmatmul.bf16.gmra.mxu0 %v1537
  %v1689 = vpop.f32.mrf.mxu0
  %v1690 = vadd.f32 %v1677, %v1689
  %v1691 = vpop.f32.mrf.mxu0
  %1692 = vdwg.mxu0
  %v1693 = vperm.slane %v1690, 0
  %v1694 = vadd.f32 %v1313, %v1693
  %v1695 = vadd.f32 %v1315, %v1693
  %v1696 = vadd.f32 %v1318, %v1693
  %v1697 = vadd.f32 %v1320, %v1693
  %v1698 = vadd.f32 %v1323, %v1693
  %v1699 = vadd.f32 %v1325, %v1693
  %v1700 = vadd.f32 %v1328, %v1693
  %v1701 = vadd.f32 %v1330, %v1693
  %v1702 = vadd.f32 %v1333, %v1693
  %v1703 = vadd.f32 %v1335, %v1693
  %v1704 = vadd.f32 %v1338, %v1693
  %v1705 = vadd.f32 %v1340, %v1693
  %v1706 = vadd.f32 %v1343, %v1693
  %v1707 = vadd.f32 %v1345, %v1693
  %v1708 = vadd.f32 %v1348, %v1693
  %v1709 = vadd.f32 %v1350, %v1693
  %v1710 = vadd.f32 %v1353, %v1693
  %v1711 = vadd.f32 %v1355, %v1693
  %v1712 = vadd.f32 %v1358, %v1693
  %v1713 = vadd.f32 %v1360, %v1693
  %v1714 = vadd.f32 %v1363, %v1693
  %v1715 = vadd.f32 %v1365, %v1693
  %v1716 = vadd.f32 %v1368, %v1693
  %v1717 = vadd.f32 %v1370, %v1693
  %v1718 = vadd.f32 %v1373, %v1693
  %v1719 = vadd.f32 %v1375, %v1693
  %v1720 = vmax.f32 %v1694, 0.0
  %v1721 = vmax.f32 %v1695, 0.0
  %v1722 = vmax.f32 %v1696, 0.0
  %v1723 = vmax.f32 %v1697, 0.0
  %v1724 = vmax.f32 %v1698, 0.0
  %v1725 = vmax.f32 %v1699, 0.0
  %v1726 = vmax.f32 %v1700, 0.0
  %v1727 = vmax.f32 %v1701, 0.0
  %v1728 = vmax.f32 %v1702, 0.0
  %v1729 = vmax.f32 %v1703, 0.0
  %v1730 = vmax.f32 %v1704, 0.0
  %v1731 = vmax.f32 %v1705, 0.0
  %v1732 = vmax.f32 %v1706, 0.0
  %v1733 = vmax.f32 %v1707, 0.0
  %v1734 = vmax.f32 %v1708, 0.0
  %v1735 = vmax.f32 %v1709, 0.0
  %v1736 = vmax.f32 %v1710, 0.0
  %v1737 = vmax.f32 %v1711, 0.0
  %v1738 = vmax.f32 %v1712, 0.0
  %v1739 = vmax.f32 %v1713, 0.0
  %v1740 = vmax.f32 %v1714, 0.0
  %v1741 = vmax.f32 %v1715, 0.0
  %v1742 = vmax.f32 %v1716, 0.0
  %v1743 = vmax.f32 %v1717, 0.0
  %v1744 = vmax.f32 %v1718, 0.0
  %v1745 = vmax.f32 %v1719, 0.0
  %v1746 = vpack.c.bf16 %v1721, %v1720
  %v1747 = vpack.c.bf16 %v1723, %v1722
  %v1748 = vpack.c.bf16 %v1725, %v1724
  %v1749 = vpack.c.bf16 %v1727, %v1726
  %v1750 = vpack.c.bf16 %v1729, %v1728
  %v1751 = vpack.c.bf16 %v1731, %v1730
  %v1752 = vpack.c.bf16 %v1733, %v1732
  %v1753 = vpack.c.bf16 %v1735, %v1734
  %v1754 = vpack.c.bf16 %v1737, %v1736
  %v1755 = vpack.c.bf16 %v1739, %v1738
  %v1756 = vpack.c.bf16 %v1741, %v1740
  %v1757 = vpack.c.bf16 %v1743, %v1742
  %v1758 = vpack.c.bf16 %v1745, %v1744
  %v1759 = vld [vmem:[%s12] sm:$0xf]
  %v1760 = vld [vmem:[%s12 + $0x4] sm:$0xf]
  %v1761 = vld [vmem:[%s12 + $0x8] sm:$0xf]
  %v1762 = vld [vmem:[%s12 + $0xc] sm:$0xf]
  %v1763 = vld [vmem:[%s12 + $0x10] sm:$0xf]
  %v1764 = vld [vmem:[%s12 + $0x14] sm:$0xf]
  %v1765 = vld [vmem:[%s12 + $0x18] sm:$0xf]
  %v1766 = vld [vmem:[%s12 + $0x1c] sm:$0xf]
  %v1767 = vld [vmem:[%s12 + $0x20] sm:$0xf]
  %v1768 = vld [vmem:[%s12 + $0x24] sm:$0xf]
  %v1769 = vld [vmem:[%s12 + $0x28] sm:$0xf]
  %v1770 = vld [vmem:[%s12 + $0x2c] sm:$0xf]
  %v1771 = vld [vmem:[%s12 + $0x30] sm:$0xf]
  %v1772 = vld [vmem:[%s12 + $0x34] sm:$0xf]
  %v1773 = vld [vmem:[%s12 + $0x38] sm:$0xf]
  %v1774 = vld [vmem:[%s12 + $0x3c] sm:$0xf]
  %v1775 = vld [vmem:[%s13] sm:$0x1]
  %v1777 = vperm.slane %v1775, 0
  %v1795 = vunpack.c.l.b16 %v1759
  %v1796 = vunpack.c.l.b16 %v1760
  %v1797 = vunpack.c.l.b16 %v1761
  %v1798 = vunpack.c.l.b16 %v1762
  %v1799 = vunpack.c.l.b16 %v1763
  %v1800 = vunpack.c.l.b16 %v1764
  %v1801 = vunpack.c.l.b16 %v1765
  %v1802 = vunpack.c.l.b16 %v1766
  %v1803 = vunpack.c.l.b16 %v1767
  %v1804 = vunpack.c.l.b16 %v1768
  %v1805 = vunpack.c.l.b16 %v1769
  %v1806 = vunpack.c.l.b16 %v1770
  %v1807 = vunpack.c.l.b16 %v1771
  %v1808 = vunpack.c.l.b16 %v1772
  %v1809 = vunpack.c.l.b16 %v1773
  %v1810 = vunpack.c.l.b16 %v1774
  %v1811 = vpack.c.b16 %v1796, %v1795
  %v1812 = vpack.c.b16 %v1798, %v1797
  %v1813 = vpack.c.b16 %v1800, %v1799
  %v1814 = vpack.c.b16 %v1802, %v1801
  %v1815 = vpack.c.b16 %v1804, %v1803
  %v1816 = vpack.c.b16 %v1806, %v1805
  %v1817 = vpack.c.b16 %v1808, %v1807
  %v1818 = vpack.c.b16 %v1810, %v1809
  %1827 = vmatpush.bf16.msra.mxu0 %v1818
  %1828 = vmatpush.bf16.msra.mxu0 %v1817
  %1829 = vmatpush.bf16.msra.mxu0 %v1816
  %1830 = vmatpush.bf16.msra.mxu0 %v1815
  %1831 = vmatpush.bf16.msra.mxu0 %v1814
  %1832 = vmatpush.bf16.msra.mxu0 %v1813
  %1833 = vmatpush.bf16.msra.mxu0 %v1812
  %1834 = vmatpush.bf16.msra.mxu0 %v1811
  %1835 = vmatmul.bf16.gmra.mxu0 %v1746
  %v1836 = vpop.f32.mrf.mxu0
  %v1837 = vadd.f32 %v1777, %v1836
  %v1838 = vpop.f32.mrf.mxu0
  %v1839 = vadd.f32 %v1777, %v1838
  %1840 = vmatmul.bf16.gmra.mxu0 %v1747
  %v1841 = vpop.f32.mrf.mxu0
  %v1842 = vadd.f32 %v1777, %v1841
  %v1843 = vpop.f32.mrf.mxu0
  %v1844 = vadd.f32 %v1777, %v1843
  %1845 = vmatmul.bf16.gmra.mxu0 %v1748
  %v1846 = vpop.f32.mrf.mxu0
  %v1847 = vadd.f32 %v1777, %v1846
  %v1848 = vpop.f32.mrf.mxu0
  %v1849 = vadd.f32 %v1777, %v1848
  %1850 = vmatmul.bf16.gmra.mxu0 %v1749
  %v1851 = vpop.f32.mrf.mxu0
  %v1852 = vadd.f32 %v1777, %v1851
  %v1853 = vpop.f32.mrf.mxu0
  %v1854 = vadd.f32 %v1777, %v1853
  %1855 = vmatmul.bf16.gmra.mxu0 %v1750
  %v1856 = vpop.f32.mrf.mxu0
  %v1857 = vadd.f32 %v1777, %v1856
  %v1858 = vpop.f32.mrf.mxu0
  %v1859 = vadd.f32 %v1777, %v1858
  %1860 = vmatmul.bf16.gmra.mxu0 %v1751
  %v1861 = vpop.f32.mrf.mxu0
  %v1862 = vadd.f32 %v1777, %v1861
  %v1863 = vpop.f32.mrf.mxu0
  %v1864 = vadd.f32 %v1777, %v1863
  %1865 = vmatmul.bf16.gmra.mxu0 %v1752
  %v1866 = vpop.f32.mrf.mxu0
  %v1867 = vadd.f32 %v1777, %v1866
  %v1868 = vpop.f32.mrf.mxu0
  %v1869 = vadd.f32 %v1777, %v1868
  %1870 = vmatmul.bf16.gmra.mxu0 %v1753
  %v1871 = vpop.f32.mrf.mxu0
  %v1872 = vadd.f32 %v1777, %v1871
  %v1873 = vpop.f32.mrf.mxu0
  %v1874 = vadd.f32 %v1777, %v1873
  %1875 = vmatmul.bf16.gmra.mxu0 %v1754
  %v1876 = vpop.f32.mrf.mxu0
  %v1877 = vadd.f32 %v1777, %v1876
  %v1878 = vpop.f32.mrf.mxu0
  %v1879 = vadd.f32 %v1777, %v1878
  %1880 = vmatmul.bf16.gmra.mxu0 %v1755
  %v1881 = vpop.f32.mrf.mxu0
  %v1882 = vadd.f32 %v1777, %v1881
  %v1883 = vpop.f32.mrf.mxu0
  %v1884 = vadd.f32 %v1777, %v1883
  %1885 = vmatmul.bf16.gmra.mxu0 %v1756
  %v1886 = vpop.f32.mrf.mxu0
  %v1887 = vadd.f32 %v1777, %v1886
  %v1888 = vpop.f32.mrf.mxu0
  %v1889 = vadd.f32 %v1777, %v1888
  %1890 = vmatmul.bf16.gmra.mxu0 %v1757
  %v1891 = vpop.f32.mrf.mxu0
  %v1892 = vadd.f32 %v1777, %v1891
  %v1893 = vpop.f32.mrf.mxu0
  %v1894 = vadd.f32 %v1777, %v1893
  %1895 = vmatmul.bf16.gmra.mxu0 %v1758
  %v1896 = vpop.f32.mrf.mxu0
  %v1897 = vadd.f32 %v1777, %v1896
  %v1898 = vpop.f32.mrf.mxu0
  %v1899 = vadd.f32 %v1777, %v1898
  %1900 = vdwg.mxu0
  %v1901 = vpack.c.bf16 %v1839, %v1837
  %v1902 = vpack.c.bf16 %v1844, %v1842
  %v1903 = vpack.c.bf16 %v1849, %v1847
  %v1904 = vpack.c.bf16 %v1854, %v1852
  %v1905 = vpack.c.bf16 %v1859, %v1857
  %v1906 = vpack.c.bf16 %v1864, %v1862
  %v1907 = vpack.c.bf16 %v1869, %v1867
  %v1908 = vpack.c.bf16 %v1874, %v1872
  %v1909 = vpack.c.bf16 %v1879, %v1877
  %v1910 = vpack.c.bf16 %v1884, %v1882
  %v1911 = vpack.c.bf16 %v1889, %v1887
  %v1912 = vpack.c.bf16 %v1894, %v1892
  %v1913 = vpack.c.bf16 %v1899, %v1897
  %v1946 = vunpack.c.l.b16 %v1442
  %v1947 = vunpack.c.h.b16 %v1442
  %v1948 = vunpack.c.l.b16 %v1443
  %v1949 = vunpack.c.h.b16 %v1443
  %v1950 = vunpack.c.l.b16 %v1444
  %v1951 = vunpack.c.h.b16 %v1444
  %v1952 = vunpack.c.l.b16 %v1445
  %v1953 = vunpack.c.h.b16 %v1445
  %v1954 = vunpack.c.l.b16 %v1446
  %v1955 = vunpack.c.h.b16 %v1446
  %v1956 = vunpack.c.l.b16 %v1447
  %v1957 = vunpack.c.h.b16 %v1447
  %v1958 = vunpack.c.l.b16 %v1448
  %v1959 = vunpack.c.h.b16 %v1448
  %v1960 = vunpack.c.l.b16 %v1449
  %v1961 = vunpack.c.h.b16 %v1449
  %v1962 = vunpack.c.l.b16 %v1450
  %v1963 = vunpack.c.h.b16 %v1450
  %v1964 = vunpack.c.l.b16 %v1451
  %v1965 = vunpack.c.h.b16 %v1451
  %v1966 = vunpack.c.l.b16 %v1452
  %v1967 = vunpack.c.h.b16 %v1452
  %v1968 = vunpack.c.l.b16 %v1453
  %v1969 = vunpack.c.h.b16 %v1453
  %v1970 = vunpack.c.l.b16 %v1454
  %v1971 = vunpack.c.h.b16 %v1454
  %v1972 = vunpack.c.l.b16 %v1455
  %v1973 = vunpack.c.h.b16 %v1455
  %v1974 = vunpack.c.l.b16 %v1456
  %v1975 = vunpack.c.h.b16 %v1456
  %v1976 = vunpack.c.l.b16 %v1457
  %v1977 = vunpack.c.h.b16 %v1457
  %v1978 = vunpack.c.l.b16 %v1458
  %v1979 = vunpack.c.h.b16 %v1458
  %v1980 = vunpack.c.l.b16 %v1459
  %v1981 = vunpack.c.h.b16 %v1459
  %v1982 = vunpack.c.l.b16 %v1460
  %v1983 = vunpack.c.h.b16 %v1460
  %v1984 = vunpack.c.l.b16 %v1461
  %v1985 = vunpack.c.h.b16 %v1461
  %v1986 = vunpack.c.l.b16 %v1462
  %v1987 = vunpack.c.h.b16 %v1462
  %v1988 = vunpack.c.l.b16 %v1463
  %v1989 = vunpack.c.h.b16 %v1463
  %v1990 = vunpack.c.l.b16 %v1464
  %v1991 = vunpack.c.h.b16 %v1464
  %v1992 = vunpack.c.l.b16 %v1465
  %v1993 = vunpack.c.h.b16 %v1465
  %v1994 = vunpack.c.l.b16 %v1466
  %v1995 = vunpack.c.h.b16 %v1466
  %v1996 = vunpack.c.l.b16 %v1467
  %v1997 = vunpack.c.h.b16 %v1467
  %v1998 = vunpack.c.l.b16 %v1468
  %v1999 = vunpack.c.h.b16 %v1468
  %v2000 = vunpack.c.l.b16 %v1469
  %v2001 = vunpack.c.h.b16 %v1469
  %v2002 = vunpack.c.l.b16 %v1470
  %v2003 = vunpack.c.h.b16 %v1470
  %v2004 = vunpack.c.l.b16 %v1471
  %v2005 = vunpack.c.h.b16 %v1471
  %v2006 = vunpack.c.l.b16 %v1472
  %v2007 = vunpack.c.h.b16 %v1472
  %v2008 = vunpack.c.l.b16 %v1473
  %v2009 = vunpack.c.h.b16 %v1473
  %v2010 = vpack.c.b16 %v1948, %v1946
  %v2011 = vpack.c.b16 %v1949, %v1947
  %v2012 = vpack.c.b16 %v1952, %v1950
  %v2013 = vpack.c.b16 %v1953, %v1951
  %v2014 = vpack.c.b16 %v1956, %v1954
  %v2015 = vpack.c.b16 %v1957, %v1955
  %v2016 = vpack.c.b16 %v1960, %v1958
  %v2017 = vpack.c.b16 %v1961, %v1959
  %v2018 = vpack.c.b16 %v1964, %v1962
  %v2019 = vpack.c.b16 %v1965, %v1963
  %v2020 = vpack.c.b16 %v1968, %v1966
  %v2021 = vpack.c.b16 %v1969, %v1967
  %v2022 = vpack.c.b16 %v1972, %v1970
  %v2023 = vpack.c.b16 %v1973, %v1971
  %v2024 = vpack.c.b16 %v1976, %v1974
  %v2025 = vpack.c.b16 %v1977, %v1975
  %v2026 = vpack.c.b16 %v1980, %v1978
  %v2027 = vpack.c.b16 %v1981, %v1979
  %v2028 = vpack.c.b16 %v1984, %v1982
  %v2029 = vpack.c.b16 %v1985, %v1983
  %v2030 = vpack.c.b16 %v1988, %v1986
  %v2031 = vpack.c.b16 %v1989, %v1987
  %v2032 = vpack.c.b16 %v1992, %v1990
  %v2033 = vpack.c.b16 %v1993, %v1991
  %v2034 = vpack.c.b16 %v1996, %v1994
  %v2035 = vpack.c.b16 %v1997, %v1995
  %v2036 = vpack.c.b16 %v2000, %v1998
  %v2037 = vpack.c.b16 %v2001, %v1999
  %v2038 = vpack.c.b16 %v2004, %v2002
  %v2039 = vpack.c.b16 %v2005, %v2003
  %v2040 = vpack.c.b16 %v2008, %v2006
  %v2041 = vpack.c.b16 %v2009, %v2007
  %vm2058 = vcmask 654336
  %v2060 = vsel %vm2058, %v2011, 0
  %v2063 = vsel %vm2058, %v2013, 0
  %v2066 = vsel %vm2058, %v2015, 0
  %v2069 = vsel %vm2058, %v2017, 0
  %v2072 = vsel %vm2058, %v2019, 0
  %v2075 = vsel %vm2058, %v2021, 0
  %v2078 = vsel %vm2058, %v2023, 0
  %v2081 = vsel %vm2058, %v2025, 0
  %v2084 = vsel %vm2058, %v2027, 0
  %v2087 = vsel %vm2058, %v2029, 0
  %v2090 = vsel %vm2058, %v2031, 0
  %v2093 = vsel %vm2058, %v2033, 0
  %v2096 = vsel %vm2058, %v2035, 0
  %v2099 = vsel %vm2058, %v2037, 0
  %v2102 = vsel %vm2058, %v2039, 0
  %v2105 = vsel %vm2058, %v2041, 0
  %2107 = vmatpush.bf16.msra.mxu0 %v1908
  %2108 = vmatpush.bf16.msra.mxu0 %v1907
  %2109 = vmatpush.bf16.msra.mxu0 %v1906
  %2110 = vmatpush.bf16.msra.mxu0 %v1905
  %2111 = vmatpush.bf16.msra.mxu0 %v1904
  %2112 = vmatpush.bf16.msra.mxu0 %v1903
  %2113 = vmatpush.bf16.msra.mxu0 %v1902
  %2114 = vmatpush.bf16.msra.mxu0 %v1901
  %2115 = vmatmul.bf16.gmra.mxu0 %v2010
  %v2116 = vpop.f32.mrf.mxu0
  %v2117 = vadd.f32 0.0, %v2116
  %v2118 = vpop.f32.mrf.mxu0
  %v2119 = vadd.f32 0.0, %v2118
  %2120 = vmatmul.bf16.gmra.mxu0 %v2012
  %v2121 = vpop.f32.mrf.mxu0
  %v2122 = vadd.f32 0.0, %v2121
  %v2123 = vpop.f32.mrf.mxu0
  %v2124 = vadd.f32 0.0, %v2123
  %2125 = vmatmul.bf16.gmra.mxu0 %v2014
  %v2126 = vpop.f32.mrf.mxu0
  %v2127 = vadd.f32 0.0, %v2126
  %v2128 = vpop.f32.mrf.mxu0
  %v2129 = vadd.f32 0.0, %v2128
  %2130 = vmatmul.bf16.gmra.mxu0 %v2016
  %v2131 = vpop.f32.mrf.mxu0
  %v2132 = vadd.f32 0.0, %v2131
  %v2133 = vpop.f32.mrf.mxu0
  %v2134 = vadd.f32 0.0, %v2133
  %2135 = vmatmul.bf16.gmra.mxu0 %v2018
  %v2136 = vpop.f32.mrf.mxu0
  %v2137 = vadd.f32 0.0, %v2136
  %v2138 = vpop.f32.mrf.mxu0
  %v2139 = vadd.f32 0.0, %v2138
  %2140 = vmatmul.bf16.gmra.mxu0 %v2020
  %v2141 = vpop.f32.mrf.mxu0
  %v2142 = vadd.f32 0.0, %v2141
  %v2143 = vpop.f32.mrf.mxu0
  %v2144 = vadd.f32 0.0, %v2143
  %2145 = vmatmul.bf16.gmra.mxu0 %v2022
  %v2146 = vpop.f32.mrf.mxu0
  %v2147 = vadd.f32 0.0, %v2146
  %v2148 = vpop.f32.mrf.mxu0
  %v2149 = vadd.f32 0.0, %v2148
  %2150 = vmatmul.bf16.gmra.mxu0 %v2024
  %v2151 = vpop.f32.mrf.mxu0
  %v2152 = vadd.f32 0.0, %v2151
  %v2153 = vpop.f32.mrf.mxu0
  %v2154 = vadd.f32 0.0, %v2153
  %2155 = vmatmul.bf16.gmra.mxu0 %v2026
  %v2156 = vpop.f32.mrf.mxu0
  %v2157 = vadd.f32 0.0, %v2156
  %v2158 = vpop.f32.mrf.mxu0
  %v2159 = vadd.f32 0.0, %v2158
  %2160 = vmatmul.bf16.gmra.mxu0 %v2028
  %v2161 = vpop.f32.mrf.mxu0
  %v2162 = vadd.f32 0.0, %v2161
  %v2163 = vpop.f32.mrf.mxu0
  %v2164 = vadd.f32 0.0, %v2163
  %2165 = vmatmul.bf16.gmra.mxu0 %v2030
  %v2166 = vpop.f32.mrf.mxu0
  %v2167 = vadd.f32 0.0, %v2166
  %v2168 = vpop.f32.mrf.mxu0
  %v2169 = vadd.f32 0.0, %v2168
  %2170 = vmatmul.bf16.gmra.mxu0 %v2032
  %v2171 = vpop.f32.mrf.mxu0
  %v2172 = vadd.f32 0.0, %v2171
  %v2173 = vpop.f32.mrf.mxu0
  %v2174 = vadd.f32 0.0, %v2173
  %2175 = vmatmul.bf16.gmra.mxu0 %v2034
  %v2176 = vpop.f32.mrf.mxu0
  %v2177 = vadd.f32 0.0, %v2176
  %v2178 = vpop.f32.mrf.mxu0
  %v2179 = vadd.f32 0.0, %v2178
  %2180 = vmatmul.bf16.gmra.mxu0 %v2036
  %v2181 = vpop.f32.mrf.mxu0
  %v2182 = vadd.f32 0.0, %v2181
  %v2183 = vpop.f32.mrf.mxu0
  %v2184 = vadd.f32 0.0, %v2183
  %2185 = vmatmul.bf16.gmra.mxu0 %v2038
  %v2186 = vpop.f32.mrf.mxu0
  %v2187 = vadd.f32 0.0, %v2186
  %v2188 = vpop.f32.mrf.mxu0
  %v2189 = vadd.f32 0.0, %v2188
  %2190 = vmatmul.bf16.gmra.mxu0 %v2040
  %v2191 = vpop.f32.mrf.mxu0
  %v2192 = vadd.f32 0.0, %v2191
  %v2193 = vpop.f32.mrf.mxu0
  %v2194 = vadd.f32 0.0, %v2193
  %2195 = vdwg.mxu0
  %2196 = vmatpush.bf16.msra.mxu0 0
  %2197 = vmatpush.bf16.msra.mxu0 0
  %2198 = vmatpush.bf16.msra.mxu0 0
  %2199 = vmatpush.bf16.msra.mxu0 %v1913
  %2200 = vmatpush.bf16.msra.mxu0 %v1912
  %2201 = vmatpush.bf16.msra.mxu0 %v1911
  %2202 = vmatpush.bf16.msra.mxu0 %v1910
  %2203 = vmatpush.bf16.msra.mxu0 %v1909
  %2204 = vmatmul.bf16.gmra.mxu0 %v2060
  %v2205 = vpop.f32.mrf.mxu0
  %v2206 = vadd.f32 %v2117, %v2205
  %v2207 = vpop.f32.mrf.mxu0
  %v2208 = vadd.f32 %v2119, %v2207
  %2209 = vmatmul.bf16.gmra.mxu0 %v2063
  %v2210 = vpop.f32.mrf.mxu0
  %v2211 = vadd.f32 %v2122, %v2210
  %v2212 = vpop.f32.mrf.mxu0
  %v2213 = vadd.f32 %v2124, %v2212
  %2214 = vmatmul.bf16.gmra.mxu0 %v2066
  %v2215 = vpop.f32.mrf.mxu0
  %v2216 = vadd.f32 %v2127, %v2215
  %v2217 = vpop.f32.mrf.mxu0
  %v2218 = vadd.f32 %v2129, %v2217
  %2219 = vmatmul.bf16.gmra.mxu0 %v2069
  %v2220 = vpop.f32.mrf.mxu0
  %v2221 = vadd.f32 %v2132, %v2220
  %v2222 = vpop.f32.mrf.mxu0
  %v2223 = vadd.f32 %v2134, %v2222
  %2224 = vmatmul.bf16.gmra.mxu0 %v2072
  %v2225 = vpop.f32.mrf.mxu0
  %v2226 = vadd.f32 %v2137, %v2225
  %v2227 = vpop.f32.mrf.mxu0
  %v2228 = vadd.f32 %v2139, %v2227
  %2229 = vmatmul.bf16.gmra.mxu0 %v2075
  %v2230 = vpop.f32.mrf.mxu0
  %v2231 = vadd.f32 %v2142, %v2230
  %v2232 = vpop.f32.mrf.mxu0
  %v2233 = vadd.f32 %v2144, %v2232
  %2234 = vmatmul.bf16.gmra.mxu0 %v2078
  %v2235 = vpop.f32.mrf.mxu0
  %v2236 = vadd.f32 %v2147, %v2235
  %v2237 = vpop.f32.mrf.mxu0
  %v2238 = vadd.f32 %v2149, %v2237
  %2239 = vmatmul.bf16.gmra.mxu0 %v2081
  %v2240 = vpop.f32.mrf.mxu0
  %v2241 = vadd.f32 %v2152, %v2240
  %v2242 = vpop.f32.mrf.mxu0
  %v2243 = vadd.f32 %v2154, %v2242
  %2244 = vmatmul.bf16.gmra.mxu0 %v2084
  %v2245 = vpop.f32.mrf.mxu0
  %v2246 = vadd.f32 %v2157, %v2245
  %v2247 = vpop.f32.mrf.mxu0
  %v2248 = vadd.f32 %v2159, %v2247
  %2249 = vmatmul.bf16.gmra.mxu0 %v2087
  %v2250 = vpop.f32.mrf.mxu0
  %v2251 = vadd.f32 %v2162, %v2250
  %v2252 = vpop.f32.mrf.mxu0
  %v2253 = vadd.f32 %v2164, %v2252
  %2254 = vmatmul.bf16.gmra.mxu0 %v2090
  %v2255 = vpop.f32.mrf.mxu0
  %v2256 = vadd.f32 %v2167, %v2255
  %v2257 = vpop.f32.mrf.mxu0
  %v2258 = vadd.f32 %v2169, %v2257
  %2259 = vmatmul.bf16.gmra.mxu0 %v2093
  %v2260 = vpop.f32.mrf.mxu0
  %v2261 = vadd.f32 %v2172, %v2260
  %v2262 = vpop.f32.mrf.mxu0
  %v2263 = vadd.f32 %v2174, %v2262
  %2264 = vmatmul.bf16.gmra.mxu0 %v2096
  %v2265 = vpop.f32.mrf.mxu0
  %v2266 = vadd.f32 %v2177, %v2265
  %v2267 = vpop.f32.mrf.mxu0
  %v2268 = vadd.f32 %v2179, %v2267
  %2269 = vmatmul.bf16.gmra.mxu0 %v2099
  %v2270 = vpop.f32.mrf.mxu0
  %v2271 = vadd.f32 %v2182, %v2270
  %v2272 = vpop.f32.mrf.mxu0
  %v2273 = vadd.f32 %v2184, %v2272
  %2274 = vmatmul.bf16.gmra.mxu0 %v2102
  %v2275 = vpop.f32.mrf.mxu0
  %v2276 = vadd.f32 %v2187, %v2275
  %v2277 = vpop.f32.mrf.mxu0
  %v2278 = vadd.f32 %v2189, %v2277
  %2279 = vmatmul.bf16.gmra.mxu0 %v2105
  %v2280 = vpop.f32.mrf.mxu0
  %v2281 = vadd.f32 %v2192, %v2280
  %v2282 = vpop.f32.mrf.mxu0
  %v2283 = vadd.f32 %v2194, %v2282
  %2284 = vdwg.mxu0
  %v2285 = vmax.f32 %v1219, %v1223
  %v2286 = vmax.f32 %v1221, %v1225
  %v2287 = vmax.f32 %v2285, %v1227
  %v2288 = vmax.f32 %v2286, %v1229
  %v2289 = vmax.f32 %v2287, %v1231
  %v2290 = vmax.f32 %v2288, %v1233
  %v2291 = vmax.f32 %v2289, %v1235
  %v2292 = vmax.f32 %v2290, %v1237
  %v2293 = vmax.f32 %v2291, %v1239
  %v2294 = vmax.f32 %v2292, %v1241
  %v2295 = vmax.f32 %v2293, %v1243
  %v2296 = vmax.f32 %v2294, %v1245
  %v2297 = vmax.f32 %v2295, %v1247
  %v2298 = vmax.f32 %v2296, %v1249
  %v2299 = vmax.f32 %v2297, %v1251
  %v2300 = vmax.f32 %v2298, %v1253
  %v2301 = vmax.f32 %v2299, %v1255
  %v2302 = vmax.f32 %v2300, %v1257
  %v2303 = vmax.f32 %v2301, %v1259
  %v2304 = vmax.f32 %v2302, %v1261
  %v2305 = vmax.f32 %v2303, %v1263
  %v2306 = vmax.f32 %v2304, %v1265
  %v2307 = vmax.f32 %v2305, %v1267
  %v2308 = vmax.f32 %v2306, %v1269
  %v2309 = vmax.f32 %v2307, %v2308
  %v2310 = vrot.slane %v2309, 4
  %v2311 = vmax.f32 %v2309, %v2310
  %v2312 = vrot.slane %v2311, 2
  %v2313 = vmax.f32 %v2311, %v2312
  %v2314 = vrot.slane %v2313, 1
  %v2315 = vmax.f32 %v2313, %v2314
  %v2316 = vmax.f32 %v1220, %v1224
  %v2317 = vmax.f32 %v1222, %v1226
  %v2318 = vmax.f32 %v2316, %v1228
  %v2319 = vmax.f32 %v2317, %v1230
  %v2320 = vmax.f32 %v2318, %v1232
  %v2321 = vmax.f32 %v2319, %v1234
  %v2322 = vmax.f32 %v2320, %v1236
  %v2323 = vmax.f32 %v2321, %v1238
  %v2324 = vmax.f32 %v2322, %v1240
  %v2325 = vmax.f32 %v2323, %v1242
  %v2326 = vmax.f32 %v2324, %v1244
  %v2327 = vmax.f32 %v2325, %v1246
  %v2328 = vmax.f32 %v2326, %v1248
  %v2329 = vmax.f32 %v2327, %v1250
  %v2330 = vmax.f32 %v2328, %v1252
  %v2331 = vmax.f32 %v2329, %v1254
  %v2332 = vmax.f32 %v2330, %v1256
  %v2333 = vmax.f32 %v2331, %v1258
  %v2334 = vmax.f32 %v2332, %v1260
  %v2335 = vmax.f32 %v2333, %v1262
  %v2336 = vmax.f32 %v2334, %v1264
  %v2337 = vmax.f32 %v2335, %v1266
  %v2338 = vmax.f32 %v2336, %v1268
  %v2339 = vmax.f32 %v2337, %v1270
  %v2340 = vmax.f32 %v2338, %v2339
  %v2341 = vrot.slane %v2340, 4
  %v2342 = vmax.f32 %v2340, %v2341
  %v2343 = vrot.slane %v2342, 2
  %v2344 = vmax.f32 %v2342, %v2343
  %v2345 = vrot.slane %v2344, 1
  %v2346 = vmax.f32 %v2344, %v2345
  %v2347 = vpack.c.bf16 %v2315, %v2315
  %v2348 = vpack.c.bf16 %v2346, %v2346
  %2349 = vmatpush.bf16.msra.mxu0 %v1642
  %2350 = vmatpush.bf16.msra.mxu0 %v1641
  %2351 = vmatpush.bf16.msra.mxu0 %v1640
  %2352 = vmatpush.bf16.msra.mxu0 %v1639
  %2353 = vmatpush.bf16.msra.mxu0 %v1638
  %2354 = vmatpush.bf16.msra.mxu0 %v1637
  %2355 = vmatpush.bf16.msra.mxu0 %v1636
  %2356 = vmatpush.bf16.msra.mxu0 %v1635
  %2357 = vmatmul.bf16.gmra.mxu0 %v2347
  %v2358 = vpop.f32.mrf.mxu0
  %v2359 = vadd.f32 %v1570, %v2358
  %v2360 = vpop.f32.mrf.mxu0
  %2361 = vdwg.mxu0
  %2362 = vmatpush.bf16.msra.mxu0 %v1650
  %2363 = vmatpush.bf16.msra.mxu0 %v1649
  %2364 = vmatpush.bf16.msra.mxu0 %v1648
  %2365 = vmatpush.bf16.msra.mxu0 %v1647
  %2366 = vmatpush.bf16.msra.mxu0 %v1646
  %2367 = vmatpush.bf16.msra.mxu0 %v1645
  %2368 = vmatpush.bf16.msra.mxu0 %v1644
  %2369 = vmatpush.bf16.msra.mxu0 %v1643
  %2370 = vmatmul.bf16.gmra.mxu0 %v2348
  %v2371 = vpop.f32.mrf.mxu0
  %v2372 = vadd.f32 %v2359, %v2371
  %v2373 = vpop.f32.mrf.mxu0
  %2374 = vdwg.mxu0
  %v2375 = vperm.slane %v2372, 0
  %v2376 = vadd.f32 %v1378, %v2375
  %v2377 = vadd.f32 %v1380, %v2375
  %v2378 = vadd.f32 %v1383, %v2375
  %v2379 = vadd.f32 %v1385, %v2375
  %v2380 = vadd.f32 %v1388, %v2375
  %v2381 = vadd.f32 %v1390, %v2375
  %v2382 = vadd.f32 %v1393, %v2375
  %v2383 = vadd.f32 %v1395, %v2375
  %v2384 = vadd.f32 %v1398, %v2375
  %v2385 = vadd.f32 %v1400, %v2375
  %v2386 = vadd.f32 %v1403, %v2375
  %v2387 = vadd.f32 %v1405, %v2375
  %v2388 = vadd.f32 %v1408, %v2375
  %v2389 = vadd.f32 %v1410, %v2375
  %v2390 = vadd.f32 %v1413, %v2375
  %v2391 = vadd.f32 %v1415, %v2375
  %v2392 = vadd.f32 %v1418, %v2375
  %v2393 = vadd.f32 %v1420, %v2375
  %v2394 = vadd.f32 %v1423, %v2375
  %v2395 = vadd.f32 %v1425, %v2375
  %v2396 = vadd.f32 %v1428, %v2375
  %v2397 = vadd.f32 %v1430, %v2375
  %v2398 = vadd.f32 %v1433, %v2375
  %v2399 = vadd.f32 %v1435, %v2375
  %v2400 = vadd.f32 %v1438, %v2375
  %v2401 = vadd.f32 %v1440, %v2375
  %v2402 = vmax.f32 %v2376, 0.0
  %v2403 = vmax.f32 %v2377, 0.0
  %v2404 = vmax.f32 %v2378, 0.0
  %v2405 = vmax.f32 %v2379, 0.0
  %v2406 = vmax.f32 %v2380, 0.0
  %v2407 = vmax.f32 %v2381, 0.0
  %v2408 = vmax.f32 %v2382, 0.0
  %v2409 = vmax.f32 %v2383, 0.0
  %v2410 = vmax.f32 %v2384, 0.0
  %v2411 = vmax.f32 %v2385, 0.0
  %v2412 = vmax.f32 %v2386, 0.0
  %v2413 = vmax.f32 %v2387, 0.0
  %v2414 = vmax.f32 %v2388, 0.0
  %v2415 = vmax.f32 %v2389, 0.0
  %v2416 = vmax.f32 %v2390, 0.0
  %v2417 = vmax.f32 %v2391, 0.0
  %v2418 = vmax.f32 %v2392, 0.0
  %v2419 = vmax.f32 %v2393, 0.0
  %v2420 = vmax.f32 %v2394, 0.0
  %v2421 = vmax.f32 %v2395, 0.0
  %v2422 = vmax.f32 %v2396, 0.0
  %v2423 = vmax.f32 %v2397, 0.0
  %v2424 = vmax.f32 %v2398, 0.0
  %v2425 = vmax.f32 %v2399, 0.0
  %v2426 = vmax.f32 %v2400, 0.0
  %v2427 = vmax.f32 %v2401, 0.0
  %v2428 = vpack.c.bf16 %v2403, %v2402
  %v2429 = vpack.c.bf16 %v2405, %v2404
  %v2430 = vpack.c.bf16 %v2407, %v2406
  %v2431 = vpack.c.bf16 %v2409, %v2408
  %v2432 = vpack.c.bf16 %v2411, %v2410
  %v2433 = vpack.c.bf16 %v2413, %v2412
  %v2434 = vpack.c.bf16 %v2415, %v2414
  %v2435 = vpack.c.bf16 %v2417, %v2416
  %v2436 = vpack.c.bf16 %v2419, %v2418
  %v2437 = vpack.c.bf16 %v2421, %v2420
  %v2438 = vpack.c.bf16 %v2423, %v2422
  %v2439 = vpack.c.bf16 %v2425, %v2424
  %v2440 = vpack.c.bf16 %v2427, %v2426
  %2441 = vmatpush.bf16.msra.mxu0 %v1818
  %2442 = vmatpush.bf16.msra.mxu0 %v1817
  %2443 = vmatpush.bf16.msra.mxu0 %v1816
  %2444 = vmatpush.bf16.msra.mxu0 %v1815
  %2445 = vmatpush.bf16.msra.mxu0 %v1814
  %2446 = vmatpush.bf16.msra.mxu0 %v1813
  %2447 = vmatpush.bf16.msra.mxu0 %v1812
  %2448 = vmatpush.bf16.msra.mxu0 %v1811
  %2449 = vmatmul.bf16.gmra.mxu0 %v2428
  %v2450 = vpop.f32.mrf.mxu0
  %v2451 = vadd.f32 %v1777, %v2450
  %v2452 = vpop.f32.mrf.mxu0
  %v2453 = vadd.f32 %v1777, %v2452
  %2454 = vmatmul.bf16.gmra.mxu0 %v2429
  %v2455 = vpop.f32.mrf.mxu0
  %v2456 = vadd.f32 %v1777, %v2455
  %v2457 = vpop.f32.mrf.mxu0
  %v2458 = vadd.f32 %v1777, %v2457
  %2459 = vmatmul.bf16.gmra.mxu0 %v2430
  %v2460 = vpop.f32.mrf.mxu0
  %v2461 = vadd.f32 %v1777, %v2460
  %v2462 = vpop.f32.mrf.mxu0
  %v2463 = vadd.f32 %v1777, %v2462
  %2464 = vmatmul.bf16.gmra.mxu0 %v2431
  %v2465 = vpop.f32.mrf.mxu0
  %v2466 = vadd.f32 %v1777, %v2465
  %v2467 = vpop.f32.mrf.mxu0
  %v2468 = vadd.f32 %v1777, %v2467
  %2469 = vmatmul.bf16.gmra.mxu0 %v2432
  %v2470 = vpop.f32.mrf.mxu0
  %v2471 = vadd.f32 %v1777, %v2470
  %v2472 = vpop.f32.mrf.mxu0
  %v2473 = vadd.f32 %v1777, %v2472
  %2474 = vmatmul.bf16.gmra.mxu0 %v2433
  %v2475 = vpop.f32.mrf.mxu0
  %v2476 = vadd.f32 %v1777, %v2475
  %v2477 = vpop.f32.mrf.mxu0
  %v2478 = vadd.f32 %v1777, %v2477
  %2479 = vmatmul.bf16.gmra.mxu0 %v2434
  %v2480 = vpop.f32.mrf.mxu0
  %v2481 = vadd.f32 %v1777, %v2480
  %v2482 = vpop.f32.mrf.mxu0
  %v2483 = vadd.f32 %v1777, %v2482
  %2484 = vmatmul.bf16.gmra.mxu0 %v2435
  %v2485 = vpop.f32.mrf.mxu0
  %v2486 = vadd.f32 %v1777, %v2485
  %v2487 = vpop.f32.mrf.mxu0
  %v2488 = vadd.f32 %v1777, %v2487
  %2489 = vmatmul.bf16.gmra.mxu0 %v2436
  %v2490 = vpop.f32.mrf.mxu0
  %v2491 = vadd.f32 %v1777, %v2490
  %v2492 = vpop.f32.mrf.mxu0
  %v2493 = vadd.f32 %v1777, %v2492
  %2494 = vmatmul.bf16.gmra.mxu0 %v2437
  %v2495 = vpop.f32.mrf.mxu0
  %v2496 = vadd.f32 %v1777, %v2495
  %v2497 = vpop.f32.mrf.mxu0
  %v2498 = vadd.f32 %v1777, %v2497
  %2499 = vmatmul.bf16.gmra.mxu0 %v2438
  %v2500 = vpop.f32.mrf.mxu0
  %v2501 = vadd.f32 %v1777, %v2500
  %v2502 = vpop.f32.mrf.mxu0
  %v2503 = vadd.f32 %v1777, %v2502
  %2504 = vmatmul.bf16.gmra.mxu0 %v2439
  %v2505 = vpop.f32.mrf.mxu0
  %v2506 = vadd.f32 %v1777, %v2505
  %v2507 = vpop.f32.mrf.mxu0
  %v2508 = vadd.f32 %v1777, %v2507
  %2509 = vmatmul.bf16.gmra.mxu0 %v2440
  %v2510 = vpop.f32.mrf.mxu0
  %v2511 = vadd.f32 %v1777, %v2510
  %v2512 = vpop.f32.mrf.mxu0
  %v2513 = vadd.f32 %v1777, %v2512
  %2514 = vdwg.mxu0
  %v2515 = vpack.c.bf16 %v2453, %v2451
  %v2516 = vpack.c.bf16 %v2458, %v2456
  %v2517 = vpack.c.bf16 %v2463, %v2461
  %v2518 = vpack.c.bf16 %v2468, %v2466
  %v2519 = vpack.c.bf16 %v2473, %v2471
  %v2520 = vpack.c.bf16 %v2478, %v2476
  %v2521 = vpack.c.bf16 %v2483, %v2481
  %v2522 = vpack.c.bf16 %v2488, %v2486
  %v2523 = vpack.c.bf16 %v2493, %v2491
  %v2524 = vpack.c.bf16 %v2498, %v2496
  %v2525 = vpack.c.bf16 %v2503, %v2501
  %v2526 = vpack.c.bf16 %v2508, %v2506
  %v2527 = vpack.c.bf16 %v2513, %v2511
  %2528 = vmatpush.bf16.msra.mxu0 %v2522
  %2529 = vmatpush.bf16.msra.mxu0 %v2521
  %2530 = vmatpush.bf16.msra.mxu0 %v2520
  %2531 = vmatpush.bf16.msra.mxu0 %v2519
  %2532 = vmatpush.bf16.msra.mxu0 %v2518
  %2533 = vmatpush.bf16.msra.mxu0 %v2517
  %2534 = vmatpush.bf16.msra.mxu0 %v2516
  %2535 = vmatpush.bf16.msra.mxu0 %v2515
  %2536 = vmatmul.bf16.gmra.mxu0 %v2010
  %v2537 = vpop.f32.mrf.mxu0
  %v2538 = vadd.f32 0.0, %v2537
  %v2539 = vpop.f32.mrf.mxu0
  %v2540 = vadd.f32 0.0, %v2539
  %2541 = vmatmul.bf16.gmra.mxu0 %v2012
  %v2542 = vpop.f32.mrf.mxu0
  %v2543 = vadd.f32 0.0, %v2542
  %v2544 = vpop.f32.mrf.mxu0
  %v2545 = vadd.f32 0.0, %v2544
  %2546 = vmatmul.bf16.gmra.mxu0 %v2014
  %v2547 = vpop.f32.mrf.mxu0
  %v2548 = vadd.f32 0.0, %v2547
  %v2549 = vpop.f32.mrf.mxu0
  %v2550 = vadd.f32 0.0, %v2549
  %2551 = vmatmul.bf16.gmra.mxu0 %v2016
  %v2552 = vpop.f32.mrf.mxu0
  %v2553 = vadd.f32 0.0, %v2552
  %v2554 = vpop.f32.mrf.mxu0
  %v2555 = vadd.f32 0.0, %v2554
  %2556 = vmatmul.bf16.gmra.mxu0 %v2018
  %v2557 = vpop.f32.mrf.mxu0
  %v2558 = vadd.f32 0.0, %v2557
  %v2559 = vpop.f32.mrf.mxu0
  %v2560 = vadd.f32 0.0, %v2559
  %2561 = vmatmul.bf16.gmra.mxu0 %v2020
  %v2562 = vpop.f32.mrf.mxu0
  %v2563 = vadd.f32 0.0, %v2562
  %v2564 = vpop.f32.mrf.mxu0
  %v2565 = vadd.f32 0.0, %v2564
  %2566 = vmatmul.bf16.gmra.mxu0 %v2022
  %v2567 = vpop.f32.mrf.mxu0
  %v2568 = vadd.f32 0.0, %v2567
  %v2569 = vpop.f32.mrf.mxu0
  %v2570 = vadd.f32 0.0, %v2569
  %2571 = vmatmul.bf16.gmra.mxu0 %v2024
  %v2572 = vpop.f32.mrf.mxu0
  %v2573 = vadd.f32 0.0, %v2572
  %v2574 = vpop.f32.mrf.mxu0
  %v2575 = vadd.f32 0.0, %v2574
  %2576 = vmatmul.bf16.gmra.mxu0 %v2026
  %v2577 = vpop.f32.mrf.mxu0
  %v2578 = vadd.f32 0.0, %v2577
  %v2579 = vpop.f32.mrf.mxu0
  %v2580 = vadd.f32 0.0, %v2579
  %2581 = vmatmul.bf16.gmra.mxu0 %v2028
  %v2582 = vpop.f32.mrf.mxu0
  %v2583 = vadd.f32 0.0, %v2582
  %v2584 = vpop.f32.mrf.mxu0
  %v2585 = vadd.f32 0.0, %v2584
  %2586 = vmatmul.bf16.gmra.mxu0 %v2030
  %v2587 = vpop.f32.mrf.mxu0
  %v2588 = vadd.f32 0.0, %v2587
  %v2589 = vpop.f32.mrf.mxu0
  %v2590 = vadd.f32 0.0, %v2589
  %2591 = vmatmul.bf16.gmra.mxu0 %v2032
  %v2592 = vpop.f32.mrf.mxu0
  %v2593 = vadd.f32 0.0, %v2592
  %v2594 = vpop.f32.mrf.mxu0
  %v2595 = vadd.f32 0.0, %v2594
  %2596 = vmatmul.bf16.gmra.mxu0 %v2034
  %v2597 = vpop.f32.mrf.mxu0
  %v2598 = vadd.f32 0.0, %v2597
  %v2599 = vpop.f32.mrf.mxu0
  %v2600 = vadd.f32 0.0, %v2599
  %2601 = vmatmul.bf16.gmra.mxu0 %v2036
  %v2602 = vpop.f32.mrf.mxu0
  %v2603 = vadd.f32 0.0, %v2602
  %v2604 = vpop.f32.mrf.mxu0
  %v2605 = vadd.f32 0.0, %v2604
  %2606 = vmatmul.bf16.gmra.mxu0 %v2038
  %v2607 = vpop.f32.mrf.mxu0
  %v2608 = vadd.f32 0.0, %v2607
  %v2609 = vpop.f32.mrf.mxu0
  %v2610 = vadd.f32 0.0, %v2609
  %2611 = vmatmul.bf16.gmra.mxu0 %v2040
  %v2612 = vpop.f32.mrf.mxu0
  %v2613 = vadd.f32 0.0, %v2612
  %v2614 = vpop.f32.mrf.mxu0
  %v2615 = vadd.f32 0.0, %v2614
  %2616 = vdwg.mxu0
  %2617 = vmatpush.bf16.msra.mxu0 0
  %2618 = vmatpush.bf16.msra.mxu0 0
  %2619 = vmatpush.bf16.msra.mxu0 0
  %2620 = vmatpush.bf16.msra.mxu0 %v2527
  %2621 = vmatpush.bf16.msra.mxu0 %v2526
  %2622 = vmatpush.bf16.msra.mxu0 %v2525
  %2623 = vmatpush.bf16.msra.mxu0 %v2524
  %2624 = vmatpush.bf16.msra.mxu0 %v2523
  %2625 = vmatmul.bf16.gmra.mxu0 %v2060
  %v2626 = vpop.f32.mrf.mxu0
  %v2627 = vadd.f32 %v2538, %v2626
  %v2628 = vpop.f32.mrf.mxu0
  %v2629 = vadd.f32 %v2540, %v2628
  %2630 = vmatmul.bf16.gmra.mxu0 %v2063
  %v2631 = vpop.f32.mrf.mxu0
  %v2632 = vadd.f32 %v2543, %v2631
  %v2633 = vpop.f32.mrf.mxu0
  %v2634 = vadd.f32 %v2545, %v2633
  %2635 = vmatmul.bf16.gmra.mxu0 %v2066
  %v2636 = vpop.f32.mrf.mxu0
  %v2637 = vadd.f32 %v2548, %v2636
  %v2638 = vpop.f32.mrf.mxu0
  %v2639 = vadd.f32 %v2550, %v2638
  %2640 = vmatmul.bf16.gmra.mxu0 %v2069
  %v2641 = vpop.f32.mrf.mxu0
  %v2642 = vadd.f32 %v2553, %v2641
  %v2643 = vpop.f32.mrf.mxu0
  %v2644 = vadd.f32 %v2555, %v2643
  %2645 = vmatmul.bf16.gmra.mxu0 %v2072
  %v2646 = vpop.f32.mrf.mxu0
  %v2647 = vadd.f32 %v2558, %v2646
  %v2648 = vpop.f32.mrf.mxu0
  %v2649 = vadd.f32 %v2560, %v2648
  %2650 = vmatmul.bf16.gmra.mxu0 %v2075
  %v2651 = vpop.f32.mrf.mxu0
  %v2652 = vadd.f32 %v2563, %v2651
  %v2653 = vpop.f32.mrf.mxu0
  %v2654 = vadd.f32 %v2565, %v2653
  %2655 = vmatmul.bf16.gmra.mxu0 %v2078
  %v2656 = vpop.f32.mrf.mxu0
  %v2657 = vadd.f32 %v2568, %v2656
  %v2658 = vpop.f32.mrf.mxu0
  %v2659 = vadd.f32 %v2570, %v2658
  %2660 = vmatmul.bf16.gmra.mxu0 %v2081
  %v2661 = vpop.f32.mrf.mxu0
  %v2662 = vadd.f32 %v2573, %v2661
  %v2663 = vpop.f32.mrf.mxu0
  %v2664 = vadd.f32 %v2575, %v2663
  %2665 = vmatmul.bf16.gmra.mxu0 %v2084
  %v2666 = vpop.f32.mrf.mxu0
  %v2667 = vadd.f32 %v2578, %v2666
  %v2668 = vpop.f32.mrf.mxu0
  %v2669 = vadd.f32 %v2580, %v2668
  %2670 = vmatmul.bf16.gmra.mxu0 %v2087
  %v2671 = vpop.f32.mrf.mxu0
  %v2672 = vadd.f32 %v2583, %v2671
  %v2673 = vpop.f32.mrf.mxu0
  %v2674 = vadd.f32 %v2585, %v2673
  %2675 = vmatmul.bf16.gmra.mxu0 %v2090
  %v2676 = vpop.f32.mrf.mxu0
  %v2677 = vadd.f32 %v2588, %v2676
  %v2678 = vpop.f32.mrf.mxu0
  %v2679 = vadd.f32 %v2590, %v2678
  %2680 = vmatmul.bf16.gmra.mxu0 %v2093
  %v2681 = vpop.f32.mrf.mxu0
  %v2682 = vadd.f32 %v2593, %v2681
  %v2683 = vpop.f32.mrf.mxu0
  %v2684 = vadd.f32 %v2595, %v2683
  %2685 = vmatmul.bf16.gmra.mxu0 %v2096
  %v2686 = vpop.f32.mrf.mxu0
  %v2687 = vadd.f32 %v2598, %v2686
  %v2688 = vpop.f32.mrf.mxu0
  %v2689 = vadd.f32 %v2600, %v2688
  %2690 = vmatmul.bf16.gmra.mxu0 %v2099
  %v2691 = vpop.f32.mrf.mxu0
  %v2692 = vadd.f32 %v2603, %v2691
  %v2693 = vpop.f32.mrf.mxu0
  %v2694 = vadd.f32 %v2605, %v2693
  %2695 = vmatmul.bf16.gmra.mxu0 %v2102
  %v2696 = vpop.f32.mrf.mxu0
  %v2697 = vadd.f32 %v2608, %v2696
  %v2698 = vpop.f32.mrf.mxu0
  %v2699 = vadd.f32 %v2610, %v2698
  %2700 = vmatmul.bf16.gmra.mxu0 %v2105
  %v2701 = vpop.f32.mrf.mxu0
  %v2702 = vadd.f32 %v2613, %v2701
  %v2703 = vpop.f32.mrf.mxu0
  %v2704 = vadd.f32 %v2615, %v2703
  %2705 = vdwg.mxu0
  %v2706 = vpack.c.bf16 %v2208, %v2206
  %v2707 = vpack.c.bf16 %v2213, %v2211
  %v2708 = vpack.c.bf16 %v2218, %v2216
  %v2709 = vpack.c.bf16 %v2223, %v2221
  %v2710 = vpack.c.bf16 %v2228, %v2226
  %v2711 = vpack.c.bf16 %v2233, %v2231
  %v2712 = vpack.c.bf16 %v2238, %v2236
  %v2713 = vpack.c.bf16 %v2243, %v2241
  %v2714 = vpack.c.bf16 %v2248, %v2246
  %v2715 = vpack.c.bf16 %v2253, %v2251
  %v2716 = vpack.c.bf16 %v2258, %v2256
  %v2717 = vpack.c.bf16 %v2263, %v2261
  %v2718 = vpack.c.bf16 %v2268, %v2266
  %v2719 = vpack.c.bf16 %v2273, %v2271
  %v2720 = vpack.c.bf16 %v2278, %v2276
  %v2721 = vpack.c.bf16 %v2283, %v2281
  %v2722 = vpack.c.bf16 %v2629, %v2627
  %v2723 = vpack.c.bf16 %v2634, %v2632
  %v2724 = vpack.c.bf16 %v2639, %v2637
  %v2725 = vpack.c.bf16 %v2644, %v2642
  %v2726 = vpack.c.bf16 %v2649, %v2647
  %v2727 = vpack.c.bf16 %v2654, %v2652
  %v2728 = vpack.c.bf16 %v2659, %v2657
  %v2729 = vpack.c.bf16 %v2664, %v2662
  %v2730 = vpack.c.bf16 %v2669, %v2667
  %v2731 = vpack.c.bf16 %v2674, %v2672
  %v2732 = vpack.c.bf16 %v2679, %v2677
  %v2733 = vpack.c.bf16 %v2684, %v2682
  %v2734 = vpack.c.bf16 %v2689, %v2687
  %v2735 = vpack.c.bf16 %v2694, %v2692
  %v2736 = vpack.c.bf16 %v2699, %v2697
  %v2737 = vpack.c.bf16 %v2704, %v2702
  %v2738 = vld [vmem:[%s2] sm:$0xf]
  %v2739 = vld [vmem:[%s2 + $0x4] sm:$0xf]
  %v2740 = vld [vmem:[%s2 + $0x8] sm:$0xf]
  %v2741 = vld [vmem:[%s2 + $0xc] sm:$0xf]
  %v2742 = vld [vmem:[%s2 + $0x10] sm:$0xf]
  %v2743 = vld [vmem:[%s2 + $0x14] sm:$0xf]
  %v2744 = vld [vmem:[%s2 + $0x18] sm:$0xf]
  %v2745 = vld [vmem:[%s2 + $0x1c] sm:$0xf]
  %v2746 = vld [vmem:[%s2 + $0x20] sm:$0xf]
  %v2747 = vld [vmem:[%s2 + $0x24] sm:$0xf]
  %v2748 = vld [vmem:[%s2 + $0x28] sm:$0xf]
  %v2749 = vld [vmem:[%s2 + $0x2c] sm:$0xf]
  %v2750 = vld [vmem:[%s2 + $0x30] sm:$0xf]
  %v2751 = vld [vmem:[%s2 + $0x34] sm:$0xf]
  %v2752 = vld [vmem:[%s2 + $0x38] sm:$0xf]
  %v2753 = vld [vmem:[%s2 + $0x3c] sm:$0xf]
  %v2754 = vld [vmem:[%s2 + $0x40] sm:$0xf]
  %v2755 = vld [vmem:[%s2 + $0x44] sm:$0xf]
  %v2756 = vld [vmem:[%s2 + $0x48] sm:$0xf]
  %v2757 = vld [vmem:[%s2 + $0x4c] sm:$0xf]
  %v2758 = vld [vmem:[%s2 + $0x50] sm:$0xf]
  %v2759 = vld [vmem:[%s2 + $0x54] sm:$0xf]
  %v2760 = vld [vmem:[%s2 + $0x58] sm:$0xf]
  %v2761 = vld [vmem:[%s2 + $0x5c] sm:$0xf]
  %v2762 = vld [vmem:[%s2 + $0x60] sm:$0xf]
  %v2763 = vld [vmem:[%s2 + $0x64] sm:$0xf]
  %v2764 = vld [vmem:[%s2 + $0x68] sm:$0xf]
  %v2765 = vld [vmem:[%s2 + $0x6c] sm:$0xf]
  %v2766 = vld [vmem:[%s2 + $0x70] sm:$0xf]
  %v2767 = vld [vmem:[%s2 + $0x74] sm:$0xf]
  %v2768 = vld [vmem:[%s2 + $0x78] sm:$0xf]
  %v2769 = vld [vmem:[%s2 + $0x7c] sm:$0xf]
  %v2770 = vld [vmem:[%s2 + $0x80] sm:$0xf]
  %v2771 = vld [vmem:[%s2 + $0x84] sm:$0xf]
  %v2772 = vld [vmem:[%s2 + $0x88] sm:$0xf]
  %v2773 = vld [vmem:[%s2 + $0x8c] sm:$0xf]
  %v2774 = vld [vmem:[%s2 + $0x90] sm:$0xf]
  %v2775 = vld [vmem:[%s2 + $0x94] sm:$0xf]
  %v2776 = vld [vmem:[%s2 + $0x98] sm:$0xf]
  %v2777 = vld [vmem:[%s2 + $0x9c] sm:$0xf]
  %v2778 = vld [vmem:[%s2 + $0xa0] sm:$0xf]
  %v2779 = vld [vmem:[%s2 + $0xa4] sm:$0xf]
  %v2780 = vld [vmem:[%s2 + $0xa8] sm:$0xf]
  %v2781 = vld [vmem:[%s2 + $0xac] sm:$0xf]
  %v2782 = vld [vmem:[%s2 + $0xb0] sm:$0xf]
  %v2783 = vld [vmem:[%s2 + $0xb4] sm:$0xf]
  %v2784 = vld [vmem:[%s2 + $0xb8] sm:$0xf]
  %v2785 = vld [vmem:[%s2 + $0xbc] sm:$0xf]
  %v2786 = vld [vmem:[%s2 + $0xc0] sm:$0xf]
  %v2787 = vld [vmem:[%s2 + $0xc4] sm:$0xf]
  %v2788 = vld [vmem:[%s2 + $0xc8] sm:$0xf]
  %v2789 = vld [vmem:[%s2 + $0xcc] sm:$0xf]
  %v2790 = vld [vmem:[%s2 + $0xd0] sm:$0xf]
  %v2791 = vld [vmem:[%s2 + $0xd4] sm:$0xf]
  %v2792 = vld [vmem:[%s2 + $0xd8] sm:$0xf]
  %v2793 = vld [vmem:[%s2 + $0xdc] sm:$0xf]
  %v2794 = vld [vmem:[%s2 + $0xe0] sm:$0xf]
  %v2795 = vld [vmem:[%s2 + $0xe4] sm:$0xf]
  %v2796 = vld [vmem:[%s2 + $0xe8] sm:$0xf]
  %v2797 = vld [vmem:[%s2 + $0xec] sm:$0xf]
  %v2798 = vld [vmem:[%s2 + $0xf0] sm:$0xf]
  %v2799 = vld [vmem:[%s2 + $0xf4] sm:$0xf]
  %v2800 = vld [vmem:[%s2 + $0xf8] sm:$0xf]
  %v2801 = vld [vmem:[%s2 + $0xfc] sm:$0xf]
  %v2802 = vld [vmem:[%s14] sm:$0xf]
  %v2803 = vld [vmem:[%s14 + $0x4] sm:$0xf]
  %v2804 = vld [vmem:[%s14 + $0x8] sm:$0xf]
  %v2805 = vld [vmem:[%s14 + $0xc] sm:$0xf]
  %v2806 = vld [vmem:[%s14 + $0x10] sm:$0xf]
  %v2807 = vld [vmem:[%s14 + $0x14] sm:$0xf]
  %v2808 = vld [vmem:[%s14 + $0x18] sm:$0xf]
  %v2809 = vld [vmem:[%s14 + $0x1c] sm:$0xf]
  %v2810 = vld [vmem:[%s14 + $0x20] sm:$0xf]
  %v2811 = vld [vmem:[%s14 + $0x24] sm:$0xf]
  %v2812 = vld [vmem:[%s14 + $0x28] sm:$0xf]
  %v2813 = vld [vmem:[%s14 + $0x2c] sm:$0xf]
  %v2814 = vld [vmem:[%s14 + $0x30] sm:$0xf]
  %v2815 = vld [vmem:[%s14 + $0x34] sm:$0xf]
  %v2816 = vld [vmem:[%s14 + $0x38] sm:$0xf]
  %v2817 = vld [vmem:[%s14 + $0x3c] sm:$0xf]
  %v2882 = vunpack.c.l.b16 %v2738
  %v2883 = vunpack.c.l.b16 %v2739
  %v2884 = vunpack.c.l.b16 %v2740
  %v2885 = vunpack.c.l.b16 %v2741
  %v2886 = vunpack.c.l.b16 %v2742
  %v2887 = vunpack.c.l.b16 %v2743
  %v2888 = vunpack.c.l.b16 %v2744
  %v2889 = vunpack.c.l.b16 %v2745
  %v2890 = vunpack.c.l.b16 %v2746
  %v2891 = vunpack.c.l.b16 %v2747
  %v2892 = vunpack.c.l.b16 %v2748
  %v2893 = vunpack.c.l.b16 %v2749
  %v2894 = vunpack.c.l.b16 %v2750
  %v2895 = vunpack.c.l.b16 %v2751
  %v2896 = vunpack.c.l.b16 %v2752
  %v2897 = vunpack.c.l.b16 %v2753
  %v2898 = vunpack.c.l.b16 %v2754
  %v2899 = vunpack.c.l.b16 %v2755
  %v2900 = vunpack.c.l.b16 %v2756
  %v2901 = vunpack.c.l.b16 %v2757
  %v2902 = vunpack.c.l.b16 %v2758
  %v2903 = vunpack.c.l.b16 %v2759
  %v2904 = vunpack.c.l.b16 %v2760
  %v2905 = vunpack.c.l.b16 %v2761
  %v2906 = vunpack.c.l.b16 %v2762
  %v2907 = vunpack.c.l.b16 %v2763
  %v2908 = vunpack.c.l.b16 %v2764
  %v2909 = vunpack.c.l.b16 %v2765
  %v2910 = vunpack.c.l.b16 %v2766
  %v2911 = vunpack.c.l.b16 %v2767
  %v2912 = vunpack.c.l.b16 %v2768
  %v2913 = vunpack.c.l.b16 %v2769
  %v2914 = vunpack.c.l.b16 %v2770
  %v2915 = vunpack.c.l.b16 %v2771
  %v2916 = vunpack.c.l.b16 %v2772
  %v2917 = vunpack.c.l.b16 %v2773
  %v2918 = vunpack.c.l.b16 %v2774
  %v2919 = vunpack.c.l.b16 %v2775
  %v2920 = vunpack.c.l.b16 %v2776
  %v2921 = vunpack.c.l.b16 %v2777
  %v2922 = vunpack.c.l.b16 %v2778
  %v2923 = vunpack.c.l.b16 %v2779
  %v2924 = vunpack.c.l.b16 %v2780
  %v2925 = vunpack.c.l.b16 %v2781
  %v2926 = vunpack.c.l.b16 %v2782
  %v2927 = vunpack.c.l.b16 %v2783
  %v2928 = vunpack.c.l.b16 %v2784
  %v2929 = vunpack.c.l.b16 %v2785
  %v2930 = vunpack.c.l.b16 %v2786
  %v2931 = vunpack.c.l.b16 %v2787
  %v2932 = vunpack.c.l.b16 %v2788
  %v2933 = vunpack.c.l.b16 %v2789
  %v2934 = vunpack.c.l.b16 %v2790
  %v2935 = vunpack.c.l.b16 %v2791
  %v2936 = vunpack.c.l.b16 %v2792
  %v2937 = vunpack.c.l.b16 %v2793
  %v2938 = vunpack.c.l.b16 %v2794
  %v2939 = vunpack.c.l.b16 %v2795
  %v2940 = vunpack.c.l.b16 %v2796
  %v2941 = vunpack.c.l.b16 %v2797
  %v2942 = vunpack.c.l.b16 %v2798
  %v2943 = vunpack.c.l.b16 %v2799
  %v2944 = vunpack.c.l.b16 %v2800
  %v2945 = vunpack.c.l.b16 %v2801
  %v2946 = vpack.c.b16 %v2883, %v2882
  %v2947 = vpack.c.b16 %v2885, %v2884
  %v2948 = vpack.c.b16 %v2887, %v2886
  %v2949 = vpack.c.b16 %v2889, %v2888
  %v2950 = vpack.c.b16 %v2891, %v2890
  %v2951 = vpack.c.b16 %v2893, %v2892
  %v2952 = vpack.c.b16 %v2895, %v2894
  %v2953 = vpack.c.b16 %v2897, %v2896
  %v2954 = vpack.c.b16 %v2899, %v2898
  %v2955 = vpack.c.b16 %v2901, %v2900
  %v2956 = vpack.c.b16 %v2903, %v2902
  %v2957 = vpack.c.b16 %v2905, %v2904
  %v2958 = vpack.c.b16 %v2907, %v2906
  %v2959 = vpack.c.b16 %v2909, %v2908
  %v2960 = vpack.c.b16 %v2911, %v2910
  %v2961 = vpack.c.b16 %v2913, %v2912
  %v2962 = vpack.c.b16 %v2915, %v2914
  %v2963 = vpack.c.b16 %v2917, %v2916
  %v2964 = vpack.c.b16 %v2919, %v2918
  %v2965 = vpack.c.b16 %v2921, %v2920
  %v2966 = vpack.c.b16 %v2923, %v2922
  %v2967 = vpack.c.b16 %v2925, %v2924
  %v2968 = vpack.c.b16 %v2927, %v2926
  %v2969 = vpack.c.b16 %v2929, %v2928
  %v2970 = vpack.c.b16 %v2931, %v2930
  %v2971 = vpack.c.b16 %v2933, %v2932
  %v2972 = vpack.c.b16 %v2935, %v2934
  %v2973 = vpack.c.b16 %v2937, %v2936
  %v2974 = vpack.c.b16 %v2939, %v2938
  %v2975 = vpack.c.b16 %v2941, %v2940
  %v2976 = vpack.c.b16 %v2943, %v2942
  %v2977 = vpack.c.b16 %v2945, %v2944
  %v2986 = vunpack.c.l.b16 %v2810
  %v2987 = vunpack.c.l.b16 %v2811
  %v2988 = vunpack.c.l.b16 %v2812
  %v2989 = vunpack.c.l.b16 %v2813
  %v2990 = vunpack.c.l.b16 %v2814
  %v2991 = vunpack.c.l.b16 %v2815
  %v2992 = vunpack.c.l.b16 %v2816
  %v2993 = vunpack.c.l.b16 %v2817
  %v2994 = vpack.c.b16 %v2987, %v2986
  %v2995 = vpack.c.b16 %v2989, %v2988
  %v2996 = vpack.c.b16 %v2991, %v2990
  %v2997 = vpack.c.b16 %v2993, %v2992
  %v3003 = vsel %vm491, %v2946, 0
  %v3006 = vsel %vm491, %v2947, 0
  %v3009 = vsel %vm491, %v2948, 0
  %v3012 = vsel %vm491, %v2949, 0
  %v3015 = vsel %vm491, %v2950, 0
  %v3018 = vsel %vm491, %v2951, 0
  %v3021 = vsel %vm491, %v2952, 0
  %v3024 = vsel %vm491, %v2953, 0
  %v3027 = vsel %vm491, %v2954, 0
  %v3030 = vsel %vm491, %v2955, 0
  %v3033 = vsel %vm491, %v2956, 0
  %v3036 = vsel %vm491, %v2957, 0
  %v3039 = vsel %vm491, %v2958, 0
  %v3042 = vsel %vm491, %v2959, 0
  %v3045 = vsel %vm491, %v2960, 0
  %v3048 = vsel %vm491, %v2961, 0
  %v3051 = vsel %vm491, %v2962, 0
  %v3054 = vsel %vm491, %v2963, 0
  %v3057 = vsel %vm491, %v2964, 0
  %v3060 = vsel %vm491, %v2965, 0
  %v3063 = vsel %vm491, %v2966, 0
  %v3066 = vsel %vm491, %v2967, 0
  %v3069 = vsel %vm491, %v2968, 0
  %v3072 = vsel %vm491, %v2969, 0
  %v3075 = vsel %vm491, %v2970, 0
  %v3078 = vsel %vm491, %v2971, 0
  %v3081 = vsel %vm491, %v2972, 0
  %v3084 = vsel %vm491, %v2973, 0
  %v3087 = vsel %vm491, %v2974, 0
  %v3090 = vsel %vm491, %v2975, 0
  %v3093 = vsel %vm491, %v2976, 0
  %v3096 = vsel %vm491, %v2977, 0
  %3098 = vmatpush.bf16.msra.mxu0 0
  %3099 = vmatpush.bf16.msra.mxu0 0
  %3100 = vmatpush.bf16.msra.mxu0 0
  %3101 = vmatpush.bf16.msra.mxu0 0
  %3102 = vmatpush.bf16.msra.mxu0 %v2997
  %3103 = vmatpush.bf16.msra.mxu0 %v2996
  %3104 = vmatpush.bf16.msra.mxu0 %v2995
  %3105 = vmatpush.bf16.msra.mxu0 %v2994
  %3106 = vmatmul.bf16.gmra.mxu0 %v3003
  %v3107 = vpop.f32.mrf.mxu0
  %v3108 = vadd.f32 0.0, %v3107
  %v3109 = vpop.f32.mrf.mxu0
  %v3110 = vadd.f32 0.0, %v3109
  %3111 = vmatmul.bf16.gmra.mxu0 %v3006
  %v3112 = vpop.f32.mrf.mxu0
  %v3113 = vadd.f32 0.0, %v3112
  %v3114 = vpop.f32.mrf.mxu0
  %v3115 = vadd.f32 0.0, %v3114
  %3116 = vmatmul.bf16.gmra.mxu0 %v3009
  %v3117 = vpop.f32.mrf.mxu0
  %v3118 = vadd.f32 0.0, %v3117
  %v3119 = vpop.f32.mrf.mxu0
  %v3120 = vadd.f32 0.0, %v3119
  %3121 = vmatmul.bf16.gmra.mxu0 %v3012
  %v3122 = vpop.f32.mrf.mxu0
  %v3123 = vadd.f32 0.0, %v3122
  %v3124 = vpop.f32.mrf.mxu0
  %v3125 = vadd.f32 0.0, %v3124
  %3126 = vmatmul.bf16.gmra.mxu0 %v3015
  %v3127 = vpop.f32.mrf.mxu0
  %v3128 = vadd.f32 0.0, %v3127
  %v3129 = vpop.f32.mrf.mxu0
  %v3130 = vadd.f32 0.0, %v3129
  %3131 = vmatmul.bf16.gmra.mxu0 %v3018
  %v3132 = vpop.f32.mrf.mxu0
  %v3133 = vadd.f32 0.0, %v3132
  %v3134 = vpop.f32.mrf.mxu0
  %v3135 = vadd.f32 0.0, %v3134
  %3136 = vmatmul.bf16.gmra.mxu0 %v3021
  %v3137 = vpop.f32.mrf.mxu0
  %v3138 = vadd.f32 0.0, %v3137
  %v3139 = vpop.f32.mrf.mxu0
  %v3140 = vadd.f32 0.0, %v3139
  %3141 = vmatmul.bf16.gmra.mxu0 %v3024
  %v3142 = vpop.f32.mrf.mxu0
  %v3143 = vadd.f32 0.0, %v3142
  %v3144 = vpop.f32.mrf.mxu0
  %v3145 = vadd.f32 0.0, %v3144
  %3146 = vmatmul.bf16.gmra.mxu0 %v3027
  %v3147 = vpop.f32.mrf.mxu0
  %v3148 = vadd.f32 0.0, %v3147
  %v3149 = vpop.f32.mrf.mxu0
  %v3150 = vadd.f32 0.0, %v3149
  %3151 = vmatmul.bf16.gmra.mxu0 %v3030
  %v3152 = vpop.f32.mrf.mxu0
  %v3153 = vadd.f32 0.0, %v3152
  %v3154 = vpop.f32.mrf.mxu0
  %v3155 = vadd.f32 0.0, %v3154
  %3156 = vmatmul.bf16.gmra.mxu0 %v3033
  %v3157 = vpop.f32.mrf.mxu0
  %v3158 = vadd.f32 0.0, %v3157
  %v3159 = vpop.f32.mrf.mxu0
  %v3160 = vadd.f32 0.0, %v3159
  %3161 = vmatmul.bf16.gmra.mxu0 %v3036
  %v3162 = vpop.f32.mrf.mxu0
  %v3163 = vadd.f32 0.0, %v3162
  %v3164 = vpop.f32.mrf.mxu0
  %v3165 = vadd.f32 0.0, %v3164
  %3166 = vmatmul.bf16.gmra.mxu0 %v3039
  %v3167 = vpop.f32.mrf.mxu0
  %v3168 = vadd.f32 0.0, %v3167
  %v3169 = vpop.f32.mrf.mxu0
  %v3170 = vadd.f32 0.0, %v3169
  %3171 = vmatmul.bf16.gmra.mxu0 %v3042
  %v3172 = vpop.f32.mrf.mxu0
  %v3173 = vadd.f32 0.0, %v3172
  %v3174 = vpop.f32.mrf.mxu0
  %v3175 = vadd.f32 0.0, %v3174
  %3176 = vmatmul.bf16.gmra.mxu0 %v3045
  %v3177 = vpop.f32.mrf.mxu0
  %v3178 = vadd.f32 0.0, %v3177
  %v3179 = vpop.f32.mrf.mxu0
  %v3180 = vadd.f32 0.0, %v3179
  %3181 = vmatmul.bf16.gmra.mxu0 %v3048
  %v3182 = vpop.f32.mrf.mxu0
  %v3183 = vadd.f32 0.0, %v3182
  %v3184 = vpop.f32.mrf.mxu0
  %v3185 = vadd.f32 0.0, %v3184
  %3186 = vmatmul.bf16.gmra.mxu0 %v3051
  %v3187 = vpop.f32.mrf.mxu0
  %v3188 = vadd.f32 0.0, %v3187
  %v3189 = vpop.f32.mrf.mxu0
  %v3190 = vadd.f32 0.0, %v3189
  %3191 = vmatmul.bf16.gmra.mxu0 %v3054
  %v3192 = vpop.f32.mrf.mxu0
  %v3193 = vadd.f32 0.0, %v3192
  %v3194 = vpop.f32.mrf.mxu0
  %v3195 = vadd.f32 0.0, %v3194
  %3196 = vmatmul.bf16.gmra.mxu0 %v3057
  %v3197 = vpop.f32.mrf.mxu0
  %v3198 = vadd.f32 0.0, %v3197
  %v3199 = vpop.f32.mrf.mxu0
  %v3200 = vadd.f32 0.0, %v3199
  %3201 = vmatmul.bf16.gmra.mxu0 %v3060
  %v3202 = vpop.f32.mrf.mxu0
  %v3203 = vadd.f32 0.0, %v3202
  %v3204 = vpop.f32.mrf.mxu0
  %v3205 = vadd.f32 0.0, %v3204
  %3206 = vmatmul.bf16.gmra.mxu0 %v3063
  %v3207 = vpop.f32.mrf.mxu0
  %v3208 = vadd.f32 0.0, %v3207
  %v3209 = vpop.f32.mrf.mxu0
  %v3210 = vadd.f32 0.0, %v3209
  %3211 = vmatmul.bf16.gmra.mxu0 %v3066
  %v3212 = vpop.f32.mrf.mxu0
  %v3213 = vadd.f32 0.0, %v3212
  %v3214 = vpop.f32.mrf.mxu0
  %v3215 = vadd.f32 0.0, %v3214
  %3216 = vmatmul.bf16.gmra.mxu0 %v3069
  %v3217 = vpop.f32.mrf.mxu0
  %v3218 = vadd.f32 0.0, %v3217
  %v3219 = vpop.f32.mrf.mxu0
  %v3220 = vadd.f32 0.0, %v3219
  %3221 = vmatmul.bf16.gmra.mxu0 %v3072
  %v3222 = vpop.f32.mrf.mxu0
  %v3223 = vadd.f32 0.0, %v3222
  %v3224 = vpop.f32.mrf.mxu0
  %v3225 = vadd.f32 0.0, %v3224
  %3226 = vmatmul.bf16.gmra.mxu0 %v3075
  %v3227 = vpop.f32.mrf.mxu0
  %v3228 = vadd.f32 0.0, %v3227
  %v3229 = vpop.f32.mrf.mxu0
  %v3230 = vadd.f32 0.0, %v3229
  %3231 = vmatmul.bf16.gmra.mxu0 %v3078
  %v3232 = vpop.f32.mrf.mxu0
  %v3233 = vadd.f32 0.0, %v3232
  %v3234 = vpop.f32.mrf.mxu0
  %v3235 = vadd.f32 0.0, %v3234
  %3236 = vmatmul.bf16.gmra.mxu0 %v3081
  %v3237 = vpop.f32.mrf.mxu0
  %v3238 = vadd.f32 0.0, %v3237
  %v3239 = vpop.f32.mrf.mxu0
  %v3240 = vadd.f32 0.0, %v3239
  %3241 = vmatmul.bf16.gmra.mxu0 %v3084
  %v3242 = vpop.f32.mrf.mxu0
  %v3243 = vadd.f32 0.0, %v3242
  %v3244 = vpop.f32.mrf.mxu0
  %v3245 = vadd.f32 0.0, %v3244
  %3246 = vmatmul.bf16.gmra.mxu0 %v3087
  %v3247 = vpop.f32.mrf.mxu0
  %v3248 = vadd.f32 0.0, %v3247
  %v3249 = vpop.f32.mrf.mxu0
  %v3250 = vadd.f32 0.0, %v3249
  %3251 = vmatmul.bf16.gmra.mxu0 %v3090
  %v3252 = vpop.f32.mrf.mxu0
  %v3253 = vadd.f32 0.0, %v3252
  %v3254 = vpop.f32.mrf.mxu0
  %v3255 = vadd.f32 0.0, %v3254
  %3256 = vmatmul.bf16.gmra.mxu0 %v3093
  %v3257 = vpop.f32.mrf.mxu0
  %v3258 = vadd.f32 0.0, %v3257
  %v3259 = vpop.f32.mrf.mxu0
  %v3260 = vadd.f32 0.0, %v3259
  %3261 = vmatmul.bf16.gmra.mxu0 %v3096
  %v3262 = vpop.f32.mrf.mxu0
  %v3263 = vadd.f32 0.0, %v3262
  %v3264 = vpop.f32.mrf.mxu0
  %v3265 = vadd.f32 0.0, %v3264
  %3266 = vdwg.mxu0
  %v3275 = vunpack.c.l.b16 %v2802
  %v3276 = vunpack.c.l.b16 %v2803
  %v3277 = vunpack.c.l.b16 %v2804
  %v3278 = vunpack.c.l.b16 %v2805
  %v3279 = vunpack.c.l.b16 %v2806
  %v3280 = vunpack.c.l.b16 %v2807
  %v3281 = vunpack.c.l.b16 %v2808
  %v3282 = vunpack.c.l.b16 %v2809
  %v3283 = vpack.c.b16 %v3276, %v3275
  %v3284 = vpack.c.b16 %v3278, %v3277
  %v3285 = vpack.c.b16 %v3280, %v3279
  %v3286 = vpack.c.b16 %v3282, %v3281
  %v3292 = vsel %vm491, %v2706, 0
  %v3295 = vsel %vm491, %v2707, 0
  %v3298 = vsel %vm491, %v2708, 0
  %v3301 = vsel %vm491, %v2709, 0
  %v3304 = vsel %vm491, %v2710, 0
  %v3307 = vsel %vm491, %v2711, 0
  %v3310 = vsel %vm491, %v2712, 0
  %v3313 = vsel %vm491, %v2713, 0
  %v3316 = vsel %vm491, %v2714, 0
  %v3319 = vsel %vm491, %v2715, 0
  %v3322 = vsel %vm491, %v2716, 0
  %v3325 = vsel %vm491, %v2717, 0
  %v3328 = vsel %vm491, %v2718, 0
  %v3331 = vsel %vm491, %v2719, 0
  %v3334 = vsel %vm491, %v2720, 0
  %v3337 = vsel %vm491, %v2721, 0
  %v3340 = vsel %vm491, %v2722, 0
  %v3343 = vsel %vm491, %v2723, 0
  %v3346 = vsel %vm491, %v2724, 0
  %v3349 = vsel %vm491, %v2725, 0
  %v3352 = vsel %vm491, %v2726, 0
  %v3355 = vsel %vm491, %v2727, 0
  %v3358 = vsel %vm491, %v2728, 0
  %v3361 = vsel %vm491, %v2729, 0
  %v3364 = vsel %vm491, %v2730, 0
  %v3367 = vsel %vm491, %v2731, 0
  %v3370 = vsel %vm491, %v2732, 0
  %v3373 = vsel %vm491, %v2733, 0
  %v3376 = vsel %vm491, %v2734, 0
  %v3379 = vsel %vm491, %v2735, 0
  %v3382 = vsel %vm491, %v2736, 0
  %v3385 = vsel %vm491, %v2737, 0
  %3387 = vmatpush.bf16.msra.mxu0 0
  %3388 = vmatpush.bf16.msra.mxu0 0
  %3389 = vmatpush.bf16.msra.mxu0 0
  %3390 = vmatpush.bf16.msra.mxu0 0
  %3391 = vmatpush.bf16.msra.mxu0 %v3286
  %3392 = vmatpush.bf16.msra.mxu0 %v3285
  %3393 = vmatpush.bf16.msra.mxu0 %v3284
  %3394 = vmatpush.bf16.msra.mxu0 %v3283
  %3395 = vmatmul.bf16.gmra.mxu0 %v3292
  %v3396 = vpop.f32.mrf.mxu0
  %v3397 = vadd.f32 %v3108, %v3396
  %v3398 = vpop.f32.mrf.mxu0
  %v3399 = vadd.f32 %v3110, %v3398
  %3400 = vmatmul.bf16.gmra.mxu0 %v3295
  %v3401 = vpop.f32.mrf.mxu0
  %v3402 = vadd.f32 %v3113, %v3401
  %v3403 = vpop.f32.mrf.mxu0
  %v3404 = vadd.f32 %v3115, %v3403
  %3405 = vmatmul.bf16.gmra.mxu0 %v3298
  %v3406 = vpop.f32.mrf.mxu0
  %v3407 = vadd.f32 %v3118, %v3406
  %v3408 = vpop.f32.mrf.mxu0
  %v3409 = vadd.f32 %v3120, %v3408
  %3410 = vmatmul.bf16.gmra.mxu0 %v3301
  %v3411 = vpop.f32.mrf.mxu0
  %v3412 = vadd.f32 %v3123, %v3411
  %v3413 = vpop.f32.mrf.mxu0
  %v3414 = vadd.f32 %v3125, %v3413
  %3415 = vmatmul.bf16.gmra.mxu0 %v3304
  %v3416 = vpop.f32.mrf.mxu0
  %v3417 = vadd.f32 %v3128, %v3416
  %v3418 = vpop.f32.mrf.mxu0
  %v3419 = vadd.f32 %v3130, %v3418
  %3420 = vmatmul.bf16.gmra.mxu0 %v3307
  %v3421 = vpop.f32.mrf.mxu0
  %v3422 = vadd.f32 %v3133, %v3421
  %v3423 = vpop.f32.mrf.mxu0
  %v3424 = vadd.f32 %v3135, %v3423
  %3425 = vmatmul.bf16.gmra.mxu0 %v3310
  %v3426 = vpop.f32.mrf.mxu0
  %v3427 = vadd.f32 %v3138, %v3426
  %v3428 = vpop.f32.mrf.mxu0
  %v3429 = vadd.f32 %v3140, %v3428
  %3430 = vmatmul.bf16.gmra.mxu0 %v3313
  %v3431 = vpop.f32.mrf.mxu0
  %v3432 = vadd.f32 %v3143, %v3431
  %v3433 = vpop.f32.mrf.mxu0
  %v3434 = vadd.f32 %v3145, %v3433
  %3435 = vmatmul.bf16.gmra.mxu0 %v3316
  %v3436 = vpop.f32.mrf.mxu0
  %v3437 = vadd.f32 %v3148, %v3436
  %v3438 = vpop.f32.mrf.mxu0
  %v3439 = vadd.f32 %v3150, %v3438
  %3440 = vmatmul.bf16.gmra.mxu0 %v3319
  %v3441 = vpop.f32.mrf.mxu0
  %v3442 = vadd.f32 %v3153, %v3441
  %v3443 = vpop.f32.mrf.mxu0
  %v3444 = vadd.f32 %v3155, %v3443
  %3445 = vmatmul.bf16.gmra.mxu0 %v3322
  %v3446 = vpop.f32.mrf.mxu0
  %v3447 = vadd.f32 %v3158, %v3446
  %v3448 = vpop.f32.mrf.mxu0
  %v3449 = vadd.f32 %v3160, %v3448
  %3450 = vmatmul.bf16.gmra.mxu0 %v3325
  %v3451 = vpop.f32.mrf.mxu0
  %v3452 = vadd.f32 %v3163, %v3451
  %v3453 = vpop.f32.mrf.mxu0
  %v3454 = vadd.f32 %v3165, %v3453
  %3455 = vmatmul.bf16.gmra.mxu0 %v3328
  %v3456 = vpop.f32.mrf.mxu0
  %v3457 = vadd.f32 %v3168, %v3456
  %v3458 = vpop.f32.mrf.mxu0
  %v3459 = vadd.f32 %v3170, %v3458
  %3460 = vmatmul.bf16.gmra.mxu0 %v3331
  %v3461 = vpop.f32.mrf.mxu0
  %v3462 = vadd.f32 %v3173, %v3461
  %v3463 = vpop.f32.mrf.mxu0
  %v3464 = vadd.f32 %v3175, %v3463
  %3465 = vmatmul.bf16.gmra.mxu0 %v3334
  %v3466 = vpop.f32.mrf.mxu0
  %v3467 = vadd.f32 %v3178, %v3466
  %v3468 = vpop.f32.mrf.mxu0
  %v3469 = vadd.f32 %v3180, %v3468
  %3470 = vmatmul.bf16.gmra.mxu0 %v3337
  %v3471 = vpop.f32.mrf.mxu0
  %v3472 = vadd.f32 %v3183, %v3471
  %v3473 = vpop.f32.mrf.mxu0
  %v3474 = vadd.f32 %v3185, %v3473
  %3475 = vmatmul.bf16.gmra.mxu0 %v3340
  %v3476 = vpop.f32.mrf.mxu0
  %v3477 = vadd.f32 %v3188, %v3476
  %v3478 = vpop.f32.mrf.mxu0
  %v3479 = vadd.f32 %v3190, %v3478
  %3480 = vmatmul.bf16.gmra.mxu0 %v3343
  %v3481 = vpop.f32.mrf.mxu0
  %v3482 = vadd.f32 %v3193, %v3481
  %v3483 = vpop.f32.mrf.mxu0
  %v3484 = vadd.f32 %v3195, %v3483
  %3485 = vmatmul.bf16.gmra.mxu0 %v3346
  %v3486 = vpop.f32.mrf.mxu0
  %v3487 = vadd.f32 %v3198, %v3486
  %v3488 = vpop.f32.mrf.mxu0
  %v3489 = vadd.f32 %v3200, %v3488
  %3490 = vmatmul.bf16.gmra.mxu0 %v3349
  %v3491 = vpop.f32.mrf.mxu0
  %v3492 = vadd.f32 %v3203, %v3491
  %v3493 = vpop.f32.mrf.mxu0
  %v3494 = vadd.f32 %v3205, %v3493
  %3495 = vmatmul.bf16.gmra.mxu0 %v3352
  %v3496 = vpop.f32.mrf.mxu0
  %v3497 = vadd.f32 %v3208, %v3496
  %v3498 = vpop.f32.mrf.mxu0
  %v3499 = vadd.f32 %v3210, %v3498
  %3500 = vmatmul.bf16.gmra.mxu0 %v3355
  %v3501 = vpop.f32.mrf.mxu0
  %v3502 = vadd.f32 %v3213, %v3501
  %v3503 = vpop.f32.mrf.mxu0
  %v3504 = vadd.f32 %v3215, %v3503
  %3505 = vmatmul.bf16.gmra.mxu0 %v3358
  %v3506 = vpop.f32.mrf.mxu0
  %v3507 = vadd.f32 %v3218, %v3506
  %v3508 = vpop.f32.mrf.mxu0
  %v3509 = vadd.f32 %v3220, %v3508
  %3510 = vmatmul.bf16.gmra.mxu0 %v3361
  %v3511 = vpop.f32.mrf.mxu0
  %v3512 = vadd.f32 %v3223, %v3511
  %v3513 = vpop.f32.mrf.mxu0
  %v3514 = vadd.f32 %v3225, %v3513
  %3515 = vmatmul.bf16.gmra.mxu0 %v3364
  %v3516 = vpop.f32.mrf.mxu0
  %v3517 = vadd.f32 %v3228, %v3516
  %v3518 = vpop.f32.mrf.mxu0
  %v3519 = vadd.f32 %v3230, %v3518
  %3520 = vmatmul.bf16.gmra.mxu0 %v3367
  %v3521 = vpop.f32.mrf.mxu0
  %v3522 = vadd.f32 %v3233, %v3521
  %v3523 = vpop.f32.mrf.mxu0
  %v3524 = vadd.f32 %v3235, %v3523
  %3525 = vmatmul.bf16.gmra.mxu0 %v3370
  %v3526 = vpop.f32.mrf.mxu0
  %v3527 = vadd.f32 %v3238, %v3526
  %v3528 = vpop.f32.mrf.mxu0
  %v3529 = vadd.f32 %v3240, %v3528
  %3530 = vmatmul.bf16.gmra.mxu0 %v3373
  %v3531 = vpop.f32.mrf.mxu0
  %v3532 = vadd.f32 %v3243, %v3531
  %v3533 = vpop.f32.mrf.mxu0
  %v3534 = vadd.f32 %v3245, %v3533
  %3535 = vmatmul.bf16.gmra.mxu0 %v3376
  %v3536 = vpop.f32.mrf.mxu0
  %v3537 = vadd.f32 %v3248, %v3536
  %v3538 = vpop.f32.mrf.mxu0
  %v3539 = vadd.f32 %v3250, %v3538
  %3540 = vmatmul.bf16.gmra.mxu0 %v3379
  %v3541 = vpop.f32.mrf.mxu0
  %v3542 = vadd.f32 %v3253, %v3541
  %v3543 = vpop.f32.mrf.mxu0
  %v3544 = vadd.f32 %v3255, %v3543
  %3545 = vmatmul.bf16.gmra.mxu0 %v3382
  %v3546 = vpop.f32.mrf.mxu0
  %v3547 = vadd.f32 %v3258, %v3546
  %v3548 = vpop.f32.mrf.mxu0
  %v3549 = vadd.f32 %v3260, %v3548
  %3550 = vmatmul.bf16.gmra.mxu0 %v3385
  %v3551 = vpop.f32.mrf.mxu0
  %v3552 = vadd.f32 %v3263, %v3551
  %v3553 = vpop.f32.mrf.mxu0
  %v3554 = vadd.f32 %v3265, %v3553
  %3555 = vdwg.mxu0
  %v3556 = vld [vmem:[%s15] sm:$0x1]
  %v3557 = vperm.slane %v3556, 0
  %v3558 = vadd.f32 %v3397, %v3557
  %v3559 = vadd.f32 %v3399, %v3557
  %v3560 = vadd.f32 %v3402, %v3557
  %v3561 = vadd.f32 %v3404, %v3557
  %v3562 = vadd.f32 %v3407, %v3557
  %v3563 = vadd.f32 %v3409, %v3557
  %v3564 = vadd.f32 %v3412, %v3557
  %v3565 = vadd.f32 %v3414, %v3557
  %v3566 = vadd.f32 %v3417, %v3557
  %v3567 = vadd.f32 %v3419, %v3557
  %v3568 = vadd.f32 %v3422, %v3557
  %v3569 = vadd.f32 %v3424, %v3557
  %v3570 = vadd.f32 %v3427, %v3557
  %v3571 = vadd.f32 %v3429, %v3557
  %v3572 = vadd.f32 %v3432, %v3557
  %v3573 = vadd.f32 %v3434, %v3557
  %v3574 = vadd.f32 %v3437, %v3557
  %v3575 = vadd.f32 %v3439, %v3557
  %v3576 = vadd.f32 %v3442, %v3557
  %v3577 = vadd.f32 %v3444, %v3557
  %v3578 = vadd.f32 %v3447, %v3557
  %v3579 = vadd.f32 %v3449, %v3557
  %v3580 = vadd.f32 %v3452, %v3557
  %v3581 = vadd.f32 %v3454, %v3557
  %v3582 = vadd.f32 %v3457, %v3557
  %v3583 = vadd.f32 %v3459, %v3557
  %v3584 = vadd.f32 %v3462, %v3557
  %v3585 = vadd.f32 %v3464, %v3557
  %v3586 = vadd.f32 %v3467, %v3557
  %v3587 = vadd.f32 %v3469, %v3557
  %v3588 = vadd.f32 %v3472, %v3557
  %v3589 = vadd.f32 %v3474, %v3557
  %v3590 = vadd.f32 %v3477, %v3557
  %v3591 = vadd.f32 %v3479, %v3557
  %v3592 = vadd.f32 %v3482, %v3557
  %v3593 = vadd.f32 %v3484, %v3557
  %v3594 = vadd.f32 %v3487, %v3557
  %v3595 = vadd.f32 %v3489, %v3557
  %v3596 = vadd.f32 %v3492, %v3557
  %v3597 = vadd.f32 %v3494, %v3557
  %v3598 = vadd.f32 %v3497, %v3557
  %v3599 = vadd.f32 %v3499, %v3557
  %v3600 = vadd.f32 %v3502, %v3557
  %v3601 = vadd.f32 %v3504, %v3557
  %v3602 = vadd.f32 %v3507, %v3557
  %v3603 = vadd.f32 %v3509, %v3557
  %v3604 = vadd.f32 %v3512, %v3557
  %v3605 = vadd.f32 %v3514, %v3557
  %v3606 = vadd.f32 %v3517, %v3557
  %v3607 = vadd.f32 %v3519, %v3557
  %v3608 = vadd.f32 %v3522, %v3557
  %v3609 = vadd.f32 %v3524, %v3557
  %v3610 = vadd.f32 %v3527, %v3557
  %v3611 = vadd.f32 %v3529, %v3557
  %v3612 = vadd.f32 %v3532, %v3557
  %v3613 = vadd.f32 %v3534, %v3557
  %v3614 = vadd.f32 %v3537, %v3557
  %v3615 = vadd.f32 %v3539, %v3557
  %v3616 = vadd.f32 %v3542, %v3557
  %v3617 = vadd.f32 %v3544, %v3557
  %v3618 = vadd.f32 %v3547, %v3557
  %v3619 = vadd.f32 %v3549, %v3557
  %v3620 = vadd.f32 %v3552, %v3557
  %v3621 = vadd.f32 %v3554, %v3557
  %v3622 = vmax.f32 %v3558, 0.0
  %v3623 = vmax.f32 %v3559, 0.0
  %v3624 = vmax.f32 %v3560, 0.0
  %v3625 = vmax.f32 %v3561, 0.0
  %v3626 = vmax.f32 %v3562, 0.0
  %v3627 = vmax.f32 %v3563, 0.0
  %v3628 = vmax.f32 %v3564, 0.0
  %v3629 = vmax.f32 %v3565, 0.0
  %v3630 = vmax.f32 %v3566, 0.0
  %v3631 = vmax.f32 %v3567, 0.0
  %v3632 = vmax.f32 %v3568, 0.0
  %v3633 = vmax.f32 %v3569, 0.0
  %v3634 = vmax.f32 %v3570, 0.0
  %v3635 = vmax.f32 %v3571, 0.0
  %v3636 = vmax.f32 %v3572, 0.0
  %v3637 = vmax.f32 %v3573, 0.0
  %v3638 = vmax.f32 %v3574, 0.0
  %v3639 = vmax.f32 %v3575, 0.0
  %v3640 = vmax.f32 %v3576, 0.0
  %v3641 = vmax.f32 %v3577, 0.0
  %v3642 = vmax.f32 %v3578, 0.0
  %v3643 = vmax.f32 %v3579, 0.0
  %v3644 = vmax.f32 %v3580, 0.0
  %v3645 = vmax.f32 %v3581, 0.0
  %v3646 = vmax.f32 %v3582, 0.0
  %v3647 = vmax.f32 %v3583, 0.0
  %v3648 = vmax.f32 %v3584, 0.0
  %v3649 = vmax.f32 %v3585, 0.0
  %v3650 = vmax.f32 %v3586, 0.0
  %v3651 = vmax.f32 %v3587, 0.0
  %v3652 = vmax.f32 %v3588, 0.0
  %v3653 = vmax.f32 %v3589, 0.0
  %v3654 = vmax.f32 %v3590, 0.0
  %v3655 = vmax.f32 %v3591, 0.0
  %v3656 = vmax.f32 %v3592, 0.0
  %v3657 = vmax.f32 %v3593, 0.0
  %v3658 = vmax.f32 %v3594, 0.0
  %v3659 = vmax.f32 %v3595, 0.0
  %v3660 = vmax.f32 %v3596, 0.0
  %v3661 = vmax.f32 %v3597, 0.0
  %v3662 = vmax.f32 %v3598, 0.0
  %v3663 = vmax.f32 %v3599, 0.0
  %v3664 = vmax.f32 %v3600, 0.0
  %v3665 = vmax.f32 %v3601, 0.0
  %v3666 = vmax.f32 %v3602, 0.0
  %v3667 = vmax.f32 %v3603, 0.0
  %v3668 = vmax.f32 %v3604, 0.0
  %v3669 = vmax.f32 %v3605, 0.0
  %v3670 = vmax.f32 %v3606, 0.0
  %v3671 = vmax.f32 %v3607, 0.0
  %v3672 = vmax.f32 %v3608, 0.0
  %v3673 = vmax.f32 %v3609, 0.0
  %v3674 = vmax.f32 %v3610, 0.0
  %v3675 = vmax.f32 %v3611, 0.0
  %v3676 = vmax.f32 %v3612, 0.0
  %v3677 = vmax.f32 %v3613, 0.0
  %v3678 = vmax.f32 %v3614, 0.0
  %v3679 = vmax.f32 %v3615, 0.0
  %v3680 = vmax.f32 %v3616, 0.0
  %v3681 = vmax.f32 %v3617, 0.0
  %v3682 = vmax.f32 %v3618, 0.0
  %v3683 = vmax.f32 %v3619, 0.0
  %v3684 = vmax.f32 %v3620, 0.0
  %v3685 = vmax.f32 %v3621, 0.0
  %v3686 = vpack.c.bf16 %v3623, %v3622
  %v3687 = vpack.c.bf16 %v3625, %v3624
  %v3688 = vpack.c.bf16 %v3627, %v3626
  %v3689 = vpack.c.bf16 %v3629, %v3628
  %v3690 = vpack.c.bf16 %v3631, %v3630
  %v3691 = vpack.c.bf16 %v3633, %v3632
  %v3692 = vpack.c.bf16 %v3635, %v3634
  %v3693 = vpack.c.bf16 %v3637, %v3636
  %v3694 = vpack.c.bf16 %v3639, %v3638
  %v3695 = vpack.c.bf16 %v3641, %v3640
  %v3696 = vpack.c.bf16 %v3643, %v3642
  %v3697 = vpack.c.bf16 %v3645, %v3644
  %v3698 = vpack.c.bf16 %v3647, %v3646
  %v3699 = vpack.c.bf16 %v3649, %v3648
  %v3700 = vpack.c.bf16 %v3651, %v3650
  %v3701 = vpack.c.bf16 %v3653, %v3652
  %v3702 = vpack.c.bf16 %v3655, %v3654
  %v3703 = vpack.c.bf16 %v3657, %v3656
  %v3704 = vpack.c.bf16 %v3659, %v3658
  %v3705 = vpack.c.bf16 %v3661, %v3660
  %v3706 = vpack.c.bf16 %v3663, %v3662
  %v3707 = vpack.c.bf16 %v3665, %v3664
  %v3708 = vpack.c.bf16 %v3667, %v3666
  %v3709 = vpack.c.bf16 %v3669, %v3668
  %v3710 = vpack.c.bf16 %v3671, %v3670
  %v3711 = vpack.c.bf16 %v3673, %v3672
  %v3712 = vpack.c.bf16 %v3675, %v3674
  %v3713 = vpack.c.bf16 %v3677, %v3676
  %v3714 = vpack.c.bf16 %v3679, %v3678
  %v3715 = vpack.c.bf16 %v3681, %v3680
  %v3716 = vpack.c.bf16 %v3683, %v3682
  %v3717 = vpack.c.bf16 %v3685, %v3684
  %s3718 = scalar_lea.vmem %s14, 64
  %v3719 = vld [vmem:[%s3718] sm:$0xf]
  %v3720 = vld [vmem:[%s3718 + $0x4] sm:$0xf]
  %v3721 = vld [vmem:[%s3718 + $0x8] sm:$0xf]
  %v3722 = vld [vmem:[%s3718 + $0xc] sm:$0xf]
  %v3723 = vld [vmem:[%s3718 + $0x10] sm:$0xf]
  %v3724 = vld [vmem:[%s3718 + $0x14] sm:$0xf]
  %v3725 = vld [vmem:[%s3718 + $0x18] sm:$0xf]
  %v3726 = vld [vmem:[%s3718 + $0x1c] sm:$0xf]
  %v3727 = vld [vmem:[%s3718 + $0x20] sm:$0xf]
  %v3728 = vld [vmem:[%s3718 + $0x24] sm:$0xf]
  %v3729 = vld [vmem:[%s3718 + $0x28] sm:$0xf]
  %v3730 = vld [vmem:[%s3718 + $0x2c] sm:$0xf]
  %v3731 = vld [vmem:[%s3718 + $0x30] sm:$0xf]
  %v3732 = vld [vmem:[%s3718 + $0x34] sm:$0xf]
  %v3733 = vld [vmem:[%s3718 + $0x38] sm:$0xf]
  %v3734 = vld [vmem:[%s3718 + $0x3c] sm:$0xf]
  %v3735 = vld [vmem:[%s15 + $0x1] sm:$0x1]
  %v3736 = vperm.slane %v3735, 0
  %v3753 = vunpack.c.l.b16 %v3719
  %v3754 = vunpack.c.l.b16 %v3720
  %v3755 = vunpack.c.l.b16 %v3721
  %v3756 = vunpack.c.l.b16 %v3722
  %v3757 = vunpack.c.l.b16 %v3723
  %v3758 = vunpack.c.l.b16 %v3724
  %v3759 = vunpack.c.l.b16 %v3725
  %v3760 = vunpack.c.l.b16 %v3726
  %v3761 = vunpack.c.l.b16 %v3727
  %v3762 = vunpack.c.l.b16 %v3728
  %v3763 = vunpack.c.l.b16 %v3729
  %v3764 = vunpack.c.l.b16 %v3730
  %v3765 = vunpack.c.l.b16 %v3731
  %v3766 = vunpack.c.l.b16 %v3732
  %v3767 = vunpack.c.l.b16 %v3733
  %v3768 = vunpack.c.l.b16 %v3734
  %v3769 = vpack.c.b16 %v3754, %v3753
  %v3770 = vpack.c.b16 %v3756, %v3755
  %v3771 = vpack.c.b16 %v3758, %v3757
  %v3772 = vpack.c.b16 %v3760, %v3759
  %v3773 = vpack.c.b16 %v3762, %v3761
  %v3774 = vpack.c.b16 %v3764, %v3763
  %v3775 = vpack.c.b16 %v3766, %v3765
  %v3776 = vpack.c.b16 %v3768, %v3767
  %3785 = vmatpush.bf16.msra.mxu0 %v3776
  %3786 = vmatpush.bf16.msra.mxu0 %v3775
  %3787 = vmatpush.bf16.msra.mxu0 %v3774
  %3788 = vmatpush.bf16.msra.mxu0 %v3773
  %3789 = vmatpush.bf16.msra.mxu0 %v3772
  %3790 = vmatpush.bf16.msra.mxu0 %v3771
  %3791 = vmatpush.bf16.msra.mxu0 %v3770
  %3792 = vmatpush.bf16.msra.mxu0 %v3769
  %3793 = vmatmul.bf16.gmra.mxu0 %v3686
  %v3794 = vpop.f32.mrf.mxu0
  %v3795 = vadd.f32 %v3736, %v3794
  %v3796 = vpop.f32.mrf.mxu0
  %v3797 = vadd.f32 %v3736, %v3796
  %3798 = vmatmul.bf16.gmra.mxu0 %v3687
  %v3799 = vpop.f32.mrf.mxu0
  %v3800 = vadd.f32 %v3736, %v3799
  %v3801 = vpop.f32.mrf.mxu0
  %v3802 = vadd.f32 %v3736, %v3801
  %3803 = vmatmul.bf16.gmra.mxu0 %v3688
  %v3804 = vpop.f32.mrf.mxu0
  %v3805 = vadd.f32 %v3736, %v3804
  %v3806 = vpop.f32.mrf.mxu0
  %v3807 = vadd.f32 %v3736, %v3806
  %3808 = vmatmul.bf16.gmra.mxu0 %v3689
  %v3809 = vpop.f32.mrf.mxu0
  %v3810 = vadd.f32 %v3736, %v3809
  %v3811 = vpop.f32.mrf.mxu0
  %v3812 = vadd.f32 %v3736, %v3811
  %3813 = vmatmul.bf16.gmra.mxu0 %v3690
  %v3814 = vpop.f32.mrf.mxu0
  %v3815 = vadd.f32 %v3736, %v3814
  %v3816 = vpop.f32.mrf.mxu0
  %v3817 = vadd.f32 %v3736, %v3816
  %3818 = vmatmul.bf16.gmra.mxu0 %v3691
  %v3819 = vpop.f32.mrf.mxu0
  %v3820 = vadd.f32 %v3736, %v3819
  %v3821 = vpop.f32.mrf.mxu0
  %v3822 = vadd.f32 %v3736, %v3821
  %3823 = vmatmul.bf16.gmra.mxu0 %v3692
  %v3824 = vpop.f32.mrf.mxu0
  %v3825 = vadd.f32 %v3736, %v3824
  %v3826 = vpop.f32.mrf.mxu0
  %v3827 = vadd.f32 %v3736, %v3826
  %3828 = vmatmul.bf16.gmra.mxu0 %v3693
  %v3829 = vpop.f32.mrf.mxu0
  %v3830 = vadd.f32 %v3736, %v3829
  %v3831 = vpop.f32.mrf.mxu0
  %v3832 = vadd.f32 %v3736, %v3831
  %3833 = vmatmul.bf16.gmra.mxu0 %v3694
  %v3834 = vpop.f32.mrf.mxu0
  %v3835 = vadd.f32 %v3736, %v3834
  %v3836 = vpop.f32.mrf.mxu0
  %v3837 = vadd.f32 %v3736, %v3836
  %3838 = vmatmul.bf16.gmra.mxu0 %v3695
  %v3839 = vpop.f32.mrf.mxu0
  %v3840 = vadd.f32 %v3736, %v3839
  %v3841 = vpop.f32.mrf.mxu0
  %v3842 = vadd.f32 %v3736, %v3841
  %3843 = vmatmul.bf16.gmra.mxu0 %v3696
  %v3844 = vpop.f32.mrf.mxu0
  %v3845 = vadd.f32 %v3736, %v3844
  %v3846 = vpop.f32.mrf.mxu0
  %v3847 = vadd.f32 %v3736, %v3846
  %3848 = vmatmul.bf16.gmra.mxu0 %v3697
  %v3849 = vpop.f32.mrf.mxu0
  %v3850 = vadd.f32 %v3736, %v3849
  %v3851 = vpop.f32.mrf.mxu0
  %v3852 = vadd.f32 %v3736, %v3851
  %3853 = vmatmul.bf16.gmra.mxu0 %v3698
  %v3854 = vpop.f32.mrf.mxu0
  %v3855 = vadd.f32 %v3736, %v3854
  %v3856 = vpop.f32.mrf.mxu0
  %v3857 = vadd.f32 %v3736, %v3856
  %3858 = vmatmul.bf16.gmra.mxu0 %v3699
  %v3859 = vpop.f32.mrf.mxu0
  %v3860 = vadd.f32 %v3736, %v3859
  %v3861 = vpop.f32.mrf.mxu0
  %v3862 = vadd.f32 %v3736, %v3861
  %3863 = vmatmul.bf16.gmra.mxu0 %v3700
  %v3864 = vpop.f32.mrf.mxu0
  %v3865 = vadd.f32 %v3736, %v3864
  %v3866 = vpop.f32.mrf.mxu0
  %v3867 = vadd.f32 %v3736, %v3866
  %3868 = vmatmul.bf16.gmra.mxu0 %v3701
  %v3869 = vpop.f32.mrf.mxu0
  %v3870 = vadd.f32 %v3736, %v3869
  %v3871 = vpop.f32.mrf.mxu0
  %v3872 = vadd.f32 %v3736, %v3871
  %3873 = vmatmul.bf16.gmra.mxu0 %v3702
  %v3874 = vpop.f32.mrf.mxu0
  %v3875 = vadd.f32 %v3736, %v3874
  %v3876 = vpop.f32.mrf.mxu0
  %v3877 = vadd.f32 %v3736, %v3876
  %3878 = vmatmul.bf16.gmra.mxu0 %v3703
  %v3879 = vpop.f32.mrf.mxu0
  %v3880 = vadd.f32 %v3736, %v3879
  %v3881 = vpop.f32.mrf.mxu0
  %v3882 = vadd.f32 %v3736, %v3881
  %3883 = vmatmul.bf16.gmra.mxu0 %v3704
  %v3884 = vpop.f32.mrf.mxu0
  %v3885 = vadd.f32 %v3736, %v3884
  %v3886 = vpop.f32.mrf.mxu0
  %v3887 = vadd.f32 %v3736, %v3886
  %3888 = vmatmul.bf16.gmra.mxu0 %v3705
  %v3889 = vpop.f32.mrf.mxu0
  %v3890 = vadd.f32 %v3736, %v3889
  %v3891 = vpop.f32.mrf.mxu0
  %v3892 = vadd.f32 %v3736, %v3891
  %3893 = vmatmul.bf16.gmra.mxu0 %v3706
  %v3894 = vpop.f32.mrf.mxu0
  %v3895 = vadd.f32 %v3736, %v3894
  %v3896 = vpop.f32.mrf.mxu0
  %v3897 = vadd.f32 %v3736, %v3896
  %3898 = vmatmul.bf16.gmra.mxu0 %v3707
  %v3899 = vpop.f32.mrf.mxu0
  %v3900 = vadd.f32 %v3736, %v3899
  %v3901 = vpop.f32.mrf.mxu0
  %v3902 = vadd.f32 %v3736, %v3901
  %3903 = vmatmul.bf16.gmra.mxu0 %v3708
  %v3904 = vpop.f32.mrf.mxu0
  %v3905 = vadd.f32 %v3736, %v3904
  %v3906 = vpop.f32.mrf.mxu0
  %v3907 = vadd.f32 %v3736, %v3906
  %3908 = vmatmul.bf16.gmra.mxu0 %v3709
  %v3909 = vpop.f32.mrf.mxu0
  %v3910 = vadd.f32 %v3736, %v3909
  %v3911 = vpop.f32.mrf.mxu0
  %v3912 = vadd.f32 %v3736, %v3911
  %3913 = vmatmul.bf16.gmra.mxu0 %v3710
  %v3914 = vpop.f32.mrf.mxu0
  %v3915 = vadd.f32 %v3736, %v3914
  %v3916 = vpop.f32.mrf.mxu0
  %v3917 = vadd.f32 %v3736, %v3916
  %3918 = vmatmul.bf16.gmra.mxu0 %v3711
  %v3919 = vpop.f32.mrf.mxu0
  %v3920 = vadd.f32 %v3736, %v3919
  %v3921 = vpop.f32.mrf.mxu0
  %v3922 = vadd.f32 %v3736, %v3921
  %3923 = vmatmul.bf16.gmra.mxu0 %v3712
  %v3924 = vpop.f32.mrf.mxu0
  %v3925 = vadd.f32 %v3736, %v3924
  %v3926 = vpop.f32.mrf.mxu0
  %v3927 = vadd.f32 %v3736, %v3926
  %3928 = vmatmul.bf16.gmra.mxu0 %v3713
  %v3929 = vpop.f32.mrf.mxu0
  %v3930 = vadd.f32 %v3736, %v3929
  %v3931 = vpop.f32.mrf.mxu0
  %v3932 = vadd.f32 %v3736, %v3931
  %3933 = vmatmul.bf16.gmra.mxu0 %v3714
  %v3934 = vpop.f32.mrf.mxu0
  %v3935 = vadd.f32 %v3736, %v3934
  %v3936 = vpop.f32.mrf.mxu0
  %v3937 = vadd.f32 %v3736, %v3936
  %3938 = vmatmul.bf16.gmra.mxu0 %v3715
  %v3939 = vpop.f32.mrf.mxu0
  %v3940 = vadd.f32 %v3736, %v3939
  %v3941 = vpop.f32.mrf.mxu0
  %v3942 = vadd.f32 %v3736, %v3941
  %3943 = vmatmul.bf16.gmra.mxu0 %v3716
  %v3944 = vpop.f32.mrf.mxu0
  %v3945 = vadd.f32 %v3736, %v3944
  %v3946 = vpop.f32.mrf.mxu0
  %v3947 = vadd.f32 %v3736, %v3946
  %3948 = vmatmul.bf16.gmra.mxu0 %v3717
  %v3949 = vpop.f32.mrf.mxu0
  %v3950 = vadd.f32 %v3736, %v3949
  %v3951 = vpop.f32.mrf.mxu0
  %v3952 = vadd.f32 %v3736, %v3951
  %3953 = vdwg.mxu0
  %v3954 = vmax.f32 %v3795, 0.0
  %v3955 = vmax.f32 %v3797, 0.0
  %v3956 = vmax.f32 %v3800, 0.0
  %v3957 = vmax.f32 %v3802, 0.0
  %v3958 = vmax.f32 %v3805, 0.0
  %v3959 = vmax.f32 %v3807, 0.0
  %v3960 = vmax.f32 %v3810, 0.0
  %v3961 = vmax.f32 %v3812, 0.0
  %v3962 = vmax.f32 %v3815, 0.0
  %v3963 = vmax.f32 %v3817, 0.0
  %v3964 = vmax.f32 %v3820, 0.0
  %v3965 = vmax.f32 %v3822, 0.0
  %v3966 = vmax.f32 %v3825, 0.0
  %v3967 = vmax.f32 %v3827, 0.0
  %v3968 = vmax.f32 %v3830, 0.0
  %v3969 = vmax.f32 %v3832, 0.0
  %v3970 = vmax.f32 %v3835, 0.0
  %v3971 = vmax.f32 %v3837, 0.0
  %v3972 = vmax.f32 %v3840, 0.0
  %v3973 = vmax.f32 %v3842, 0.0
  %v3974 = vmax.f32 %v3845, 0.0
  %v3975 = vmax.f32 %v3847, 0.0
  %v3976 = vmax.f32 %v3850, 0.0
  %v3977 = vmax.f32 %v3852, 0.0
  %v3978 = vmax.f32 %v3855, 0.0
  %v3979 = vmax.f32 %v3857, 0.0
  %v3980 = vmax.f32 %v3860, 0.0
  %v3981 = vmax.f32 %v3862, 0.0
  %v3982 = vmax.f32 %v3865, 0.0
  %v3983 = vmax.f32 %v3867, 0.0
  %v3984 = vmax.f32 %v3870, 0.0
  %v3985 = vmax.f32 %v3872, 0.0
  %v3986 = vmax.f32 %v3875, 0.0
  %v3987 = vmax.f32 %v3877, 0.0
  %v3988 = vmax.f32 %v3880, 0.0
  %v3989 = vmax.f32 %v3882, 0.0
  %v3990 = vmax.f32 %v3885, 0.0
  %v3991 = vmax.f32 %v3887, 0.0
  %v3992 = vmax.f32 %v3890, 0.0
  %v3993 = vmax.f32 %v3892, 0.0
  %v3994 = vmax.f32 %v3895, 0.0
  %v3995 = vmax.f32 %v3897, 0.0
  %v3996 = vmax.f32 %v3900, 0.0
  %v3997 = vmax.f32 %v3902, 0.0
  %v3998 = vmax.f32 %v3905, 0.0
  %v3999 = vmax.f32 %v3907, 0.0
  %v4000 = vmax.f32 %v3910, 0.0
  %v4001 = vmax.f32 %v3912, 0.0
  %v4002 = vmax.f32 %v3915, 0.0
  %v4003 = vmax.f32 %v3917, 0.0
  %v4004 = vmax.f32 %v3920, 0.0
  %v4005 = vmax.f32 %v3922, 0.0
  %v4006 = vmax.f32 %v3925, 0.0
  %v4007 = vmax.f32 %v3927, 0.0
  %v4008 = vmax.f32 %v3930, 0.0
  %v4009 = vmax.f32 %v3932, 0.0
  %v4010 = vmax.f32 %v3935, 0.0
  %v4011 = vmax.f32 %v3937, 0.0
  %v4012 = vmax.f32 %v3940, 0.0
  %v4013 = vmax.f32 %v3942, 0.0
  %v4014 = vmax.f32 %v3945, 0.0
  %v4015 = vmax.f32 %v3947, 0.0
  %v4016 = vmax.f32 %v3950, 0.0
  %v4017 = vmax.f32 %v3952, 0.0
  %v4018 = vpack.c.bf16 %v3955, %v3954
  %v4019 = vpack.c.bf16 %v3957, %v3956
  %v4020 = vpack.c.bf16 %v3959, %v3958
  %v4021 = vpack.c.bf16 %v3961, %v3960
  %v4022 = vpack.c.bf16 %v3963, %v3962
  %v4023 = vpack.c.bf16 %v3965, %v3964
  %v4024 = vpack.c.bf16 %v3967, %v3966
  %v4025 = vpack.c.bf16 %v3969, %v3968
  %v4026 = vpack.c.bf16 %v3971, %v3970
  %v4027 = vpack.c.bf16 %v3973, %v3972
  %v4028 = vpack.c.bf16 %v3975, %v3974
  %v4029 = vpack.c.bf16 %v3977, %v3976
  %v4030 = vpack.c.bf16 %v3979, %v3978
  %v4031 = vpack.c.bf16 %v3981, %v3980
  %v4032 = vpack.c.bf16 %v3983, %v3982
  %v4033 = vpack.c.bf16 %v3985, %v3984
  %v4034 = vpack.c.bf16 %v3987, %v3986
  %v4035 = vpack.c.bf16 %v3989, %v3988
  %v4036 = vpack.c.bf16 %v3991, %v3990
  %v4037 = vpack.c.bf16 %v3993, %v3992
  %v4038 = vpack.c.bf16 %v3995, %v3994
  %v4039 = vpack.c.bf16 %v3997, %v3996
  %v4040 = vpack.c.bf16 %v3999, %v3998
  %v4041 = vpack.c.bf16 %v4001, %v4000
  %v4042 = vpack.c.bf16 %v4003, %v4002
  %v4043 = vpack.c.bf16 %v4005, %v4004
  %v4044 = vpack.c.bf16 %v4007, %v4006
  %v4045 = vpack.c.bf16 %v4009, %v4008
  %v4046 = vpack.c.bf16 %v4011, %v4010
  %v4047 = vpack.c.bf16 %v4013, %v4012
  %v4048 = vpack.c.bf16 %v4015, %v4014
  %v4049 = vpack.c.bf16 %v4017, %v4016
  %s4050 = scalar_lea.vmem %s14, 128
  %v4051 = vld [vmem:[%s4050] sm:$0xf]
  %v4052 = vld [vmem:[%s4050 + $0x4] sm:$0xf]
  %v4053 = vld [vmem:[%s4050 + $0x8] sm:$0xf]
  %v4054 = vld [vmem:[%s4050 + $0xc] sm:$0xf]
  %v4055 = vld [vmem:[%s4050 + $0x10] sm:$0xf]
  %v4056 = vld [vmem:[%s4050 + $0x14] sm:$0xf]
  %v4057 = vld [vmem:[%s4050 + $0x18] sm:$0xf]
  %v4058 = vld [vmem:[%s4050 + $0x1c] sm:$0xf]
  %v4059 = vld [vmem:[%s4050 + $0x20] sm:$0xf]
  %v4060 = vld [vmem:[%s4050 + $0x24] sm:$0xf]
  %v4061 = vld [vmem:[%s4050 + $0x28] sm:$0xf]
  %v4062 = vld [vmem:[%s4050 + $0x2c] sm:$0xf]
  %v4063 = vld [vmem:[%s4050 + $0x30] sm:$0xf]
  %v4064 = vld [vmem:[%s4050 + $0x34] sm:$0xf]
  %v4065 = vld [vmem:[%s4050 + $0x38] sm:$0xf]
  %v4066 = vld [vmem:[%s4050 + $0x3c] sm:$0xf]
  %v4067 = vld [vmem:[%s15 + $0x2] sm:$0x1]
  %v4068 = vperm.slane %v4067, 0
  %v4085 = vunpack.c.l.b16 %v4051
  %v4086 = vunpack.c.l.b16 %v4052
  %v4087 = vunpack.c.l.b16 %v4053
  %v4088 = vunpack.c.l.b16 %v4054
  %v4089 = vunpack.c.l.b16 %v4055
  %v4090 = vunpack.c.l.b16 %v4056
  %v4091 = vunpack.c.l.b16 %v4057
  %v4092 = vunpack.c.l.b16 %v4058
  %v4093 = vunpack.c.l.b16 %v4059
  %v4094 = vunpack.c.l.b16 %v4060
  %v4095 = vunpack.c.l.b16 %v4061
  %v4096 = vunpack.c.l.b16 %v4062
  %v4097 = vunpack.c.l.b16 %v4063
  %v4098 = vunpack.c.l.b16 %v4064
  %v4099 = vunpack.c.l.b16 %v4065
  %v4100 = vunpack.c.l.b16 %v4066
  %v4101 = vpack.c.b16 %v4086, %v4085
  %v4102 = vpack.c.b16 %v4088, %v4087
  %v4103 = vpack.c.b16 %v4090, %v4089
  %v4104 = vpack.c.b16 %v4092, %v4091
  %v4105 = vpack.c.b16 %v4094, %v4093
  %v4106 = vpack.c.b16 %v4096, %v4095
  %v4107 = vpack.c.b16 %v4098, %v4097
  %v4108 = vpack.c.b16 %v4100, %v4099
  %4117 = vmatpush.bf16.msra.mxu0 %v4108
  %4118 = vmatpush.bf16.msra.mxu0 %v4107
  %4119 = vmatpush.bf16.msra.mxu0 %v4106
  %4120 = vmatpush.bf16.msra.mxu0 %v4105
  %4121 = vmatpush.bf16.msra.mxu0 %v4104
  %4122 = vmatpush.bf16.msra.mxu0 %v4103
  %4123 = vmatpush.bf16.msra.mxu0 %v4102
  %4124 = vmatpush.bf16.msra.mxu0 %v4101
  %4125 = vmatmul.bf16.gmra.mxu0 %v4018
  %v4126 = vpop.f32.mrf.mxu0
  %v4127 = vadd.f32 %v4068, %v4126
  %v4128 = vpop.f32.mrf.mxu0
  %v4129 = vadd.f32 %v4068, %v4128
  %4130 = vmatmul.bf16.gmra.mxu0 %v4019
  %v4131 = vpop.f32.mrf.mxu0
  %v4132 = vadd.f32 %v4068, %v4131
  %v4133 = vpop.f32.mrf.mxu0
  %v4134 = vadd.f32 %v4068, %v4133
  %4135 = vmatmul.bf16.gmra.mxu0 %v4020
  %v4136 = vpop.f32.mrf.mxu0
  %v4137 = vadd.f32 %v4068, %v4136
  %v4138 = vpop.f32.mrf.mxu0
  %v4139 = vadd.f32 %v4068, %v4138
  %4140 = vmatmul.bf16.gmra.mxu0 %v4021
  %v4141 = vpop.f32.mrf.mxu0
  %v4142 = vadd.f32 %v4068, %v4141
  %v4143 = vpop.f32.mrf.mxu0
  %v4144 = vadd.f32 %v4068, %v4143
  %4145 = vmatmul.bf16.gmra.mxu0 %v4022
  %v4146 = vpop.f32.mrf.mxu0
  %v4147 = vadd.f32 %v4068, %v4146
  %v4148 = vpop.f32.mrf.mxu0
  %v4149 = vadd.f32 %v4068, %v4148
  %4150 = vmatmul.bf16.gmra.mxu0 %v4023
  %v4151 = vpop.f32.mrf.mxu0
  %v4152 = vadd.f32 %v4068, %v4151
  %v4153 = vpop.f32.mrf.mxu0
  %v4154 = vadd.f32 %v4068, %v4153
  %4155 = vmatmul.bf16.gmra.mxu0 %v4024
  %v4156 = vpop.f32.mrf.mxu0
  %v4157 = vadd.f32 %v4068, %v4156
  %v4158 = vpop.f32.mrf.mxu0
  %v4159 = vadd.f32 %v4068, %v4158
  %4160 = vmatmul.bf16.gmra.mxu0 %v4025
  %v4161 = vpop.f32.mrf.mxu0
  %v4162 = vadd.f32 %v4068, %v4161
  %v4163 = vpop.f32.mrf.mxu0
  %v4164 = vadd.f32 %v4068, %v4163
  %4165 = vmatmul.bf16.gmra.mxu0 %v4026
  %v4166 = vpop.f32.mrf.mxu0
  %v4167 = vadd.f32 %v4068, %v4166
  %v4168 = vpop.f32.mrf.mxu0
  %v4169 = vadd.f32 %v4068, %v4168
  %4170 = vmatmul.bf16.gmra.mxu0 %v4027
  %v4171 = vpop.f32.mrf.mxu0
  %v4172 = vadd.f32 %v4068, %v4171
  %v4173 = vpop.f32.mrf.mxu0
  %v4174 = vadd.f32 %v4068, %v4173
  %4175 = vmatmul.bf16.gmra.mxu0 %v4028
  %v4176 = vpop.f32.mrf.mxu0
  %v4177 = vadd.f32 %v4068, %v4176
  %v4178 = vpop.f32.mrf.mxu0
  %v4179 = vadd.f32 %v4068, %v4178
  %4180 = vmatmul.bf16.gmra.mxu0 %v4029
  %v4181 = vpop.f32.mrf.mxu0
  %v4182 = vadd.f32 %v4068, %v4181
  %v4183 = vpop.f32.mrf.mxu0
  %v4184 = vadd.f32 %v4068, %v4183
  %4185 = vmatmul.bf16.gmra.mxu0 %v4030
  %v4186 = vpop.f32.mrf.mxu0
  %v4187 = vadd.f32 %v4068, %v4186
  %v4188 = vpop.f32.mrf.mxu0
  %v4189 = vadd.f32 %v4068, %v4188
  %4190 = vmatmul.bf16.gmra.mxu0 %v4031
  %v4191 = vpop.f32.mrf.mxu0
  %v4192 = vadd.f32 %v4068, %v4191
  %v4193 = vpop.f32.mrf.mxu0
  %v4194 = vadd.f32 %v4068, %v4193
  %4195 = vmatmul.bf16.gmra.mxu0 %v4032
  %v4196 = vpop.f32.mrf.mxu0
  %v4197 = vadd.f32 %v4068, %v4196
  %v4198 = vpop.f32.mrf.mxu0
  %v4199 = vadd.f32 %v4068, %v4198
  %4200 = vmatmul.bf16.gmra.mxu0 %v4033
  %v4201 = vpop.f32.mrf.mxu0
  %v4202 = vadd.f32 %v4068, %v4201
  %v4203 = vpop.f32.mrf.mxu0
  %v4204 = vadd.f32 %v4068, %v4203
  %4205 = vmatmul.bf16.gmra.mxu0 %v4034
  %v4206 = vpop.f32.mrf.mxu0
  %v4207 = vadd.f32 %v4068, %v4206
  %v4208 = vpop.f32.mrf.mxu0
  %v4209 = vadd.f32 %v4068, %v4208
  %4210 = vmatmul.bf16.gmra.mxu0 %v4035
  %v4211 = vpop.f32.mrf.mxu0
  %v4212 = vadd.f32 %v4068, %v4211
  %v4213 = vpop.f32.mrf.mxu0
  %v4214 = vadd.f32 %v4068, %v4213
  %4215 = vmatmul.bf16.gmra.mxu0 %v4036
  %v4216 = vpop.f32.mrf.mxu0
  %v4217 = vadd.f32 %v4068, %v4216
  %v4218 = vpop.f32.mrf.mxu0
  %v4219 = vadd.f32 %v4068, %v4218
  %4220 = vmatmul.bf16.gmra.mxu0 %v4037
  %v4221 = vpop.f32.mrf.mxu0
  %v4222 = vadd.f32 %v4068, %v4221
  %v4223 = vpop.f32.mrf.mxu0
  %v4224 = vadd.f32 %v4068, %v4223
  %4225 = vmatmul.bf16.gmra.mxu0 %v4038
  %v4226 = vpop.f32.mrf.mxu0
  %v4227 = vadd.f32 %v4068, %v4226
  %v4228 = vpop.f32.mrf.mxu0
  %v4229 = vadd.f32 %v4068, %v4228
  %4230 = vmatmul.bf16.gmra.mxu0 %v4039
  %v4231 = vpop.f32.mrf.mxu0
  %v4232 = vadd.f32 %v4068, %v4231
  %v4233 = vpop.f32.mrf.mxu0
  %v4234 = vadd.f32 %v4068, %v4233
  %4235 = vmatmul.bf16.gmra.mxu0 %v4040
  %v4236 = vpop.f32.mrf.mxu0
  %v4237 = vadd.f32 %v4068, %v4236
  %v4238 = vpop.f32.mrf.mxu0
  %v4239 = vadd.f32 %v4068, %v4238
  %4240 = vmatmul.bf16.gmra.mxu0 %v4041
  %v4241 = vpop.f32.mrf.mxu0
  %v4242 = vadd.f32 %v4068, %v4241
  %v4243 = vpop.f32.mrf.mxu0
  %v4244 = vadd.f32 %v4068, %v4243
  %4245 = vmatmul.bf16.gmra.mxu0 %v4042
  %v4246 = vpop.f32.mrf.mxu0
  %v4247 = vadd.f32 %v4068, %v4246
  %v4248 = vpop.f32.mrf.mxu0
  %v4249 = vadd.f32 %v4068, %v4248
  %4250 = vmatmul.bf16.gmra.mxu0 %v4043
  %v4251 = vpop.f32.mrf.mxu0
  %v4252 = vadd.f32 %v4068, %v4251
  %v4253 = vpop.f32.mrf.mxu0
  %v4254 = vadd.f32 %v4068, %v4253
  %4255 = vmatmul.bf16.gmra.mxu0 %v4044
  %v4256 = vpop.f32.mrf.mxu0
  %v4257 = vadd.f32 %v4068, %v4256
  %v4258 = vpop.f32.mrf.mxu0
  %v4259 = vadd.f32 %v4068, %v4258
  %4260 = vmatmul.bf16.gmra.mxu0 %v4045
  %v4261 = vpop.f32.mrf.mxu0
  %v4262 = vadd.f32 %v4068, %v4261
  %v4263 = vpop.f32.mrf.mxu0
  %v4264 = vadd.f32 %v4068, %v4263
  %4265 = vmatmul.bf16.gmra.mxu0 %v4046
  %v4266 = vpop.f32.mrf.mxu0
  %v4267 = vadd.f32 %v4068, %v4266
  %v4268 = vpop.f32.mrf.mxu0
  %v4269 = vadd.f32 %v4068, %v4268
  %4270 = vmatmul.bf16.gmra.mxu0 %v4047
  %v4271 = vpop.f32.mrf.mxu0
  %v4272 = vadd.f32 %v4068, %v4271
  %v4273 = vpop.f32.mrf.mxu0
  %v4274 = vadd.f32 %v4068, %v4273
  %4275 = vmatmul.bf16.gmra.mxu0 %v4048
  %v4276 = vpop.f32.mrf.mxu0
  %v4277 = vadd.f32 %v4068, %v4276
  %v4278 = vpop.f32.mrf.mxu0
  %v4279 = vadd.f32 %v4068, %v4278
  %4280 = vmatmul.bf16.gmra.mxu0 %v4049
  %v4281 = vpop.f32.mrf.mxu0
  %v4282 = vadd.f32 %v4068, %v4281
  %v4283 = vpop.f32.mrf.mxu0
  %v4284 = vadd.f32 %v4068, %v4283
  %4285 = vdwg.mxu0
  %v4286 = vmax.f32 %v4127, 0.0
  %v4287 = vmax.f32 %v4129, 0.0
  %v4288 = vmax.f32 %v4132, 0.0
  %v4289 = vmax.f32 %v4134, 0.0
  %v4290 = vmax.f32 %v4137, 0.0
  %v4291 = vmax.f32 %v4139, 0.0
  %v4292 = vmax.f32 %v4142, 0.0
  %v4293 = vmax.f32 %v4144, 0.0
  %v4294 = vmax.f32 %v4147, 0.0
  %v4295 = vmax.f32 %v4149, 0.0
  %v4296 = vmax.f32 %v4152, 0.0
  %v4297 = vmax.f32 %v4154, 0.0
  %v4298 = vmax.f32 %v4157, 0.0
  %v4299 = vmax.f32 %v4159, 0.0
  %v4300 = vmax.f32 %v4162, 0.0
  %v4301 = vmax.f32 %v4164, 0.0
  %v4302 = vmax.f32 %v4167, 0.0
  %v4303 = vmax.f32 %v4169, 0.0
  %v4304 = vmax.f32 %v4172, 0.0
  %v4305 = vmax.f32 %v4174, 0.0
  %v4306 = vmax.f32 %v4177, 0.0
  %v4307 = vmax.f32 %v4179, 0.0
  %v4308 = vmax.f32 %v4182, 0.0
  %v4309 = vmax.f32 %v4184, 0.0
  %v4310 = vmax.f32 %v4187, 0.0
  %v4311 = vmax.f32 %v4189, 0.0
  %v4312 = vmax.f32 %v4192, 0.0
  %v4313 = vmax.f32 %v4194, 0.0
  %v4314 = vmax.f32 %v4197, 0.0
  %v4315 = vmax.f32 %v4199, 0.0
  %v4316 = vmax.f32 %v4202, 0.0
  %v4317 = vmax.f32 %v4204, 0.0
  %v4318 = vmax.f32 %v4207, 0.0
  %v4319 = vmax.f32 %v4209, 0.0
  %v4320 = vmax.f32 %v4212, 0.0
  %v4321 = vmax.f32 %v4214, 0.0
  %v4322 = vmax.f32 %v4217, 0.0
  %v4323 = vmax.f32 %v4219, 0.0
  %v4324 = vmax.f32 %v4222, 0.0
  %v4325 = vmax.f32 %v4224, 0.0
  %v4326 = vmax.f32 %v4227, 0.0
  %v4327 = vmax.f32 %v4229, 0.0
  %v4328 = vmax.f32 %v4232, 0.0
  %v4329 = vmax.f32 %v4234, 0.0
  %v4330 = vmax.f32 %v4237, 0.0
  %v4331 = vmax.f32 %v4239, 0.0
  %v4332 = vmax.f32 %v4242, 0.0
  %v4333 = vmax.f32 %v4244, 0.0
  %v4334 = vmax.f32 %v4247, 0.0
  %v4335 = vmax.f32 %v4249, 0.0
  %v4336 = vmax.f32 %v4252, 0.0
  %v4337 = vmax.f32 %v4254, 0.0
  %v4338 = vmax.f32 %v4257, 0.0
  %v4339 = vmax.f32 %v4259, 0.0
  %v4340 = vmax.f32 %v4262, 0.0
  %v4341 = vmax.f32 %v4264, 0.0
  %v4342 = vmax.f32 %v4267, 0.0
  %v4343 = vmax.f32 %v4269, 0.0
  %v4344 = vmax.f32 %v4272, 0.0
  %v4345 = vmax.f32 %v4274, 0.0
  %v4346 = vmax.f32 %v4277, 0.0
  %v4347 = vmax.f32 %v4279, 0.0
  %v4348 = vmax.f32 %v4282, 0.0
  %v4349 = vmax.f32 %v4284, 0.0
  %v4350 = vpack.c.bf16 %v4287, %v4286
  %v4351 = vpack.c.bf16 %v4289, %v4288
  %v4352 = vpack.c.bf16 %v4291, %v4290
  %v4353 = vpack.c.bf16 %v4293, %v4292
  %v4354 = vpack.c.bf16 %v4295, %v4294
  %v4355 = vpack.c.bf16 %v4297, %v4296
  %v4356 = vpack.c.bf16 %v4299, %v4298
  %v4357 = vpack.c.bf16 %v4301, %v4300
  %v4358 = vpack.c.bf16 %v4303, %v4302
  %v4359 = vpack.c.bf16 %v4305, %v4304
  %v4360 = vpack.c.bf16 %v4307, %v4306
  %v4361 = vpack.c.bf16 %v4309, %v4308
  %v4362 = vpack.c.bf16 %v4311, %v4310
  %v4363 = vpack.c.bf16 %v4313, %v4312
  %v4364 = vpack.c.bf16 %v4315, %v4314
  %v4365 = vpack.c.bf16 %v4317, %v4316
  %v4366 = vpack.c.bf16 %v4319, %v4318
  %v4367 = vpack.c.bf16 %v4321, %v4320
  %v4368 = vpack.c.bf16 %v4323, %v4322
  %v4369 = vpack.c.bf16 %v4325, %v4324
  %v4370 = vpack.c.bf16 %v4327, %v4326
  %v4371 = vpack.c.bf16 %v4329, %v4328
  %v4372 = vpack.c.bf16 %v4331, %v4330
  %v4373 = vpack.c.bf16 %v4333, %v4332
  %v4374 = vpack.c.bf16 %v4335, %v4334
  %v4375 = vpack.c.bf16 %v4337, %v4336
  %v4376 = vpack.c.bf16 %v4339, %v4338
  %v4377 = vpack.c.bf16 %v4341, %v4340
  %v4378 = vpack.c.bf16 %v4343, %v4342
  %v4379 = vpack.c.bf16 %v4345, %v4344
  %v4380 = vpack.c.bf16 %v4347, %v4346
  %v4381 = vpack.c.bf16 %v4349, %v4348
  %s4382 = scalar_lea.vmem %s14, 192
  %v4383 = vld [vmem:[%s4382] sm:$0xf]
  %v4384 = vld [vmem:[%s4382 + $0x4] sm:$0xf]
  %v4385 = vld [vmem:[%s4382 + $0x8] sm:$0xf]
  %v4386 = vld [vmem:[%s4382 + $0xc] sm:$0xf]
  %v4387 = vld [vmem:[%s4382 + $0x10] sm:$0xf]
  %v4388 = vld [vmem:[%s4382 + $0x14] sm:$0xf]
  %v4389 = vld [vmem:[%s4382 + $0x18] sm:$0xf]
  %v4390 = vld [vmem:[%s4382 + $0x1c] sm:$0xf]
  %v4391 = vld [vmem:[%s4382 + $0x20] sm:$0xf]
  %v4392 = vld [vmem:[%s4382 + $0x24] sm:$0xf]
  %v4393 = vld [vmem:[%s4382 + $0x28] sm:$0xf]
  %v4394 = vld [vmem:[%s4382 + $0x2c] sm:$0xf]
  %v4395 = vld [vmem:[%s4382 + $0x30] sm:$0xf]
  %v4396 = vld [vmem:[%s4382 + $0x34] sm:$0xf]
  %v4397 = vld [vmem:[%s4382 + $0x38] sm:$0xf]
  %v4398 = vld [vmem:[%s4382 + $0x3c] sm:$0xf]
  %v4407 = vunpack.c.l.b16 %v4391
  %v4408 = vunpack.c.l.b16 %v4392
  %v4409 = vunpack.c.l.b16 %v4393
  %v4410 = vunpack.c.l.b16 %v4394
  %v4411 = vunpack.c.l.b16 %v4395
  %v4412 = vunpack.c.l.b16 %v4396
  %v4413 = vunpack.c.l.b16 %v4397
  %v4414 = vunpack.c.l.b16 %v4398
  %v4415 = vpack.c.b16 %v4408, %v4407
  %v4416 = vpack.c.b16 %v4410, %v4409
  %v4417 = vpack.c.b16 %v4412, %v4411
  %v4418 = vpack.c.b16 %v4414, %v4413
  %4423 = vmatpush.bf16.msra.mxu0 0
  %4424 = vmatpush.bf16.msra.mxu0 0
  %4425 = vmatpush.bf16.msra.mxu0 0
  %4426 = vmatpush.bf16.msra.mxu0 0
  %4427 = vmatpush.bf16.msra.mxu0 %v4418
  %4428 = vmatpush.bf16.msra.mxu0 %v4417
  %4429 = vmatpush.bf16.msra.mxu0 %v4416
  %4430 = vmatpush.bf16.msra.mxu0 %v4415
  %4431 = vmatmul.bf16.gmra.mxu0 %v3003
  %v4432 = vpop.f32.mrf.mxu0
  %v4433 = vadd.f32 0.0, %v4432
  %v4434 = vpop.f32.mrf.mxu0
  %v4435 = vadd.f32 0.0, %v4434
  %4436 = vmatmul.bf16.gmra.mxu0 %v3006
  %v4437 = vpop.f32.mrf.mxu0
  %v4438 = vadd.f32 0.0, %v4437
  %v4439 = vpop.f32.mrf.mxu0
  %v4440 = vadd.f32 0.0, %v4439
  %4441 = vmatmul.bf16.gmra.mxu0 %v3009
  %v4442 = vpop.f32.mrf.mxu0
  %v4443 = vadd.f32 0.0, %v4442
  %v4444 = vpop.f32.mrf.mxu0
  %v4445 = vadd.f32 0.0, %v4444
  %4446 = vmatmul.bf16.gmra.mxu0 %v3012
  %v4447 = vpop.f32.mrf.mxu0
  %v4448 = vadd.f32 0.0, %v4447
  %v4449 = vpop.f32.mrf.mxu0
  %v4450 = vadd.f32 0.0, %v4449
  %4451 = vmatmul.bf16.gmra.mxu0 %v3015
  %v4452 = vpop.f32.mrf.mxu0
  %v4453 = vadd.f32 0.0, %v4452
  %v4454 = vpop.f32.mrf.mxu0
  %v4455 = vadd.f32 0.0, %v4454
  %4456 = vmatmul.bf16.gmra.mxu0 %v3018
  %v4457 = vpop.f32.mrf.mxu0
  %v4458 = vadd.f32 0.0, %v4457
  %v4459 = vpop.f32.mrf.mxu0
  %v4460 = vadd.f32 0.0, %v4459
  %4461 = vmatmul.bf16.gmra.mxu0 %v3021
  %v4462 = vpop.f32.mrf.mxu0
  %v4463 = vadd.f32 0.0, %v4462
  %v4464 = vpop.f32.mrf.mxu0
  %v4465 = vadd.f32 0.0, %v4464
  %4466 = vmatmul.bf16.gmra.mxu0 %v3024
  %v4467 = vpop.f32.mrf.mxu0
  %v4468 = vadd.f32 0.0, %v4467
  %v4469 = vpop.f32.mrf.mxu0
  %v4470 = vadd.f32 0.0, %v4469
  %4471 = vmatmul.bf16.gmra.mxu0 %v3027
  %v4472 = vpop.f32.mrf.mxu0
  %v4473 = vadd.f32 0.0, %v4472
  %v4474 = vpop.f32.mrf.mxu0
  %v4475 = vadd.f32 0.0, %v4474
  %4476 = vmatmul.bf16.gmra.mxu0 %v3030
  %v4477 = vpop.f32.mrf.mxu0
  %v4478 = vadd.f32 0.0, %v4477
  %v4479 = vpop.f32.mrf.mxu0
  %v4480 = vadd.f32 0.0, %v4479
  %4481 = vmatmul.bf16.gmra.mxu0 %v3033
  %v4482 = vpop.f32.mrf.mxu0
  %v4483 = vadd.f32 0.0, %v4482
  %v4484 = vpop.f32.mrf.mxu0
  %v4485 = vadd.f32 0.0, %v4484
  %4486 = vmatmul.bf16.gmra.mxu0 %v3036
  %v4487 = vpop.f32.mrf.mxu0
  %v4488 = vadd.f32 0.0, %v4487
  %v4489 = vpop.f32.mrf.mxu0
  %v4490 = vadd.f32 0.0, %v4489
  %4491 = vmatmul.bf16.gmra.mxu0 %v3039
  %v4492 = vpop.f32.mrf.mxu0
  %v4493 = vadd.f32 0.0, %v4492
  %v4494 = vpop.f32.mrf.mxu0
  %v4495 = vadd.f32 0.0, %v4494
  %4496 = vmatmul.bf16.gmra.mxu0 %v3042
  %v4497 = vpop.f32.mrf.mxu0
  %v4498 = vadd.f32 0.0, %v4497
  %v4499 = vpop.f32.mrf.mxu0
  %v4500 = vadd.f32 0.0, %v4499
  %4501 = vmatmul.bf16.gmra.mxu0 %v3045
  %v4502 = vpop.f32.mrf.mxu0
  %v4503 = vadd.f32 0.0, %v4502
  %v4504 = vpop.f32.mrf.mxu0
  %v4505 = vadd.f32 0.0, %v4504
  %4506 = vmatmul.bf16.gmra.mxu0 %v3048
  %v4507 = vpop.f32.mrf.mxu0
  %v4508 = vadd.f32 0.0, %v4507
  %v4509 = vpop.f32.mrf.mxu0
  %v4510 = vadd.f32 0.0, %v4509
  %4511 = vmatmul.bf16.gmra.mxu0 %v3051
  %v4512 = vpop.f32.mrf.mxu0
  %v4513 = vadd.f32 0.0, %v4512
  %v4514 = vpop.f32.mrf.mxu0
  %v4515 = vadd.f32 0.0, %v4514
  %4516 = vmatmul.bf16.gmra.mxu0 %v3054
  %v4517 = vpop.f32.mrf.mxu0
  %v4518 = vadd.f32 0.0, %v4517
  %v4519 = vpop.f32.mrf.mxu0
  %v4520 = vadd.f32 0.0, %v4519
  %4521 = vmatmul.bf16.gmra.mxu0 %v3057
  %v4522 = vpop.f32.mrf.mxu0
  %v4523 = vadd.f32 0.0, %v4522
  %v4524 = vpop.f32.mrf.mxu0
  %v4525 = vadd.f32 0.0, %v4524
  %4526 = vmatmul.bf16.gmra.mxu0 %v3060
  %v4527 = vpop.f32.mrf.mxu0
  %v4528 = vadd.f32 0.0, %v4527
  %v4529 = vpop.f32.mrf.mxu0
  %v4530 = vadd.f32 0.0, %v4529
  %4531 = vmatmul.bf16.gmra.mxu0 %v3063
  %v4532 = vpop.f32.mrf.mxu0
  %v4533 = vadd.f32 0.0, %v4532
  %v4534 = vpop.f32.mrf.mxu0
  %v4535 = vadd.f32 0.0, %v4534
  %4536 = vmatmul.bf16.gmra.mxu0 %v3066
  %v4537 = vpop.f32.mrf.mxu0
  %v4538 = vadd.f32 0.0, %v4537
  %v4539 = vpop.f32.mrf.mxu0
  %v4540 = vadd.f32 0.0, %v4539
  %4541 = vmatmul.bf16.gmra.mxu0 %v3069
  %v4542 = vpop.f32.mrf.mxu0
  %v4543 = vadd.f32 0.0, %v4542
  %v4544 = vpop.f32.mrf.mxu0
  %v4545 = vadd.f32 0.0, %v4544
  %4546 = vmatmul.bf16.gmra.mxu0 %v3072
  %v4547 = vpop.f32.mrf.mxu0
  %v4548 = vadd.f32 0.0, %v4547
  %v4549 = vpop.f32.mrf.mxu0
  %v4550 = vadd.f32 0.0, %v4549
  %4551 = vmatmul.bf16.gmra.mxu0 %v3075
  %v4552 = vpop.f32.mrf.mxu0
  %v4553 = vadd.f32 0.0, %v4552
  %v4554 = vpop.f32.mrf.mxu0
  %v4555 = vadd.f32 0.0, %v4554
  %4556 = vmatmul.bf16.gmra.mxu0 %v3078
  %v4557 = vpop.f32.mrf.mxu0
  %v4558 = vadd.f32 0.0, %v4557
  %v4559 = vpop.f32.mrf.mxu0
  %v4560 = vadd.f32 0.0, %v4559
  %4561 = vmatmul.bf16.gmra.mxu0 %v3081
  %v4562 = vpop.f32.mrf.mxu0
  %v4563 = vadd.f32 0.0, %v4562
  %v4564 = vpop.f32.mrf.mxu0
  %v4565 = vadd.f32 0.0, %v4564
  %4566 = vmatmul.bf16.gmra.mxu0 %v3084
  %v4567 = vpop.f32.mrf.mxu0
  %v4568 = vadd.f32 0.0, %v4567
  %v4569 = vpop.f32.mrf.mxu0
  %v4570 = vadd.f32 0.0, %v4569
  %4571 = vmatmul.bf16.gmra.mxu0 %v3087
  %v4572 = vpop.f32.mrf.mxu0
  %v4573 = vadd.f32 0.0, %v4572
  %v4574 = vpop.f32.mrf.mxu0
  %v4575 = vadd.f32 0.0, %v4574
  %4576 = vmatmul.bf16.gmra.mxu0 %v3090
  %v4577 = vpop.f32.mrf.mxu0
  %v4578 = vadd.f32 0.0, %v4577
  %v4579 = vpop.f32.mrf.mxu0
  %v4580 = vadd.f32 0.0, %v4579
  %4581 = vmatmul.bf16.gmra.mxu0 %v3093
  %v4582 = vpop.f32.mrf.mxu0
  %v4583 = vadd.f32 0.0, %v4582
  %v4584 = vpop.f32.mrf.mxu0
  %v4585 = vadd.f32 0.0, %v4584
  %4586 = vmatmul.bf16.gmra.mxu0 %v3096
  %v4587 = vpop.f32.mrf.mxu0
  %v4588 = vadd.f32 0.0, %v4587
  %v4589 = vpop.f32.mrf.mxu0
  %v4590 = vadd.f32 0.0, %v4589
  %4591 = vdwg.mxu0
  %v4600 = vunpack.c.l.b16 %v4383
  %v4601 = vunpack.c.l.b16 %v4384
  %v4602 = vunpack.c.l.b16 %v4385
  %v4603 = vunpack.c.l.b16 %v4386
  %v4604 = vunpack.c.l.b16 %v4387
  %v4605 = vunpack.c.l.b16 %v4388
  %v4606 = vunpack.c.l.b16 %v4389
  %v4607 = vunpack.c.l.b16 %v4390
  %v4608 = vpack.c.b16 %v4601, %v4600
  %v4609 = vpack.c.b16 %v4603, %v4602
  %v4610 = vpack.c.b16 %v4605, %v4604
  %v4611 = vpack.c.b16 %v4607, %v4606
  %4616 = vmatpush.bf16.msra.mxu0 0
  %4617 = vmatpush.bf16.msra.mxu0 0
  %4618 = vmatpush.bf16.msra.mxu0 0
  %4619 = vmatpush.bf16.msra.mxu0 0
  %4620 = vmatpush.bf16.msra.mxu0 %v4611
  %4621 = vmatpush.bf16.msra.mxu0 %v4610
  %4622 = vmatpush.bf16.msra.mxu0 %v4609
  %4623 = vmatpush.bf16.msra.mxu0 %v4608
  %4624 = vmatmul.bf16.gmra.mxu0 %v3292
  %v4625 = vpop.f32.mrf.mxu0
  %v4626 = vadd.f32 %v4433, %v4625
  %v4627 = vpop.f32.mrf.mxu0
  %v4628 = vadd.f32 %v4435, %v4627
  %4629 = vmatmul.bf16.gmra.mxu0 %v3295
  %v4630 = vpop.f32.mrf.mxu0
  %v4631 = vadd.f32 %v4438, %v4630
  %v4632 = vpop.f32.mrf.mxu0
  %v4633 = vadd.f32 %v4440, %v4632
  %4634 = vmatmul.bf16.gmra.mxu0 %v3298
  %v4635 = vpop.f32.mrf.mxu0
  %v4636 = vadd.f32 %v4443, %v4635
  %v4637 = vpop.f32.mrf.mxu0
  %v4638 = vadd.f32 %v4445, %v4637
  %4639 = vmatmul.bf16.gmra.mxu0 %v3301
  %v4640 = vpop.f32.mrf.mxu0
  %v4641 = vadd.f32 %v4448, %v4640
  %v4642 = vpop.f32.mrf.mxu0
  %v4643 = vadd.f32 %v4450, %v4642
  %4644 = vmatmul.bf16.gmra.mxu0 %v3304
  %v4645 = vpop.f32.mrf.mxu0
  %v4646 = vadd.f32 %v4453, %v4645
  %v4647 = vpop.f32.mrf.mxu0
  %v4648 = vadd.f32 %v4455, %v4647
  %4649 = vmatmul.bf16.gmra.mxu0 %v3307
  %v4650 = vpop.f32.mrf.mxu0
  %v4651 = vadd.f32 %v4458, %v4650
  %v4652 = vpop.f32.mrf.mxu0
  %v4653 = vadd.f32 %v4460, %v4652
  %4654 = vmatmul.bf16.gmra.mxu0 %v3310
  %v4655 = vpop.f32.mrf.mxu0
  %v4656 = vadd.f32 %v4463, %v4655
  %v4657 = vpop.f32.mrf.mxu0
  %v4658 = vadd.f32 %v4465, %v4657
  %4659 = vmatmul.bf16.gmra.mxu0 %v3313
  %v4660 = vpop.f32.mrf.mxu0
  %v4661 = vadd.f32 %v4468, %v4660
  %v4662 = vpop.f32.mrf.mxu0
  %v4663 = vadd.f32 %v4470, %v4662
  %4664 = vmatmul.bf16.gmra.mxu0 %v3316
  %v4665 = vpop.f32.mrf.mxu0
  %v4666 = vadd.f32 %v4473, %v4665
  %v4667 = vpop.f32.mrf.mxu0
  %v4668 = vadd.f32 %v4475, %v4667
  %4669 = vmatmul.bf16.gmra.mxu0 %v3319
  %v4670 = vpop.f32.mrf.mxu0
  %v4671 = vadd.f32 %v4478, %v4670
  %v4672 = vpop.f32.mrf.mxu0
  %v4673 = vadd.f32 %v4480, %v4672
  %4674 = vmatmul.bf16.gmra.mxu0 %v3322
  %v4675 = vpop.f32.mrf.mxu0
  %v4676 = vadd.f32 %v4483, %v4675
  %v4677 = vpop.f32.mrf.mxu0
  %v4678 = vadd.f32 %v4485, %v4677
  %4679 = vmatmul.bf16.gmra.mxu0 %v3325
  %v4680 = vpop.f32.mrf.mxu0
  %v4681 = vadd.f32 %v4488, %v4680
  %v4682 = vpop.f32.mrf.mxu0
  %v4683 = vadd.f32 %v4490, %v4682
  %4684 = vmatmul.bf16.gmra.mxu0 %v3328
  %v4685 = vpop.f32.mrf.mxu0
  %v4686 = vadd.f32 %v4493, %v4685
  %v4687 = vpop.f32.mrf.mxu0
  %v4688 = vadd.f32 %v4495, %v4687
  %4689 = vmatmul.bf16.gmra.mxu0 %v3331
  %v4690 = vpop.f32.mrf.mxu0
  %v4691 = vadd.f32 %v4498, %v4690
  %v4692 = vpop.f32.mrf.mxu0
  %v4693 = vadd.f32 %v4500, %v4692
  %4694 = vmatmul.bf16.gmra.mxu0 %v3334
  %v4695 = vpop.f32.mrf.mxu0
  %v4696 = vadd.f32 %v4503, %v4695
  %v4697 = vpop.f32.mrf.mxu0
  %v4698 = vadd.f32 %v4505, %v4697
  %4699 = vmatmul.bf16.gmra.mxu0 %v3337
  %v4700 = vpop.f32.mrf.mxu0
  %v4701 = vadd.f32 %v4508, %v4700
  %v4702 = vpop.f32.mrf.mxu0
  %v4703 = vadd.f32 %v4510, %v4702
  %4704 = vmatmul.bf16.gmra.mxu0 %v3340
  %v4705 = vpop.f32.mrf.mxu0
  %v4706 = vadd.f32 %v4513, %v4705
  %v4707 = vpop.f32.mrf.mxu0
  %v4708 = vadd.f32 %v4515, %v4707
  %4709 = vmatmul.bf16.gmra.mxu0 %v3343
  %v4710 = vpop.f32.mrf.mxu0
  %v4711 = vadd.f32 %v4518, %v4710
  %v4712 = vpop.f32.mrf.mxu0
  %v4713 = vadd.f32 %v4520, %v4712
  %4714 = vmatmul.bf16.gmra.mxu0 %v3346
  %v4715 = vpop.f32.mrf.mxu0
  %v4716 = vadd.f32 %v4523, %v4715
  %v4717 = vpop.f32.mrf.mxu0
  %v4718 = vadd.f32 %v4525, %v4717
  %4719 = vmatmul.bf16.gmra.mxu0 %v3349
  %v4720 = vpop.f32.mrf.mxu0
  %v4721 = vadd.f32 %v4528, %v4720
  %v4722 = vpop.f32.mrf.mxu0
  %v4723 = vadd.f32 %v4530, %v4722
  %4724 = vmatmul.bf16.gmra.mxu0 %v3352
  %v4725 = vpop.f32.mrf.mxu0
  %v4726 = vadd.f32 %v4533, %v4725
  %v4727 = vpop.f32.mrf.mxu0
  %v4728 = vadd.f32 %v4535, %v4727
  %4729 = vmatmul.bf16.gmra.mxu0 %v3355
  %v4730 = vpop.f32.mrf.mxu0
  %v4731 = vadd.f32 %v4538, %v4730
  %v4732 = vpop.f32.mrf.mxu0
  %v4733 = vadd.f32 %v4540, %v4732
  %4734 = vmatmul.bf16.gmra.mxu0 %v3358
  %v4735 = vpop.f32.mrf.mxu0
  %v4736 = vadd.f32 %v4543, %v4735
  %v4737 = vpop.f32.mrf.mxu0
  %v4738 = vadd.f32 %v4545, %v4737
  %4739 = vmatmul.bf16.gmra.mxu0 %v3361
  %v4740 = vpop.f32.mrf.mxu0
  %v4741 = vadd.f32 %v4548, %v4740
  %v4742 = vpop.f32.mrf.mxu0
  %v4743 = vadd.f32 %v4550, %v4742
  %4744 = vmatmul.bf16.gmra.mxu0 %v3364
  %v4745 = vpop.f32.mrf.mxu0
  %v4746 = vadd.f32 %v4553, %v4745
  %v4747 = vpop.f32.mrf.mxu0
  %v4748 = vadd.f32 %v4555, %v4747
  %4749 = vmatmul.bf16.gmra.mxu0 %v3367
  %v4750 = vpop.f32.mrf.mxu0
  %v4751 = vadd.f32 %v4558, %v4750
  %v4752 = vpop.f32.mrf.mxu0
  %v4753 = vadd.f32 %v4560, %v4752
  %4754 = vmatmul.bf16.gmra.mxu0 %v3370
  %v4755 = vpop.f32.mrf.mxu0
  %v4756 = vadd.f32 %v4563, %v4755
  %v4757 = vpop.f32.mrf.mxu0
  %v4758 = vadd.f32 %v4565, %v4757
  %4759 = vmatmul.bf16.gmra.mxu0 %v3373
  %v4760 = vpop.f32.mrf.mxu0
  %v4761 = vadd.f32 %v4568, %v4760
  %v4762 = vpop.f32.mrf.mxu0
  %v4763 = vadd.f32 %v4570, %v4762
  %4764 = vmatmul.bf16.gmra.mxu0 %v3376
  %v4765 = vpop.f32.mrf.mxu0
  %v4766 = vadd.f32 %v4573, %v4765
  %v4767 = vpop.f32.mrf.mxu0
  %v4768 = vadd.f32 %v4575, %v4767
  %4769 = vmatmul.bf16.gmra.mxu0 %v3379
  %v4770 = vpop.f32.mrf.mxu0
  %v4771 = vadd.f32 %v4578, %v4770
  %v4772 = vpop.f32.mrf.mxu0
  %v4773 = vadd.f32 %v4580, %v4772
  %4774 = vmatmul.bf16.gmra.mxu0 %v3382
  %v4775 = vpop.f32.mrf.mxu0
  %v4776 = vadd.f32 %v4583, %v4775
  %v4777 = vpop.f32.mrf.mxu0
  %v4778 = vadd.f32 %v4585, %v4777
  %4779 = vmatmul.bf16.gmra.mxu0 %v3385
  %v4780 = vpop.f32.mrf.mxu0
  %v4781 = vadd.f32 %v4588, %v4780
  %v4782 = vpop.f32.mrf.mxu0
  %v4783 = vadd.f32 %v4590, %v4782
  %4784 = vdwg.mxu0
  %s4785 = scalar_lea.vmem %s14, 256
  %v4786 = vld [vmem:[%s4785] sm:$0xf]
  %v4787 = vld [vmem:[%s4785 + $0x4] sm:$0xf]
  %v4788 = vld [vmem:[%s4785 + $0x8] sm:$0xf]
  %v4789 = vld [vmem:[%s4785 + $0xc] sm:$0xf]
  %v4790 = vld [vmem:[%s4785 + $0x10] sm:$0xf]
  %v4791 = vld [vmem:[%s4785 + $0x14] sm:$0xf]
  %v4792 = vld [vmem:[%s4785 + $0x18] sm:$0xf]
  %v4793 = vld [vmem:[%s4785 + $0x1c] sm:$0xf]
  %v4794 = vld [vmem:[%s4785 + $0x20] sm:$0xf]
  %v4795 = vld [vmem:[%s4785 + $0x24] sm:$0xf]
  %v4796 = vld [vmem:[%s4785 + $0x28] sm:$0xf]
  %v4797 = vld [vmem:[%s4785 + $0x2c] sm:$0xf]
  %v4798 = vld [vmem:[%s4785 + $0x30] sm:$0xf]
  %v4799 = vld [vmem:[%s4785 + $0x34] sm:$0xf]
  %v4800 = vld [vmem:[%s4785 + $0x38] sm:$0xf]
  %v4801 = vld [vmem:[%s4785 + $0x3c] sm:$0xf]
  %v4818 = vunpack.c.l.b16 %v4786
  %v4819 = vunpack.c.l.b16 %v4787
  %v4820 = vunpack.c.l.b16 %v4788
  %v4821 = vunpack.c.l.b16 %v4789
  %v4822 = vunpack.c.l.b16 %v4790
  %v4823 = vunpack.c.l.b16 %v4791
  %v4824 = vunpack.c.l.b16 %v4792
  %v4825 = vunpack.c.l.b16 %v4793
  %v4826 = vunpack.c.l.b16 %v4794
  %v4827 = vunpack.c.l.b16 %v4795
  %v4828 = vunpack.c.l.b16 %v4796
  %v4829 = vunpack.c.l.b16 %v4797
  %v4830 = vunpack.c.l.b16 %v4798
  %v4831 = vunpack.c.l.b16 %v4799
  %v4832 = vunpack.c.l.b16 %v4800
  %v4833 = vunpack.c.l.b16 %v4801
  %v4834 = vpack.c.b16 %v4819, %v4818
  %v4835 = vpack.c.b16 %v4821, %v4820
  %v4836 = vpack.c.b16 %v4823, %v4822
  %v4837 = vpack.c.b16 %v4825, %v4824
  %v4838 = vpack.c.b16 %v4827, %v4826
  %v4839 = vpack.c.b16 %v4829, %v4828
  %v4840 = vpack.c.b16 %v4831, %v4830
  %v4841 = vpack.c.b16 %v4833, %v4832
  %4850 = vmatpush.bf16.msra.mxu0 %v4841
  %4851 = vmatpush.bf16.msra.mxu0 %v4840
  %4852 = vmatpush.bf16.msra.mxu0 %v4839
  %4853 = vmatpush.bf16.msra.mxu0 %v4838
  %4854 = vmatpush.bf16.msra.mxu0 %v4837
  %4855 = vmatpush.bf16.msra.mxu0 %v4836
  %4856 = vmatpush.bf16.msra.mxu0 %v4835
  %4857 = vmatpush.bf16.msra.mxu0 %v4834
  %4858 = vmatmul.bf16.gmra.mxu0 %v4350
  %v4859 = vpop.f32.mrf.mxu0
  %v4860 = vadd.f32 0.0, %v4859
  %v4861 = vpop.f32.mrf.mxu0
  %v4862 = vadd.f32 0.0, %v4861
  %4863 = vmatmul.bf16.gmra.mxu0 %v4351
  %v4864 = vpop.f32.mrf.mxu0
  %v4865 = vadd.f32 0.0, %v4864
  %v4866 = vpop.f32.mrf.mxu0
  %v4867 = vadd.f32 0.0, %v4866
  %4868 = vmatmul.bf16.gmra.mxu0 %v4352
  %v4869 = vpop.f32.mrf.mxu0
  %v4870 = vadd.f32 0.0, %v4869
  %v4871 = vpop.f32.mrf.mxu0
  %v4872 = vadd.f32 0.0, %v4871
  %4873 = vmatmul.bf16.gmra.mxu0 %v4353
  %v4874 = vpop.f32.mrf.mxu0
  %v4875 = vadd.f32 0.0, %v4874
  %v4876 = vpop.f32.mrf.mxu0
  %v4877 = vadd.f32 0.0, %v4876
  %4878 = vmatmul.bf16.gmra.mxu0 %v4354
  %v4879 = vpop.f32.mrf.mxu0
  %v4880 = vadd.f32 0.0, %v4879
  %v4881 = vpop.f32.mrf.mxu0
  %v4882 = vadd.f32 0.0, %v4881
  %4883 = vmatmul.bf16.gmra.mxu0 %v4355
  %v4884 = vpop.f32.mrf.mxu0
  %v4885 = vadd.f32 0.0, %v4884
  %v4886 = vpop.f32.mrf.mxu0
  %v4887 = vadd.f32 0.0, %v4886
  %4888 = vmatmul.bf16.gmra.mxu0 %v4356
  %v4889 = vpop.f32.mrf.mxu0
  %v4890 = vadd.f32 0.0, %v4889
  %v4891 = vpop.f32.mrf.mxu0
  %v4892 = vadd.f32 0.0, %v4891
  %4893 = vmatmul.bf16.gmra.mxu0 %v4357
  %v4894 = vpop.f32.mrf.mxu0
  %v4895 = vadd.f32 0.0, %v4894
  %v4896 = vpop.f32.mrf.mxu0
  %v4897 = vadd.f32 0.0, %v4896
  %4898 = vmatmul.bf16.gmra.mxu0 %v4358
  %v4899 = vpop.f32.mrf.mxu0
  %v4900 = vadd.f32 0.0, %v4899
  %v4901 = vpop.f32.mrf.mxu0
  %v4902 = vadd.f32 0.0, %v4901
  %4903 = vmatmul.bf16.gmra.mxu0 %v4359
  %v4904 = vpop.f32.mrf.mxu0
  %v4905 = vadd.f32 0.0, %v4904
  %v4906 = vpop.f32.mrf.mxu0
  %v4907 = vadd.f32 0.0, %v4906
  %4908 = vmatmul.bf16.gmra.mxu0 %v4360
  %v4909 = vpop.f32.mrf.mxu0
  %v4910 = vadd.f32 0.0, %v4909
  %v4911 = vpop.f32.mrf.mxu0
  %v4912 = vadd.f32 0.0, %v4911
  %4913 = vmatmul.bf16.gmra.mxu0 %v4361
  %v4914 = vpop.f32.mrf.mxu0
  %v4915 = vadd.f32 0.0, %v4914
  %v4916 = vpop.f32.mrf.mxu0
  %v4917 = vadd.f32 0.0, %v4916
  %4918 = vmatmul.bf16.gmra.mxu0 %v4362
  %v4919 = vpop.f32.mrf.mxu0
  %v4920 = vadd.f32 0.0, %v4919
  %v4921 = vpop.f32.mrf.mxu0
  %v4922 = vadd.f32 0.0, %v4921
  %4923 = vmatmul.bf16.gmra.mxu0 %v4363
  %v4924 = vpop.f32.mrf.mxu0
  %v4925 = vadd.f32 0.0, %v4924
  %v4926 = vpop.f32.mrf.mxu0
  %v4927 = vadd.f32 0.0, %v4926
  %4928 = vmatmul.bf16.gmra.mxu0 %v4364
  %v4929 = vpop.f32.mrf.mxu0
  %v4930 = vadd.f32 0.0, %v4929
  %v4931 = vpop.f32.mrf.mxu0
  %v4932 = vadd.f32 0.0, %v4931
  %4933 = vmatmul.bf16.gmra.mxu0 %v4365
  %v4934 = vpop.f32.mrf.mxu0
  %v4935 = vadd.f32 0.0, %v4934
  %v4936 = vpop.f32.mrf.mxu0
  %v4937 = vadd.f32 0.0, %v4936
  %4938 = vmatmul.bf16.gmra.mxu0 %v4366
  %v4939 = vpop.f32.mrf.mxu0
  %v4940 = vadd.f32 0.0, %v4939
  %v4941 = vpop.f32.mrf.mxu0
  %v4942 = vadd.f32 0.0, %v4941
  %4943 = vmatmul.bf16.gmra.mxu0 %v4367
  %v4944 = vpop.f32.mrf.mxu0
  %v4945 = vadd.f32 0.0, %v4944
  %v4946 = vpop.f32.mrf.mxu0
  %v4947 = vadd.f32 0.0, %v4946
  %4948 = vmatmul.bf16.gmra.mxu0 %v4368
  %v4949 = vpop.f32.mrf.mxu0
  %v4950 = vadd.f32 0.0, %v4949
  %v4951 = vpop.f32.mrf.mxu0
  %v4952 = vadd.f32 0.0, %v4951
  %4953 = vmatmul.bf16.gmra.mxu0 %v4369
  %v4954 = vpop.f32.mrf.mxu0
  %v4955 = vadd.f32 0.0, %v4954
  %v4956 = vpop.f32.mrf.mxu0
  %v4957 = vadd.f32 0.0, %v4956
  %4958 = vmatmul.bf16.gmra.mxu0 %v4370
  %v4959 = vpop.f32.mrf.mxu0
  %v4960 = vadd.f32 0.0, %v4959
  %v4961 = vpop.f32.mrf.mxu0
  %v4962 = vadd.f32 0.0, %v4961
  %4963 = vmatmul.bf16.gmra.mxu0 %v4371
  %v4964 = vpop.f32.mrf.mxu0
  %v4965 = vadd.f32 0.0, %v4964
  %v4966 = vpop.f32.mrf.mxu0
  %v4967 = vadd.f32 0.0, %v4966
  %4968 = vmatmul.bf16.gmra.mxu0 %v4372
  %v4969 = vpop.f32.mrf.mxu0
  %v4970 = vadd.f32 0.0, %v4969
  %v4971 = vpop.f32.mrf.mxu0
  %v4972 = vadd.f32 0.0, %v4971
  %4973 = vmatmul.bf16.gmra.mxu0 %v4373
  %v4974 = vpop.f32.mrf.mxu0
  %v4975 = vadd.f32 0.0, %v4974
  %v4976 = vpop.f32.mrf.mxu0
  %v4977 = vadd.f32 0.0, %v4976
  %4978 = vmatmul.bf16.gmra.mxu0 %v4374
  %v4979 = vpop.f32.mrf.mxu0
  %v4980 = vadd.f32 0.0, %v4979
  %v4981 = vpop.f32.mrf.mxu0
  %v4982 = vadd.f32 0.0, %v4981
  %4983 = vmatmul.bf16.gmra.mxu0 %v4375
  %v4984 = vpop.f32.mrf.mxu0
  %v4985 = vadd.f32 0.0, %v4984
  %v4986 = vpop.f32.mrf.mxu0
  %v4987 = vadd.f32 0.0, %v4986
  %4988 = vmatmul.bf16.gmra.mxu0 %v4376
  %v4989 = vpop.f32.mrf.mxu0
  %v4990 = vadd.f32 0.0, %v4989
  %v4991 = vpop.f32.mrf.mxu0
  %v4992 = vadd.f32 0.0, %v4991
  %4993 = vmatmul.bf16.gmra.mxu0 %v4377
  %v4994 = vpop.f32.mrf.mxu0
  %v4995 = vadd.f32 0.0, %v4994
  %v4996 = vpop.f32.mrf.mxu0
  %v4997 = vadd.f32 0.0, %v4996
  %4998 = vmatmul.bf16.gmra.mxu0 %v4378
  %v4999 = vpop.f32.mrf.mxu0
  %v5000 = vadd.f32 0.0, %v4999
  %v5001 = vpop.f32.mrf.mxu0
  %v5002 = vadd.f32 0.0, %v5001
  %5003 = vmatmul.bf16.gmra.mxu0 %v4379
  %v5004 = vpop.f32.mrf.mxu0
  %v5005 = vadd.f32 0.0, %v5004
  %v5006 = vpop.f32.mrf.mxu0
  %v5007 = vadd.f32 0.0, %v5006
  %5008 = vmatmul.bf16.gmra.mxu0 %v4380
  %v5009 = vpop.f32.mrf.mxu0
  %v5010 = vadd.f32 0.0, %v5009
  %v5011 = vpop.f32.mrf.mxu0
  %v5012 = vadd.f32 0.0, %v5011
  %5013 = vmatmul.bf16.gmra.mxu0 %v4381
  %v5014 = vpop.f32.mrf.mxu0
  %v5015 = vadd.f32 0.0, %v5014
  %v5016 = vpop.f32.mrf.mxu0
  %v5017 = vadd.f32 0.0, %v5016
  %5018 = vdwg.mxu0
  %v5019 = vadd.f32 %v4626, %v4860
  %v5020 = vadd.f32 %v4628, %v4862
  %v5021 = vadd.f32 %v4631, %v4865
  %v5022 = vadd.f32 %v4633, %v4867
  %v5023 = vadd.f32 %v4636, %v4870
  %v5024 = vadd.f32 %v4638, %v4872
  %v5025 = vadd.f32 %v4641, %v4875
  %v5026 = vadd.f32 %v4643, %v4877
  %v5027 = vadd.f32 %v4646, %v4880
  %v5028 = vadd.f32 %v4648, %v4882
  %v5029 = vadd.f32 %v4651, %v4885
  %v5030 = vadd.f32 %v4653, %v4887
  %v5031 = vadd.f32 %v4656, %v4890
  %v5032 = vadd.f32 %v4658, %v4892
  %v5033 = vadd.f32 %v4661, %v4895
  %v5034 = vadd.f32 %v4663, %v4897
  %v5035 = vadd.f32 %v4666, %v4900
  %v5036 = vadd.f32 %v4668, %v4902
  %v5037 = vadd.f32 %v4671, %v4905
  %v5038 = vadd.f32 %v4673, %v4907
  %v5039 = vadd.f32 %v4676, %v4910
  %v5040 = vadd.f32 %v4678, %v4912
  %v5041 = vadd.f32 %v4681, %v4915
  %v5042 = vadd.f32 %v4683, %v4917
  %v5043 = vadd.f32 %v4686, %v4920
  %v5044 = vadd.f32 %v4688, %v4922
  %v5045 = vadd.f32 %v4691, %v4925
  %v5046 = vadd.f32 %v4693, %v4927
  %v5047 = vadd.f32 %v4696, %v4930
  %v5048 = vadd.f32 %v4698, %v4932
  %v5049 = vadd.f32 %v4701, %v4935
  %v5050 = vadd.f32 %v4703, %v4937
  %v5051 = vadd.f32 %v4706, %v4940
  %v5052 = vadd.f32 %v4708, %v4942
  %v5053 = vadd.f32 %v4711, %v4945
  %v5054 = vadd.f32 %v4713, %v4947
  %v5055 = vadd.f32 %v4716, %v4950
  %v5056 = vadd.f32 %v4718, %v4952
  %v5057 = vadd.f32 %v4721, %v4955
  %v5058 = vadd.f32 %v4723, %v4957
  %v5059 = vadd.f32 %v4726, %v4960
  %v5060 = vadd.f32 %v4728, %v4962
  %v5061 = vadd.f32 %v4731, %v4965
  %v5062 = vadd.f32 %v4733, %v4967
  %v5063 = vadd.f32 %v4736, %v4970
  %v5064 = vadd.f32 %v4738, %v4972
  %v5065 = vadd.f32 %v4741, %v4975
  %v5066 = vadd.f32 %v4743, %v4977
  %v5067 = vadd.f32 %v4746, %v4980
  %v5068 = vadd.f32 %v4748, %v4982
  %v5069 = vadd.f32 %v4751, %v4985
  %v5070 = vadd.f32 %v4753, %v4987
  %v5071 = vadd.f32 %v4756, %v4990
  %v5072 = vadd.f32 %v4758, %v4992
  %v5073 = vadd.f32 %v4761, %v4995
  %v5074 = vadd.f32 %v4763, %v4997
  %v5075 = vadd.f32 %v4766, %v5000
  %v5076 = vadd.f32 %v4768, %v5002
  %v5077 = vadd.f32 %v4771, %v5005
  %v5078 = vadd.f32 %v4773, %v5007
  %v5079 = vadd.f32 %v4776, %v5010
  %v5080 = vadd.f32 %v4778, %v5012
  %v5081 = vadd.f32 %v4781, %v5015
  %v5082 = vadd.f32 %v4783, %v5017
  %v5083 = vld [vmem:[%s15 + $0x3] sm:$0x1]
  %v5084 = vperm.slane %v5083, 0
  %v5085 = vadd.f32 %v5019, %v5084
  %v5086 = vadd.f32 %v5020, %v5084
  %v5087 = vadd.f32 %v5021, %v5084
  %v5088 = vadd.f32 %v5022, %v5084
  %v5089 = vadd.f32 %v5023, %v5084
  %v5090 = vadd.f32 %v5024, %v5084
  %v5091 = vadd.f32 %v5025, %v5084
  %v5092 = vadd.f32 %v5026, %v5084
  %v5093 = vadd.f32 %v5027, %v5084
  %v5094 = vadd.f32 %v5028, %v5084
  %v5095 = vadd.f32 %v5029, %v5084
  %v5096 = vadd.f32 %v5030, %v5084
  %v5097 = vadd.f32 %v5031, %v5084
  %v5098 = vadd.f32 %v5032, %v5084
  %v5099 = vadd.f32 %v5033, %v5084
  %v5100 = vadd.f32 %v5034, %v5084
  %v5101 = vadd.f32 %v5035, %v5084
  %v5102 = vadd.f32 %v5036, %v5084
  %v5103 = vadd.f32 %v5037, %v5084
  %v5104 = vadd.f32 %v5038, %v5084
  %v5105 = vadd.f32 %v5039, %v5084
  %v5106 = vadd.f32 %v5040, %v5084
  %v5107 = vadd.f32 %v5041, %v5084
  %v5108 = vadd.f32 %v5042, %v5084
  %v5109 = vadd.f32 %v5043, %v5084
  %v5110 = vadd.f32 %v5044, %v5084
  %v5111 = vadd.f32 %v5045, %v5084
  %v5112 = vadd.f32 %v5046, %v5084
  %v5113 = vadd.f32 %v5047, %v5084
  %v5114 = vadd.f32 %v5048, %v5084
  %v5115 = vadd.f32 %v5049, %v5084
  %v5116 = vadd.f32 %v5050, %v5084
  %v5117 = vadd.f32 %v5051, %v5084
  %v5118 = vadd.f32 %v5052, %v5084
  %v5119 = vadd.f32 %v5053, %v5084
  %v5120 = vadd.f32 %v5054, %v5084
  %v5121 = vadd.f32 %v5055, %v5084
  %v5122 = vadd.f32 %v5056, %v5084
  %v5123 = vadd.f32 %v5057, %v5084
  %v5124 = vadd.f32 %v5058, %v5084
  %v5125 = vadd.f32 %v5059, %v5084
  %v5126 = vadd.f32 %v5060, %v5084
  %v5127 = vadd.f32 %v5061, %v5084
  %v5128 = vadd.f32 %v5062, %v5084
  %v5129 = vadd.f32 %v5063, %v5084
  %v5130 = vadd.f32 %v5064, %v5084
  %v5131 = vadd.f32 %v5065, %v5084
  %v5132 = vadd.f32 %v5066, %v5084
  %v5133 = vadd.f32 %v5067, %v5084
  %v5134 = vadd.f32 %v5068, %v5084
  %v5135 = vadd.f32 %v5069, %v5084
  %v5136 = vadd.f32 %v5070, %v5084
  %v5137 = vadd.f32 %v5071, %v5084
  %v5138 = vadd.f32 %v5072, %v5084
  %v5139 = vadd.f32 %v5073, %v5084
  %v5140 = vadd.f32 %v5074, %v5084
  %v5141 = vadd.f32 %v5075, %v5084
  %v5142 = vadd.f32 %v5076, %v5084
  %v5143 = vadd.f32 %v5077, %v5084
  %v5144 = vadd.f32 %v5078, %v5084
  %v5145 = vadd.f32 %v5079, %v5084
  %v5146 = vadd.f32 %v5080, %v5084
  %v5147 = vadd.f32 %v5081, %v5084
  %v5148 = vadd.f32 %v5082, %v5084
  %v5149 = vmax.f32 %v5085, 0.0
  %v5150 = vmax.f32 %v5086, 0.0
  %v5151 = vmax.f32 %v5087, 0.0
  %v5152 = vmax.f32 %v5088, 0.0
  %v5153 = vmax.f32 %v5089, 0.0
  %v5154 = vmax.f32 %v5090, 0.0
  %v5155 = vmax.f32 %v5091, 0.0
  %v5156 = vmax.f32 %v5092, 0.0
  %v5157 = vmax.f32 %v5093, 0.0
  %v5158 = vmax.f32 %v5094, 0.0
  %v5159 = vmax.f32 %v5095, 0.0
  %v5160 = vmax.f32 %v5096, 0.0
  %v5161 = vmax.f32 %v5097, 0.0
  %v5162 = vmax.f32 %v5098, 0.0
  %v5163 = vmax.f32 %v5099, 0.0
  %v5164 = vmax.f32 %v5100, 0.0
  %v5165 = vmax.f32 %v5101, 0.0
  %v5166 = vmax.f32 %v5102, 0.0
  %v5167 = vmax.f32 %v5103, 0.0
  %v5168 = vmax.f32 %v5104, 0.0
  %v5169 = vmax.f32 %v5105, 0.0
  %v5170 = vmax.f32 %v5106, 0.0
  %v5171 = vmax.f32 %v5107, 0.0
  %v5172 = vmax.f32 %v5108, 0.0
  %v5173 = vmax.f32 %v5109, 0.0
  %v5174 = vmax.f32 %v5110, 0.0
  %v5175 = vmax.f32 %v5111, 0.0
  %v5176 = vmax.f32 %v5112, 0.0
  %v5177 = vmax.f32 %v5113, 0.0
  %v5178 = vmax.f32 %v5114, 0.0
  %v5179 = vmax.f32 %v5115, 0.0
  %v5180 = vmax.f32 %v5116, 0.0
  %v5181 = vmax.f32 %v5117, 0.0
  %v5182 = vmax.f32 %v5118, 0.0
  %v5183 = vmax.f32 %v5119, 0.0
  %v5184 = vmax.f32 %v5120, 0.0
  %v5185 = vmax.f32 %v5121, 0.0
  %v5186 = vmax.f32 %v5122, 0.0
  %v5187 = vmax.f32 %v5123, 0.0
  %v5188 = vmax.f32 %v5124, 0.0
  %v5189 = vmax.f32 %v5125, 0.0
  %v5190 = vmax.f32 %v5126, 0.0
  %v5191 = vmax.f32 %v5127, 0.0
  %v5192 = vmax.f32 %v5128, 0.0
  %v5193 = vmax.f32 %v5129, 0.0
  %v5194 = vmax.f32 %v5130, 0.0
  %v5195 = vmax.f32 %v5131, 0.0
  %v5196 = vmax.f32 %v5132, 0.0
  %v5197 = vmax.f32 %v5133, 0.0
  %v5198 = vmax.f32 %v5134, 0.0
  %v5199 = vmax.f32 %v5135, 0.0
  %v5200 = vmax.f32 %v5136, 0.0
  %v5201 = vmax.f32 %v5137, 0.0
  %v5202 = vmax.f32 %v5138, 0.0
  %v5203 = vmax.f32 %v5139, 0.0
  %v5204 = vmax.f32 %v5140, 0.0
  %v5205 = vmax.f32 %v5141, 0.0
  %v5206 = vmax.f32 %v5142, 0.0
  %v5207 = vmax.f32 %v5143, 0.0
  %v5208 = vmax.f32 %v5144, 0.0
  %v5209 = vmax.f32 %v5145, 0.0
  %v5210 = vmax.f32 %v5146, 0.0
  %v5211 = vmax.f32 %v5147, 0.0
  %v5212 = vmax.f32 %v5148, 0.0
  %v5213 = vpack.c.bf16 %v5150, %v5149
  %v5214 = vpack.c.bf16 %v5152, %v5151
  %v5215 = vpack.c.bf16 %v5154, %v5153
  %v5216 = vpack.c.bf16 %v5156, %v5155
  %v5217 = vpack.c.bf16 %v5158, %v5157
  %v5218 = vpack.c.bf16 %v5160, %v5159
  %v5219 = vpack.c.bf16 %v5162, %v5161
  %v5220 = vpack.c.bf16 %v5164, %v5163
  %v5221 = vpack.c.bf16 %v5166, %v5165
  %v5222 = vpack.c.bf16 %v5168, %v5167
  %v5223 = vpack.c.bf16 %v5170, %v5169
  %v5224 = vpack.c.bf16 %v5172, %v5171
  %v5225 = vpack.c.bf16 %v5174, %v5173
  %v5226 = vpack.c.bf16 %v5176, %v5175
  %v5227 = vpack.c.bf16 %v5178, %v5177
  %v5228 = vpack.c.bf16 %v5180, %v5179
  %v5229 = vpack.c.bf16 %v5182, %v5181
  %v5230 = vpack.c.bf16 %v5184, %v5183
  %v5231 = vpack.c.bf16 %v5186, %v5185
  %v5232 = vpack.c.bf16 %v5188, %v5187
  %v5233 = vpack.c.bf16 %v5190, %v5189
  %v5234 = vpack.c.bf16 %v5192, %v5191
  %v5235 = vpack.c.bf16 %v5194, %v5193
  %v5236 = vpack.c.bf16 %v5196, %v5195
  %v5237 = vpack.c.bf16 %v5198, %v5197
  %v5238 = vpack.c.bf16 %v5200, %v5199
  %v5239 = vpack.c.bf16 %v5202, %v5201
  %v5240 = vpack.c.bf16 %v5204, %v5203
  %v5241 = vpack.c.bf16 %v5206, %v5205
  %v5242 = vpack.c.bf16 %v5208, %v5207
  %v5243 = vpack.c.bf16 %v5210, %v5209
  %v5244 = vpack.c.bf16 %v5212, %v5211
  %s5245 = scalar_lea.vmem %s14, 320
  %v5246 = vld [vmem:[%s5245] sm:$0xf]
  %v5247 = vld [vmem:[%s5245 + $0x4] sm:$0xf]
  %v5248 = vld [vmem:[%s5245 + $0x8] sm:$0xf]
  %v5249 = vld [vmem:[%s5245 + $0xc] sm:$0xf]
  %v5250 = vld [vmem:[%s5245 + $0x10] sm:$0xf]
  %v5251 = vld [vmem:[%s5245 + $0x14] sm:$0xf]
  %v5252 = vld [vmem:[%s5245 + $0x18] sm:$0xf]
  %v5253 = vld [vmem:[%s5245 + $0x1c] sm:$0xf]
  %v5254 = vld [vmem:[%s5245 + $0x20] sm:$0xf]
  %v5255 = vld [vmem:[%s5245 + $0x24] sm:$0xf]
  %v5256 = vld [vmem:[%s5245 + $0x28] sm:$0xf]
  %v5257 = vld [vmem:[%s5245 + $0x2c] sm:$0xf]
  %v5258 = vld [vmem:[%s5245 + $0x30] sm:$0xf]
  %v5259 = vld [vmem:[%s5245 + $0x34] sm:$0xf]
  %v5260 = vld [vmem:[%s5245 + $0x38] sm:$0xf]
  %v5261 = vld [vmem:[%s5245 + $0x3c] sm:$0xf]
  %v5262 = vld [vmem:[%s15 + $0x5] sm:$0x1]
  %v5263 = vperm.slane %v5262, 0
  %v5280 = vunpack.c.l.b16 %v5246
  %v5281 = vunpack.c.l.b16 %v5247
  %v5282 = vunpack.c.l.b16 %v5248
  %v5283 = vunpack.c.l.b16 %v5249
  %v5284 = vunpack.c.l.b16 %v5250
  %v5285 = vunpack.c.l.b16 %v5251
  %v5286 = vunpack.c.l.b16 %v5252
  %v5287 = vunpack.c.l.b16 %v5253
  %v5288 = vunpack.c.l.b16 %v5254
  %v5289 = vunpack.c.l.b16 %v5255
  %v5290 = vunpack.c.l.b16 %v5256
  %v5291 = vunpack.c.l.b16 %v5257
  %v5292 = vunpack.c.l.b16 %v5258
  %v5293 = vunpack.c.l.b16 %v5259
  %v5294 = vunpack.c.l.b16 %v5260
  %v5295 = vunpack.c.l.b16 %v5261
  %v5296 = vpack.c.b16 %v5281, %v5280
  %v5297 = vpack.c.b16 %v5283, %v5282
  %v5298 = vpack.c.b16 %v5285, %v5284
  %v5299 = vpack.c.b16 %v5287, %v5286
  %v5300 = vpack.c.b16 %v5289, %v5288
  %v5301 = vpack.c.b16 %v5291, %v5290
  %v5302 = vpack.c.b16 %v5293, %v5292
  %v5303 = vpack.c.b16 %v5295, %v5294
  %5312 = vmatpush.bf16.msra.mxu0 %v5303
  %5313 = vmatpush.bf16.msra.mxu0 %v5302
  %5314 = vmatpush.bf16.msra.mxu0 %v5301
  %5315 = vmatpush.bf16.msra.mxu0 %v5300
  %5316 = vmatpush.bf16.msra.mxu0 %v5299
  %5317 = vmatpush.bf16.msra.mxu0 %v5298
  %5318 = vmatpush.bf16.msra.mxu0 %v5297
  %5319 = vmatpush.bf16.msra.mxu0 %v5296
  %5320 = vmatmul.bf16.gmra.mxu0 %v5213
  %v5321 = vpop.f32.mrf.mxu0
  %v5322 = vadd.f32 %v5263, %v5321
  %v5323 = vpop.f32.mrf.mxu0
  %v5324 = vadd.f32 %v5263, %v5323
  %5325 = vmatmul.bf16.gmra.mxu0 %v5214
  %v5326 = vpop.f32.mrf.mxu0
  %v5327 = vadd.f32 %v5263, %v5326
  %v5328 = vpop.f32.mrf.mxu0
  %v5329 = vadd.f32 %v5263, %v5328
  %5330 = vmatmul.bf16.gmra.mxu0 %v5215
  %v5331 = vpop.f32.mrf.mxu0
  %v5332 = vadd.f32 %v5263, %v5331
  %v5333 = vpop.f32.mrf.mxu0
  %v5334 = vadd.f32 %v5263, %v5333
  %5335 = vmatmul.bf16.gmra.mxu0 %v5216
  %v5336 = vpop.f32.mrf.mxu0
  %v5337 = vadd.f32 %v5263, %v5336
  %v5338 = vpop.f32.mrf.mxu0
  %v5339 = vadd.f32 %v5263, %v5338
  %5340 = vmatmul.bf16.gmra.mxu0 %v5217
  %v5341 = vpop.f32.mrf.mxu0
  %v5342 = vadd.f32 %v5263, %v5341
  %v5343 = vpop.f32.mrf.mxu0
  %v5344 = vadd.f32 %v5263, %v5343
  %5345 = vmatmul.bf16.gmra.mxu0 %v5218
  %v5346 = vpop.f32.mrf.mxu0
  %v5347 = vadd.f32 %v5263, %v5346
  %v5348 = vpop.f32.mrf.mxu0
  %v5349 = vadd.f32 %v5263, %v5348
  %5350 = vmatmul.bf16.gmra.mxu0 %v5219
  %v5351 = vpop.f32.mrf.mxu0
  %v5352 = vadd.f32 %v5263, %v5351
  %v5353 = vpop.f32.mrf.mxu0
  %v5354 = vadd.f32 %v5263, %v5353
  %5355 = vmatmul.bf16.gmra.mxu0 %v5220
  %v5356 = vpop.f32.mrf.mxu0
  %v5357 = vadd.f32 %v5263, %v5356
  %v5358 = vpop.f32.mrf.mxu0
  %v5359 = vadd.f32 %v5263, %v5358
  %5360 = vmatmul.bf16.gmra.mxu0 %v5221
  %v5361 = vpop.f32.mrf.mxu0
  %v5362 = vadd.f32 %v5263, %v5361
  %v5363 = vpop.f32.mrf.mxu0
  %v5364 = vadd.f32 %v5263, %v5363
  %5365 = vmatmul.bf16.gmra.mxu0 %v5222
  %v5366 = vpop.f32.mrf.mxu0
  %v5367 = vadd.f32 %v5263, %v5366
  %v5368 = vpop.f32.mrf.mxu0
  %v5369 = vadd.f32 %v5263, %v5368
  %5370 = vmatmul.bf16.gmra.mxu0 %v5223
  %v5371 = vpop.f32.mrf.mxu0
  %v5372 = vadd.f32 %v5263, %v5371
  %v5373 = vpop.f32.mrf.mxu0
  %v5374 = vadd.f32 %v5263, %v5373
  %5375 = vmatmul.bf16.gmra.mxu0 %v5224
  %v5376 = vpop.f32.mrf.mxu0
  %v5377 = vadd.f32 %v5263, %v5376
  %v5378 = vpop.f32.mrf.mxu0
  %v5379 = vadd.f32 %v5263, %v5378
  %5380 = vmatmul.bf16.gmra.mxu0 %v5225
  %v5381 = vpop.f32.mrf.mxu0
  %v5382 = vadd.f32 %v5263, %v5381
  %v5383 = vpop.f32.mrf.mxu0
  %v5384 = vadd.f32 %v5263, %v5383
  %5385 = vmatmul.bf16.gmra.mxu0 %v5226
  %v5386 = vpop.f32.mrf.mxu0
  %v5387 = vadd.f32 %v5263, %v5386
  %v5388 = vpop.f32.mrf.mxu0
  %v5389 = vadd.f32 %v5263, %v5388
  %5390 = vmatmul.bf16.gmra.mxu0 %v5227
  %v5391 = vpop.f32.mrf.mxu0
  %v5392 = vadd.f32 %v5263, %v5391
  %v5393 = vpop.f32.mrf.mxu0
  %v5394 = vadd.f32 %v5263, %v5393
  %5395 = vmatmul.bf16.gmra.mxu0 %v5228
  %v5396 = vpop.f32.mrf.mxu0
  %v5397 = vadd.f32 %v5263, %v5396
  %v5398 = vpop.f32.mrf.mxu0
  %v5399 = vadd.f32 %v5263, %v5398
  %5400 = vmatmul.bf16.gmra.mxu0 %v5229
  %v5401 = vpop.f32.mrf.mxu0
  %v5402 = vadd.f32 %v5263, %v5401
  %v5403 = vpop.f32.mrf.mxu0
  %v5404 = vadd.f32 %v5263, %v5403
  %5405 = vmatmul.bf16.gmra.mxu0 %v5230
  %v5406 = vpop.f32.mrf.mxu0
  %v5407 = vadd.f32 %v5263, %v5406
  %v5408 = vpop.f32.mrf.mxu0
  %v5409 = vadd.f32 %v5263, %v5408
  %5410 = vmatmul.bf16.gmra.mxu0 %v5231
  %v5411 = vpop.f32.mrf.mxu0
  %v5412 = vadd.f32 %v5263, %v5411
  %v5413 = vpop.f32.mrf.mxu0
  %v5414 = vadd.f32 %v5263, %v5413
  %5415 = vmatmul.bf16.gmra.mxu0 %v5232
  %v5416 = vpop.f32.mrf.mxu0
  %v5417 = vadd.f32 %v5263, %v5416
  %v5418 = vpop.f32.mrf.mxu0
  %v5419 = vadd.f32 %v5263, %v5418
  %5420 = vmatmul.bf16.gmra.mxu0 %v5233
  %v5421 = vpop.f32.mrf.mxu0
  %v5422 = vadd.f32 %v5263, %v5421
  %v5423 = vpop.f32.mrf.mxu0
  %v5424 = vadd.f32 %v5263, %v5423
  %5425 = vmatmul.bf16.gmra.mxu0 %v5234
  %v5426 = vpop.f32.mrf.mxu0
  %v5427 = vadd.f32 %v5263, %v5426
  %v5428 = vpop.f32.mrf.mxu0
  %v5429 = vadd.f32 %v5263, %v5428
  %5430 = vmatmul.bf16.gmra.mxu0 %v5235
  %v5431 = vpop.f32.mrf.mxu0
  %v5432 = vadd.f32 %v5263, %v5431
  %v5433 = vpop.f32.mrf.mxu0
  %v5434 = vadd.f32 %v5263, %v5433
  %5435 = vmatmul.bf16.gmra.mxu0 %v5236
  %v5436 = vpop.f32.mrf.mxu0
  %v5437 = vadd.f32 %v5263, %v5436
  %v5438 = vpop.f32.mrf.mxu0
  %v5439 = vadd.f32 %v5263, %v5438
  %5440 = vmatmul.bf16.gmra.mxu0 %v5237
  %v5441 = vpop.f32.mrf.mxu0
  %v5442 = vadd.f32 %v5263, %v5441
  %v5443 = vpop.f32.mrf.mxu0
  %v5444 = vadd.f32 %v5263, %v5443
  %5445 = vmatmul.bf16.gmra.mxu0 %v5238
  %v5446 = vpop.f32.mrf.mxu0
  %v5447 = vadd.f32 %v5263, %v5446
  %v5448 = vpop.f32.mrf.mxu0
  %v5449 = vadd.f32 %v5263, %v5448
  %5450 = vmatmul.bf16.gmra.mxu0 %v5239
  %v5451 = vpop.f32.mrf.mxu0
  %v5452 = vadd.f32 %v5263, %v5451
  %v5453 = vpop.f32.mrf.mxu0
  %v5454 = vadd.f32 %v5263, %v5453
  %5455 = vmatmul.bf16.gmra.mxu0 %v5240
  %v5456 = vpop.f32.mrf.mxu0
  %v5457 = vadd.f32 %v5263, %v5456
  %v5458 = vpop.f32.mrf.mxu0
  %v5459 = vadd.f32 %v5263, %v5458
  %5460 = vmatmul.bf16.gmra.mxu0 %v5241
  %v5461 = vpop.f32.mrf.mxu0
  %v5462 = vadd.f32 %v5263, %v5461
  %v5463 = vpop.f32.mrf.mxu0
  %v5464 = vadd.f32 %v5263, %v5463
  %5465 = vmatmul.bf16.gmra.mxu0 %v5242
  %v5466 = vpop.f32.mrf.mxu0
  %v5467 = vadd.f32 %v5263, %v5466
  %v5468 = vpop.f32.mrf.mxu0
  %v5469 = vadd.f32 %v5263, %v5468
  %5470 = vmatmul.bf16.gmra.mxu0 %v5243
  %v5471 = vpop.f32.mrf.mxu0
  %v5472 = vadd.f32 %v5263, %v5471
  %v5473 = vpop.f32.mrf.mxu0
  %v5474 = vadd.f32 %v5263, %v5473
  %5475 = vmatmul.bf16.gmra.mxu0 %v5244
  %v5476 = vpop.f32.mrf.mxu0
  %v5477 = vadd.f32 %v5263, %v5476
  %v5478 = vpop.f32.mrf.mxu0
  %v5479 = vadd.f32 %v5263, %v5478
  %5480 = vdwg.mxu0
  %v5481 = vmax.f32 %v5322, 0.0
  %v5482 = vmax.f32 %v5324, 0.0
  %v5483 = vmax.f32 %v5327, 0.0
  %v5484 = vmax.f32 %v5329, 0.0
  %v5485 = vmax.f32 %v5332, 0.0
  %v5486 = vmax.f32 %v5334, 0.0
  %v5487 = vmax.f32 %v5337, 0.0
  %v5488 = vmax.f32 %v5339, 0.0
  %v5489 = vmax.f32 %v5342, 0.0
  %v5490 = vmax.f32 %v5344, 0.0
  %v5491 = vmax.f32 %v5347, 0.0
  %v5492 = vmax.f32 %v5349, 0.0
  %v5493 = vmax.f32 %v5352, 0.0
  %v5494 = vmax.f32 %v5354, 0.0
  %v5495 = vmax.f32 %v5357, 0.0
  %v5496 = vmax.f32 %v5359, 0.0
  %v5497 = vmax.f32 %v5362, 0.0
  %v5498 = vmax.f32 %v5364, 0.0
  %v5499 = vmax.f32 %v5367, 0.0
  %v5500 = vmax.f32 %v5369, 0.0
  %v5501 = vmax.f32 %v5372, 0.0
  %v5502 = vmax.f32 %v5374, 0.0
  %v5503 = vmax.f32 %v5377, 0.0
  %v5504 = vmax.f32 %v5379, 0.0
  %v5505 = vmax.f32 %v5382, 0.0
  %v5506 = vmax.f32 %v5384, 0.0
  %v5507 = vmax.f32 %v5387, 0.0
  %v5508 = vmax.f32 %v5389, 0.0
  %v5509 = vmax.f32 %v5392, 0.0
  %v5510 = vmax.f32 %v5394, 0.0
  %v5511 = vmax.f32 %v5397, 0.0
  %v5512 = vmax.f32 %v5399, 0.0
  %v5513 = vmax.f32 %v5402, 0.0
  %v5514 = vmax.f32 %v5404, 0.0
  %v5515 = vmax.f32 %v5407, 0.0
  %v5516 = vmax.f32 %v5409, 0.0
  %v5517 = vmax.f32 %v5412, 0.0
  %v5518 = vmax.f32 %v5414, 0.0
  %v5519 = vmax.f32 %v5417, 0.0
  %v5520 = vmax.f32 %v5419, 0.0
  %v5521 = vmax.f32 %v5422, 0.0
  %v5522 = vmax.f32 %v5424, 0.0
  %v5523 = vmax.f32 %v5427, 0.0
  %v5524 = vmax.f32 %v5429, 0.0
  %v5525 = vmax.f32 %v5432, 0.0
  %v5526 = vmax.f32 %v5434, 0.0
  %v5527 = vmax.f32 %v5437, 0.0
  %v5528 = vmax.f32 %v5439, 0.0
  %v5529 = vmax.f32 %v5442, 0.0
  %v5530 = vmax.f32 %v5444, 0.0
  %v5531 = vmax.f32 %v5447, 0.0
  %v5532 = vmax.f32 %v5449, 0.0
  %v5533 = vmax.f32 %v5452, 0.0
  %v5534 = vmax.f32 %v5454, 0.0
  %v5535 = vmax.f32 %v5457, 0.0
  %v5536 = vmax.f32 %v5459, 0.0
  %v5537 = vmax.f32 %v5462, 0.0
  %v5538 = vmax.f32 %v5464, 0.0
  %v5539 = vmax.f32 %v5467, 0.0
  %v5540 = vmax.f32 %v5469, 0.0
  %v5541 = vmax.f32 %v5472, 0.0
  %v5542 = vmax.f32 %v5474, 0.0
  %v5543 = vmax.f32 %v5477, 0.0
  %v5544 = vmax.f32 %v5479, 0.0
  %v5545 = vpack.c.bf16 %v5482, %v5481
  %v5546 = vpack.c.bf16 %v5484, %v5483
  %v5547 = vpack.c.bf16 %v5486, %v5485
  %v5548 = vpack.c.bf16 %v5488, %v5487
  %v5549 = vpack.c.bf16 %v5490, %v5489
  %v5550 = vpack.c.bf16 %v5492, %v5491
  %v5551 = vpack.c.bf16 %v5494, %v5493
  %v5552 = vpack.c.bf16 %v5496, %v5495
  %v5553 = vpack.c.bf16 %v5498, %v5497
  %v5554 = vpack.c.bf16 %v5500, %v5499
  %v5555 = vpack.c.bf16 %v5502, %v5501
  %v5556 = vpack.c.bf16 %v5504, %v5503
  %v5557 = vpack.c.bf16 %v5506, %v5505
  %v5558 = vpack.c.bf16 %v5508, %v5507
  %v5559 = vpack.c.bf16 %v5510, %v5509
  %v5560 = vpack.c.bf16 %v5512, %v5511
  %v5561 = vpack.c.bf16 %v5514, %v5513
  %v5562 = vpack.c.bf16 %v5516, %v5515
  %v5563 = vpack.c.bf16 %v5518, %v5517
  %v5564 = vpack.c.bf16 %v5520, %v5519
  %v5565 = vpack.c.bf16 %v5522, %v5521
  %v5566 = vpack.c.bf16 %v5524, %v5523
  %v5567 = vpack.c.bf16 %v5526, %v5525
  %v5568 = vpack.c.bf16 %v5528, %v5527
  %v5569 = vpack.c.bf16 %v5530, %v5529
  %v5570 = vpack.c.bf16 %v5532, %v5531
  %v5571 = vpack.c.bf16 %v5534, %v5533
  %v5572 = vpack.c.bf16 %v5536, %v5535
  %v5573 = vpack.c.bf16 %v5538, %v5537
  %v5574 = vpack.c.bf16 %v5540, %v5539
  %v5575 = vpack.c.bf16 %v5542, %v5541
  %v5576 = vpack.c.bf16 %v5544, %v5543
  %v5577 = vld [vmem:[%s16] sm:$0xff]
  %v5578 = vld [vmem:[%s16 + $0x8] sm:$0xff]
  %v5579 = vld [vmem:[%s16 + $0x10] sm:$0xff]
  %v5580 = vld [vmem:[%s16 + $0x18] sm:$0xff]
  %v5581 = vld [vmem:[%s16 + $0x20] sm:$0xff]
  %v5582 = vld [vmem:[%s16 + $0x28] sm:$0xff]
  %v5583 = vld [vmem:[%s16 + $0x30] sm:$0xff]
  %v5584 = vld [vmem:[%s16 + $0x38] sm:$0xff]
  %v5585 = vld [vmem:[%s16 + $0x40] sm:$0xff]
  %v5586 = vld [vmem:[%s16 + $0x48] sm:$0xff]
  %v5587 = vld [vmem:[%s16 + $0x50] sm:$0xff]
  %v5588 = vld [vmem:[%s16 + $0x58] sm:$0xff]
  %v5589 = vld [vmem:[%s16 + $0x60] sm:$0xff]
  %v5590 = vld [vmem:[%s16 + $0x68] sm:$0xff]
  %v5591 = vld [vmem:[%s16 + $0x70] sm:$0xff]
  %v5592 = vld [vmem:[%s16 + $0x78] sm:$0xff]
  %v5593 = vld [vmem:[%s17] sm:$0x3]
  %v5595 = vperm.slane %v5593, 0
  %v5596 = vperm.slane %v5593, 1
  %v5615 = vunpack.c.l.b16 %v5577
  %v5616 = vunpack.c.h.b16 %v5577
  %v5617 = vunpack.c.l.b16 %v5578
  %v5618 = vunpack.c.h.b16 %v5578
  %v5619 = vunpack.c.l.b16 %v5579
  %v5620 = vunpack.c.h.b16 %v5579
  %v5621 = vunpack.c.l.b16 %v5580
  %v5622 = vunpack.c.h.b16 %v5580
  %v5623 = vunpack.c.l.b16 %v5581
  %v5624 = vunpack.c.h.b16 %v5581
  %v5625 = vunpack.c.l.b16 %v5582
  %v5626 = vunpack.c.h.b16 %v5582
  %v5627 = vunpack.c.l.b16 %v5583
  %v5628 = vunpack.c.h.b16 %v5583
  %v5629 = vunpack.c.l.b16 %v5584
  %v5630 = vunpack.c.h.b16 %v5584
  %v5631 = vunpack.c.l.b16 %v5585
  %v5632 = vunpack.c.h.b16 %v5585
  %v5633 = vunpack.c.l.b16 %v5586
  %v5634 = vunpack.c.h.b16 %v5586
  %v5635 = vunpack.c.l.b16 %v5587
  %v5636 = vunpack.c.h.b16 %v5587
  %v5637 = vunpack.c.l.b16 %v5588
  %v5638 = vunpack.c.h.b16 %v5588
  %v5639 = vunpack.c.l.b16 %v5589
  %v5640 = vunpack.c.h.b16 %v5589
  %v5641 = vunpack.c.l.b16 %v5590
  %v5642 = vunpack.c.h.b16 %v5590
  %v5643 = vunpack.c.l.b16 %v5591
  %v5644 = vunpack.c.h.b16 %v5591
  %v5645 = vunpack.c.l.b16 %v5592
  %v5646 = vunpack.c.h.b16 %v5592
  %v5647 = vpack.c.b16 %v5617, %v5615
  %v5648 = vpack.c.b16 %v5618, %v5616
  %v5649 = vpack.c.b16 %v5621, %v5619
  %v5650 = vpack.c.b16 %v5622, %v5620
  %v5651 = vpack.c.b16 %v5625, %v5623
  %v5652 = vpack.c.b16 %v5626, %v5624
  %v5653 = vpack.c.b16 %v5629, %v5627
  %v5654 = vpack.c.b16 %v5630, %v5628
  %v5655 = vpack.c.b16 %v5633, %v5631
  %v5656 = vpack.c.b16 %v5634, %v5632
  %v5657 = vpack.c.b16 %v5637, %v5635
  %v5658 = vpack.c.b16 %v5638, %v5636
  %v5659 = vpack.c.b16 %v5641, %v5639
  %v5660 = vpack.c.b16 %v5642, %v5640
  %v5661 = vpack.c.b16 %v5645, %v5643
  %v5662 = vpack.c.b16 %v5646, %v5644
  %5679 = vmatpush.bf16.msra.mxu0 %v5661
  %5680 = vmatpush.bf16.msra.mxu0 %v5659
  %5681 = vmatpush.bf16.msra.mxu0 %v5657
  %5682 = vmatpush.bf16.msra.mxu0 %v5655
  %5683 = vmatpush.bf16.msra.mxu0 %v5653
  %5684 = vmatpush.bf16.msra.mxu0 %v5651
  %5685 = vmatpush.bf16.msra.mxu0 %v5649
  %5686 = vmatpush.bf16.msra.mxu0 %v5647
  %5687 = vmatmul.bf16.gmra.mxu0 %v5545
  %v5688 = vpop.f32.mrf.mxu0
  %v5689 = vadd.f32 %v5595, %v5688
  %v5690 = vpop.f32.mrf.mxu0
  %v5691 = vadd.f32 %v5595, %v5690
  %5692 = vmatmul.bf16.gmra.mxu0 %v5546
  %v5693 = vpop.f32.mrf.mxu0
  %v5694 = vadd.f32 %v5595, %v5693
  %v5695 = vpop.f32.mrf.mxu0
  %v5696 = vadd.f32 %v5595, %v5695
  %5697 = vmatmul.bf16.gmra.mxu0 %v5547
  %v5698 = vpop.f32.mrf.mxu0
  %v5699 = vadd.f32 %v5595, %v5698
  %v5700 = vpop.f32.mrf.mxu0
  %v5701 = vadd.f32 %v5595, %v5700
  %5702 = vmatmul.bf16.gmra.mxu0 %v5548
  %v5703 = vpop.f32.mrf.mxu0
  %v5704 = vadd.f32 %v5595, %v5703
  %v5705 = vpop.f32.mrf.mxu0
  %v5706 = vadd.f32 %v5595, %v5705
  %5707 = vmatmul.bf16.gmra.mxu0 %v5549
  %v5708 = vpop.f32.mrf.mxu0
  %v5709 = vadd.f32 %v5595, %v5708
  %v5710 = vpop.f32.mrf.mxu0
  %v5711 = vadd.f32 %v5595, %v5710
  %5712 = vmatmul.bf16.gmra.mxu0 %v5550
  %v5713 = vpop.f32.mrf.mxu0
  %v5714 = vadd.f32 %v5595, %v5713
  %v5715 = vpop.f32.mrf.mxu0
  %v5716 = vadd.f32 %v5595, %v5715
  %5717 = vmatmul.bf16.gmra.mxu0 %v5551
  %v5718 = vpop.f32.mrf.mxu0
  %v5719 = vadd.f32 %v5595, %v5718
  %v5720 = vpop.f32.mrf.mxu0
  %v5721 = vadd.f32 %v5595, %v5720
  %5722 = vmatmul.bf16.gmra.mxu0 %v5552
  %v5723 = vpop.f32.mrf.mxu0
  %v5724 = vadd.f32 %v5595, %v5723
  %v5725 = vpop.f32.mrf.mxu0
  %v5726 = vadd.f32 %v5595, %v5725
  %5727 = vmatmul.bf16.gmra.mxu0 %v5553
  %v5728 = vpop.f32.mrf.mxu0
  %v5729 = vadd.f32 %v5595, %v5728
  %v5730 = vpop.f32.mrf.mxu0
  %v5731 = vadd.f32 %v5595, %v5730
  %5732 = vmatmul.bf16.gmra.mxu0 %v5554
  %v5733 = vpop.f32.mrf.mxu0
  %v5734 = vadd.f32 %v5595, %v5733
  %v5735 = vpop.f32.mrf.mxu0
  %v5736 = vadd.f32 %v5595, %v5735
  %5737 = vmatmul.bf16.gmra.mxu0 %v5555
  %v5738 = vpop.f32.mrf.mxu0
  %v5739 = vadd.f32 %v5595, %v5738
  %v5740 = vpop.f32.mrf.mxu0
  %v5741 = vadd.f32 %v5595, %v5740
  %5742 = vmatmul.bf16.gmra.mxu0 %v5556
  %v5743 = vpop.f32.mrf.mxu0
  %v5744 = vadd.f32 %v5595, %v5743
  %v5745 = vpop.f32.mrf.mxu0
  %v5746 = vadd.f32 %v5595, %v5745
  %5747 = vmatmul.bf16.gmra.mxu0 %v5557
  %v5748 = vpop.f32.mrf.mxu0
  %v5749 = vadd.f32 %v5595, %v5748
  %v5750 = vpop.f32.mrf.mxu0
  %v5751 = vadd.f32 %v5595, %v5750
  %5752 = vmatmul.bf16.gmra.mxu0 %v5558
  %v5753 = vpop.f32.mrf.mxu0
  %v5754 = vadd.f32 %v5595, %v5753
  %v5755 = vpop.f32.mrf.mxu0
  %v5756 = vadd.f32 %v5595, %v5755
  %5757 = vmatmul.bf16.gmra.mxu0 %v5559
  %v5758 = vpop.f32.mrf.mxu0
  %v5759 = vadd.f32 %v5595, %v5758
  %v5760 = vpop.f32.mrf.mxu0
  %v5761 = vadd.f32 %v5595, %v5760
  %5762 = vmatmul.bf16.gmra.mxu0 %v5560
  %v5763 = vpop.f32.mrf.mxu0
  %v5764 = vadd.f32 %v5595, %v5763
  %v5765 = vpop.f32.mrf.mxu0
  %v5766 = vadd.f32 %v5595, %v5765
  %5767 = vmatmul.bf16.gmra.mxu0 %v5561
  %v5768 = vpop.f32.mrf.mxu0
  %v5769 = vadd.f32 %v5595, %v5768
  %v5770 = vpop.f32.mrf.mxu0
  %v5771 = vadd.f32 %v5595, %v5770
  %5772 = vmatmul.bf16.gmra.mxu0 %v5562
  %v5773 = vpop.f32.mrf.mxu0
  %v5774 = vadd.f32 %v5595, %v5773
  %v5775 = vpop.f32.mrf.mxu0
  %v5776 = vadd.f32 %v5595, %v5775
  %5777 = vmatmul.bf16.gmra.mxu0 %v5563
  %v5778 = vpop.f32.mrf.mxu0
  %v5779 = vadd.f32 %v5595, %v5778
  %v5780 = vpop.f32.mrf.mxu0
  %v5781 = vadd.f32 %v5595, %v5780
  %5782 = vmatmul.bf16.gmra.mxu0 %v5564
  %v5783 = vpop.f32.mrf.mxu0
  %v5784 = vadd.f32 %v5595, %v5783
  %v5785 = vpop.f32.mrf.mxu0
  %v5786 = vadd.f32 %v5595, %v5785
  %5787 = vmatmul.bf16.gmra.mxu0 %v5565
  %v5788 = vpop.f32.mrf.mxu0
  %v5789 = vadd.f32 %v5595, %v5788
  %v5790 = vpop.f32.mrf.mxu0
  %v5791 = vadd.f32 %v5595, %v5790
  %5792 = vmatmul.bf16.gmra.mxu0 %v5566
  %v5793 = vpop.f32.mrf.mxu0
  %v5794 = vadd.f32 %v5595, %v5793
  %v5795 = vpop.f32.mrf.mxu0
  %v5796 = vadd.f32 %v5595, %v5795
  %5797 = vmatmul.bf16.gmra.mxu0 %v5567
  %v5798 = vpop.f32.mrf.mxu0
  %v5799 = vadd.f32 %v5595, %v5798
  %v5800 = vpop.f32.mrf.mxu0
  %v5801 = vadd.f32 %v5595, %v5800
  %5802 = vmatmul.bf16.gmra.mxu0 %v5568
  %v5803 = vpop.f32.mrf.mxu0
  %v5804 = vadd.f32 %v5595, %v5803
  %v5805 = vpop.f32.mrf.mxu0
  %v5806 = vadd.f32 %v5595, %v5805
  %5807 = vmatmul.bf16.gmra.mxu0 %v5569
  %v5808 = vpop.f32.mrf.mxu0
  %v5809 = vadd.f32 %v5595, %v5808
  %v5810 = vpop.f32.mrf.mxu0
  %v5811 = vadd.f32 %v5595, %v5810
  %5812 = vmatmul.bf16.gmra.mxu0 %v5570
  %v5813 = vpop.f32.mrf.mxu0
  %v5814 = vadd.f32 %v5595, %v5813
  %v5815 = vpop.f32.mrf.mxu0
  %v5816 = vadd.f32 %v5595, %v5815
  %5817 = vmatmul.bf16.gmra.mxu0 %v5571
  %v5818 = vpop.f32.mrf.mxu0
  %v5819 = vadd.f32 %v5595, %v5818
  %v5820 = vpop.f32.mrf.mxu0
  %v5821 = vadd.f32 %v5595, %v5820
  %5822 = vmatmul.bf16.gmra.mxu0 %v5572
  %v5823 = vpop.f32.mrf.mxu0
  %v5824 = vadd.f32 %v5595, %v5823
  %v5825 = vpop.f32.mrf.mxu0
  %v5826 = vadd.f32 %v5595, %v5825
  %5827 = vmatmul.bf16.gmra.mxu0 %v5573
  %v5828 = vpop.f32.mrf.mxu0
  %v5829 = vadd.f32 %v5595, %v5828
  %v5830 = vpop.f32.mrf.mxu0
  %v5831 = vadd.f32 %v5595, %v5830
  %5832 = vmatmul.bf16.gmra.mxu0 %v5574
  %v5833 = vpop.f32.mrf.mxu0
  %v5834 = vadd.f32 %v5595, %v5833
  %v5835 = vpop.f32.mrf.mxu0
  %v5836 = vadd.f32 %v5595, %v5835
  %5837 = vmatmul.bf16.gmra.mxu0 %v5575
  %v5838 = vpop.f32.mrf.mxu0
  %v5839 = vadd.f32 %v5595, %v5838
  %v5840 = vpop.f32.mrf.mxu0
  %v5841 = vadd.f32 %v5595, %v5840
  %5842 = vmatmul.bf16.gmra.mxu0 %v5576
  %v5843 = vpop.f32.mrf.mxu0
  %v5844 = vadd.f32 %v5595, %v5843
  %v5845 = vpop.f32.mrf.mxu0
  %v5846 = vadd.f32 %v5595, %v5845
  %5847 = vdwg.mxu0
  %5848 = vmatpush.bf16.msra.mxu0 %v5662
  %5849 = vmatpush.bf16.msra.mxu0 %v5660
  %5850 = vmatpush.bf16.msra.mxu0 %v5658
  %5851 = vmatpush.bf16.msra.mxu0 %v5656
  %5852 = vmatpush.bf16.msra.mxu0 %v5654
  %5853 = vmatpush.bf16.msra.mxu0 %v5652
  %5854 = vmatpush.bf16.msra.mxu0 %v5650
  %5855 = vmatpush.bf16.msra.mxu0 %v5648
  %5856 = vmatmul.bf16.gmra.mxu0 %v5545
  %v5857 = vpop.f32.mrf.mxu0
  %v5858 = vadd.f32 %v5596, %v5857
  %v5859 = vpop.f32.mrf.mxu0
  %v5860 = vadd.f32 %v5596, %v5859
  %5861 = vmatmul.bf16.gmra.mxu0 %v5546
  %v5862 = vpop.f32.mrf.mxu0
  %v5863 = vadd.f32 %v5596, %v5862
  %v5864 = vpop.f32.mrf.mxu0
  %v5865 = vadd.f32 %v5596, %v5864
  %5866 = vmatmul.bf16.gmra.mxu0 %v5547
  %v5867 = vpop.f32.mrf.mxu0
  %v5868 = vadd.f32 %v5596, %v5867
  %v5869 = vpop.f32.mrf.mxu0
  %v5870 = vadd.f32 %v5596, %v5869
  %5871 = vmatmul.bf16.gmra.mxu0 %v5548
  %v5872 = vpop.f32.mrf.mxu0
  %v5873 = vadd.f32 %v5596, %v5872
  %v5874 = vpop.f32.mrf.mxu0
  %v5875 = vadd.f32 %v5596, %v5874
  %5876 = vmatmul.bf16.gmra.mxu0 %v5549
  %v5877 = vpop.f32.mrf.mxu0
  %v5878 = vadd.f32 %v5596, %v5877
  %v5879 = vpop.f32.mrf.mxu0
  %v5880 = vadd.f32 %v5596, %v5879
  %5881 = vmatmul.bf16.gmra.mxu0 %v5550
  %v5882 = vpop.f32.mrf.mxu0
  %v5883 = vadd.f32 %v5596, %v5882
  %v5884 = vpop.f32.mrf.mxu0
  %v5885 = vadd.f32 %v5596, %v5884
  %5886 = vmatmul.bf16.gmra.mxu0 %v5551
  %v5887 = vpop.f32.mrf.mxu0
  %v5888 = vadd.f32 %v5596, %v5887
  %v5889 = vpop.f32.mrf.mxu0
  %v5890 = vadd.f32 %v5596, %v5889
  %5891 = vmatmul.bf16.gmra.mxu0 %v5552
  %v5892 = vpop.f32.mrf.mxu0
  %v5893 = vadd.f32 %v5596, %v5892
  %v5894 = vpop.f32.mrf.mxu0
  %v5895 = vadd.f32 %v5596, %v5894
  %5896 = vmatmul.bf16.gmra.mxu0 %v5553
  %v5897 = vpop.f32.mrf.mxu0
  %v5898 = vadd.f32 %v5596, %v5897
  %v5899 = vpop.f32.mrf.mxu0
  %v5900 = vadd.f32 %v5596, %v5899
  %5901 = vmatmul.bf16.gmra.mxu0 %v5554
  %v5902 = vpop.f32.mrf.mxu0
  %v5903 = vadd.f32 %v5596, %v5902
  %v5904 = vpop.f32.mrf.mxu0
  %v5905 = vadd.f32 %v5596, %v5904
  %5906 = vmatmul.bf16.gmra.mxu0 %v5555
  %v5907 = vpop.f32.mrf.mxu0
  %v5908 = vadd.f32 %v5596, %v5907
  %v5909 = vpop.f32.mrf.mxu0
  %v5910 = vadd.f32 %v5596, %v5909
  %5911 = vmatmul.bf16.gmra.mxu0 %v5556
  %v5912 = vpop.f32.mrf.mxu0
  %v5913 = vadd.f32 %v5596, %v5912
  %v5914 = vpop.f32.mrf.mxu0
  %v5915 = vadd.f32 %v5596, %v5914
  %5916 = vmatmul.bf16.gmra.mxu0 %v5557
  %v5917 = vpop.f32.mrf.mxu0
  %v5918 = vadd.f32 %v5596, %v5917
  %v5919 = vpop.f32.mrf.mxu0
  %v5920 = vadd.f32 %v5596, %v5919
  %5921 = vmatmul.bf16.gmra.mxu0 %v5558
  %v5922 = vpop.f32.mrf.mxu0
  %v5923 = vadd.f32 %v5596, %v5922
  %v5924 = vpop.f32.mrf.mxu0
  %v5925 = vadd.f32 %v5596, %v5924
  %5926 = vmatmul.bf16.gmra.mxu0 %v5559
  %v5927 = vpop.f32.mrf.mxu0
  %v5928 = vadd.f32 %v5596, %v5927
  %v5929 = vpop.f32.mrf.mxu0
  %v5930 = vadd.f32 %v5596, %v5929
  %5931 = vmatmul.bf16.gmra.mxu0 %v5560
  %v5932 = vpop.f32.mrf.mxu0
  %v5933 = vadd.f32 %v5596, %v5932
  %v5934 = vpop.f32.mrf.mxu0
  %v5935 = vadd.f32 %v5596, %v5934
  %5936 = vmatmul.bf16.gmra.mxu0 %v5561
  %v5937 = vpop.f32.mrf.mxu0
  %v5938 = vadd.f32 %v5596, %v5937
  %v5939 = vpop.f32.mrf.mxu0
  %v5940 = vadd.f32 %v5596, %v5939
  %5941 = vmatmul.bf16.gmra.mxu0 %v5562
  %v5942 = vpop.f32.mrf.mxu0
  %v5943 = vadd.f32 %v5596, %v5942
  %v5944 = vpop.f32.mrf.mxu0
  %v5945 = vadd.f32 %v5596, %v5944
  %5946 = vmatmul.bf16.gmra.mxu0 %v5563
  %v5947 = vpop.f32.mrf.mxu0
  %v5948 = vadd.f32 %v5596, %v5947
  %v5949 = vpop.f32.mrf.mxu0
  %v5950 = vadd.f32 %v5596, %v5949
  %5951 = vmatmul.bf16.gmra.mxu0 %v5564
  %v5952 = vpop.f32.mrf.mxu0
  %v5953 = vadd.f32 %v5596, %v5952
  %v5954 = vpop.f32.mrf.mxu0
  %v5955 = vadd.f32 %v5596, %v5954
  %5956 = vmatmul.bf16.gmra.mxu0 %v5565
  %v5957 = vpop.f32.mrf.mxu0
  %v5958 = vadd.f32 %v5596, %v5957
  %v5959 = vpop.f32.mrf.mxu0
  %v5960 = vadd.f32 %v5596, %v5959
  %5961 = vmatmul.bf16.gmra.mxu0 %v5566
  %v5962 = vpop.f32.mrf.mxu0
  %v5963 = vadd.f32 %v5596, %v5962
  %v5964 = vpop.f32.mrf.mxu0
  %v5965 = vadd.f32 %v5596, %v5964
  %5966 = vmatmul.bf16.gmra.mxu0 %v5567
  %v5967 = vpop.f32.mrf.mxu0
  %v5968 = vadd.f32 %v5596, %v5967
  %v5969 = vpop.f32.mrf.mxu0
  %v5970 = vadd.f32 %v5596, %v5969
  %5971 = vmatmul.bf16.gmra.mxu0 %v5568
  %v5972 = vpop.f32.mrf.mxu0
  %v5973 = vadd.f32 %v5596, %v5972
  %v5974 = vpop.f32.mrf.mxu0
  %v5975 = vadd.f32 %v5596, %v5974
  %5976 = vmatmul.bf16.gmra.mxu0 %v5569
  %v5977 = vpop.f32.mrf.mxu0
  %v5978 = vadd.f32 %v5596, %v5977
  %v5979 = vpop.f32.mrf.mxu0
  %v5980 = vadd.f32 %v5596, %v5979
  %5981 = vmatmul.bf16.gmra.mxu0 %v5570
  %v5982 = vpop.f32.mrf.mxu0
  %v5983 = vadd.f32 %v5596, %v5982
  %v5984 = vpop.f32.mrf.mxu0
  %v5985 = vadd.f32 %v5596, %v5984
  %5986 = vmatmul.bf16.gmra.mxu0 %v5571
  %v5987 = vpop.f32.mrf.mxu0
  %v5988 = vadd.f32 %v5596, %v5987
  %v5989 = vpop.f32.mrf.mxu0
  %v5990 = vadd.f32 %v5596, %v5989
  %5991 = vmatmul.bf16.gmra.mxu0 %v5572
  %v5992 = vpop.f32.mrf.mxu0
  %v5993 = vadd.f32 %v5596, %v5992
  %v5994 = vpop.f32.mrf.mxu0
  %v5995 = vadd.f32 %v5596, %v5994
  %5996 = vmatmul.bf16.gmra.mxu0 %v5573
  %v5997 = vpop.f32.mrf.mxu0
  %v5998 = vadd.f32 %v5596, %v5997
  %v5999 = vpop.f32.mrf.mxu0
  %v6000 = vadd.f32 %v5596, %v5999
  %6001 = vmatmul.bf16.gmra.mxu0 %v5574
  %v6002 = vpop.f32.mrf.mxu0
  %v6003 = vadd.f32 %v5596, %v6002
  %v6004 = vpop.f32.mrf.mxu0
  %v6005 = vadd.f32 %v5596, %v6004
  %6006 = vmatmul.bf16.gmra.mxu0 %v5575
  %v6007 = vpop.f32.mrf.mxu0
  %v6008 = vadd.f32 %v5596, %v6007
  %v6009 = vpop.f32.mrf.mxu0
  %v6010 = vadd.f32 %v5596, %v6009
  %6011 = vmatmul.bf16.gmra.mxu0 %v5576
  %v6012 = vpop.f32.mrf.mxu0
  %v6013 = vadd.f32 %v5596, %v6012
  %v6014 = vpop.f32.mrf.mxu0
  %v6015 = vadd.f32 %v5596, %v6014
  %6016 = vdwg.mxu0
  %v6017 = vmax.f32 %v5689, 0.0
  %v6018 = vmax.f32 %v5858, 0.0
  %v6019 = vmax.f32 %v5691, 0.0
  %v6020 = vmax.f32 %v5860, 0.0
  %v6021 = vmax.f32 %v5694, 0.0
  %v6022 = vmax.f32 %v5863, 0.0
  %v6023 = vmax.f32 %v5696, 0.0
  %v6024 = vmax.f32 %v5865, 0.0
  %v6025 = vmax.f32 %v5699, 0.0
  %v6026 = vmax.f32 %v5868, 0.0
  %v6027 = vmax.f32 %v5701, 0.0
  %v6028 = vmax.f32 %v5870, 0.0
  %v6029 = vmax.f32 %v5704, 0.0
  %v6030 = vmax.f32 %v5873, 0.0
  %v6031 = vmax.f32 %v5706, 0.0
  %v6032 = vmax.f32 %v5875, 0.0
  %v6033 = vmax.f32 %v5709, 0.0
  %v6034 = vmax.f32 %v5878, 0.0
  %v6035 = vmax.f32 %v5711, 0.0
  %v6036 = vmax.f32 %v5880, 0.0
  %v6037 = vmax.f32 %v5714, 0.0
  %v6038 = vmax.f32 %v5883, 0.0
  %v6039 = vmax.f32 %v5716, 0.0
  %v6040 = vmax.f32 %v5885, 0.0
  %v6041 = vmax.f32 %v5719, 0.0
  %v6042 = vmax.f32 %v5888, 0.0
  %v6043 = vmax.f32 %v5721, 0.0
  %v6044 = vmax.f32 %v5890, 0.0
  %v6045 = vmax.f32 %v5724, 0.0
  %v6046 = vmax.f32 %v5893, 0.0
  %v6047 = vmax.f32 %v5726, 0.0
  %v6048 = vmax.f32 %v5895, 0.0
  %v6049 = vmax.f32 %v5729, 0.0
  %v6050 = vmax.f32 %v5898, 0.0
  %v6051 = vmax.f32 %v5731, 0.0
  %v6052 = vmax.f32 %v5900, 0.0
  %v6053 = vmax.f32 %v5734, 0.0
  %v6054 = vmax.f32 %v5903, 0.0
  %v6055 = vmax.f32 %v5736, 0.0
  %v6056 = vmax.f32 %v5905, 0.0
  %v6057 = vmax.f32 %v5739, 0.0
  %v6058 = vmax.f32 %v5908, 0.0
  %v6059 = vmax.f32 %v5741, 0.0
  %v6060 = vmax.f32 %v5910, 0.0
  %v6061 = vmax.f32 %v5744, 0.0
  %v6062 = vmax.f32 %v5913, 0.0
  %v6063 = vmax.f32 %v5746, 0.0
  %v6064 = vmax.f32 %v5915, 0.0
  %v6065 = vmax.f32 %v5749, 0.0
  %v6066 = vmax.f32 %v5918, 0.0
  %v6067 = vmax.f32 %v5751, 0.0
  %v6068 = vmax.f32 %v5920, 0.0
  %v6069 = vmax.f32 %v5754, 0.0
  %v6070 = vmax.f32 %v5923, 0.0
  %v6071 = vmax.f32 %v5756, 0.0
  %v6072 = vmax.f32 %v5925, 0.0
  %v6073 = vmax.f32 %v5759, 0.0
  %v6074 = vmax.f32 %v5928, 0.0
  %v6075 = vmax.f32 %v5761, 0.0
  %v6076 = vmax.f32 %v5930, 0.0
  %v6077 = vmax.f32 %v5764, 0.0
  %v6078 = vmax.f32 %v5933, 0.0
  %v6079 = vmax.f32 %v5766, 0.0
  %v6080 = vmax.f32 %v5935, 0.0
  %v6081 = vmax.f32 %v5769, 0.0
  %v6082 = vmax.f32 %v5938, 0.0
  %v6083 = vmax.f32 %v5771, 0.0
  %v6084 = vmax.f32 %v5940, 0.0
  %v6085 = vmax.f32 %v5774, 0.0
  %v6086 = vmax.f32 %v5943, 0.0
  %v6087 = vmax.f32 %v5776, 0.0
  %v6088 = vmax.f32 %v5945, 0.0
  %v6089 = vmax.f32 %v5779, 0.0
  %v6090 = vmax.f32 %v5948, 0.0
  %v6091 = vmax.f32 %v5781, 0.0
  %v6092 = vmax.f32 %v5950, 0.0
  %v6093 = vmax.f32 %v5784, 0.0
  %v6094 = vmax.f32 %v5953, 0.0
  %v6095 = vmax.f32 %v5786, 0.0
  %v6096 = vmax.f32 %v5955, 0.0
  %v6097 = vmax.f32 %v5789, 0.0
  %v6098 = vmax.f32 %v5958, 0.0
  %v6099 = vmax.f32 %v5791, 0.0
  %v6100 = vmax.f32 %v5960, 0.0
  %v6101 = vmax.f32 %v5794, 0.0
  %v6102 = vmax.f32 %v5963, 0.0
  %v6103 = vmax.f32 %v5796, 0.0
  %v6104 = vmax.f32 %v5965, 0.0
  %v6105 = vmax.f32 %v5799, 0.0
  %v6106 = vmax.f32 %v5968, 0.0
  %v6107 = vmax.f32 %v5801, 0.0
  %v6108 = vmax.f32 %v5970, 0.0
  %v6109 = vmax.f32 %v5804, 0.0
  %v6110 = vmax.f32 %v5973, 0.0
  %v6111 = vmax.f32 %v5806, 0.0
  %v6112 = vmax.f32 %v5975, 0.0
  %v6113 = vmax.f32 %v5809, 0.0
  %v6114 = vmax.f32 %v5978, 0.0
  %v6115 = vmax.f32 %v5811, 0.0
  %v6116 = vmax.f32 %v5980, 0.0
  %v6117 = vmax.f32 %v5814, 0.0
  %v6118 = vmax.f32 %v5983, 0.0
  %v6119 = vmax.f32 %v5816, 0.0
  %v6120 = vmax.f32 %v5985, 0.0
  %v6121 = vmax.f32 %v5819, 0.0
  %v6122 = vmax.f32 %v5988, 0.0
  %v6123 = vmax.f32 %v5821, 0.0
  %v6124 = vmax.f32 %v5990, 0.0
  %v6125 = vmax.f32 %v5824, 0.0
  %v6126 = vmax.f32 %v5993, 0.0
  %v6127 = vmax.f32 %v5826, 0.0
  %v6128 = vmax.f32 %v5995, 0.0
  %v6129 = vmax.f32 %v5829, 0.0
  %v6130 = vmax.f32 %v5998, 0.0
  %v6131 = vmax.f32 %v5831, 0.0
  %v6132 = vmax.f32 %v6000, 0.0
  %v6133 = vmax.f32 %v5834, 0.0
  %v6134 = vmax.f32 %v6003, 0.0
  %v6135 = vmax.f32 %v5836, 0.0
  %v6136 = vmax.f32 %v6005, 0.0
  %v6137 = vmax.f32 %v5839, 0.0
  %v6138 = vmax.f32 %v6008, 0.0
  %v6139 = vmax.f32 %v5841, 0.0
  %v6140 = vmax.f32 %v6010, 0.0
  %v6141 = vmax.f32 %v5844, 0.0
  %v6142 = vmax.f32 %v6013, 0.0
  %v6143 = vmax.f32 %v5846, 0.0
  %v6144 = vmax.f32 %v6015, 0.0
  %v6145 = vpack.c.bf16 %v6019, %v6017
  %v6146 = vpack.c.bf16 %v6020, %v6018
  %v6147 = vpack.c.bf16 %v6023, %v6021
  %v6148 = vpack.c.bf16 %v6024, %v6022
  %v6149 = vpack.c.bf16 %v6027, %v6025
  %v6150 = vpack.c.bf16 %v6028, %v6026
  %v6151 = vpack.c.bf16 %v6031, %v6029
  %v6152 = vpack.c.bf16 %v6032, %v6030
  %v6153 = vpack.c.bf16 %v6035, %v6033
  %v6154 = vpack.c.bf16 %v6036, %v6034
  %v6155 = vpack.c.bf16 %v6039, %v6037
  %v6156 = vpack.c.bf16 %v6040, %v6038
  %v6157 = vpack.c.bf16 %v6043, %v6041
  %v6158 = vpack.c.bf16 %v6044, %v6042
  %v6159 = vpack.c.bf16 %v6047, %v6045
  %v6160 = vpack.c.bf16 %v6048, %v6046
  %v6161 = vpack.c.bf16 %v6051, %v6049
  %v6162 = vpack.c.bf16 %v6052, %v6050
  %v6163 = vpack.c.bf16 %v6055, %v6053
  %v6164 = vpack.c.bf16 %v6056, %v6054
  %v6165 = vpack.c.bf16 %v6059, %v6057
  %v6166 = vpack.c.bf16 %v6060, %v6058
  %v6167 = vpack.c.bf16 %v6063, %v6061
  %v6168 = vpack.c.bf16 %v6064, %v6062
  %v6169 = vpack.c.bf16 %v6067, %v6065
  %v6170 = vpack.c.bf16 %v6068, %v6066
  %v6171 = vpack.c.bf16 %v6071, %v6069
  %v6172 = vpack.c.bf16 %v6072, %v6070
  %v6173 = vpack.c.bf16 %v6075, %v6073
  %v6174 = vpack.c.bf16 %v6076, %v6074
  %v6175 = vpack.c.bf16 %v6079, %v6077
  %v6176 = vpack.c.bf16 %v6080, %v6078
  %v6177 = vpack.c.bf16 %v6083, %v6081
  %v6178 = vpack.c.bf16 %v6084, %v6082
  %v6179 = vpack.c.bf16 %v6087, %v6085
  %v6180 = vpack.c.bf16 %v6088, %v6086
  %v6181 = vpack.c.bf16 %v6091, %v6089
  %v6182 = vpack.c.bf16 %v6092, %v6090
  %v6183 = vpack.c.bf16 %v6095, %v6093
  %v6184 = vpack.c.bf16 %v6096, %v6094
  %v6185 = vpack.c.bf16 %v6099, %v6097
  %v6186 = vpack.c.bf16 %v6100, %v6098
  %v6187 = vpack.c.bf16 %v6103, %v6101
  %v6188 = vpack.c.bf16 %v6104, %v6102
  %v6189 = vpack.c.bf16 %v6107, %v6105
  %v6190 = vpack.c.bf16 %v6108, %v6106
  %v6191 = vpack.c.bf16 %v6111, %v6109
  %v6192 = vpack.c.bf16 %v6112, %v6110
  %v6193 = vpack.c.bf16 %v6115, %v6113
  %v6194 = vpack.c.bf16 %v6116, %v6114
  %v6195 = vpack.c.bf16 %v6119, %v6117
  %v6196 = vpack.c.bf16 %v6120, %v6118
  %v6197 = vpack.c.bf16 %v6123, %v6121
  %v6198 = vpack.c.bf16 %v6124, %v6122
  %v6199 = vpack.c.bf16 %v6127, %v6125
  %v6200 = vpack.c.bf16 %v6128, %v6126
  %v6201 = vpack.c.bf16 %v6131, %v6129
  %v6202 = vpack.c.bf16 %v6132, %v6130
  %v6203 = vpack.c.bf16 %v6135, %v6133
  %v6204 = vpack.c.bf16 %v6136, %v6134
  %v6205 = vpack.c.bf16 %v6139, %v6137
  %v6206 = vpack.c.bf16 %v6140, %v6138
  %v6207 = vpack.c.bf16 %v6143, %v6141
  %v6208 = vpack.c.bf16 %v6144, %v6142
  %v6209 = vld [vmem:[%s18] sm:$0xff]
  %v6210 = vld [vmem:[%s18 + $0x8] sm:$0xff]
  %v6211 = vld [vmem:[%s18 + $0x10] sm:$0xff]
  %v6212 = vld [vmem:[%s18 + $0x18] sm:$0xff]
  %v6213 = vld [vmem:[%s18 + $0x20] sm:$0xff]
  %v6214 = vld [vmem:[%s18 + $0x28] sm:$0xff]
  %v6215 = vld [vmem:[%s18 + $0x30] sm:$0xff]
  %v6216 = vld [vmem:[%s18 + $0x38] sm:$0xff]
  %v6217 = vld [vmem:[%s18 + $0x40] sm:$0xff]
  %v6218 = vld [vmem:[%s18 + $0x48] sm:$0xff]
  %v6219 = vld [vmem:[%s18 + $0x50] sm:$0xff]
  %v6220 = vld [vmem:[%s18 + $0x58] sm:$0xff]
  %v6221 = vld [vmem:[%s18 + $0x60] sm:$0xff]
  %v6222 = vld [vmem:[%s18 + $0x68] sm:$0xff]
  %v6223 = vld [vmem:[%s18 + $0x70] sm:$0xff]
  %v6224 = vld [vmem:[%s18 + $0x78] sm:$0xff]
  %v6225 = vld [vmem:[%s18 + $0x80] sm:$0xff]
  %v6226 = vld [vmem:[%s18 + $0x88] sm:$0xff]
  %v6227 = vld [vmem:[%s18 + $0x90] sm:$0xff]
  %v6228 = vld [vmem:[%s18 + $0x98] sm:$0xff]
  %v6229 = vld [vmem:[%s18 + $0xa0] sm:$0xff]
  %v6230 = vld [vmem:[%s18 + $0xa8] sm:$0xff]
  %v6231 = vld [vmem:[%s18 + $0xb0] sm:$0xff]
  %v6232 = vld [vmem:[%s18 + $0xb8] sm:$0xff]
  %v6233 = vld [vmem:[%s18 + $0xc0] sm:$0xff]
  %v6234 = vld [vmem:[%s18 + $0xc8] sm:$0xff]
  %v6235 = vld [vmem:[%s18 + $0xd0] sm:$0xff]
  %v6236 = vld [vmem:[%s18 + $0xd8] sm:$0xff]
  %v6237 = vld [vmem:[%s18 + $0xe0] sm:$0xff]
  %v6238 = vld [vmem:[%s18 + $0xe8] sm:$0xff]
  %v6239 = vld [vmem:[%s18 + $0xf0] sm:$0xff]
  %v6240 = vld [vmem:[%s18 + $0xf8] sm:$0xff]
  %v6241 = vld [vmem:[%s19] sm:$0x3]
  %v6243 = vperm.slane %v6241, 0
  %v6244 = vperm.slane %v6241, 1
  %v6279 = vunpack.c.l.b16 %v6209
  %v6280 = vunpack.c.h.b16 %v6209
  %v6281 = vunpack.c.l.b16 %v6210
  %v6282 = vunpack.c.h.b16 %v6210
  %v6283 = vunpack.c.l.b16 %v6211
  %v6284 = vunpack.c.h.b16 %v6211
  %v6285 = vunpack.c.l.b16 %v6212
  %v6286 = vunpack.c.h.b16 %v6212
  %v6287 = vunpack.c.l.b16 %v6213
  %v6288 = vunpack.c.h.b16 %v6213
  %v6289 = vunpack.c.l.b16 %v6214
  %v6290 = vunpack.c.h.b16 %v6214
  %v6291 = vunpack.c.l.b16 %v6215
  %v6292 = vunpack.c.h.b16 %v6215
  %v6293 = vunpack.c.l.b16 %v6216
  %v6294 = vunpack.c.h.b16 %v6216
  %v6295 = vunpack.c.l.b16 %v6217
  %v6296 = vunpack.c.h.b16 %v6217
  %v6297 = vunpack.c.l.b16 %v6218
  %v6298 = vunpack.c.h.b16 %v6218
  %v6299 = vunpack.c.l.b16 %v6219
  %v6300 = vunpack.c.h.b16 %v6219
  %v6301 = vunpack.c.l.b16 %v6220
  %v6302 = vunpack.c.h.b16 %v6220
  %v6303 = vunpack.c.l.b16 %v6221
  %v6304 = vunpack.c.h.b16 %v6221
  %v6305 = vunpack.c.l.b16 %v6222
  %v6306 = vunpack.c.h.b16 %v6222
  %v6307 = vunpack.c.l.b16 %v6223
  %v6308 = vunpack.c.h.b16 %v6223
  %v6309 = vunpack.c.l.b16 %v6224
  %v6310 = vunpack.c.h.b16 %v6224
  %v6311 = vunpack.c.l.b16 %v6225
  %v6312 = vunpack.c.h.b16 %v6225
  %v6313 = vunpack.c.l.b16 %v6226
  %v6314 = vunpack.c.h.b16 %v6226
  %v6315 = vunpack.c.l.b16 %v6227
  %v6316 = vunpack.c.h.b16 %v6227
  %v6317 = vunpack.c.l.b16 %v6228
  %v6318 = vunpack.c.h.b16 %v6228
  %v6319 = vunpack.c.l.b16 %v6229
  %v6320 = vunpack.c.h.b16 %v6229
  %v6321 = vunpack.c.l.b16 %v6230
  %v6322 = vunpack.c.h.b16 %v6230
  %v6323 = vunpack.c.l.b16 %v6231
  %v6324 = vunpack.c.h.b16 %v6231
  %v6325 = vunpack.c.l.b16 %v6232
  %v6326 = vunpack.c.h.b16 %v6232
  %v6327 = vunpack.c.l.b16 %v6233
  %v6328 = vunpack.c.h.b16 %v6233
  %v6329 = vunpack.c.l.b16 %v6234
  %v6330 = vunpack.c.h.b16 %v6234
  %v6331 = vunpack.c.l.b16 %v6235
  %v6332 = vunpack.c.h.b16 %v6235
  %v6333 = vunpack.c.l.b16 %v6236
  %v6334 = vunpack.c.h.b16 %v6236
  %v6335 = vunpack.c.l.b16 %v6237
  %v6336 = vunpack.c.h.b16 %v6237
  %v6337 = vunpack.c.l.b16 %v6238
  %v6338 = vunpack.c.h.b16 %v6238
  %v6339 = vunpack.c.l.b16 %v6239
  %v6340 = vunpack.c.h.b16 %v6239
  %v6341 = vunpack.c.l.b16 %v6240
  %v6342 = vunpack.c.h.b16 %v6240
  %v6343 = vpack.c.b16 %v6281, %v6279
  %v6344 = vpack.c.b16 %v6282, %v6280
  %v6345 = vpack.c.b16 %v6285, %v6283
  %v6346 = vpack.c.b16 %v6286, %v6284
  %v6347 = vpack.c.b16 %v6289, %v6287
  %v6348 = vpack.c.b16 %v6290, %v6288
  %v6349 = vpack.c.b16 %v6293, %v6291
  %v6350 = vpack.c.b16 %v6294, %v6292
  %v6351 = vpack.c.b16 %v6297, %v6295
  %v6352 = vpack.c.b16 %v6298, %v6296
  %v6353 = vpack.c.b16 %v6301, %v6299
  %v6354 = vpack.c.b16 %v6302, %v6300
  %v6355 = vpack.c.b16 %v6305, %v6303
  %v6356 = vpack.c.b16 %v6306, %v6304
  %v6357 = vpack.c.b16 %v6309, %v6307
  %v6358 = vpack.c.b16 %v6310, %v6308
  %v6359 = vpack.c.b16 %v6313, %v6311
  %v6360 = vpack.c.b16 %v6314, %v6312
  %v6361 = vpack.c.b16 %v6317, %v6315
  %v6362 = vpack.c.b16 %v6318, %v6316
  %v6363 = vpack.c.b16 %v6321, %v6319
  %v6364 = vpack.c.b16 %v6322, %v6320
  %v6365 = vpack.c.b16 %v6325, %v6323
  %v6366 = vpack.c.b16 %v6326, %v6324
  %v6367 = vpack.c.b16 %v6329, %v6327
  %v6368 = vpack.c.b16 %v6330, %v6328
  %v6369 = vpack.c.b16 %v6333, %v6331
  %v6370 = vpack.c.b16 %v6334, %v6332
  %v6371 = vpack.c.b16 %v6337, %v6335
  %v6372 = vpack.c.b16 %v6338, %v6336
  %v6373 = vpack.c.b16 %v6341, %v6339
  %v6374 = vpack.c.b16 %v6342, %v6340
  %6407 = vmatpush.bf16.msra.mxu0 %v6357
  %6408 = vmatpush.bf16.msra.mxu0 %v6355
  %6409 = vmatpush.bf16.msra.mxu0 %v6353
  %6410 = vmatpush.bf16.msra.mxu0 %v6351
  %6411 = vmatpush.bf16.msra.mxu0 %v6349
  %6412 = vmatpush.bf16.msra.mxu0 %v6347
  %6413 = vmatpush.bf16.msra.mxu0 %v6345
  %6414 = vmatpush.bf16.msra.mxu0 %v6343
  %6415 = vmatmul.bf16.gmra.mxu0 %v6145
  %v6416 = vpop.f32.mrf.mxu0
  %v6417 = vadd.f32 %v6243, %v6416
  %v6418 = vpop.f32.mrf.mxu0
  %v6419 = vadd.f32 %v6243, %v6418
  %6420 = vmatmul.bf16.gmra.mxu0 %v6147
  %v6421 = vpop.f32.mrf.mxu0
  %v6422 = vadd.f32 %v6243, %v6421
  %v6423 = vpop.f32.mrf.mxu0
  %v6424 = vadd.f32 %v6243, %v6423
  %6425 = vmatmul.bf16.gmra.mxu0 %v6149
  %v6426 = vpop.f32.mrf.mxu0
  %v6427 = vadd.f32 %v6243, %v6426
  %v6428 = vpop.f32.mrf.mxu0
  %v6429 = vadd.f32 %v6243, %v6428
  %6430 = vmatmul.bf16.gmra.mxu0 %v6151
  %v6431 = vpop.f32.mrf.mxu0
  %v6432 = vadd.f32 %v6243, %v6431
  %v6433 = vpop.f32.mrf.mxu0
  %v6434 = vadd.f32 %v6243, %v6433
  %6435 = vmatmul.bf16.gmra.mxu0 %v6153
  %v6436 = vpop.f32.mrf.mxu0
  %v6437 = vadd.f32 %v6243, %v6436
  %v6438 = vpop.f32.mrf.mxu0
  %v6439 = vadd.f32 %v6243, %v6438
  %6440 = vmatmul.bf16.gmra.mxu0 %v6155
  %v6441 = vpop.f32.mrf.mxu0
  %v6442 = vadd.f32 %v6243, %v6441
  %v6443 = vpop.f32.mrf.mxu0
  %v6444 = vadd.f32 %v6243, %v6443
  %6445 = vmatmul.bf16.gmra.mxu0 %v6157
  %v6446 = vpop.f32.mrf.mxu0
  %v6447 = vadd.f32 %v6243, %v6446
  %v6448 = vpop.f32.mrf.mxu0
  %v6449 = vadd.f32 %v6243, %v6448
  %6450 = vmatmul.bf16.gmra.mxu0 %v6159
  %v6451 = vpop.f32.mrf.mxu0
  %v6452 = vadd.f32 %v6243, %v6451
  %v6453 = vpop.f32.mrf.mxu0
  %v6454 = vadd.f32 %v6243, %v6453
  %6455 = vmatmul.bf16.gmra.mxu0 %v6161
  %v6456 = vpop.f32.mrf.mxu0
  %v6457 = vadd.f32 %v6243, %v6456
  %v6458 = vpop.f32.mrf.mxu0
  %v6459 = vadd.f32 %v6243, %v6458
  %6460 = vmatmul.bf16.gmra.mxu0 %v6163
  %v6461 = vpop.f32.mrf.mxu0
  %v6462 = vadd.f32 %v6243, %v6461
  %v6463 = vpop.f32.mrf.mxu0
  %v6464 = vadd.f32 %v6243, %v6463
  %6465 = vmatmul.bf16.gmra.mxu0 %v6165
  %v6466 = vpop.f32.mrf.mxu0
  %v6467 = vadd.f32 %v6243, %v6466
  %v6468 = vpop.f32.mrf.mxu0
  %v6469 = vadd.f32 %v6243, %v6468
  %6470 = vmatmul.bf16.gmra.mxu0 %v6167
  %v6471 = vpop.f32.mrf.mxu0
  %v6472 = vadd.f32 %v6243, %v6471
  %v6473 = vpop.f32.mrf.mxu0
  %v6474 = vadd.f32 %v6243, %v6473
  %6475 = vmatmul.bf16.gmra.mxu0 %v6169
  %v6476 = vpop.f32.mrf.mxu0
  %v6477 = vadd.f32 %v6243, %v6476
  %v6478 = vpop.f32.mrf.mxu0
  %v6479 = vadd.f32 %v6243, %v6478
  %6480 = vmatmul.bf16.gmra.mxu0 %v6171
  %v6481 = vpop.f32.mrf.mxu0
  %v6482 = vadd.f32 %v6243, %v6481
  %v6483 = vpop.f32.mrf.mxu0
  %v6484 = vadd.f32 %v6243, %v6483
  %6485 = vmatmul.bf16.gmra.mxu0 %v6173
  %v6486 = vpop.f32.mrf.mxu0
  %v6487 = vadd.f32 %v6243, %v6486
  %v6488 = vpop.f32.mrf.mxu0
  %v6489 = vadd.f32 %v6243, %v6488
  %6490 = vmatmul.bf16.gmra.mxu0 %v6175
  %v6491 = vpop.f32.mrf.mxu0
  %v6492 = vadd.f32 %v6243, %v6491
  %v6493 = vpop.f32.mrf.mxu0
  %v6494 = vadd.f32 %v6243, %v6493
  %6495 = vmatmul.bf16.gmra.mxu0 %v6177
  %v6496 = vpop.f32.mrf.mxu0
  %v6497 = vadd.f32 %v6243, %v6496
  %v6498 = vpop.f32.mrf.mxu0
  %v6499 = vadd.f32 %v6243, %v6498
  %6500 = vmatmul.bf16.gmra.mxu0 %v6179
  %v6501 = vpop.f32.mrf.mxu0
  %v6502 = vadd.f32 %v6243, %v6501
  %v6503 = vpop.f32.mrf.mxu0
  %v6504 = vadd.f32 %v6243, %v6503
  %6505 = vmatmul.bf16.gmra.mxu0 %v6181
  %v6506 = vpop.f32.mrf.mxu0
  %v6507 = vadd.f32 %v6243, %v6506
  %v6508 = vpop.f32.mrf.mxu0
  %v6509 = vadd.f32 %v6243, %v6508
  %6510 = vmatmul.bf16.gmra.mxu0 %v6183
  %v6511 = vpop.f32.mrf.mxu0
  %v6512 = vadd.f32 %v6243, %v6511
  %v6513 = vpop.f32.mrf.mxu0
  %v6514 = vadd.f32 %v6243, %v6513
  %6515 = vmatmul.bf16.gmra.mxu0 %v6185
  %v6516 = vpop.f32.mrf.mxu0
  %v6517 = vadd.f32 %v6243, %v6516
  %v6518 = vpop.f32.mrf.mxu0
  %v6519 = vadd.f32 %v6243, %v6518
  %6520 = vmatmul.bf16.gmra.mxu0 %v6187
  %v6521 = vpop.f32.mrf.mxu0
  %v6522 = vadd.f32 %v6243, %v6521
  %v6523 = vpop.f32.mrf.mxu0
  %v6524 = vadd.f32 %v6243, %v6523
  %6525 = vmatmul.bf16.gmra.mxu0 %v6189
  %v6526 = vpop.f32.mrf.mxu0
  %v6527 = vadd.f32 %v6243, %v6526
  %v6528 = vpop.f32.mrf.mxu0
  %v6529 = vadd.f32 %v6243, %v6528
  %6530 = vmatmul.bf16.gmra.mxu0 %v6191
  %v6531 = vpop.f32.mrf.mxu0
  %v6532 = vadd.f32 %v6243, %v6531
  %v6533 = vpop.f32.mrf.mxu0
  %v6534 = vadd.f32 %v6243, %v6533
  %6535 = vmatmul.bf16.gmra.mxu0 %v6193
  %v6536 = vpop.f32.mrf.mxu0
  %v6537 = vadd.f32 %v6243, %v6536
  %v6538 = vpop.f32.mrf.mxu0
  %v6539 = vadd.f32 %v6243, %v6538
  %6540 = vmatmul.bf16.gmra.mxu0 %v6195
  %v6541 = vpop.f32.mrf.mxu0
  %v6542 = vadd.f32 %v6243, %v6541
  %v6543 = vpop.f32.mrf.mxu0
  %v6544 = vadd.f32 %v6243, %v6543
  %6545 = vmatmul.bf16.gmra.mxu0 %v6197
  %v6546 = vpop.f32.mrf.mxu0
  %v6547 = vadd.f32 %v6243, %v6546
  %v6548 = vpop.f32.mrf.mxu0
  %v6549 = vadd.f32 %v6243, %v6548
  %6550 = vmatmul.bf16.gmra.mxu0 %v6199
  %v6551 = vpop.f32.mrf.mxu0
  %v6552 = vadd.f32 %v6243, %v6551
  %v6553 = vpop.f32.mrf.mxu0
  %v6554 = vadd.f32 %v6243, %v6553
  %6555 = vmatmul.bf16.gmra.mxu0 %v6201
  %v6556 = vpop.f32.mrf.mxu0
  %v6557 = vadd.f32 %v6243, %v6556
  %v6558 = vpop.f32.mrf.mxu0
  %v6559 = vadd.f32 %v6243, %v6558
  %6560 = vmatmul.bf16.gmra.mxu0 %v6203
  %v6561 = vpop.f32.mrf.mxu0
  %v6562 = vadd.f32 %v6243, %v6561
  %v6563 = vpop.f32.mrf.mxu0
  %v6564 = vadd.f32 %v6243, %v6563
  %6565 = vmatmul.bf16.gmra.mxu0 %v6205
  %v6566 = vpop.f32.mrf.mxu0
  %v6567 = vadd.f32 %v6243, %v6566
  %v6568 = vpop.f32.mrf.mxu0
  %v6569 = vadd.f32 %v6243, %v6568
  %6570 = vmatmul.bf16.gmra.mxu0 %v6207
  %v6571 = vpop.f32.mrf.mxu0
  %v6572 = vadd.f32 %v6243, %v6571
  %v6573 = vpop.f32.mrf.mxu0
  %v6574 = vadd.f32 %v6243, %v6573
  %6575 = vdwg.mxu0
  %6576 = vmatpush.bf16.msra.mxu0 %v6373
  %6577 = vmatpush.bf16.msra.mxu0 %v6371
  %6578 = vmatpush.bf16.msra.mxu0 %v6369
  %6579 = vmatpush.bf16.msra.mxu0 %v6367
  %6580 = vmatpush.bf16.msra.mxu0 %v6365
  %6581 = vmatpush.bf16.msra.mxu0 %v6363
  %6582 = vmatpush.bf16.msra.mxu0 %v6361
  %6583 = vmatpush.bf16.msra.mxu0 %v6359
  %6584 = vmatmul.bf16.gmra.mxu0 %v6146
  %v6585 = vpop.f32.mrf.mxu0
  %v6586 = vadd.f32 %v6417, %v6585
  %v6587 = vpop.f32.mrf.mxu0
  %v6588 = vadd.f32 %v6419, %v6587
  %6589 = vmatmul.bf16.gmra.mxu0 %v6148
  %v6590 = vpop.f32.mrf.mxu0
  %v6591 = vadd.f32 %v6422, %v6590
  %v6592 = vpop.f32.mrf.mxu0
  %v6593 = vadd.f32 %v6424, %v6592
  %6594 = vmatmul.bf16.gmra.mxu0 %v6150
  %v6595 = vpop.f32.mrf.mxu0
  %v6596 = vadd.f32 %v6427, %v6595
  %v6597 = vpop.f32.mrf.mxu0
  %v6598 = vadd.f32 %v6429, %v6597
  %6599 = vmatmul.bf16.gmra.mxu0 %v6152
  %v6600 = vpop.f32.mrf.mxu0
  %v6601 = vadd.f32 %v6432, %v6600
  %v6602 = vpop.f32.mrf.mxu0
  %v6603 = vadd.f32 %v6434, %v6602
  %6604 = vmatmul.bf16.gmra.mxu0 %v6154
  %v6605 = vpop.f32.mrf.mxu0
  %v6606 = vadd.f32 %v6437, %v6605
  %v6607 = vpop.f32.mrf.mxu0
  %v6608 = vadd.f32 %v6439, %v6607
  %6609 = vmatmul.bf16.gmra.mxu0 %v6156
  %v6610 = vpop.f32.mrf.mxu0
  %v6611 = vadd.f32 %v6442, %v6610
  %v6612 = vpop.f32.mrf.mxu0
  %v6613 = vadd.f32 %v6444, %v6612
  %6614 = vmatmul.bf16.gmra.mxu0 %v6158
  %v6615 = vpop.f32.mrf.mxu0
  %v6616 = vadd.f32 %v6447, %v6615
  %v6617 = vpop.f32.mrf.mxu0
  %v6618 = vadd.f32 %v6449, %v6617
  %6619 = vmatmul.bf16.gmra.mxu0 %v6160
  %v6620 = vpop.f32.mrf.mxu0
  %v6621 = vadd.f32 %v6452, %v6620
  %v6622 = vpop.f32.mrf.mxu0
  %v6623 = vadd.f32 %v6454, %v6622
  %6624 = vmatmul.bf16.gmra.mxu0 %v6162
  %v6625 = vpop.f32.mrf.mxu0
  %v6626 = vadd.f32 %v6457, %v6625
  %v6627 = vpop.f32.mrf.mxu0
  %v6628 = vadd.f32 %v6459, %v6627
  %6629 = vmatmul.bf16.gmra.mxu0 %v6164
  %v6630 = vpop.f32.mrf.mxu0
  %v6631 = vadd.f32 %v6462, %v6630
  %v6632 = vpop.f32.mrf.mxu0
  %v6633 = vadd.f32 %v6464, %v6632
  %6634 = vmatmul.bf16.gmra.mxu0 %v6166
  %v6635 = vpop.f32.mrf.mxu0
  %v6636 = vadd.f32 %v6467, %v6635
  %v6637 = vpop.f32.mrf.mxu0
  %v6638 = vadd.f32 %v6469, %v6637
  %6639 = vmatmul.bf16.gmra.mxu0 %v6168
  %v6640 = vpop.f32.mrf.mxu0
  %v6641 = vadd.f32 %v6472, %v6640
  %v6642 = vpop.f32.mrf.mxu0
  %v6643 = vadd.f32 %v6474, %v6642
  %6644 = vmatmul.bf16.gmra.mxu0 %v6170
  %v6645 = vpop.f32.mrf.mxu0
  %v6646 = vadd.f32 %v6477, %v6645
  %v6647 = vpop.f32.mrf.mxu0
  %v6648 = vadd.f32 %v6479, %v6647
  %6649 = vmatmul.bf16.gmra.mxu0 %v6172
  %v6650 = vpop.f32.mrf.mxu0
  %v6651 = vadd.f32 %v6482, %v6650
  %v6652 = vpop.f32.mrf.mxu0
  %v6653 = vadd.f32 %v6484, %v6652
  %6654 = vmatmul.bf16.gmra.mxu0 %v6174
  %v6655 = vpop.f32.mrf.mxu0
  %v6656 = vadd.f32 %v6487, %v6655
  %v6657 = vpop.f32.mrf.mxu0
  %v6658 = vadd.f32 %v6489, %v6657
  %6659 = vmatmul.bf16.gmra.mxu0 %v6176
  %v6660 = vpop.f32.mrf.mxu0
  %v6661 = vadd.f32 %v6492, %v6660
  %v6662 = vpop.f32.mrf.mxu0
  %v6663 = vadd.f32 %v6494, %v6662
  %6664 = vmatmul.bf16.gmra.mxu0 %v6178
  %v6665 = vpop.f32.mrf.mxu0
  %v6666 = vadd.f32 %v6497, %v6665
  %v6667 = vpop.f32.mrf.mxu0
  %v6668 = vadd.f32 %v6499, %v6667
  %6669 = vmatmul.bf16.gmra.mxu0 %v6180
  %v6670 = vpop.f32.mrf.mxu0
  %v6671 = vadd.f32 %v6502, %v6670
  %v6672 = vpop.f32.mrf.mxu0
  %v6673 = vadd.f32 %v6504, %v6672
  %6674 = vmatmul.bf16.gmra.mxu0 %v6182
  %v6675 = vpop.f32.mrf.mxu0
  %v6676 = vadd.f32 %v6507, %v6675
  %v6677 = vpop.f32.mrf.mxu0
  %v6678 = vadd.f32 %v6509, %v6677
  %6679 = vmatmul.bf16.gmra.mxu0 %v6184
  %v6680 = vpop.f32.mrf.mxu0
  %v6681 = vadd.f32 %v6512, %v6680
  %v6682 = vpop.f32.mrf.mxu0
  %v6683 = vadd.f32 %v6514, %v6682
  %6684 = vmatmul.bf16.gmra.mxu0 %v6186
  %v6685 = vpop.f32.mrf.mxu0
  %v6686 = vadd.f32 %v6517, %v6685
  %v6687 = vpop.f32.mrf.mxu0
  %v6688 = vadd.f32 %v6519, %v6687
  %6689 = vmatmul.bf16.gmra.mxu0 %v6188
  %v6690 = vpop.f32.mrf.mxu0
  %v6691 = vadd.f32 %v6522, %v6690
  %v6692 = vpop.f32.mrf.mxu0
  %v6693 = vadd.f32 %v6524, %v6692
  %6694 = vmatmul.bf16.gmra.mxu0 %v6190
  %v6695 = vpop.f32.mrf.mxu0
  %v6696 = vadd.f32 %v6527, %v6695
  %v6697 = vpop.f32.mrf.mxu0
  %v6698 = vadd.f32 %v6529, %v6697
  %6699 = vmatmul.bf16.gmra.mxu0 %v6192
  %v6700 = vpop.f32.mrf.mxu0
  %v6701 = vadd.f32 %v6532, %v6700
  %v6702 = vpop.f32.mrf.mxu0
  %v6703 = vadd.f32 %v6534, %v6702
  %6704 = vmatmul.bf16.gmra.mxu0 %v6194
  %v6705 = vpop.f32.mrf.mxu0
  %v6706 = vadd.f32 %v6537, %v6705
  %v6707 = vpop.f32.mrf.mxu0
  %v6708 = vadd.f32 %v6539, %v6707
  %6709 = vmatmul.bf16.gmra.mxu0 %v6196
  %v6710 = vpop.f32.mrf.mxu0
  %v6711 = vadd.f32 %v6542, %v6710
  %v6712 = vpop.f32.mrf.mxu0
  %v6713 = vadd.f32 %v6544, %v6712
  %6714 = vmatmul.bf16.gmra.mxu0 %v6198
  %v6715 = vpop.f32.mrf.mxu0
  %v6716 = vadd.f32 %v6547, %v6715
  %v6717 = vpop.f32.mrf.mxu0
  %v6718 = vadd.f32 %v6549, %v6717
  %6719 = vmatmul.bf16.gmra.mxu0 %v6200
  %v6720 = vpop.f32.mrf.mxu0
  %v6721 = vadd.f32 %v6552, %v6720
  %v6722 = vpop.f32.mrf.mxu0
  %v6723 = vadd.f32 %v6554, %v6722
  %6724 = vmatmul.bf16.gmra.mxu0 %v6202
  %v6725 = vpop.f32.mrf.mxu0
  %v6726 = vadd.f32 %v6557, %v6725
  %v6727 = vpop.f32.mrf.mxu0
  %v6728 = vadd.f32 %v6559, %v6727
  %6729 = vmatmul.bf16.gmra.mxu0 %v6204
  %v6730 = vpop.f32.mrf.mxu0
  %v6731 = vadd.f32 %v6562, %v6730
  %v6732 = vpop.f32.mrf.mxu0
  %v6733 = vadd.f32 %v6564, %v6732
  %6734 = vmatmul.bf16.gmra.mxu0 %v6206
  %v6735 = vpop.f32.mrf.mxu0
  %v6736 = vadd.f32 %v6567, %v6735
  %v6737 = vpop.f32.mrf.mxu0
  %v6738 = vadd.f32 %v6569, %v6737
  %6739 = vmatmul.bf16.gmra.mxu0 %v6208
  %v6740 = vpop.f32.mrf.mxu0
  %v6741 = vadd.f32 %v6572, %v6740
  %v6742 = vpop.f32.mrf.mxu0
  %v6743 = vadd.f32 %v6574, %v6742
  %6744 = vdwg.mxu0
  %6745 = vmatpush.bf16.msra.mxu0 %v6358
  %6746 = vmatpush.bf16.msra.mxu0 %v6356
  %6747 = vmatpush.bf16.msra.mxu0 %v6354
  %6748 = vmatpush.bf16.msra.mxu0 %v6352
  %6749 = vmatpush.bf16.msra.mxu0 %v6350
  %6750 = vmatpush.bf16.msra.mxu0 %v6348
  %6751 = vmatpush.bf16.msra.mxu0 %v6346
  %6752 = vmatpush.bf16.msra.mxu0 %v6344
  %6753 = vmatmul.bf16.gmra.mxu0 %v6145
  %v6754 = vpop.f32.mrf.mxu0
  %v6755 = vadd.f32 %v6244, %v6754
  %v6756 = vpop.f32.mrf.mxu0
  %v6757 = vadd.f32 %v6244, %v6756
  %6758 = vmatmul.bf16.gmra.mxu0 %v6147
  %v6759 = vpop.f32.mrf.mxu0
  %v6760 = vadd.f32 %v6244, %v6759
  %v6761 = vpop.f32.mrf.mxu0
  %v6762 = vadd.f32 %v6244, %v6761
  %6763 = vmatmul.bf16.gmra.mxu0 %v6149
  %v6764 = vpop.f32.mrf.mxu0
  %v6765 = vadd.f32 %v6244, %v6764
  %v6766 = vpop.f32.mrf.mxu0
  %v6767 = vadd.f32 %v6244, %v6766
  %6768 = vmatmul.bf16.gmra.mxu0 %v6151
  %v6769 = vpop.f32.mrf.mxu0
  %v6770 = vadd.f32 %v6244, %v6769
  %v6771 = vpop.f32.mrf.mxu0
  %v6772 = vadd.f32 %v6244, %v6771
  %6773 = vmatmul.bf16.gmra.mxu0 %v6153
  %v6774 = vpop.f32.mrf.mxu0
  %v6775 = vadd.f32 %v6244, %v6774
  %v6776 = vpop.f32.mrf.mxu0
  %v6777 = vadd.f32 %v6244, %v6776
  %6778 = vmatmul.bf16.gmra.mxu0 %v6155
  %v6779 = vpop.f32.mrf.mxu0
  %v6780 = vadd.f32 %v6244, %v6779
  %v6781 = vpop.f32.mrf.mxu0
  %v6782 = vadd.f32 %v6244, %v6781
  %6783 = vmatmul.bf16.gmra.mxu0 %v6157
  %v6784 = vpop.f32.mrf.mxu0
  %v6785 = vadd.f32 %v6244, %v6784
  %v6786 = vpop.f32.mrf.mxu0
  %v6787 = vadd.f32 %v6244, %v6786
  %6788 = vmatmul.bf16.gmra.mxu0 %v6159
  %v6789 = vpop.f32.mrf.mxu0
  %v6790 = vadd.f32 %v6244, %v6789
  %v6791 = vpop.f32.mrf.mxu0
  %v6792 = vadd.f32 %v6244, %v6791
  %6793 = vmatmul.bf16.gmra.mxu0 %v6161
  %v6794 = vpop.f32.mrf.mxu0
  %v6795 = vadd.f32 %v6244, %v6794
  %v6796 = vpop.f32.mrf.mxu0
  %v6797 = vadd.f32 %v6244, %v6796
  %6798 = vmatmul.bf16.gmra.mxu0 %v6163
  %v6799 = vpop.f32.mrf.mxu0
  %v6800 = vadd.f32 %v6244, %v6799
  %v6801 = vpop.f32.mrf.mxu0
  %v6802 = vadd.f32 %v6244, %v6801
  %6803 = vmatmul.bf16.gmra.mxu0 %v6165
  %v6804 = vpop.f32.mrf.mxu0
  %v6805 = vadd.f32 %v6244, %v6804
  %v6806 = vpop.f32.mrf.mxu0
  %v6807 = vadd.f32 %v6244, %v6806
  %6808 = vmatmul.bf16.gmra.mxu0 %v6167
  %v6809 = vpop.f32.mrf.mxu0
  %v6810 = vadd.f32 %v6244, %v6809
  %v6811 = vpop.f32.mrf.mxu0
  %v6812 = vadd.f32 %v6244, %v6811
  %6813 = vmatmul.bf16.gmra.mxu0 %v6169
  %v6814 = vpop.f32.mrf.mxu0
  %v6815 = vadd.f32 %v6244, %v6814
  %v6816 = vpop.f32.mrf.mxu0
  %v6817 = vadd.f32 %v6244, %v6816
  %6818 = vmatmul.bf16.gmra.mxu0 %v6171
  %v6819 = vpop.f32.mrf.mxu0
  %v6820 = vadd.f32 %v6244, %v6819
  %v6821 = vpop.f32.mrf.mxu0
  %v6822 = vadd.f32 %v6244, %v6821
  %6823 = vmatmul.bf16.gmra.mxu0 %v6173
  %v6824 = vpop.f32.mrf.mxu0
  %v6825 = vadd.f32 %v6244, %v6824
  %v6826 = vpop.f32.mrf.mxu0
  %v6827 = vadd.f32 %v6244, %v6826
  %6828 = vmatmul.bf16.gmra.mxu0 %v6175
  %v6829 = vpop.f32.mrf.mxu0
  %v6830 = vadd.f32 %v6244, %v6829
  %v6831 = vpop.f32.mrf.mxu0
  %v6832 = vadd.f32 %v6244, %v6831
  %6833 = vmatmul.bf16.gmra.mxu0 %v6177
  %v6834 = vpop.f32.mrf.mxu0
  %v6835 = vadd.f32 %v6244, %v6834
  %v6836 = vpop.f32.mrf.mxu0
  %v6837 = vadd.f32 %v6244, %v6836
  %6838 = vmatmul.bf16.gmra.mxu0 %v6179
  %v6839 = vpop.f32.mrf.mxu0
  %v6840 = vadd.f32 %v6244, %v6839
  %v6841 = vpop.f32.mrf.mxu0
  %v6842 = vadd.f32 %v6244, %v6841
  %6843 = vmatmul.bf16.gmra.mxu0 %v6181
  %v6844 = vpop.f32.mrf.mxu0
  %v6845 = vadd.f32 %v6244, %v6844
  %v6846 = vpop.f32.mrf.mxu0
  %v6847 = vadd.f32 %v6244, %v6846
  %6848 = vmatmul.bf16.gmra.mxu0 %v6183
  %v6849 = vpop.f32.mrf.mxu0
  %v6850 = vadd.f32 %v6244, %v6849
  %v6851 = vpop.f32.mrf.mxu0
  %v6852 = vadd.f32 %v6244, %v6851
  %6853 = vmatmul.bf16.gmra.mxu0 %v6185
  %v6854 = vpop.f32.mrf.mxu0
  %v6855 = vadd.f32 %v6244, %v6854
  %v6856 = vpop.f32.mrf.mxu0
  %v6857 = vadd.f32 %v6244, %v6856
  %6858 = vmatmul.bf16.gmra.mxu0 %v6187
  %v6859 = vpop.f32.mrf.mxu0
  %v6860 = vadd.f32 %v6244, %v6859
  %v6861 = vpop.f32.mrf.mxu0
  %v6862 = vadd.f32 %v6244, %v6861
  %6863 = vmatmul.bf16.gmra.mxu0 %v6189
  %v6864 = vpop.f32.mrf.mxu0
  %v6865 = vadd.f32 %v6244, %v6864
  %v6866 = vpop.f32.mrf.mxu0
  %v6867 = vadd.f32 %v6244, %v6866
  %6868 = vmatmul.bf16.gmra.mxu0 %v6191
  %v6869 = vpop.f32.mrf.mxu0
  %v6870 = vadd.f32 %v6244, %v6869
  %v6871 = vpop.f32.mrf.mxu0
  %v6872 = vadd.f32 %v6244, %v6871
  %6873 = vmatmul.bf16.gmra.mxu0 %v6193
  %v6874 = vpop.f32.mrf.mxu0
  %v6875 = vadd.f32 %v6244, %v6874
  %v6876 = vpop.f32.mrf.mxu0
  %v6877 = vadd.f32 %v6244, %v6876
  %6878 = vmatmul.bf16.gmra.mxu0 %v6195
  %v6879 = vpop.f32.mrf.mxu0
  %v6880 = vadd.f32 %v6244, %v6879
  %v6881 = vpop.f32.mrf.mxu0
  %v6882 = vadd.f32 %v6244, %v6881
  %6883 = vmatmul.bf16.gmra.mxu0 %v6197
  %v6884 = vpop.f32.mrf.mxu0
  %v6885 = vadd.f32 %v6244, %v6884
  %v6886 = vpop.f32.mrf.mxu0
  %v6887 = vadd.f32 %v6244, %v6886
  %6888 = vmatmul.bf16.gmra.mxu0 %v6199
  %v6889 = vpop.f32.mrf.mxu0
  %v6890 = vadd.f32 %v6244, %v6889
  %v6891 = vpop.f32.mrf.mxu0
  %v6892 = vadd.f32 %v6244, %v6891
  %6893 = vmatmul.bf16.gmra.mxu0 %v6201
  %v6894 = vpop.f32.mrf.mxu0
  %v6895 = vadd.f32 %v6244, %v6894
  %v6896 = vpop.f32.mrf.mxu0
  %v6897 = vadd.f32 %v6244, %v6896
  %6898 = vmatmul.bf16.gmra.mxu0 %v6203
  %v6899 = vpop.f32.mrf.mxu0
  %v6900 = vadd.f32 %v6244, %v6899
  %v6901 = vpop.f32.mrf.mxu0
  %v6902 = vadd.f32 %v6244, %v6901
  %6903 = vmatmul.bf16.gmra.mxu0 %v6205
  %v6904 = vpop.f32.mrf.mxu0
  %v6905 = vadd.f32 %v6244, %v6904
  %v6906 = vpop.f32.mrf.mxu0
  %v6907 = vadd.f32 %v6244, %v6906
  %6908 = vmatmul.bf16.gmra.mxu0 %v6207
  %v6909 = vpop.f32.mrf.mxu0
  %v6910 = vadd.f32 %v6244, %v6909
  %v6911 = vpop.f32.mrf.mxu0
  %v6912 = vadd.f32 %v6244, %v6911
  %6913 = vdwg.mxu0
  %6914 = vmatpush.bf16.msra.mxu0 %v6374
  %6915 = vmatpush.bf16.msra.mxu0 %v6372
  %6916 = vmatpush.bf16.msra.mxu0 %v6370
  %6917 = vmatpush.bf16.msra.mxu0 %v6368
  %6918 = vmatpush.bf16.msra.mxu0 %v6366
  %6919 = vmatpush.bf16.msra.mxu0 %v6364
  %6920 = vmatpush.bf16.msra.mxu0 %v6362
  %6921 = vmatpush.bf16.msra.mxu0 %v6360
  %6922 = vmatmul.bf16.gmra.mxu0 %v6146
  %v6923 = vpop.f32.mrf.mxu0
  %v6924 = vadd.f32 %v6755, %v6923
  %v6925 = vpop.f32.mrf.mxu0
  %v6926 = vadd.f32 %v6757, %v6925
  %6927 = vmatmul.bf16.gmra.mxu0 %v6148
  %v6928 = vpop.f32.mrf.mxu0
  %v6929 = vadd.f32 %v6760, %v6928
  %v6930 = vpop.f32.mrf.mxu0
  %v6931 = vadd.f32 %v6762, %v6930
  %6932 = vmatmul.bf16.gmra.mxu0 %v6150
  %v6933 = vpop.f32.mrf.mxu0
  %v6934 = vadd.f32 %v6765, %v6933
  %v6935 = vpop.f32.mrf.mxu0
  %v6936 = vadd.f32 %v6767, %v6935
  %6937 = vmatmul.bf16.gmra.mxu0 %v6152
  %v6938 = vpop.f32.mrf.mxu0
  %v6939 = vadd.f32 %v6770, %v6938
  %v6940 = vpop.f32.mrf.mxu0
  %v6941 = vadd.f32 %v6772, %v6940
  %6942 = vmatmul.bf16.gmra.mxu0 %v6154
  %v6943 = vpop.f32.mrf.mxu0
  %v6944 = vadd.f32 %v6775, %v6943
  %v6945 = vpop.f32.mrf.mxu0
  %v6946 = vadd.f32 %v6777, %v6945
  %6947 = vmatmul.bf16.gmra.mxu0 %v6156
  %v6948 = vpop.f32.mrf.mxu0
  %v6949 = vadd.f32 %v6780, %v6948
  %v6950 = vpop.f32.mrf.mxu0
  %v6951 = vadd.f32 %v6782, %v6950
  %6952 = vmatmul.bf16.gmra.mxu0 %v6158
  %v6953 = vpop.f32.mrf.mxu0
  %v6954 = vadd.f32 %v6785, %v6953
  %v6955 = vpop.f32.mrf.mxu0
  %v6956 = vadd.f32 %v6787, %v6955
  %6957 = vmatmul.bf16.gmra.mxu0 %v6160
  %v6958 = vpop.f32.mrf.mxu0
  %v6959 = vadd.f32 %v6790, %v6958
  %v6960 = vpop.f32.mrf.mxu0
  %v6961 = vadd.f32 %v6792, %v6960
  %6962 = vmatmul.bf16.gmra.mxu0 %v6162
  %v6963 = vpop.f32.mrf.mxu0
  %v6964 = vadd.f32 %v6795, %v6963
  %v6965 = vpop.f32.mrf.mxu0
  %v6966 = vadd.f32 %v6797, %v6965
  %6967 = vmatmul.bf16.gmra.mxu0 %v6164
  %v6968 = vpop.f32.mrf.mxu0
  %v6969 = vadd.f32 %v6800, %v6968
  %v6970 = vpop.f32.mrf.mxu0
  %v6971 = vadd.f32 %v6802, %v6970
  %6972 = vmatmul.bf16.gmra.mxu0 %v6166
  %v6973 = vpop.f32.mrf.mxu0
  %v6974 = vadd.f32 %v6805, %v6973
  %v6975 = vpop.f32.mrf.mxu0
  %v6976 = vadd.f32 %v6807, %v6975
  %6977 = vmatmul.bf16.gmra.mxu0 %v6168
  %v6978 = vpop.f32.mrf.mxu0
  %v6979 = vadd.f32 %v6810, %v6978
  %v6980 = vpop.f32.mrf.mxu0
  %v6981 = vadd.f32 %v6812, %v6980
  %6982 = vmatmul.bf16.gmra.mxu0 %v6170
  %v6983 = vpop.f32.mrf.mxu0
  %v6984 = vadd.f32 %v6815, %v6983
  %v6985 = vpop.f32.mrf.mxu0
  %v6986 = vadd.f32 %v6817, %v6985
  %6987 = vmatmul.bf16.gmra.mxu0 %v6172
  %v6988 = vpop.f32.mrf.mxu0
  %v6989 = vadd.f32 %v6820, %v6988
  %v6990 = vpop.f32.mrf.mxu0
  %v6991 = vadd.f32 %v6822, %v6990
  %6992 = vmatmul.bf16.gmra.mxu0 %v6174
  %v6993 = vpop.f32.mrf.mxu0
  %v6994 = vadd.f32 %v6825, %v6993
  %v6995 = vpop.f32.mrf.mxu0
  %v6996 = vadd.f32 %v6827, %v6995
  %6997 = vmatmul.bf16.gmra.mxu0 %v6176
  %v6998 = vpop.f32.mrf.mxu0
  %v6999 = vadd.f32 %v6830, %v6998
  %v7000 = vpop.f32.mrf.mxu0
  %v7001 = vadd.f32 %v6832, %v7000
  %7002 = vmatmul.bf16.gmra.mxu0 %v6178
  %v7003 = vpop.f32.mrf.mxu0
  %v7004 = vadd.f32 %v6835, %v7003
  %v7005 = vpop.f32.mrf.mxu0
  %v7006 = vadd.f32 %v6837, %v7005
  %7007 = vmatmul.bf16.gmra.mxu0 %v6180
  %v7008 = vpop.f32.mrf.mxu0
  %v7009 = vadd.f32 %v6840, %v7008
  %v7010 = vpop.f32.mrf.mxu0
  %v7011 = vadd.f32 %v6842, %v7010
  %7012 = vmatmul.bf16.gmra.mxu0 %v6182
  %v7013 = vpop.f32.mrf.mxu0
  %v7014 = vadd.f32 %v6845, %v7013
  %v7015 = vpop.f32.mrf.mxu0
  %v7016 = vadd.f32 %v6847, %v7015
  %7017 = vmatmul.bf16.gmra.mxu0 %v6184
  %v7018 = vpop.f32.mrf.mxu0
  %v7019 = vadd.f32 %v6850, %v7018
  %v7020 = vpop.f32.mrf.mxu0
  %v7021 = vadd.f32 %v6852, %v7020
  %7022 = vmatmul.bf16.gmra.mxu0 %v6186
  %v7023 = vpop.f32.mrf.mxu0
  %v7024 = vadd.f32 %v6855, %v7023
  %v7025 = vpop.f32.mrf.mxu0
  %v7026 = vadd.f32 %v6857, %v7025
  %7027 = vmatmul.bf16.gmra.mxu0 %v6188
  %v7028 = vpop.f32.mrf.mxu0
  %v7029 = vadd.f32 %v6860, %v7028
  %v7030 = vpop.f32.mrf.mxu0
  %v7031 = vadd.f32 %v6862, %v7030
  %7032 = vmatmul.bf16.gmra.mxu0 %v6190
  %v7033 = vpop.f32.mrf.mxu0
  %v7034 = vadd.f32 %v6865, %v7033
  %v7035 = vpop.f32.mrf.mxu0
  %v7036 = vadd.f32 %v6867, %v7035
  %7037 = vmatmul.bf16.gmra.mxu0 %v6192
  %v7038 = vpop.f32.mrf.mxu0
  %v7039 = vadd.f32 %v6870, %v7038
  %v7040 = vpop.f32.mrf.mxu0
  %v7041 = vadd.f32 %v6872, %v7040
  %7042 = vmatmul.bf16.gmra.mxu0 %v6194
  %v7043 = vpop.f32.mrf.mxu0
  %v7044 = vadd.f32 %v6875, %v7043
  %v7045 = vpop.f32.mrf.mxu0
  %v7046 = vadd.f32 %v6877, %v7045
  %7047 = vmatmul.bf16.gmra.mxu0 %v6196
  %v7048 = vpop.f32.mrf.mxu0
  %v7049 = vadd.f32 %v6880, %v7048
  %v7050 = vpop.f32.mrf.mxu0
  %v7051 = vadd.f32 %v6882, %v7050
  %7052 = vmatmul.bf16.gmra.mxu0 %v6198
  %v7053 = vpop.f32.mrf.mxu0
  %v7054 = vadd.f32 %v6885, %v7053
  %v7055 = vpop.f32.mrf.mxu0
  %v7056 = vadd.f32 %v6887, %v7055
  %7057 = vmatmul.bf16.gmra.mxu0 %v6200
  %v7058 = vpop.f32.mrf.mxu0
  %v7059 = vadd.f32 %v6890, %v7058
  %v7060 = vpop.f32.mrf.mxu0
  %v7061 = vadd.f32 %v6892, %v7060
  %7062 = vmatmul.bf16.gmra.mxu0 %v6202
  %v7063 = vpop.f32.mrf.mxu0
  %v7064 = vadd.f32 %v6895, %v7063
  %v7065 = vpop.f32.mrf.mxu0
  %v7066 = vadd.f32 %v6897, %v7065
  %7067 = vmatmul.bf16.gmra.mxu0 %v6204
  %v7068 = vpop.f32.mrf.mxu0
  %v7069 = vadd.f32 %v6900, %v7068
  %v7070 = vpop.f32.mrf.mxu0
  %v7071 = vadd.f32 %v6902, %v7070
  %7072 = vmatmul.bf16.gmra.mxu0 %v6206
  %v7073 = vpop.f32.mrf.mxu0
  %v7074 = vadd.f32 %v6905, %v7073
  %v7075 = vpop.f32.mrf.mxu0
  %v7076 = vadd.f32 %v6907, %v7075
  %7077 = vmatmul.bf16.gmra.mxu0 %v6208
  %v7078 = vpop.f32.mrf.mxu0
  %v7079 = vadd.f32 %v6910, %v7078
  %v7080 = vpop.f32.mrf.mxu0
  %v7081 = vadd.f32 %v6912, %v7080
  %7082 = vdwg.mxu0
  %v7083 = vmax.f32 %v6586, 0.0
  %v7084 = vmax.f32 %v6924, 0.0
  %v7085 = vmax.f32 %v6588, 0.0
  %v7086 = vmax.f32 %v6926, 0.0
  %v7087 = vmax.f32 %v6591, 0.0
  %v7088 = vmax.f32 %v6929, 0.0
  %v7089 = vmax.f32 %v6593, 0.0
  %v7090 = vmax.f32 %v6931, 0.0
  %v7091 = vmax.f32 %v6596, 0.0
  %v7092 = vmax.f32 %v6934, 0.0
  %v7093 = vmax.f32 %v6598, 0.0
  %v7094 = vmax.f32 %v6936, 0.0
  %v7095 = vmax.f32 %v6601, 0.0
  %v7096 = vmax.f32 %v6939, 0.0
  %v7097 = vmax.f32 %v6603, 0.0
  %v7098 = vmax.f32 %v6941, 0.0
  %v7099 = vmax.f32 %v6606, 0.0
  %v7100 = vmax.f32 %v6944, 0.0
  %v7101 = vmax.f32 %v6608, 0.0
  %v7102 = vmax.f32 %v6946, 0.0
  %v7103 = vmax.f32 %v6611, 0.0
  %v7104 = vmax.f32 %v6949, 0.0
  %v7105 = vmax.f32 %v6613, 0.0
  %v7106 = vmax.f32 %v6951, 0.0
  %v7107 = vmax.f32 %v6616, 0.0
  %v7108 = vmax.f32 %v6954, 0.0
  %v7109 = vmax.f32 %v6618, 0.0
  %v7110 = vmax.f32 %v6956, 0.0
  %v7111 = vmax.f32 %v6621, 0.0
  %v7112 = vmax.f32 %v6959, 0.0
  %v7113 = vmax.f32 %v6623, 0.0
  %v7114 = vmax.f32 %v6961, 0.0
  %v7115 = vmax.f32 %v6626, 0.0
  %v7116 = vmax.f32 %v6964, 0.0
  %v7117 = vmax.f32 %v6628, 0.0
  %v7118 = vmax.f32 %v6966, 0.0
  %v7119 = vmax.f32 %v6631, 0.0
  %v7120 = vmax.f32 %v6969, 0.0
  %v7121 = vmax.f32 %v6633, 0.0
  %v7122 = vmax.f32 %v6971, 0.0
  %v7123 = vmax.f32 %v6636, 0.0
  %v7124 = vmax.f32 %v6974, 0.0
  %v7125 = vmax.f32 %v6638, 0.0
  %v7126 = vmax.f32 %v6976, 0.0
  %v7127 = vmax.f32 %v6641, 0.0
  %v7128 = vmax.f32 %v6979, 0.0
  %v7129 = vmax.f32 %v6643, 0.0
  %v7130 = vmax.f32 %v6981, 0.0
  %v7131 = vmax.f32 %v6646, 0.0
  %v7132 = vmax.f32 %v6984, 0.0
  %v7133 = vmax.f32 %v6648, 0.0
  %v7134 = vmax.f32 %v6986, 0.0
  %v7135 = vmax.f32 %v6651, 0.0
  %v7136 = vmax.f32 %v6989, 0.0
  %v7137 = vmax.f32 %v6653, 0.0
  %v7138 = vmax.f32 %v6991, 0.0
  %v7139 = vmax.f32 %v6656, 0.0
  %v7140 = vmax.f32 %v6994, 0.0
  %v7141 = vmax.f32 %v6658, 0.0
  %v7142 = vmax.f32 %v6996, 0.0
  %v7143 = vmax.f32 %v6661, 0.0
  %v7144 = vmax.f32 %v6999, 0.0
  %v7145 = vmax.f32 %v6663, 0.0
  %v7146 = vmax.f32 %v7001, 0.0
  %v7147 = vmax.f32 %v6666, 0.0
  %v7148 = vmax.f32 %v7004, 0.0
  %v7149 = vmax.f32 %v6668, 0.0
  %v7150 = vmax.f32 %v7006, 0.0
  %v7151 = vmax.f32 %v6671, 0.0
  %v7152 = vmax.f32 %v7009, 0.0
  %v7153 = vmax.f32 %v6673, 0.0
  %v7154 = vmax.f32 %v7011, 0.0
  %v7155 = vmax.f32 %v6676, 0.0
  %v7156 = vmax.f32 %v7014, 0.0
  %v7157 = vmax.f32 %v6678, 0.0
  %v7158 = vmax.f32 %v7016, 0.0
  %v7159 = vmax.f32 %v6681, 0.0
  %v7160 = vmax.f32 %v7019, 0.0
  %v7161 = vmax.f32 %v6683, 0.0
  %v7162 = vmax.f32 %v7021, 0.0
  %v7163 = vmax.f32 %v6686, 0.0
  %v7164 = vmax.f32 %v7024, 0.0
  %v7165 = vmax.f32 %v6688, 0.0
  %v7166 = vmax.f32 %v7026, 0.0
  %v7167 = vmax.f32 %v6691, 0.0
  %v7168 = vmax.f32 %v7029, 0.0
  %v7169 = vmax.f32 %v6693, 0.0
  %v7170 = vmax.f32 %v7031, 0.0
  %v7171 = vmax.f32 %v6696, 0.0
  %v7172 = vmax.f32 %v7034, 0.0
  %v7173 = vmax.f32 %v6698, 0.0
  %v7174 = vmax.f32 %v7036, 0.0
  %v7175 = vmax.f32 %v6701, 0.0
  %v7176 = vmax.f32 %v7039, 0.0
  %v7177 = vmax.f32 %v6703, 0.0
  %v7178 = vmax.f32 %v7041, 0.0
  %v7179 = vmax.f32 %v6706, 0.0
  %v7180 = vmax.f32 %v7044, 0.0
  %v7181 = vmax.f32 %v6708, 0.0
  %v7182 = vmax.f32 %v7046, 0.0
  %v7183 = vmax.f32 %v6711, 0.0
  %v7184 = vmax.f32 %v7049, 0.0
  %v7185 = vmax.f32 %v6713, 0.0
  %v7186 = vmax.f32 %v7051, 0.0
  %v7187 = vmax.f32 %v6716, 0.0
  %v7188 = vmax.f32 %v7054, 0.0
  %v7189 = vmax.f32 %v6718, 0.0
  %v7190 = vmax.f32 %v7056, 0.0
  %v7191 = vmax.f32 %v6721, 0.0
  %v7192 = vmax.f32 %v7059, 0.0
  %v7193 = vmax.f32 %v6723, 0.0
  %v7194 = vmax.f32 %v7061, 0.0
  %v7195 = vmax.f32 %v6726, 0.0
  %v7196 = vmax.f32 %v7064, 0.0
  %v7197 = vmax.f32 %v6728, 0.0
  %v7198 = vmax.f32 %v7066, 0.0
  %v7199 = vmax.f32 %v6731, 0.0
  %v7200 = vmax.f32 %v7069, 0.0
  %v7201 = vmax.f32 %v6733, 0.0
  %v7202 = vmax.f32 %v7071, 0.0
  %v7203 = vmax.f32 %v6736, 0.0
  %v7204 = vmax.f32 %v7074, 0.0
  %v7205 = vmax.f32 %v6738, 0.0
  %v7206 = vmax.f32 %v7076, 0.0
  %v7207 = vmax.f32 %v6741, 0.0
  %v7208 = vmax.f32 %v7079, 0.0
  %v7209 = vmax.f32 %v6743, 0.0
  %v7210 = vmax.f32 %v7081, 0.0
  %v7211 = vpack.c.bf16 %v7085, %v7083
  %v7212 = vpack.c.bf16 %v7086, %v7084
  %v7213 = vpack.c.bf16 %v7089, %v7087
  %v7214 = vpack.c.bf16 %v7090, %v7088
  %v7215 = vpack.c.bf16 %v7093, %v7091
  %v7216 = vpack.c.bf16 %v7094, %v7092
  %v7217 = vpack.c.bf16 %v7097, %v7095
  %v7218 = vpack.c.bf16 %v7098, %v7096
  %v7219 = vpack.c.bf16 %v7101, %v7099
  %v7220 = vpack.c.bf16 %v7102, %v7100
  %v7221 = vpack.c.bf16 %v7105, %v7103
  %v7222 = vpack.c.bf16 %v7106, %v7104
  %v7223 = vpack.c.bf16 %v7109, %v7107
  %v7224 = vpack.c.bf16 %v7110, %v7108
  %v7225 = vpack.c.bf16 %v7113, %v7111
  %v7226 = vpack.c.bf16 %v7114, %v7112
  %v7227 = vpack.c.bf16 %v7117, %v7115
  %v7228 = vpack.c.bf16 %v7118, %v7116
  %v7229 = vpack.c.bf16 %v7121, %v7119
  %v7230 = vpack.c.bf16 %v7122, %v7120
  %v7231 = vpack.c.bf16 %v7125, %v7123
  %v7232 = vpack.c.bf16 %v7126, %v7124
  %v7233 = vpack.c.bf16 %v7129, %v7127
  %v7234 = vpack.c.bf16 %v7130, %v7128
  %v7235 = vpack.c.bf16 %v7133, %v7131
  %v7236 = vpack.c.bf16 %v7134, %v7132
  %v7237 = vpack.c.bf16 %v7137, %v7135
  %v7238 = vpack.c.bf16 %v7138, %v7136
  %v7239 = vpack.c.bf16 %v7141, %v7139
  %v7240 = vpack.c.bf16 %v7142, %v7140
  %v7241 = vpack.c.bf16 %v7145, %v7143
  %v7242 = vpack.c.bf16 %v7146, %v7144
  %v7243 = vpack.c.bf16 %v7149, %v7147
  %v7244 = vpack.c.bf16 %v7150, %v7148
  %v7245 = vpack.c.bf16 %v7153, %v7151
  %v7246 = vpack.c.bf16 %v7154, %v7152
  %v7247 = vpack.c.bf16 %v7157, %v7155
  %v7248 = vpack.c.bf16 %v7158, %v7156
  %v7249 = vpack.c.bf16 %v7161, %v7159
  %v7250 = vpack.c.bf16 %v7162, %v7160
  %v7251 = vpack.c.bf16 %v7165, %v7163
  %v7252 = vpack.c.bf16 %v7166, %v7164
  %v7253 = vpack.c.bf16 %v7169, %v7167
  %v7254 = vpack.c.bf16 %v7170, %v7168
  %v7255 = vpack.c.bf16 %v7173, %v7171
  %v7256 = vpack.c.bf16 %v7174, %v7172
  %v7257 = vpack.c.bf16 %v7177, %v7175
  %v7258 = vpack.c.bf16 %v7178, %v7176
  %v7259 = vpack.c.bf16 %v7181, %v7179
  %v7260 = vpack.c.bf16 %v7182, %v7180
  %v7261 = vpack.c.bf16 %v7185, %v7183
  %v7262 = vpack.c.bf16 %v7186, %v7184
  %v7263 = vpack.c.bf16 %v7189, %v7187
  %v7264 = vpack.c.bf16 %v7190, %v7188
  %v7265 = vpack.c.bf16 %v7193, %v7191
  %v7266 = vpack.c.bf16 %v7194, %v7192
  %v7267 = vpack.c.bf16 %v7197, %v7195
  %v7268 = vpack.c.bf16 %v7198, %v7196
  %v7269 = vpack.c.bf16 %v7201, %v7199
  %v7270 = vpack.c.bf16 %v7202, %v7200
  %v7271 = vpack.c.bf16 %v7205, %v7203
  %v7272 = vpack.c.bf16 %v7206, %v7204
  %v7273 = vpack.c.bf16 %v7209, %v7207
  %v7274 = vpack.c.bf16 %v7210, %v7208
  %v7275 = vld [vmem:[%s20] sm:$0xf]
  %v7276 = vld [vmem:[%s20 + $0x4] sm:$0xf]
  %v7277 = vld [vmem:[%s20 + $0x8] sm:$0xf]
  %v7278 = vld [vmem:[%s20 + $0xc] sm:$0xf]
  %v7279 = vld [vmem:[%s20 + $0x10] sm:$0xf]
  %v7280 = vld [vmem:[%s20 + $0x14] sm:$0xf]
  %v7281 = vld [vmem:[%s20 + $0x18] sm:$0xf]
  %v7282 = vld [vmem:[%s20 + $0x1c] sm:$0xf]
  %v7283 = vld [vmem:[%s20 + $0x20] sm:$0xf]
  %v7284 = vld [vmem:[%s20 + $0x24] sm:$0xf]
  %v7285 = vld [vmem:[%s20 + $0x28] sm:$0xf]
  %v7286 = vld [vmem:[%s20 + $0x2c] sm:$0xf]
  %v7287 = vld [vmem:[%s20 + $0x30] sm:$0xf]
  %v7288 = vld [vmem:[%s20 + $0x34] sm:$0xf]
  %v7289 = vld [vmem:[%s20 + $0x38] sm:$0xf]
  %v7290 = vld [vmem:[%s20 + $0x3c] sm:$0xf]
  %v7291 = vld [vmem:[%s20 + $0x40] sm:$0xf]
  %v7292 = vld [vmem:[%s20 + $0x44] sm:$0xf]
  %v7293 = vld [vmem:[%s20 + $0x48] sm:$0xf]
  %v7294 = vld [vmem:[%s20 + $0x4c] sm:$0xf]
  %v7295 = vld [vmem:[%s20 + $0x50] sm:$0xf]
  %v7296 = vld [vmem:[%s20 + $0x54] sm:$0xf]
  %v7297 = vld [vmem:[%s20 + $0x58] sm:$0xf]
  %v7298 = vld [vmem:[%s20 + $0x5c] sm:$0xf]
  %v7299 = vld [vmem:[%s20 + $0x60] sm:$0xf]
  %v7300 = vld [vmem:[%s20 + $0x64] sm:$0xf]
  %v7301 = vld [vmem:[%s20 + $0x68] sm:$0xf]
  %v7302 = vld [vmem:[%s20 + $0x6c] sm:$0xf]
  %v7303 = vld [vmem:[%s20 + $0x70] sm:$0xf]
  %v7304 = vld [vmem:[%s20 + $0x74] sm:$0xf]
  %v7305 = vld [vmem:[%s20 + $0x78] sm:$0xf]
  %v7306 = vld [vmem:[%s20 + $0x7c] sm:$0xf]
  %v7307 = vld [vmem:[%s21] sm:$0x1]
  %v7309 = vperm.slane %v7307, 0
  %v7343 = vunpack.c.l.b16 %v7275
  %v7344 = vunpack.c.l.b16 %v7276
  %v7345 = vunpack.c.l.b16 %v7277
  %v7346 = vunpack.c.l.b16 %v7278
  %v7347 = vunpack.c.l.b16 %v7279
  %v7348 = vunpack.c.l.b16 %v7280
  %v7349 = vunpack.c.l.b16 %v7281
  %v7350 = vunpack.c.l.b16 %v7282
  %v7351 = vunpack.c.l.b16 %v7283
  %v7352 = vunpack.c.l.b16 %v7284
  %v7353 = vunpack.c.l.b16 %v7285
  %v7354 = vunpack.c.l.b16 %v7286
  %v7355 = vunpack.c.l.b16 %v7287
  %v7356 = vunpack.c.l.b16 %v7288
  %v7357 = vunpack.c.l.b16 %v7289
  %v7358 = vunpack.c.l.b16 %v7290
  %v7359 = vunpack.c.l.b16 %v7291
  %v7360 = vunpack.c.l.b16 %v7292
  %v7361 = vunpack.c.l.b16 %v7293
  %v7362 = vunpack.c.l.b16 %v7294
  %v7363 = vunpack.c.l.b16 %v7295
  %v7364 = vunpack.c.l.b16 %v7296
  %v7365 = vunpack.c.l.b16 %v7297
  %v7366 = vunpack.c.l.b16 %v7298
  %v7367 = vunpack.c.l.b16 %v7299
  %v7368 = vunpack.c.l.b16 %v7300
  %v7369 = vunpack.c.l.b16 %v7301
  %v7370 = vunpack.c.l.b16 %v7302
  %v7371 = vunpack.c.l.b16 %v7303
  %v7372 = vunpack.c.l.b16 %v7304
  %v7373 = vunpack.c.l.b16 %v7305
  %v7374 = vunpack.c.l.b16 %v7306
  %v7375 = vpack.c.b16 %v7344, %v7343
  %v7376 = vpack.c.b16 %v7346, %v7345
  %v7377 = vpack.c.b16 %v7348, %v7347
  %v7378 = vpack.c.b16 %v7350, %v7349
  %v7379 = vpack.c.b16 %v7352, %v7351
  %v7380 = vpack.c.b16 %v7354, %v7353
  %v7381 = vpack.c.b16 %v7356, %v7355
  %v7382 = vpack.c.b16 %v7358, %v7357
  %v7383 = vpack.c.b16 %v7360, %v7359
  %v7384 = vpack.c.b16 %v7362, %v7361
  %v7385 = vpack.c.b16 %v7364, %v7363
  %v7386 = vpack.c.b16 %v7366, %v7365
  %v7387 = vpack.c.b16 %v7368, %v7367
  %v7388 = vpack.c.b16 %v7370, %v7369
  %v7389 = vpack.c.b16 %v7372, %v7371
  %v7390 = vpack.c.b16 %v7374, %v7373
  %7407 = vmatpush.bf16.msra.mxu0 %v7382
  %7408 = vmatpush.bf16.msra.mxu0 %v7381
  %7409 = vmatpush.bf16.msra.mxu0 %v7380
  %7410 = vmatpush.bf16.msra.mxu0 %v7379
  %7411 = vmatpush.bf16.msra.mxu0 %v7378
  %7412 = vmatpush.bf16.msra.mxu0 %v7377
  %7413 = vmatpush.bf16.msra.mxu0 %v7376
  %7414 = vmatpush.bf16.msra.mxu0 %v7375
  %7415 = vmatmul.bf16.gmra.mxu0 %v7211
  %v7416 = vpop.f32.mrf.mxu0
  %v7417 = vadd.f32 %v7309, %v7416
  %v7418 = vpop.f32.mrf.mxu0
  %v7419 = vadd.f32 %v7309, %v7418
  %7420 = vmatmul.bf16.gmra.mxu0 %v7213
  %v7421 = vpop.f32.mrf.mxu0
  %v7422 = vadd.f32 %v7309, %v7421
  %v7423 = vpop.f32.mrf.mxu0
  %v7424 = vadd.f32 %v7309, %v7423
  %7425 = vmatmul.bf16.gmra.mxu0 %v7215
  %v7426 = vpop.f32.mrf.mxu0
  %v7427 = vadd.f32 %v7309, %v7426
  %v7428 = vpop.f32.mrf.mxu0
  %v7429 = vadd.f32 %v7309, %v7428
  %7430 = vmatmul.bf16.gmra.mxu0 %v7217
  %v7431 = vpop.f32.mrf.mxu0
  %v7432 = vadd.f32 %v7309, %v7431
  %v7433 = vpop.f32.mrf.mxu0
  %v7434 = vadd.f32 %v7309, %v7433
  %7435 = vmatmul.bf16.gmra.mxu0 %v7219
  %v7436 = vpop.f32.mrf.mxu0
  %v7437 = vadd.f32 %v7309, %v7436
  %v7438 = vpop.f32.mrf.mxu0
  %v7439 = vadd.f32 %v7309, %v7438
  %7440 = vmatmul.bf16.gmra.mxu0 %v7221
  %v7441 = vpop.f32.mrf.mxu0
  %v7442 = vadd.f32 %v7309, %v7441
  %v7443 = vpop.f32.mrf.mxu0
  %v7444 = vadd.f32 %v7309, %v7443
  %7445 = vmatmul.bf16.gmra.mxu0 %v7223
  %v7446 = vpop.f32.mrf.mxu0
  %v7447 = vadd.f32 %v7309, %v7446
  %v7448 = vpop.f32.mrf.mxu0
  %v7449 = vadd.f32 %v7309, %v7448
  %7450 = vmatmul.bf16.gmra.mxu0 %v7225
  %v7451 = vpop.f32.mrf.mxu0
  %v7452 = vadd.f32 %v7309, %v7451
  %v7453 = vpop.f32.mrf.mxu0
  %v7454 = vadd.f32 %v7309, %v7453
  %7455 = vmatmul.bf16.gmra.mxu0 %v7227
  %v7456 = vpop.f32.mrf.mxu0
  %v7457 = vadd.f32 %v7309, %v7456
  %v7458 = vpop.f32.mrf.mxu0
  %v7459 = vadd.f32 %v7309, %v7458
  %7460 = vmatmul.bf16.gmra.mxu0 %v7229
  %v7461 = vpop.f32.mrf.mxu0
  %v7462 = vadd.f32 %v7309, %v7461
  %v7463 = vpop.f32.mrf.mxu0
  %v7464 = vadd.f32 %v7309, %v7463
  %7465 = vmatmul.bf16.gmra.mxu0 %v7231
  %v7466 = vpop.f32.mrf.mxu0
  %v7467 = vadd.f32 %v7309, %v7466
  %v7468 = vpop.f32.mrf.mxu0
  %v7469 = vadd.f32 %v7309, %v7468
  %7470 = vmatmul.bf16.gmra.mxu0 %v7233
  %v7471 = vpop.f32.mrf.mxu0
  %v7472 = vadd.f32 %v7309, %v7471
  %v7473 = vpop.f32.mrf.mxu0
  %v7474 = vadd.f32 %v7309, %v7473
  %7475 = vmatmul.bf16.gmra.mxu0 %v7235
  %v7476 = vpop.f32.mrf.mxu0
  %v7477 = vadd.f32 %v7309, %v7476
  %v7478 = vpop.f32.mrf.mxu0
  %v7479 = vadd.f32 %v7309, %v7478
  %7480 = vmatmul.bf16.gmra.mxu0 %v7237
  %v7481 = vpop.f32.mrf.mxu0
  %v7482 = vadd.f32 %v7309, %v7481
  %v7483 = vpop.f32.mrf.mxu0
  %v7484 = vadd.f32 %v7309, %v7483
  %7485 = vmatmul.bf16.gmra.mxu0 %v7239
  %v7486 = vpop.f32.mrf.mxu0
  %v7487 = vadd.f32 %v7309, %v7486
  %v7488 = vpop.f32.mrf.mxu0
  %v7489 = vadd.f32 %v7309, %v7488
  %7490 = vmatmul.bf16.gmra.mxu0 %v7241
  %v7491 = vpop.f32.mrf.mxu0
  %v7492 = vadd.f32 %v7309, %v7491
  %v7493 = vpop.f32.mrf.mxu0
  %v7494 = vadd.f32 %v7309, %v7493
  %7495 = vmatmul.bf16.gmra.mxu0 %v7243
  %v7496 = vpop.f32.mrf.mxu0
  %v7497 = vadd.f32 %v7309, %v7496
  %v7498 = vpop.f32.mrf.mxu0
  %v7499 = vadd.f32 %v7309, %v7498
  %7500 = vmatmul.bf16.gmra.mxu0 %v7245
  %v7501 = vpop.f32.mrf.mxu0
  %v7502 = vadd.f32 %v7309, %v7501
  %v7503 = vpop.f32.mrf.mxu0
  %v7504 = vadd.f32 %v7309, %v7503
  %7505 = vmatmul.bf16.gmra.mxu0 %v7247
  %v7506 = vpop.f32.mrf.mxu0
  %v7507 = vadd.f32 %v7309, %v7506
  %v7508 = vpop.f32.mrf.mxu0
  %v7509 = vadd.f32 %v7309, %v7508
  %7510 = vmatmul.bf16.gmra.mxu0 %v7249
  %v7511 = vpop.f32.mrf.mxu0
  %v7512 = vadd.f32 %v7309, %v7511
  %v7513 = vpop.f32.mrf.mxu0
  %v7514 = vadd.f32 %v7309, %v7513
  %7515 = vmatmul.bf16.gmra.mxu0 %v7251
  %v7516 = vpop.f32.mrf.mxu0
  %v7517 = vadd.f32 %v7309, %v7516
  %v7518 = vpop.f32.mrf.mxu0
  %v7519 = vadd.f32 %v7309, %v7518
  %7520 = vmatmul.bf16.gmra.mxu0 %v7253
  %v7521 = vpop.f32.mrf.mxu0
  %v7522 = vadd.f32 %v7309, %v7521
  %v7523 = vpop.f32.mrf.mxu0
  %v7524 = vadd.f32 %v7309, %v7523
  %7525 = vmatmul.bf16.gmra.mxu0 %v7255
  %v7526 = vpop.f32.mrf.mxu0
  %v7527 = vadd.f32 %v7309, %v7526
  %v7528 = vpop.f32.mrf.mxu0
  %v7529 = vadd.f32 %v7309, %v7528
  %7530 = vmatmul.bf16.gmra.mxu0 %v7257
  %v7531 = vpop.f32.mrf.mxu0
  %v7532 = vadd.f32 %v7309, %v7531
  %v7533 = vpop.f32.mrf.mxu0
  %v7534 = vadd.f32 %v7309, %v7533
  %7535 = vmatmul.bf16.gmra.mxu0 %v7259
  %v7536 = vpop.f32.mrf.mxu0
  %v7537 = vadd.f32 %v7309, %v7536
  %v7538 = vpop.f32.mrf.mxu0
  %v7539 = vadd.f32 %v7309, %v7538
  %7540 = vmatmul.bf16.gmra.mxu0 %v7261
  %v7541 = vpop.f32.mrf.mxu0
  %v7542 = vadd.f32 %v7309, %v7541
  %v7543 = vpop.f32.mrf.mxu0
  %v7544 = vadd.f32 %v7309, %v7543
  %7545 = vmatmul.bf16.gmra.mxu0 %v7263
  %v7546 = vpop.f32.mrf.mxu0
  %v7547 = vadd.f32 %v7309, %v7546
  %v7548 = vpop.f32.mrf.mxu0
  %v7549 = vadd.f32 %v7309, %v7548
  %7550 = vmatmul.bf16.gmra.mxu0 %v7265
  %v7551 = vpop.f32.mrf.mxu0
  %v7552 = vadd.f32 %v7309, %v7551
  %v7553 = vpop.f32.mrf.mxu0
  %v7554 = vadd.f32 %v7309, %v7553
  %7555 = vmatmul.bf16.gmra.mxu0 %v7267
  %v7556 = vpop.f32.mrf.mxu0
  %v7557 = vadd.f32 %v7309, %v7556
  %v7558 = vpop.f32.mrf.mxu0
  %v7559 = vadd.f32 %v7309, %v7558
  %7560 = vmatmul.bf16.gmra.mxu0 %v7269
  %v7561 = vpop.f32.mrf.mxu0
  %v7562 = vadd.f32 %v7309, %v7561
  %v7563 = vpop.f32.mrf.mxu0
  %v7564 = vadd.f32 %v7309, %v7563
  %7565 = vmatmul.bf16.gmra.mxu0 %v7271
  %v7566 = vpop.f32.mrf.mxu0
  %v7567 = vadd.f32 %v7309, %v7566
  %v7568 = vpop.f32.mrf.mxu0
  %v7569 = vadd.f32 %v7309, %v7568
  %7570 = vmatmul.bf16.gmra.mxu0 %v7273
  %v7571 = vpop.f32.mrf.mxu0
  %v7572 = vadd.f32 %v7309, %v7571
  %v7573 = vpop.f32.mrf.mxu0
  %v7574 = vadd.f32 %v7309, %v7573
  %7575 = vdwg.mxu0
  %7576 = vmatpush.bf16.msra.mxu0 %v7390
  %7577 = vmatpush.bf16.msra.mxu0 %v7389
  %7578 = vmatpush.bf16.msra.mxu0 %v7388
  %7579 = vmatpush.bf16.msra.mxu0 %v7387
  %7580 = vmatpush.bf16.msra.mxu0 %v7386
  %7581 = vmatpush.bf16.msra.mxu0 %v7385
  %7582 = vmatpush.bf16.msra.mxu0 %v7384
  %7583 = vmatpush.bf16.msra.mxu0 %v7383
  %7584 = vmatmul.bf16.gmra.mxu0 %v7212
  %v7585 = vpop.f32.mrf.mxu0
  %v7586 = vadd.f32 %v7417, %v7585
  %v7587 = vpop.f32.mrf.mxu0
  %v7588 = vadd.f32 %v7419, %v7587
  %7589 = vmatmul.bf16.gmra.mxu0 %v7214
  %v7590 = vpop.f32.mrf.mxu0
  %v7591 = vadd.f32 %v7422, %v7590
  %v7592 = vpop.f32.mrf.mxu0
  %v7593 = vadd.f32 %v7424, %v7592
  %7594 = vmatmul.bf16.gmra.mxu0 %v7216
  %v7595 = vpop.f32.mrf.mxu0
  %v7596 = vadd.f32 %v7427, %v7595
  %v7597 = vpop.f32.mrf.mxu0
  %v7598 = vadd.f32 %v7429, %v7597
  %7599 = vmatmul.bf16.gmra.mxu0 %v7218
  %v7600 = vpop.f32.mrf.mxu0
  %v7601 = vadd.f32 %v7432, %v7600
  %v7602 = vpop.f32.mrf.mxu0
  %v7603 = vadd.f32 %v7434, %v7602
  %7604 = vmatmul.bf16.gmra.mxu0 %v7220
  %v7605 = vpop.f32.mrf.mxu0
  %v7606 = vadd.f32 %v7437, %v7605
  %v7607 = vpop.f32.mrf.mxu0
  %v7608 = vadd.f32 %v7439, %v7607
  %7609 = vmatmul.bf16.gmra.mxu0 %v7222
  %v7610 = vpop.f32.mrf.mxu0
  %v7611 = vadd.f32 %v7442, %v7610
  %v7612 = vpop.f32.mrf.mxu0
  %v7613 = vadd.f32 %v7444, %v7612
  %7614 = vmatmul.bf16.gmra.mxu0 %v7224
  %v7615 = vpop.f32.mrf.mxu0
  %v7616 = vadd.f32 %v7447, %v7615
  %v7617 = vpop.f32.mrf.mxu0
  %v7618 = vadd.f32 %v7449, %v7617
  %7619 = vmatmul.bf16.gmra.mxu0 %v7226
  %v7620 = vpop.f32.mrf.mxu0
  %v7621 = vadd.f32 %v7452, %v7620
  %v7622 = vpop.f32.mrf.mxu0
  %v7623 = vadd.f32 %v7454, %v7622
  %7624 = vmatmul.bf16.gmra.mxu0 %v7228
  %v7625 = vpop.f32.mrf.mxu0
  %v7626 = vadd.f32 %v7457, %v7625
  %v7627 = vpop.f32.mrf.mxu0
  %v7628 = vadd.f32 %v7459, %v7627
  %7629 = vmatmul.bf16.gmra.mxu0 %v7230
  %v7630 = vpop.f32.mrf.mxu0
  %v7631 = vadd.f32 %v7462, %v7630
  %v7632 = vpop.f32.mrf.mxu0
  %v7633 = vadd.f32 %v7464, %v7632
  %7634 = vmatmul.bf16.gmra.mxu0 %v7232
  %v7635 = vpop.f32.mrf.mxu0
  %v7636 = vadd.f32 %v7467, %v7635
  %v7637 = vpop.f32.mrf.mxu0
  %v7638 = vadd.f32 %v7469, %v7637
  %7639 = vmatmul.bf16.gmra.mxu0 %v7234
  %v7640 = vpop.f32.mrf.mxu0
  %v7641 = vadd.f32 %v7472, %v7640
  %v7642 = vpop.f32.mrf.mxu0
  %v7643 = vadd.f32 %v7474, %v7642
  %7644 = vmatmul.bf16.gmra.mxu0 %v7236
  %v7645 = vpop.f32.mrf.mxu0
  %v7646 = vadd.f32 %v7477, %v7645
  %v7647 = vpop.f32.mrf.mxu0
  %v7648 = vadd.f32 %v7479, %v7647
  %7649 = vmatmul.bf16.gmra.mxu0 %v7238
  %v7650 = vpop.f32.mrf.mxu0
  %v7651 = vadd.f32 %v7482, %v7650
  %v7652 = vpop.f32.mrf.mxu0
  %v7653 = vadd.f32 %v7484, %v7652
  %7654 = vmatmul.bf16.gmra.mxu0 %v7240
  %v7655 = vpop.f32.mrf.mxu0
  %v7656 = vadd.f32 %v7487, %v7655
  %v7657 = vpop.f32.mrf.mxu0
  %v7658 = vadd.f32 %v7489, %v7657
  %7659 = vmatmul.bf16.gmra.mxu0 %v7242
  %v7660 = vpop.f32.mrf.mxu0
  %v7661 = vadd.f32 %v7492, %v7660
  %v7662 = vpop.f32.mrf.mxu0
  %v7663 = vadd.f32 %v7494, %v7662
  %7664 = vmatmul.bf16.gmra.mxu0 %v7244
  %v7665 = vpop.f32.mrf.mxu0
  %v7666 = vadd.f32 %v7497, %v7665
  %v7667 = vpop.f32.mrf.mxu0
  %v7668 = vadd.f32 %v7499, %v7667
  %7669 = vmatmul.bf16.gmra.mxu0 %v7246
  %v7670 = vpop.f32.mrf.mxu0
  %v7671 = vadd.f32 %v7502, %v7670
  %v7672 = vpop.f32.mrf.mxu0
  %v7673 = vadd.f32 %v7504, %v7672
  %7674 = vmatmul.bf16.gmra.mxu0 %v7248
  %v7675 = vpop.f32.mrf.mxu0
  %v7676 = vadd.f32 %v7507, %v7675
  %v7677 = vpop.f32.mrf.mxu0
  %v7678 = vadd.f32 %v7509, %v7677
  %7679 = vmatmul.bf16.gmra.mxu0 %v7250
  %v7680 = vpop.f32.mrf.mxu0
  %v7681 = vadd.f32 %v7512, %v7680
  %v7682 = vpop.f32.mrf.mxu0
  %v7683 = vadd.f32 %v7514, %v7682
  %7684 = vmatmul.bf16.gmra.mxu0 %v7252
  %v7685 = vpop.f32.mrf.mxu0
  %v7686 = vadd.f32 %v7517, %v7685
  %v7687 = vpop.f32.mrf.mxu0
  %v7688 = vadd.f32 %v7519, %v7687
  %7689 = vmatmul.bf16.gmra.mxu0 %v7254
  %v7690 = vpop.f32.mrf.mxu0
  %v7691 = vadd.f32 %v7522, %v7690
  %v7692 = vpop.f32.mrf.mxu0
  %v7693 = vadd.f32 %v7524, %v7692
  %7694 = vmatmul.bf16.gmra.mxu0 %v7256
  %v7695 = vpop.f32.mrf.mxu0
  %v7696 = vadd.f32 %v7527, %v7695
  %v7697 = vpop.f32.mrf.mxu0
  %v7698 = vadd.f32 %v7529, %v7697
  %7699 = vmatmul.bf16.gmra.mxu0 %v7258
  %v7700 = vpop.f32.mrf.mxu0
  %v7701 = vadd.f32 %v7532, %v7700
  %v7702 = vpop.f32.mrf.mxu0
  %v7703 = vadd.f32 %v7534, %v7702
  %7704 = vmatmul.bf16.gmra.mxu0 %v7260
  %v7705 = vpop.f32.mrf.mxu0
  %v7706 = vadd.f32 %v7537, %v7705
  %v7707 = vpop.f32.mrf.mxu0
  %v7708 = vadd.f32 %v7539, %v7707
  %7709 = vmatmul.bf16.gmra.mxu0 %v7262
  %v7710 = vpop.f32.mrf.mxu0
  %v7711 = vadd.f32 %v7542, %v7710
  %v7712 = vpop.f32.mrf.mxu0
  %v7713 = vadd.f32 %v7544, %v7712
  %7714 = vmatmul.bf16.gmra.mxu0 %v7264
  %v7715 = vpop.f32.mrf.mxu0
  %v7716 = vadd.f32 %v7547, %v7715
  %v7717 = vpop.f32.mrf.mxu0
  %v7718 = vadd.f32 %v7549, %v7717
  %7719 = vmatmul.bf16.gmra.mxu0 %v7266
  %v7720 = vpop.f32.mrf.mxu0
  %v7721 = vadd.f32 %v7552, %v7720
  %v7722 = vpop.f32.mrf.mxu0
  %v7723 = vadd.f32 %v7554, %v7722
  %7724 = vmatmul.bf16.gmra.mxu0 %v7268
  %v7725 = vpop.f32.mrf.mxu0
  %v7726 = vadd.f32 %v7557, %v7725
  %v7727 = vpop.f32.mrf.mxu0
  %v7728 = vadd.f32 %v7559, %v7727
  %7729 = vmatmul.bf16.gmra.mxu0 %v7270
  %v7730 = vpop.f32.mrf.mxu0
  %v7731 = vadd.f32 %v7562, %v7730
  %v7732 = vpop.f32.mrf.mxu0
  %v7733 = vadd.f32 %v7564, %v7732
  %7734 = vmatmul.bf16.gmra.mxu0 %v7272
  %v7735 = vpop.f32.mrf.mxu0
  %v7736 = vadd.f32 %v7567, %v7735
  %v7737 = vpop.f32.mrf.mxu0
  %v7738 = vadd.f32 %v7569, %v7737
  %7739 = vmatmul.bf16.gmra.mxu0 %v7274
  %v7740 = vpop.f32.mrf.mxu0
  %v7741 = vadd.f32 %v7572, %v7740
  %v7742 = vpop.f32.mrf.mxu0
  %v7743 = vadd.f32 %v7574, %v7742
  %7744 = vdwg.mxu0
  %v7745 = vpack.c.bf16 %v7586, %v7586
  %v7746 = vpack.c.bf16 %v7588, %v7588
  %v7747 = vpack.c.bf16 %v7591, %v7591
  %v7748 = vpack.c.bf16 %v7593, %v7593
  %v7749 = vpack.c.bf16 %v7596, %v7596
  %v7750 = vpack.c.bf16 %v7598, %v7598
  %v7751 = vpack.c.bf16 %v7601, %v7601
  %v7752 = vpack.c.bf16 %v7603, %v7603
  %v7753 = vpack.c.bf16 %v7606, %v7606
  %v7754 = vpack.c.bf16 %v7608, %v7608
  %v7755 = vpack.c.bf16 %v7611, %v7611
  %v7756 = vpack.c.bf16 %v7613, %v7613
  %v7757 = vpack.c.bf16 %v7616, %v7616
  %v7758 = vpack.c.bf16 %v7618, %v7618
  %v7759 = vpack.c.bf16 %v7621, %v7621
  %v7760 = vpack.c.bf16 %v7623, %v7623
  %v7761 = vpack.c.bf16 %v7626, %v7626
  %v7762 = vpack.c.bf16 %v7628, %v7628
  %v7763 = vpack.c.bf16 %v7631, %v7631
  %v7764 = vpack.c.bf16 %v7633, %v7633
  %v7765 = vpack.c.bf16 %v7636, %v7636
  %v7766 = vpack.c.bf16 %v7638, %v7638
  %v7767 = vpack.c.bf16 %v7641, %v7641
  %v7768 = vpack.c.bf16 %v7643, %v7643
  %v7769 = vpack.c.bf16 %v7646, %v7646
  %v7770 = vpack.c.bf16 %v7648, %v7648
  %v7771 = vpack.c.bf16 %v7651, %v7651
  %v7772 = vpack.c.bf16 %v7653, %v7653
  %v7773 = vpack.c.bf16 %v7656, %v7656
  %v7774 = vpack.c.bf16 %v7658, %v7658
  %v7775 = vpack.c.bf16 %v7661, %v7661
  %v7776 = vpack.c.bf16 %v7663, %v7663
  %v7777 = vpack.c.bf16 %v7666, %v7666
  %v7778 = vpack.c.bf16 %v7668, %v7668
  %v7779 = vpack.c.bf16 %v7671, %v7671
  %v7780 = vpack.c.bf16 %v7673, %v7673
  %v7781 = vpack.c.bf16 %v7676, %v7676
  %v7782 = vpack.c.bf16 %v7678, %v7678
  %v7783 = vpack.c.bf16 %v7681, %v7681
  %v7784 = vpack.c.bf16 %v7683, %v7683
  %v7785 = vpack.c.bf16 %v7686, %v7686
  %v7786 = vpack.c.bf16 %v7688, %v7688
  %v7787 = vpack.c.bf16 %v7691, %v7691
  %v7788 = vpack.c.bf16 %v7693, %v7693
  %v7789 = vpack.c.bf16 %v7696, %v7696
  %v7790 = vpack.c.bf16 %v7698, %v7698
  %v7791 = vpack.c.bf16 %v7701, %v7701
  %v7792 = vpack.c.bf16 %v7703, %v7703
  %v7793 = vpack.c.bf16 %v7706, %v7706
  %v7794 = vpack.c.bf16 %v7708, %v7708
  %v7795 = vpack.c.bf16 %v7711, %v7711
  %v7796 = vpack.c.bf16 %v7713, %v7713
  %v7797 = vpack.c.bf16 %v7716, %v7716
  %v7798 = vpack.c.bf16 %v7718, %v7718
  %v7799 = vpack.c.bf16 %v7721, %v7721
  %v7800 = vpack.c.bf16 %v7723, %v7723
  %v7801 = vpack.c.bf16 %v7726, %v7726
  %v7802 = vpack.c.bf16 %v7728, %v7728
  %v7803 = vpack.c.bf16 %v7731, %v7731
  %v7804 = vpack.c.bf16 %v7733, %v7733
  %v7805 = vpack.c.bf16 %v7736, %v7736
  %v7806 = vpack.c.bf16 %v7738, %v7738
  %v7807 = vpack.c.bf16 %v7741, %v7741
  %v7808 = vpack.c.bf16 %v7743, %v7743
  %7809 = vst [vmem:[%s22] sm:$0xf] %v7745
  %7810 = vst [vmem:[%s22 + $0x4] sm:$0xf] %v7746
  %7811 = vst [vmem:[%s22 + $0x8] sm:$0xf] %v7747
  %7812 = vst [vmem:[%s22 + $0xc] sm:$0xf] %v7748
  %7813 = vst [vmem:[%s22 + $0x10] sm:$0xf] %v7749
  %7814 = vst [vmem:[%s22 + $0x14] sm:$0xf] %v7750
  %7815 = vst [vmem:[%s22 + $0x18] sm:$0xf] %v7751
  %7816 = vst [vmem:[%s22 + $0x1c] sm:$0xf] %v7752
  %7817 = vst [vmem:[%s22 + $0x20] sm:$0xf] %v7753
  %7818 = vst [vmem:[%s22 + $0x24] sm:$0xf] %v7754
  %7819 = vst [vmem:[%s22 + $0x28] sm:$0xf] %v7755
  %7820 = vst [vmem:[%s22 + $0x2c] sm:$0xf] %v7756
  %7821 = vst [vmem:[%s22 + $0x30] sm:$0xf] %v7757
  %7822 = vst [vmem:[%s22 + $0x34] sm:$0xf] %v7758
  %7823 = vst [vmem:[%s22 + $0x38] sm:$0xf] %v7759
  %7824 = vst [vmem:[%s22 + $0x3c] sm:$0xf] %v7760
  %7825 = vst [vmem:[%s22 + $0x40] sm:$0xf] %v7761
  %7826 = vst [vmem:[%s22 + $0x44] sm:$0xf] %v7762
  %7827 = vst [vmem:[%s22 + $0x48] sm:$0xf] %v7763
  %7828 = vst [vmem:[%s22 + $0x4c] sm:$0xf] %v7764
  %7829 = vst [vmem:[%s22 + $0x50] sm:$0xf] %v7765
  %7830 = vst [vmem:[%s22 + $0x54] sm:$0xf] %v7766
  %7831 = vst [vmem:[%s22 + $0x58] sm:$0xf] %v7767
  %7832 = vst [vmem:[%s22 + $0x5c] sm:$0xf] %v7768
  %7833 = vst [vmem:[%s22 + $0x60] sm:$0xf] %v7769
  %7834 = vst [vmem:[%s22 + $0x64] sm:$0xf] %v7770
  %7835 = vst [vmem:[%s22 + $0x68] sm:$0xf] %v7771
  %7836 = vst [vmem:[%s22 + $0x6c] sm:$0xf] %v7772
  %7837 = vst [vmem:[%s22 + $0x70] sm:$0xf] %v7773
  %7838 = vst [vmem:[%s22 + $0x74] sm:$0xf] %v7774
  %7839 = vst [vmem:[%s22 + $0x78] sm:$0xf] %v7775
  %7840 = vst [vmem:[%s22 + $0x7c] sm:$0xf] %v7776
  %7841 = vst [vmem:[%s22 + $0x80] sm:$0xf] %v7777
  %7842 = vst [vmem:[%s22 + $0x84] sm:$0xf] %v7778
  %7843 = vst [vmem:[%s22 + $0x88] sm:$0xf] %v7779
  %7844 = vst [vmem:[%s22 + $0x8c] sm:$0xf] %v7780
  %7845 = vst [vmem:[%s22 + $0x90] sm:$0xf] %v7781
  %7846 = vst [vmem:[%s22 + $0x94] sm:$0xf] %v7782
  %7847 = vst [vmem:[%s22 + $0x98] sm:$0xf] %v7783
  %7848 = vst [vmem:[%s22 + $0x9c] sm:$0xf] %v7784
  %7849 = vst [vmem:[%s22 + $0xa0] sm:$0xf] %v7785
  %7850 = vst [vmem:[%s22 + $0xa4] sm:$0xf] %v7786
  %7851 = vst [vmem:[%s22 + $0xa8] sm:$0xf] %v7787
  %7852 = vst [vmem:[%s22 + $0xac] sm:$0xf] %v7788
  %7853 = vst [vmem:[%s22 + $0xb0] sm:$0xf] %v7789
  %7854 = vst [vmem:[%s22 + $0xb4] sm:$0xf] %v7790
  %7855 = vst [vmem:[%s22 + $0xb8] sm:$0xf] %v7791
  %7856 = vst [vmem:[%s22 + $0xbc] sm:$0xf] %v7792
  %7857 = vst [vmem:[%s22 + $0xc0] sm:$0xf] %v7793
  %7858 = vst [vmem:[%s22 + $0xc4] sm:$0xf] %v7794
  %7859 = vst [vmem:[%s22 + $0xc8] sm:$0xf] %v7795
  %7860 = vst [vmem:[%s22 + $0xcc] sm:$0xf] %v7796
  %7861 = vst [vmem:[%s22 + $0xd0] sm:$0xf] %v7797
  %7862 = vst [vmem:[%s22 + $0xd4] sm:$0xf] %v7798
  %7863 = vst [vmem:[%s22 + $0xd8] sm:$0xf] %v7799
  %7864 = vst [vmem:[%s22 + $0xdc] sm:$0xf] %v7800
  %7865 = vst [vmem:[%s22 + $0xe0] sm:$0xf] %v7801
  %7866 = vst [vmem:[%s22 + $0xe4] sm:$0xf] %v7802
  %7867 = vst [vmem:[%s22 + $0xe8] sm:$0xf] %v7803
  %7868 = vst [vmem:[%s22 + $0xec] sm:$0xf] %v7804
  %7869 = vst [vmem:[%s22 + $0xf0] sm:$0xf] %v7805
  %7870 = vst [vmem:[%s22 + $0xf4] sm:$0xf] %v7806
  %7871 = vst [vmem:[%s22 + $0xf8] sm:$0xf] %v7807
  %7872 = vst [vmem:[%s22 + $0xfc] sm:$0xf] %v7808
  // Predicated region
  $region90: #{network_forward.1} parent=0 // pred_check
    _
  $region91: #{network_forward.1} parent=0 // pred_check_branch
    %7874 = sbr.rel (0) target = $region93
  $region92: #{network_forward.1} parent=0 // pred_region
    _
  $region93: #{network_forward.1} parent=0 // pred_fallthru
    _
  // Predicated region
  $region94: #{network_forward.1} parent=0 // pred_check
    _
  $region95: #{network_forward.1} parent=0 // pred_check_branch
    %7876 = sbr.rel (0) target = $region97
  $region96: #{network_forward.1} parent=0 // pred_region
    _
  $region97: #{network_forward.1} parent=0 // pred_fallthru
    _

</llo_original>
